<compile_context>
chip_gen: v7x
topology: tpu7x:2x2x1
jax: 0.10.0
libtpu: 0.0.40
codegen_flags: <defaults>
</compile_context>

<pallas_src>
import functools
import math

import jax
import jax.numpy as jnp
from jax.experimental import pallas as pl
from jax.experimental.pallas import tpu as pltpu  # noqa: F401  (kept for clarity)

# ---------------- configuration ----------------
IMG_SIZE = 32
PATCH = 16
IN_CH = 3
EMBED_DIM = 64
DEPTH = 2
NUM_HEADS = 4
MLP_RATIO = 4
NUM_CLASSES = 11
RADAR_DIM = 6
RADAR_HIDDEN = 64
RADAR_PTS = 8
BATCH = 2
LN_EPS = 1e-6
HEAD_OUT_PAD = 128  # lane-dense packed head output: [cls(11) | box(4) | pad]


# ---------------- the fused Pallas kernel ----------------
def _rgvit_fused_kernel(
    patches_ref, pos_ref, radar_ref, pool_ref, attn_bias_ref, fus_bias_ref,
    patch_w_ref, patch_b_ref,
    ln1_g_ref, ln1_b_ref, qw_ref, qb_ref, kw_ref, kb_ref, vw_ref, vb_ref,
    pw_ref, pb_ref, ln2_g_ref, ln2_b_ref,
    fc1_w_ref, fc1_b_ref, fc2_w_ref, fc2_b_ref,
    rad_w1_ref, rad_b1_ref, rad_w2_ref, rad_b2_ref,
    fus_qw_ref, fus_qb_ref, fus_kw_ref, fus_kb_ref, fus_vw_ref, fus_vb_ref,
    head_w1_ref, head_b1_ref, head_w2_ref, head_b2_ref,
    out_ref,
    *, depth, num_heads):
    f32 = jnp.float32
    bf16 = jnp.bfloat16
    D = pos_ref.shape[-1]
    BN = pos_ref.shape[0]
    hd = qw_ref.shape[-1]

    def mmw(a, w_bf16):  # f32 activation @ bf16 weight, f32 accumulation
        return jnp.dot(a.astype(bf16), w_bf16, preferred_element_type=f32)

    def mm_nt(a, b):     # a @ b.T without materializing the transpose
        return jax.lax.dot_general(
            a.astype(bf16), b.astype(bf16),
            (((1,), (1,)), ((), ())), preferred_element_type=f32)

    def layer_norm(x, g, b):
        mu = jnp.mean(x, axis=-1, keepdims=True)
        var = jnp.mean(jnp.square(x - mu), axis=-1, keepdims=True)
        return (x - mu) * jax.lax.rsqrt(var + LN_EPS) * g + b

    def softmax(s):
        s = s - jnp.max(s, axis=-1, keepdims=True)
        e = jnp.exp(s)
        return e * pl.reciprocal(jnp.sum(e, axis=-1, keepdims=True), approx=True)

    # ---- patch embedding + positional embedding ----
    x = jnp.dot(patches_ref[...], patch_w_ref[...], preferred_element_type=f32)
    x = x + patch_b_ref[...] + pos_ref[...]

    # ---- transformer blocks (batch handled via block-diagonal attention bias) ----
    attn_bias = attn_bias_ref[...]
    attn_scale = 1.0 / math.sqrt(hd)
    for d in range(depth):
        xn = layer_norm(x, ln1_g_ref[d], ln1_b_ref[d])
        xnb = xn.astype(bf16)
        attn_out = jnp.zeros((BN, D), f32)
        for h in range(num_heads):
            i = d * num_heads + h
            q = jnp.dot(xnb, qw_ref[i], preferred_element_type=f32) + qb_ref[i]
            k = jnp.dot(xnb, kw_ref[i], preferred_element_type=f32) + kb_ref[i]
            v = jnp.dot(xnb, vw_ref[i], preferred_element_type=f32) + vb_ref[i]
            p = softmax(mm_nt(q, k) * attn_scale + attn_bias)
            o = jnp.dot(p.astype(bf16), v.astype(bf16), preferred_element_type=f32)
            attn_out = attn_out + jnp.dot(o.astype(bf16), pw_ref[i],
                                          preferred_element_type=f32)
        x = x + attn_out + pb_ref[d]

        xn2 = layer_norm(x, ln2_g_ref[d], ln2_b_ref[d])
        h1 = mmw(xn2, fc1_w_ref[d]) + fc1_b_ref[d]
        h1 = 0.5 * h1 * (1.0 + jax.lax.erf(h1 * (1.0 / math.sqrt(2.0))))  # exact GELU
        x = x + mmw(h1, fc2_w_ref[d]) + fc2_b_ref[d]

    # ---- radar encoder ----
    rad = jnp.maximum(
        jnp.dot(radar_ref[...], rad_w1_ref[...], preferred_element_type=f32)
        + rad_b1_ref[...], 0.0)
    rad = jnp.maximum(mmw(rad, rad_w2_ref[...]) + rad_b2_ref[...], 0.0)

    # ---- cross-attention fusion ----
    Q = mmw(x, fus_qw_ref[...]) + fus_qb_ref[...]
    K = mmw(rad, fus_kw_ref[...]) + fus_kb_ref[...]
    V = mmw(rad, fus_vw_ref[...]) + fus_vb_ref[...]
    p = softmax(mm_nt(Q, K) * (1.0 / math.sqrt(D)) + fus_bias_ref[...])
    fused = x + jnp.dot(p.astype(bf16), V.astype(bf16), preferred_element_type=f32)

    # ---- per-batch mean pool (as a matmul) + fused detection head ----
    pooled = jnp.dot(pool_ref[...], fused.astype(bf16), preferred_element_type=f32)
    hh = jnp.maximum(mmw(pooled, head_w1_ref[...]) + head_b1_ref[...], 0.0)
    out_ref[...] = mmw(hh, head_w2_ref[...]) + head_b2_ref[...]


# ---------------- wrapper (weight packing + one pallas_call) ----------------
def _patchify(image):
    # NCHW -> (B*Np, C*P*P), flatten order (c, ph, pw) to match Conv2d weights
    B = image.shape[0]
    hn = IMG_SIZE // PATCH
    x = image.reshape(B, IN_CH, hn, PATCH, hn, PATCH)
    x = x.transpose(0, 2, 4, 1, 3, 5)
    return x.reshape(B * hn * hn, IN_CH * PATCH * PATCH)


def _block_diag_bias(rows_per_b, cols_per_b, batch):
    ri = jnp.repeat(jnp.arange(batch), rows_per_b)
    ci = jnp.repeat(jnp.arange(batch), cols_per_b)
    same = ri[:, None] == ci[None, :]
    return jnp.where(same, 0.0, -1e9).astype(jnp.float32)


@jax.jit
def rgvit_forward(image, radar, p):
    f32, bf16 = jnp.float32, jnp.bfloat16
    B = image.shape[0]
    hn = IMG_SIZE // PATCH
    num_patches = hn * hn
    hd = EMBED_DIM // NUM_HEADS
    R = radar.shape[1]
    blocks = p["blocks"]

    # activations / constants prepared outside the kernel (plain XLA glue)
    patches = _patchify(image).astype(bf16)
    pos = jnp.tile(p["pos_embed"][0, 1:, :], (B, 1)).astype(f32)          # (B*N, D)
    radar_flat = radar.reshape(B * R, RADAR_DIM).astype(bf16)
    pool = (jnp.repeat(jnp.eye(B, dtype=f32), num_patches, axis=1)
            / num_patches).astype(bf16)                                   # (B, B*N)
    attn_bias = _block_diag_bias(num_patches, num_patches, B)             # (B*N, B*N)
    fus_bias = _block_diag_bias(num_patches, R, B)                        # (B*N, B*R)

    # per-head pre-split qkv / proj weights, stacked over (depth, head)
    qw, qb, kw, kb, vw, vb, pw = [], [], [], [], [], [], []
    for blk in blocks:
        for h in range(NUM_HEADS):
            for off, wl, bl in ((0, qw, qb), (EMBED_DIM, kw, kb),
                                (2 * EMBED_DIM, vw, vb)):
                sl = slice(off + h * hd, off + (h + 1) * hd)
                wl.append(blk["qkv_w"][:, sl])
                bl.append(blk["qkv_b"][:, sl])
            pw.append(blk["proj_w"][h * hd:(h + 1) * hd, :])
    qw = jnp.stack(qw).astype(bf16); qb = jnp.stack(qb)
    kw = jnp.stack(kw).astype(bf16); kb = jnp.stack(kb)
    vw = jnp.stack(vw).astype(bf16); vb = jnp.stack(vb)
    pw = jnp.stack(pw).astype(bf16)

    def stack(name, cast=False):
        s = jnp.stack([blk[name] for blk in blocks])
        return s.astype(bf16) if cast else s

    # fused, lane-dense detection head: hidden = [cls_hidden | reg_hidden],
    # second layer is block-diagonal into a (B, 128) slab [cls(11) | box(4) | pad]
    half = EMBED_DIM // 2
    head_w1 = jnp.concatenate([p["cls_w1"], p["reg_w1"]], axis=1).astype(bf16)
    head_b1 = jnp.concatenate([p["cls_b1"], p["reg_b1"]], axis=1)
    head_w2 = jnp.zeros((EMBED_DIM, HEAD_OUT_PAD), f32)
    head_w2 = head_w2.at[:half, :NUM_CLASSES].set(p["cls_w2"])
    head_w2 = head_w2.at[half:, NUM_CLASSES:NUM_CLASSES + 4].set(p["reg_w2"])
    head_w2 = head_w2.astype(bf16)
    head_b2 = jnp.zeros((1, HEAD_OUT_PAD), f32)
    head_b2 = head_b2.at[:, :NUM_CLASSES].set(p["cls_b2"])
    head_b2 = head_b2.at[:, NUM_CLASSES:NUM_CLASSES + 4].set(p["reg_b2"])

    operands = (
        patches, pos, radar_flat, pool, attn_bias, fus_bias,
        p["patch_w"].astype(bf16), p["patch_b"],
        stack("ln1_g"), stack("ln1_b"), qw, qb, kw, kb, vw, vb,
        pw, stack("proj_b"), stack("ln2_g"), stack("ln2_b"),
        stack("fc1_w", True), stack("fc1_b"), stack("fc2_w", True), stack("fc2_b"),
        p["rad_w1"].astype(bf16), p["rad_b1"],
        p["rad_w2"].astype(bf16), p["rad_b2"],
        p["fus_qw"].astype(bf16), p["fus_qb"],
        p["fus_kw"].astype(bf16), p["fus_kb"],
        p["fus_vw"].astype(bf16), p["fus_vb"],
        head_w1, head_b1, head_w2, head_b2,
    )

    out = pl.pallas_call(
        functools.partial(_rgvit_fused_kernel, depth=DEPTH, num_heads=NUM_HEADS),
        out_shape=jax.ShapeDtypeStruct((B, HEAD_OUT_PAD), f32),
    )(*operands)

    cls_logits = out[:, :NUM_CLASSES]
    box_preds = out[:, NUM_CLASSES:NUM_CLASSES + 4]
    return cls_logits, box_preds


# ---------------- pure-JAX reference (sanity check) ----------------
def reference_forward(image, radar, p):
    B = image.shape[0]
    hn = IMG_SIZE // PATCH
    num_patches = hn * hn
    hd = EMBED_DIM // NUM_HEADS

    def ln(x, g, b):
        mu = x.mean(-1, keepdims=True)
        var = ((x - mu) ** 2).mean(-1, keepdims=True)
        return (x - mu) / jnp.sqrt(var + LN_EPS) * g + b

    tok = _patchify(image) @ p["patch_w"] + p["patch_b"]
    tok = tok.reshape(B, num_patches, EMBED_DIM) + p["pos_embed"][:, 1:, :]

    for blk in p["blocks"]:
        xn = ln(tok, blk["ln1_g"], blk["ln1_b"])
        qkv = xn @ blk["qkv_w"] + blk["qkv_b"]
        q, k, v = jnp.split(qkv, 3, axis=-1)
        q = q.reshape(B, num_patches, NUM_HEADS, hd).transpose(0, 2, 1, 3)
        k = k.reshape(B, num_patches, NUM_HEADS, hd).transpose(0, 2, 1, 3)
        v = v.reshape(B, num_patches, NUM_HEADS, hd).transpose(0, 2, 1, 3)
        a = jax.nn.softmax((q @ k.transpose(0, 1, 3, 2)) / math.sqrt(hd), axis=-1)
        o = (a @ v).transpose(0, 2, 1, 3).reshape(B, num_patches, EMBED_DIM)
        tok = tok + o @ blk["proj_w"] + blk["proj_b"]
        xn2 = ln(tok, blk["ln2_g"], blk["ln2_b"])
        h = jax.nn.gelu(xn2 @ blk["fc1_w"] + blk["fc1_b"], approximate=False)
        tok = tok + h @ blk["fc2_w"] + blk["fc2_b"]

    rad = jnp.maximum(radar @ p["rad_w1"] + p["rad_b1"], 0.0)
    rad = jnp.maximum(rad @ p["rad_w2"] + p["rad_b2"], 0.0)

    Q = tok @ p["fus_qw"] + p["fus_qb"]
    K = rad @ p["fus_kw"] + p["fus_kb"]
    V = rad @ p["fus_vw"] + p["fus_vb"]
    a = jax.nn.softmax(Q @ K.transpose(0, 2, 1) / math.sqrt(EMBED_DIM), axis=-1)
    fused = tok + a @ V

    pooled = fused.mean(axis=1)
    cls = jnp.maximum(pooled @ p["cls_w1"] + p["cls_b1"], 0.0) @ p["cls_w2"] + p["cls_b2"]
    box = jnp.maximum(pooled @ p["reg_w1"] + p["reg_b1"], 0.0) @ p["reg_w2"] + p["reg_b2"]
    return cls, box


# ---------------- deterministic parameter init ----------------
def init_params(key):
    keys = iter(jax.random.split(key, 128))

    def w(shape, scale=0.02):
        return scale * jax.random.normal(next(keys), shape, jnp.float32)

    hn = IMG_SIZE // PATCH
    num_patches = hn * hn
    hidden = EMBED_DIM * MLP_RATIO
    half = EMBED_DIM // 2
    p = {
        "patch_w": w((IN_CH * PATCH * PATCH, EMBED_DIM)),
        "patch_b": w((1, EMBED_DIM)),
        "pos_embed": w((1, num_patches + 1, EMBED_DIM)),
        "rad_w1": w((RADAR_DIM, RADAR_HIDDEN)), "rad_b1": w((1, RADAR_HIDDEN)),
        "rad_w2": w((RADAR_HIDDEN, EMBED_DIM)), "rad_b2": w((1, EMBED_DIM)),
        "fus_qw": w((EMBED_DIM, EMBED_DIM)), "fus_qb": w((1, EMBED_DIM)),
        "fus_kw": w((EMBED_DIM, EMBED_DIM)), "fus_kb": w((1, EMBED_DIM)),
        "fus_vw": w((EMBED_DIM, EMBED_DIM)), "fus_vb": w((1, EMBED_DIM)),
        "cls_w1": w((EMBED_DIM, half)), "cls_b1": w((1, half)),
        "cls_w2": w((half, NUM_CLASSES)), "cls_b2": w((1, NUM_CLASSES)),
        "reg_w1": w((EMBED_DIM, half)), "reg_b1": w((1, half)),
        "reg_w2": w((half, 4)), "reg_b2": w((1, 4)),
    }
    blocks = []
    for _ in range(DEPTH):
        blocks.append({
            "ln1_g": jnp.ones((1, EMBED_DIM), jnp.float32),
            "ln1_b": w((1, EMBED_DIM)),
            "qkv_w": w((EMBED_DIM, 3 * EMBED_DIM)),
            "qkv_b": w((1, 3 * EMBED_DIM)),
            "proj_w": w((EMBED_DIM, EMBED_DIM)),
            "proj_b": w((1, EMBED_DIM)),
            "ln2_g": jnp.ones((1, EMBED_DIM), jnp.float32),
            "ln2_b": w((1, EMBED_DIM)),
            "fc1_w": w((EMBED_DIM, hidden)),
            "fc1_b": w((1, hidden)),
            "fc2_w": w((hidden, EMBED_DIM)),
            "fc2_b": w((1, EMBED_DIM)),
        })
    p["blocks"] = blocks
    return p


# ---------------- main ----------------
if __name__ == "__main__":
    key = jax.random.PRNGKey(0)
    k_img, k_rad, k_par = jax.random.split(key, 3)

    image = jax.random.normal(k_img, (BATCH, IN_CH, IMG_SIZE, IMG_SIZE), jnp.float32)
    radar = jax.random.normal(k_rad, (BATCH, RADAR_PTS, RADAR_DIM), jnp.float32)
    params = init_params(k_par)

    cls_logits, box_preds = jax.block_until_ready(rgvit_forward(image, radar, params))

    # sanity check against a pure-JAX reference
    ref_cls, ref_box = jax.block_until_ready(reference_forward(image, radar, params))
    assert cls_logits.shape == (BATCH, NUM_CLASSES) and box_preds.shape == (BATCH, 4)
    assert bool(jnp.all(jnp.isfinite(cls_logits))) and bool(jnp.all(jnp.isfinite(box_preds)))
    max_diff = max(float(jnp.max(jnp.abs(cls_logits - ref_cls))),
                   float(jnp.max(jnp.abs(box_preds - ref_box))))
    assert max_diff < 5e-2, f"mismatch vs reference: {max_diff}"

    print("KERNEL_OK")
</pallas_src>

<mosaic_0001>
module attributes {stable_mosaic.version = 11 : i64} {
  func.func @_rgvit_fused_kernel(%arg0: memref<8x768xbf16, #tpu.memory_space<vmem>>, %arg1: memref<8x64xf32, #tpu.memory_space<vmem>>, %arg2: memref<16x6xbf16, #tpu.memory_space<vmem>>, %arg3: memref<2x8xbf16, #tpu.memory_space<vmem>>, %arg4: memref<8x8xf32, #tpu.memory_space<vmem>>, %arg5: memref<8x16xf32, #tpu.memory_space<vmem>>, %arg6: memref<768x64xbf16, #tpu.memory_space<vmem>>, %arg7: memref<1x64xf32, #tpu.memory_space<vmem>>, %arg8: memref<2x1x64xf32, #tpu.memory_space<vmem>>, %arg9: memref<2x1x64xf32, #tpu.memory_space<vmem>>, %arg10: memref<8x64x16xbf16, #tpu.memory_space<vmem>>, %arg11: memref<8x1x16xf32, #tpu.memory_space<vmem>>, %arg12: memref<8x64x16xbf16, #tpu.memory_space<vmem>>, %arg13: memref<8x1x16xf32, #tpu.memory_space<vmem>>, %arg14: memref<8x64x16xbf16, #tpu.memory_space<vmem>>, %arg15: memref<8x1x16xf32, #tpu.memory_space<vmem>>, %arg16: memref<8x16x64xbf16, #tpu.memory_space<vmem>>, %arg17: memref<2x1x64xf32, #tpu.memory_space<vmem>>, %arg18: memref<2x1x64xf32, #tpu.memory_space<vmem>>, %arg19: memref<2x1x64xf32, #tpu.memory_space<vmem>>, %arg20: memref<2x64x256xbf16, #tpu.memory_space<vmem>>, %arg21: memref<2x1x256xf32, #tpu.memory_space<vmem>>, %arg22: memref<2x256x64xbf16, #tpu.memory_space<vmem>>, %arg23: memref<2x1x64xf32, #tpu.memory_space<vmem>>, %arg24: memref<6x64xbf16, #tpu.memory_space<vmem>>, %arg25: memref<1x64xf32, #tpu.memory_space<vmem>>, %arg26: memref<64x64xbf16, #tpu.memory_space<vmem>>, %arg27: memref<1x64xf32, #tpu.memory_space<vmem>>, %arg28: memref<64x64xbf16, #tpu.memory_space<vmem>>, %arg29: memref<1x64xf32, #tpu.memory_space<vmem>>, %arg30: memref<64x64xbf16, #tpu.memory_space<vmem>>, %arg31: memref<1x64xf32, #tpu.memory_space<vmem>>, %arg32: memref<64x64xbf16, #tpu.memory_space<vmem>>, %arg33: memref<1x64xf32, #tpu.memory_space<vmem>>, %arg34: memref<64x64xbf16, #tpu.memory_space<vmem>>, %arg35: memref<1x64xf32, #tpu.memory_space<vmem>>, %arg36: memref<64x128xbf16, #tpu.memory_space<vmem>>, %arg37: memref<1x128xf32, #tpu.memory_space<vmem>>, %arg38: memref<2x128xf32, #tpu.memory_space<vmem>>) attributes {dimension_semantics = [], scalar_prefetch = 0 : i64, scratch_operands = 0 : i64, tpu.core_type = #tpu.core_type<tc>} {
    %c0 = arith.constant 0 : index
    %c0_0 = arith.constant 0 : index
    %0 = vector.load %arg0[%c0, %c0_0] : memref<8x768xbf16, #tpu.memory_space<vmem>>, vector<8x768xbf16>
    %c0_1 = arith.constant 0 : index
    %c0_2 = arith.constant 0 : index
    %1 = vector.load %arg6[%c0_1, %c0_2] : memref<768x64xbf16, #tpu.memory_space<vmem>>, vector<768x64xbf16>
    %cst = arith.constant dense<0.000000e+00> : vector<8x64xf32>
    %2 = tpu.matmul %0, %1, %cst {dimension_numbers = #tpu.dot_dimension_numbers<[1], [0], [0], [1], [0, 0, 1, 1], [], []>} : vector<8x768xbf16>, vector<768x64xbf16>, vector<8x64xf32> -> vector<8x64xf32>
    %c0_3 = arith.constant 0 : index
    %c0_4 = arith.constant 0 : index
    %3 = vector.load %arg7[%c0_3, %c0_4] : memref<1x64xf32, #tpu.memory_space<vmem>>, vector<1x64xf32>
    %4 = vector.broadcast %3 : vector<1x64xf32> to vector<8x64xf32>
    %5 = arith.addf %2, %4 : vector<8x64xf32>
    %c0_5 = arith.constant 0 : index
    %c0_6 = arith.constant 0 : index
    %6 = vector.load %arg1[%c0_5, %c0_6] : memref<8x64xf32, #tpu.memory_space<vmem>>, vector<8x64xf32>
    %7 = arith.addf %5, %6 : vector<8x64xf32>
    %c0_7 = arith.constant 0 : index
    %c0_8 = arith.constant 0 : index
    %8 = vector.load %arg4[%c0_7, %c0_8] : memref<8x8xf32, #tpu.memory_space<vmem>>, vector<8x8xf32>
    %c0_9 = arith.constant 0 : index
    %c0_10 = arith.constant 0 : index
    %c0_11 = arith.constant 0 : index
    %9 = vector.load %arg8[%c0_9, %c0_10, %c0_11] : memref<2x1x64xf32, #tpu.memory_space<vmem>>, vector<1x1x64xf32>
    %10 = vector.shape_cast %9 : vector<1x1x64xf32> to vector<1x64xf32>
    %c0_12 = arith.constant 0 : index
    %c0_13 = arith.constant 0 : index
    %c0_14 = arith.constant 0 : index
    %11 = vector.load %arg9[%c0_12, %c0_13, %c0_14] : memref<2x1x64xf32, #tpu.memory_space<vmem>>, vector<1x1x64xf32>
    %12 = vector.shape_cast %11 : vector<1x1x64xf32> to vector<1x64xf32>
    %cst_15 = arith.constant dense<0.000000e+00> : vector<8xf32>
    %13 = vector.multi_reduction <add>, %7, %cst_15 [1] : vector<8x64xf32> to vector<8xf32>
    %14 = vector.shape_cast %13 : vector<8xf32> to vector<8x1xf32>
    %cst_16 = arith.constant 6.400000e+01 : f32
    %15 = vector.broadcast %cst_16 : f32 to vector<8x1xf32>
    %16 = arith.divf %14, %15 : vector<8x1xf32>
    %17 = vector.broadcast %16 : vector<8x1xf32> to vector<8x64xf32>
    %18 = arith.subf %7, %17 : vector<8x64xf32>
    %19 = arith.mulf %18, %18 : vector<8x64xf32>
    %cst_17 = arith.constant dense<0.000000e+00> : vector<8xf32>
    %20 = vector.multi_reduction <add>, %19, %cst_17 [1] : vector<8x64xf32> to vector<8xf32>
    %21 = vector.shape_cast %20 : vector<8xf32> to vector<8x1xf32>
    %cst_18 = arith.constant 6.400000e+01 : f32
    %22 = vector.broadcast %cst_18 : f32 to vector<8x1xf32>
    %23 = arith.divf %21, %22 : vector<8x1xf32>
    %24 = vector.broadcast %16 : vector<8x1xf32> to vector<8x64xf32>
    %25 = arith.subf %7, %24 : vector<8x64xf32>
    %cst_19 = arith.constant 9.99999997E-7 : f32
    %26 = vector.broadcast %cst_19 : f32 to vector<8x1xf32>
    %27 = arith.addf %23, %26 : vector<8x1xf32>
    %28 = math.rsqrt %27 : vector<8x1xf32>
    %29 = vector.broadcast %28 : vector<8x1xf32> to vector<8x64xf32>
    %30 = arith.mulf %25, %29 : vector<8x64xf32>
    %31 = vector.broadcast %10 : vector<1x64xf32> to vector<8x64xf32>
    %32 = arith.mulf %30, %31 : vector<8x64xf32>
    %33 = vector.broadcast %12 : vector<1x64xf32> to vector<8x64xf32>
    %34 = arith.addf %32, %33 : vector<8x64xf32>
    %35 = arith.truncf %34 : vector<8x64xf32> to vector<8x64xbf16>
    %cst_20 = arith.constant 0.000000e+00 : f32
    %36 = vector.broadcast %cst_20 : f32 to vector<8x64xf32>
    %c0_21 = arith.constant 0 : index
    %c0_22 = arith.constant 0 : index
    %c0_23 = arith.constant 0 : index
    %37 = vector.load %arg10[%c0_21, %c0_22, %c0_23] : memref<8x64x16xbf16, #tpu.memory_space<vmem>>, vector<1x64x16xbf16>
    %38 = vector.shape_cast %37 : vector<1x64x16xbf16> to vector<64x16xbf16>
    %cst_24 = arith.constant dense<0.000000e+00> : vector<8x16xf32>
    %39 = tpu.matmul %35, %38, %cst_24 {dimension_numbers = #tpu.dot_dimension_numbers<[1], [0], [0], [1], [0, 0, 1, 1], [], []>} : vector<8x64xbf16>, vector<64x16xbf16>, vector<8x16xf32> -> vector<8x16xf32>
    %c0_25 = arith.constant 0 : index
    %c0_26 = arith.constant 0 : index
    %c0_27 = arith.constant 0 : index
    %40 = vector.load %arg11[%c0_25, %c0_26, %c0_27] : memref<8x1x16xf32, #tpu.memory_space<vmem>>, vector<1x1x16xf32>
    %41 = vector.shape_cast %40 : vector<1x1x16xf32> to vector<1x16xf32>
    %42 = vector.broadcast %41 : vector<1x16xf32> to vector<8x16xf32>
    %43 = arith.addf %39, %42 : vector<8x16xf32>
    %c0_28 = arith.constant 0 : index
    %c0_29 = arith.constant 0 : index
    %c0_30 = arith.constant 0 : index
    %44 = vector.load %arg12[%c0_28, %c0_29, %c0_30] : memref<8x64x16xbf16, #tpu.memory_space<vmem>>, vector<1x64x16xbf16>
    %45 = vector.shape_cast %44 : vector<1x64x16xbf16> to vector<64x16xbf16>
    %cst_31 = arith.constant dense<0.000000e+00> : vector<8x16xf32>
    %46 = tpu.matmul %35, %45, %cst_31 {dimension_numbers = #tpu.dot_dimension_numbers<[1], [0], [0], [1], [0, 0, 1, 1], [], []>} : vector<8x64xbf16>, vector<64x16xbf16>, vector<8x16xf32> -> vector<8x16xf32>
    %c0_32 = arith.constant 0 : index
    %c0_33 = arith.constant 0 : index
    %c0_34 = arith.constant 0 : index
    %47 = vector.load %arg13[%c0_32, %c0_33, %c0_34] : memref<8x1x16xf32, #tpu.memory_space<vmem>>, vector<1x1x16xf32>
    %48 = vector.shape_cast %47 : vector<1x1x16xf32> to vector<1x16xf32>
    %49 = vector.broadcast %48 : vector<1x16xf32> to vector<8x16xf32>
    %50 = arith.addf %46, %49 : vector<8x16xf32>
    %c0_35 = arith.constant 0 : index
    %c0_36 = arith.constant 0 : index
    %c0_37 = arith.constant 0 : index
    %51 = vector.load %arg14[%c0_35, %c0_36, %c0_37] : memref<8x64x16xbf16, #tpu.memory_space<vmem>>, vector<1x64x16xbf16>
    %52 = vector.shape_cast %51 : vector<1x64x16xbf16> to vector<64x16xbf16>
    %cst_38 = arith.constant dense<0.000000e+00> : vector<8x16xf32>
    %53 = tpu.matmul %35, %52, %cst_38 {dimension_numbers = #tpu.dot_dimension_numbers<[1], [0], [0], [1], [0, 0, 1, 1], [], []>} : vector<8x64xbf16>, vector<64x16xbf16>, vector<8x16xf32> -> vector<8x16xf32>
    %c0_39 = arith.constant 0 : index
    %c0_40 = arith.constant 0 : index
    %c0_41 = arith.constant 0 : index
    %54 = vector.load %arg15[%c0_39, %c0_40, %c0_41] : memref<8x1x16xf32, #tpu.memory_space<vmem>>, vector<1x1x16xf32>
    %55 = vector.shape_cast %54 : vector<1x1x16xf32> to vector<1x16xf32>
    %56 = vector.broadcast %55 : vector<1x16xf32> to vector<8x16xf32>
    %57 = arith.addf %53, %56 : vector<8x16xf32>
    %58 = arith.truncf %43 : vector<8x16xf32> to vector<8x16xbf16>
    %59 = arith.truncf %50 : vector<8x16xf32> to vector<8x16xbf16>
    %cst_42 = arith.constant dense<0.000000e+00> : vector<8x8xf32>
    %60 = tpu.matmul %58, %59, %cst_42 {dimension_numbers = #tpu.dot_dimension_numbers<[1], [1], [0], [0], [0, 0, 1, 0], [], []>} : vector<8x16xbf16>, vector<8x16xbf16>, vector<8x8xf32> -> vector<8x8xf32>
    %cst_43 = arith.constant 2.500000e-01 : f32
    %61 = vector.broadcast %cst_43 : f32 to vector<8x8xf32>
    %62 = arith.mulf %60, %61 : vector<8x8xf32>
    %63 = arith.addf %62, %8 : vector<8x8xf32>
    %cst_44 = arith.constant dense<0xFF800000> : vector<8xf32>
    %64 = vector.multi_reduction <maximumf>, %63, %cst_44 [1] : vector<8x8xf32> to vector<8xf32>
    %65 = vector.shape_cast %64 : vector<8xf32> to vector<8x1xf32>
    %66 = vector.broadcast %65 : vector<8x1xf32> to vector<8x8xf32>
    %67 = arith.subf %63, %66 : vector<8x8xf32>
    %68 = math.exp %67 : vector<8x8xf32>
    %cst_45 = arith.constant dense<0.000000e+00> : vector<8xf32>
    %69 = vector.multi_reduction <add>, %68, %cst_45 [1] : vector<8x8xf32> to vector<8xf32>
    %70 = vector.shape_cast %69 : vector<8xf32> to vector<8x1xf32>
    %71 = tpu.reciprocal %70 {approx = true} : vector<8x1xf32> -> vector<8x1xf32>
    %72 = vector.broadcast %71 : vector<8x1xf32> to vector<8x8xf32>
    %73 = arith.mulf %68, %72 : vector<8x8xf32>
    %74 = arith.truncf %73 : vector<8x8xf32> to vector<8x8xbf16>
    %75 = arith.truncf %57 : vector<8x16xf32> to vector<8x16xbf16>
    %cst_46 = arith.constant dense<0.000000e+00> : vector<8x16xf32>
    %76 = tpu.matmul %74, %75, %cst_46 {dimension_numbers = #tpu.dot_dimension_numbers<[1], [0], [0], [1], [0, 0, 1, 1], [], []>} : vector<8x8xbf16>, vector<8x16xbf16>, vector<8x16xf32> -> vector<8x16xf32>
    %77 = arith.truncf %76 : vector<8x16xf32> to vector<8x16xbf16>
    %c0_47 = arith.constant 0 : index
    %c0_48 = arith.constant 0 : index
    %c0_49 = arith.constant 0 : index
    %78 = vector.load %arg16[%c0_47, %c0_48, %c0_49] : memref<8x16x64xbf16, #tpu.memory_space<vmem>>, vector<1x16x64xbf16>
    %79 = vector.shape_cast %78 : vector<1x16x64xbf16> to vector<16x64xbf16>
    %cst_50 = arith.constant dense<0.000000e+00> : vector<8x64xf32>
    %80 = tpu.matmul %77, %79, %cst_50 {dimension_numbers = #tpu.dot_dimension_numbers<[1], [0], [0], [1], [0, 0, 1, 1], [], []>} : vector<8x16xbf16>, vector<16x64xbf16>, vector<8x64xf32> -> vector<8x64xf32>
    %81 = arith.addf %36, %80 : vector<8x64xf32>
    %c1 = arith.constant 1 : index
    %c0_51 = arith.constant 0 : index
    %c0_52 = arith.constant 0 : index
    %82 = vector.load %arg10[%c1, %c0_51, %c0_52] : memref<8x64x16xbf16, #tpu.memory_space<vmem>>, vector<1x64x16xbf16>
    %83 = vector.shape_cast %82 : vector<1x64x16xbf16> to vector<64x16xbf16>
    %cst_53 = arith.constant dense<0.000000e+00> : vector<8x16xf32>
    %84 = tpu.matmul %35, %83, %cst_53 {dimension_numbers = #tpu.dot_dimension_numbers<[1], [0], [0], [1], [0, 0, 1, 1], [], []>} : vector<8x64xbf16>, vector<64x16xbf16>, vector<8x16xf32> -> vector<8x16xf32>
    %c1_54 = arith.constant 1 : index
    %c0_55 = arith.constant 0 : index
    %c0_56 = arith.constant 0 : index
    %85 = vector.load %arg11[%c1_54, %c0_55, %c0_56] : memref<8x1x16xf32, #tpu.memory_space<vmem>>, vector<1x1x16xf32>
    %86 = vector.shape_cast %85 : vector<1x1x16xf32> to vector<1x16xf32>
    %87 = vector.broadcast %86 : vector<1x16xf32> to vector<8x16xf32>
    %88 = arith.addf %84, %87 : vector<8x16xf32>
    %c1_57 = arith.constant 1 : index
    %c0_58 = arith.constant 0 : index
    %c0_59 = arith.constant 0 : index
    %89 = vector.load %arg12[%c1_57, %c0_58, %c0_59] : memref<8x64x16xbf16, #tpu.memory_space<vmem>>, vector<1x64x16xbf16>
    %90 = vector.shape_cast %89 : vector<1x64x16xbf16> to vector<64x16xbf16>
    %cst_60 = arith.constant dense<0.000000e+00> : vector<8x16xf32>
    %91 = tpu.matmul %35, %90, %cst_60 {dimension_numbers = #tpu.dot_dimension_numbers<[1], [0], [0], [1], [0, 0, 1, 1], [], []>} : vector<8x64xbf16>, vector<64x16xbf16>, vector<8x16xf32> -> vector<8x16xf32>
    %c1_61 = arith.constant 1 : index
    %c0_62 = arith.constant 0 : index
    %c0_63 = arith.constant 0 : index
    %92 = vector.load %arg13[%c1_61, %c0_62, %c0_63] : memref<8x1x16xf32, #tpu.memory_space<vmem>>, vector<1x1x16xf32>
    %93 = vector.shape_cast %92 : vector<1x1x16xf32> to vector<1x16xf32>
    %94 = vector.broadcast %93 : vector<1x16xf32> to vector<8x16xf32>
    %95 = arith.addf %91, %94 : vector<8x16xf32>
    %c1_64 = arith.constant 1 : index
    %c0_65 = arith.constant 0 : index
    %c0_66 = arith.constant 0 : index
    %96 = vector.load %arg14[%c1_64, %c0_65, %c0_66] : memref<8x64x16xbf16, #tpu.memory_space<vmem>>, vector<1x64x16xbf16>
    %97 = vector.shape_cast %96 : vector<1x64x16xbf16> to vector<64x16xbf16>
    %cst_67 = arith.constant dense<0.000000e+00> : vector<8x16xf32>
    %98 = tpu.matmul %35, %97, %cst_67 {dimension_numbers = #tpu.dot_dimension_numbers<[1], [0], [0], [1], [0, 0, 1, 1], [], []>} : vector<8x64xbf16>, vector<64x16xbf16>, vector<8x16xf32> -> vector<8x16xf32>
    %c1_68 = arith.constant 1 : index
    %c0_69 = arith.constant 0 : index
    %c0_70 = arith.constant 0 : index
    %99 = vector.load %arg15[%c1_68, %c0_69, %c0_70] : memref<8x1x16xf32, #tpu.memory_space<vmem>>, vector<1x1x16xf32>
    %100 = vector.shape_cast %99 : vector<1x1x16xf32> to vector<1x16xf32>
    %101 = vector.broadcast %100 : vector<1x16xf32> to vector<8x16xf32>
    %102 = arith.addf %98, %101 : vector<8x16xf32>
    %103 = arith.truncf %88 : vector<8x16xf32> to vector<8x16xbf16>
    %104 = arith.truncf %95 : vector<8x16xf32> to vector<8x16xbf16>
    %cst_71 = arith.constant dense<0.000000e+00> : vector<8x8xf32>
    %105 = tpu.matmul %103, %104, %cst_71 {dimension_numbers = #tpu.dot_dimension_numbers<[1], [1], [0], [0], [0, 0, 1, 0], [], []>} : vector<8x16xbf16>, vector<8x16xbf16>, vector<8x8xf32> -> vector<8x8xf32>
    %cst_72 = arith.constant 2.500000e-01 : f32
    %106 = vector.broadcast %cst_72 : f32 to vector<8x8xf32>
    %107 = arith.mulf %105, %106 : vector<8x8xf32>
    %108 = arith.addf %107, %8 : vector<8x8xf32>
    %cst_73 = arith.constant dense<0xFF800000> : vector<8xf32>
    %109 = vector.multi_reduction <maximumf>, %108, %cst_73 [1] : vector<8x8xf32> to vector<8xf32>
    %110 = vector.shape_cast %109 : vector<8xf32> to vector<8x1xf32>
    %111 = vector.broadcast %110 : vector<8x1xf32> to vector<8x8xf32>
    %112 = arith.subf %108, %111 : vector<8x8xf32>
    %113 = math.exp %112 : vector<8x8xf32>
    %cst_74 = arith.constant dense<0.000000e+00> : vector<8xf32>
    %114 = vector.multi_reduction <add>, %113, %cst_74 [1] : vector<8x8xf32> to vector<8xf32>
    %115 = vector.shape_cast %114 : vector<8xf32> to vector<8x1xf32>
    %116 = tpu.reciprocal %115 {approx = true} : vector<8x1xf32> -> vector<8x1xf32>
    %117 = vector.broadcast %116 : vector<8x1xf32> to vector<8x8xf32>
    %118 = arith.mulf %113, %117 : vector<8x8xf32>
    %119 = arith.truncf %118 : vector<8x8xf32> to vector<8x8xbf16>
    %120 = arith.truncf %102 : vector<8x16xf32> to vector<8x16xbf16>
    %cst_75 = arith.constant dense<0.000000e+00> : vector<8x16xf32>
    %121 = tpu.matmul %119, %120, %cst_75 {dimension_numbers = #tpu.dot_dimension_numbers<[1], [0], [0], [1], [0, 0, 1, 1], [], []>} : vector<8x8xbf16>, vector<8x16xbf16>, vector<8x16xf32> -> vector<8x16xf32>
    %122 = arith.truncf %121 : vector<8x16xf32> to vector<8x16xbf16>
    %c1_76 = arith.constant 1 : index
    %c0_77 = arith.constant 0 : index
    %c0_78 = arith.constant 0 : index
    %123 = vector.load %arg16[%c1_76, %c0_77, %c0_78] : memref<8x16x64xbf16, #tpu.memory_space<vmem>>, vector<1x16x64xbf16>
    %124 = vector.shape_cast %123 : vector<1x16x64xbf16> to vector<16x64xbf16>
    %cst_79 = arith.constant dense<0.000000e+00> : vector<8x64xf32>
    %125 = tpu.matmul %122, %124, %cst_79 {dimension_numbers = #tpu.dot_dimension_numbers<[1], [0], [0], [1], [0, 0, 1, 1], [], []>} : vector<8x16xbf16>, vector<16x64xbf16>, vector<8x64xf32> -> vector<8x64xf32>
    %126 = arith.addf %81, %125 : vector<8x64xf32>
    %c2 = arith.constant 2 : index
    %c0_80 = arith.constant 0 : index
    %c0_81 = arith.constant 0 : index
    %127 = vector.load %arg10[%c2, %c0_80, %c0_81] : memref<8x64x16xbf16, #tpu.memory_space<vmem>>, vector<1x64x16xbf16>
    %128 = vector.shape_cast %127 : vector<1x64x16xbf16> to vector<64x16xbf16>
    %cst_82 = arith.constant dense<0.000000e+00> : vector<8x16xf32>
    %129 = tpu.matmul %35, %128, %cst_82 {dimension_numbers = #tpu.dot_dimension_numbers<[1], [0], [0], [1], [0, 0, 1, 1], [], []>} : vector<8x64xbf16>, vector<64x16xbf16>, vector<8x16xf32> -> vector<8x16xf32>
    %c2_83 = arith.constant 2 : index
    %c0_84 = arith.constant 0 : index
    %c0_85 = arith.constant 0 : index
    %130 = vector.load %arg11[%c2_83, %c0_84, %c0_85] : memref<8x1x16xf32, #tpu.memory_space<vmem>>, vector<1x1x16xf32>
    %131 = vector.shape_cast %130 : vector<1x1x16xf32> to vector<1x16xf32>
    %132 = vector.broadcast %131 : vector<1x16xf32> to vector<8x16xf32>
    %133 = arith.addf %129, %132 : vector<8x16xf32>
    %c2_86 = arith.constant 2 : index
    %c0_87 = arith.constant 0 : index
    %c0_88 = arith.constant 0 : index
    %134 = vector.load %arg12[%c2_86, %c0_87, %c0_88] : memref<8x64x16xbf16, #tpu.memory_space<vmem>>, vector<1x64x16xbf16>
    %135 = vector.shape_cast %134 : vector<1x64x16xbf16> to vector<64x16xbf16>
    %cst_89 = arith.constant dense<0.000000e+00> : vector<8x16xf32>
    %136 = tpu.matmul %35, %135, %cst_89 {dimension_numbers = #tpu.dot_dimension_numbers<[1], [0], [0], [1], [0, 0, 1, 1], [], []>} : vector<8x64xbf16>, vector<64x16xbf16>, vector<8x16xf32> -> vector<8x16xf32>
    %c2_90 = arith.constant 2 : index
    %c0_91 = arith.constant 0 : index
    %c0_92 = arith.constant 0 : index
    %137 = vector.load %arg13[%c2_90, %c0_91, %c0_92] : memref<8x1x16xf32, #tpu.memory_space<vmem>>, vector<1x1x16xf32>
    %138 = vector.shape_cast %137 : vector<1x1x16xf32> to vector<1x16xf32>
    %139 = vector.broadcast %138 : vector<1x16xf32> to vector<8x16xf32>
    %140 = arith.addf %136, %139 : vector<8x16xf32>
    %c2_93 = arith.constant 2 : index
    %c0_94 = arith.constant 0 : index
    %c0_95 = arith.constant 0 : index
    %141 = vector.load %arg14[%c2_93, %c0_94, %c0_95] : memref<8x64x16xbf16, #tpu.memory_space<vmem>>, vector<1x64x16xbf16>
    %142 = vector.shape_cast %141 : vector<1x64x16xbf16> to vector<64x16xbf16>
    %cst_96 = arith.constant dense<0.000000e+00> : vector<8x16xf32>
    %143 = tpu.matmul %35, %142, %cst_96 {dimension_numbers = #tpu.dot_dimension_numbers<[1], [0], [0], [1], [0, 0, 1, 1], [], []>} : vector<8x64xbf16>, vector<64x16xbf16>, vector<8x16xf32> -> vector<8x16xf32>
    %c2_97 = arith.constant 2 : index
    %c0_98 = arith.constant 0 : index
    %c0_99 = arith.constant 0 : index
    %144 = vector.load %arg15[%c2_97, %c0_98, %c0_99] : memref<8x1x16xf32, #tpu.memory_space<vmem>>, vector<1x1x16xf32>
    %145 = vector.shape_cast %144 : vector<1x1x16xf32> to vector<1x16xf32>
    %146 = vector.broadcast %145 : vector<1x16xf32> to vector<8x16xf32>
    %147 = arith.addf %143, %146 : vector<8x16xf32>
    %148 = arith.truncf %133 : vector<8x16xf32> to vector<8x16xbf16>
    %149 = arith.truncf %140 : vector<8x16xf32> to vector<8x16xbf16>
    %cst_100 = arith.constant dense<0.000000e+00> : vector<8x8xf32>
    %150 = tpu.matmul %148, %149, %cst_100 {dimension_numbers = #tpu.dot_dimension_numbers<[1], [1], [0], [0], [0, 0, 1, 0], [], []>} : vector<8x16xbf16>, vector<8x16xbf16>, vector<8x8xf32> -> vector<8x8xf32>
    %cst_101 = arith.constant 2.500000e-01 : f32
    %151 = vector.broadcast %cst_101 : f32 to vector<8x8xf32>
    %152 = arith.mulf %150, %151 : vector<8x8xf32>
    %153 = arith.addf %152, %8 : vector<8x8xf32>
    %cst_102 = arith.constant dense<0xFF800000> : vector<8xf32>
    %154 = vector.multi_reduction <maximumf>, %153, %cst_102 [1] : vector<8x8xf32> to vector<8xf32>
    %155 = vector.shape_cast %154 : vector<8xf32> to vector<8x1xf32>
    %156 = vector.broadcast %155 : vector<8x1xf32> to vector<8x8xf32>
    %157 = arith.subf %153, %156 : vector<8x8xf32>
    %158 = math.exp %157 : vector<8x8xf32>
    %cst_103 = arith.constant dense<0.000000e+00> : vector<8xf32>
    %159 = vector.multi_reduction <add>, %158, %cst_103 [1] : vector<8x8xf32> to vector<8xf32>
    %160 = vector.shape_cast %159 : vector<8xf32> to vector<8x1xf32>
    %161 = tpu.reciprocal %160 {approx = true} : vector<8x1xf32> -> vector<8x1xf32>
    %162 = vector.broadcast %161 : vector<8x1xf32> to vector<8x8xf32>
    %163 = arith.mulf %158, %162 : vector<8x8xf32>
    %164 = arith.truncf %163 : vector<8x8xf32> to vector<8x8xbf16>
    %165 = arith.truncf %147 : vector<8x16xf32> to vector<8x16xbf16>
    %cst_104 = arith.constant dense<0.000000e+00> : vector<8x16xf32>
    %166 = tpu.matmul %164, %165, %cst_104 {dimension_numbers = #tpu.dot_dimension_numbers<[1], [0], [0], [1], [0, 0, 1, 1], [], []>} : vector<8x8xbf16>, vector<8x16xbf16>, vector<8x16xf32> -> vector<8x16xf32>
    %167 = arith.truncf %166 : vector<8x16xf32> to vector<8x16xbf16>
    %c2_105 = arith.constant 2 : index
    %c0_106 = arith.constant 0 : index
    %c0_107 = arith.constant 0 : index
    %168 = vector.load %arg16[%c2_105, %c0_106, %c0_107] : memref<8x16x64xbf16, #tpu.memory_space<vmem>>, vector<1x16x64xbf16>
    %169 = vector.shape_cast %168 : vector<1x16x64xbf16> to vector<16x64xbf16>
    %cst_108 = arith.constant dense<0.000000e+00> : vector<8x64xf32>
    %170 = tpu.matmul %167, %169, %cst_108 {dimension_numbers = #tpu.dot_dimension_numbers<[1], [0], [0], [1], [0, 0, 1, 1], [], []>} : vector<8x16xbf16>, vector<16x64xbf16>, vector<8x64xf32> -> vector<8x64xf32>
    %171 = arith.addf %126, %170 : vector<8x64xf32>
    %c3 = arith.constant 3 : index
    %c0_109 = arith.constant 0 : index
    %c0_110 = arith.constant 0 : index
    %172 = vector.load %arg10[%c3, %c0_109, %c0_110] : memref<8x64x16xbf16, #tpu.memory_space<vmem>>, vector<1x64x16xbf16>
    %173 = vector.shape_cast %172 : vector<1x64x16xbf16> to vector<64x16xbf16>
    %cst_111 = arith.constant dense<0.000000e+00> : vector<8x16xf32>
    %174 = tpu.matmul %35, %173, %cst_111 {dimension_numbers = #tpu.dot_dimension_numbers<[1], [0], [0], [1], [0, 0, 1, 1], [], []>} : vector<8x64xbf16>, vector<64x16xbf16>, vector<8x16xf32> -> vector<8x16xf32>
    %c3_112 = arith.constant 3 : index
    %c0_113 = arith.constant 0 : index
    %c0_114 = arith.constant 0 : index
    %175 = vector.load %arg11[%c3_112, %c0_113, %c0_114] : memref<8x1x16xf32, #tpu.memory_space<vmem>>, vector<1x1x16xf32>
    %176 = vector.shape_cast %175 : vector<1x1x16xf32> to vector<1x16xf32>
    %177 = vector.broadcast %176 : vector<1x16xf32> to vector<8x16xf32>
    %178 = arith.addf %174, %177 : vector<8x16xf32>
    %c3_115 = arith.constant 3 : index
    %c0_116 = arith.constant 0 : index
    %c0_117 = arith.constant 0 : index
    %179 = vector.load %arg12[%c3_115, %c0_116, %c0_117] : memref<8x64x16xbf16, #tpu.memory_space<vmem>>, vector<1x64x16xbf16>
    %180 = vector.shape_cast %179 : vector<1x64x16xbf16> to vector<64x16xbf16>
    %cst_118 = arith.constant dense<0.000000e+00> : vector<8x16xf32>
    %181 = tpu.matmul %35, %180, %cst_118 {dimension_numbers = #tpu.dot_dimension_numbers<[1], [0], [0], [1], [0, 0, 1, 1], [], []>} : vector<8x64xbf16>, vector<64x16xbf16>, vector<8x16xf32> -> vector<8x16xf32>
    %c3_119 = arith.constant 3 : index
    %c0_120 = arith.constant 0 : index
    %c0_121 = arith.constant 0 : index
    %182 = vector.load %arg13[%c3_119, %c0_120, %c0_121] : memref<8x1x16xf32, #tpu.memory_space<vmem>>, vector<1x1x16xf32>
    %183 = vector.shape_cast %182 : vector<1x1x16xf32> to vector<1x16xf32>
    %184 = vector.broadcast %183 : vector<1x16xf32> to vector<8x16xf32>
    %185 = arith.addf %181, %184 : vector<8x16xf32>
    %c3_122 = arith.constant 3 : index
    %c0_123 = arith.constant 0 : index
    %c0_124 = arith.constant 0 : index
    %186 = vector.load %arg14[%c3_122, %c0_123, %c0_124] : memref<8x64x16xbf16, #tpu.memory_space<vmem>>, vector<1x64x16xbf16>
    %187 = vector.shape_cast %186 : vector<1x64x16xbf16> to vector<64x16xbf16>
    %cst_125 = arith.constant dense<0.000000e+00> : vector<8x16xf32>
    %188 = tpu.matmul %35, %187, %cst_125 {dimension_numbers = #tpu.dot_dimension_numbers<[1], [0], [0], [1], [0, 0, 1, 1], [], []>} : vector<8x64xbf16>, vector<64x16xbf16>, vector<8x16xf32> -> vector<8x16xf32>
    %c3_126 = arith.constant 3 : index
    %c0_127 = arith.constant 0 : index
    %c0_128 = arith.constant 0 : index
    %189 = vector.load %arg15[%c3_126, %c0_127, %c0_128] : memref<8x1x16xf32, #tpu.memory_space<vmem>>, vector<1x1x16xf32>
    %190 = vector.shape_cast %189 : vector<1x1x16xf32> to vector<1x16xf32>
    %191 = vector.broadcast %190 : vector<1x16xf32> to vector<8x16xf32>
    %192 = arith.addf %188, %191 : vector<8x16xf32>
    %193 = arith.truncf %178 : vector<8x16xf32> to vector<8x16xbf16>
    %194 = arith.truncf %185 : vector<8x16xf32> to vector<8x16xbf16>
    %cst_129 = arith.constant dense<0.000000e+00> : vector<8x8xf32>
    %195 = tpu.matmul %193, %194, %cst_129 {dimension_numbers = #tpu.dot_dimension_numbers<[1], [1], [0], [0], [0, 0, 1, 0], [], []>} : vector<8x16xbf16>, vector<8x16xbf16>, vector<8x8xf32> -> vector<8x8xf32>
    %cst_130 = arith.constant 2.500000e-01 : f32
    %196 = vector.broadcast %cst_130 : f32 to vector<8x8xf32>
    %197 = arith.mulf %195, %196 : vector<8x8xf32>
    %198 = arith.addf %197, %8 : vector<8x8xf32>
    %cst_131 = arith.constant dense<0xFF800000> : vector<8xf32>
    %199 = vector.multi_reduction <maximumf>, %198, %cst_131 [1] : vector<8x8xf32> to vector<8xf32>
    %200 = vector.shape_cast %199 : vector<8xf32> to vector<8x1xf32>
    %201 = vector.broadcast %200 : vector<8x1xf32> to vector<8x8xf32>
    %202 = arith.subf %198, %201 : vector<8x8xf32>
    %203 = math.exp %202 : vector<8x8xf32>
    %cst_132 = arith.constant dense<0.000000e+00> : vector<8xf32>
    %204 = vector.multi_reduction <add>, %203, %cst_132 [1] : vector<8x8xf32> to vector<8xf32>
    %205 = vector.shape_cast %204 : vector<8xf32> to vector<8x1xf32>
    %206 = tpu.reciprocal %205 {approx = true} : vector<8x1xf32> -> vector<8x1xf32>
    %207 = vector.broadcast %206 : vector<8x1xf32> to vector<8x8xf32>
    %208 = arith.mulf %203, %207 : vector<8x8xf32>
    %209 = arith.truncf %208 : vector<8x8xf32> to vector<8x8xbf16>
    %210 = arith.truncf %192 : vector<8x16xf32> to vector<8x16xbf16>
    %cst_133 = arith.constant dense<0.000000e+00> : vector<8x16xf32>
    %211 = tpu.matmul %209, %210, %cst_133 {dimension_numbers = #tpu.dot_dimension_numbers<[1], [0], [0], [1], [0, 0, 1, 1], [], []>} : vector<8x8xbf16>, vector<8x16xbf16>, vector<8x16xf32> -> vector<8x16xf32>
    %212 = arith.truncf %211 : vector<8x16xf32> to vector<8x16xbf16>
    %c3_134 = arith.constant 3 : index
    %c0_135 = arith.constant 0 : index
    %c0_136 = arith.constant 0 : index
    %213 = vector.load %arg16[%c3_134, %c0_135, %c0_136] : memref<8x16x64xbf16, #tpu.memory_space<vmem>>, vector<1x16x64xbf16>
    %214 = vector.shape_cast %213 : vector<1x16x64xbf16> to vector<16x64xbf16>
    %cst_137 = arith.constant dense<0.000000e+00> : vector<8x64xf32>
    %215 = tpu.matmul %212, %214, %cst_137 {dimension_numbers = #tpu.dot_dimension_numbers<[1], [0], [0], [1], [0, 0, 1, 1], [], []>} : vector<8x16xbf16>, vector<16x64xbf16>, vector<8x64xf32> -> vector<8x64xf32>
    %216 = arith.addf %171, %215 : vector<8x64xf32>
    %217 = arith.addf %7, %216 : vector<8x64xf32>
    %c0_138 = arith.constant 0 : index
    %c0_139 = arith.constant 0 : index
    %c0_140 = arith.constant 0 : index
    %218 = vector.load %arg17[%c0_138, %c0_139, %c0_140] : memref<2x1x64xf32, #tpu.memory_space<vmem>>, vector<1x1x64xf32>
    %219 = vector.shape_cast %218 : vector<1x1x64xf32> to vector<1x64xf32>
    %220 = vector.broadcast %219 : vector<1x64xf32> to vector<8x64xf32>
    %221 = arith.addf %217, %220 : vector<8x64xf32>
    %c0_141 = arith.constant 0 : index
    %c0_142 = arith.constant 0 : index
    %c0_143 = arith.constant 0 : index
    %222 = vector.load %arg18[%c0_141, %c0_142, %c0_143] : memref<2x1x64xf32, #tpu.memory_space<vmem>>, vector<1x1x64xf32>
    %223 = vector.shape_cast %222 : vector<1x1x64xf32> to vector<1x64xf32>
    %c0_144 = arith.constant 0 : index
    %c0_145 = arith.constant 0 : index
    %c0_146 = arith.constant 0 : index
    %224 = vector.load %arg19[%c0_144, %c0_145, %c0_146] : memref<2x1x64xf32, #tpu.memory_space<vmem>>, vector<1x1x64xf32>
    %225 = vector.shape_cast %224 : vector<1x1x64xf32> to vector<1x64xf32>
    %cst_147 = arith.constant dense<0.000000e+00> : vector<8xf32>
    %226 = vector.multi_reduction <add>, %221, %cst_147 [1] : vector<8x64xf32> to vector<8xf32>
    %227 = vector.shape_cast %226 : vector<8xf32> to vector<8x1xf32>
    %cst_148 = arith.constant 6.400000e+01 : f32
    %228 = vector.broadcast %cst_148 : f32 to vector<8x1xf32>
    %229 = arith.divf %227, %228 : vector<8x1xf32>
    %230 = vector.broadcast %229 : vector<8x1xf32> to vector<8x64xf32>
    %231 = arith.subf %221, %230 : vector<8x64xf32>
    %232 = arith.mulf %231, %231 : vector<8x64xf32>
    %cst_149 = arith.constant dense<0.000000e+00> : vector<8xf32>
    %233 = vector.multi_reduction <add>, %232, %cst_149 [1] : vector<8x64xf32> to vector<8xf32>
    %234 = vector.shape_cast %233 : vector<8xf32> to vector<8x1xf32>
    %cst_150 = arith.constant 6.400000e+01 : f32
    %235 = vector.broadcast %cst_150 : f32 to vector<8x1xf32>
    %236 = arith.divf %234, %235 : vector<8x1xf32>
    %237 = vector.broadcast %229 : vector<8x1xf32> to vector<8x64xf32>
    %238 = arith.subf %221, %237 : vector<8x64xf32>
    %cst_151 = arith.constant 9.99999997E-7 : f32
    %239 = vector.broadcast %cst_151 : f32 to vector<8x1xf32>
    %240 = arith.addf %236, %239 : vector<8x1xf32>
    %241 = math.rsqrt %240 : vector<8x1xf32>
    %242 = vector.broadcast %241 : vector<8x1xf32> to vector<8x64xf32>
    %243 = arith.mulf %238, %242 : vector<8x64xf32>
    %244 = vector.broadcast %223 : vector<1x64xf32> to vector<8x64xf32>
    %245 = arith.mulf %243, %244 : vector<8x64xf32>
    %246 = vector.broadcast %225 : vector<1x64xf32> to vector<8x64xf32>
    %247 = arith.addf %245, %246 : vector<8x64xf32>
    %c0_152 = arith.constant 0 : index
    %c0_153 = arith.constant 0 : index
    %c0_154 = arith.constant 0 : index
    %248 = vector.load %arg20[%c0_152, %c0_153, %c0_154] : memref<2x64x256xbf16, #tpu.memory_space<vmem>>, vector<1x64x256xbf16>
    %249 = vector.shape_cast %248 : vector<1x64x256xbf16> to vector<64x256xbf16>
    %250 = arith.truncf %247 : vector<8x64xf32> to vector<8x64xbf16>
    %cst_155 = arith.constant dense<0.000000e+00> : vector<8x256xf32>
    %251 = tpu.matmul %250, %249, %cst_155 {dimension_numbers = #tpu.dot_dimension_numbers<[1], [0], [0], [1], [0, 0, 1, 1], [], []>} : vector<8x64xbf16>, vector<64x256xbf16>, vector<8x256xf32> -> vector<8x256xf32>
    %c0_156 = arith.constant 0 : index
    %c0_157 = arith.constant 0 : index
    %c0_158 = arith.constant 0 : index
    %252 = vector.load %arg21[%c0_156, %c0_157, %c0_158] : memref<2x1x256xf32, #tpu.memory_space<vmem>>, vector<1x1x256xf32>
    %253 = vector.shape_cast %252 : vector<1x1x256xf32> to vector<1x256xf32>
    %254 = vector.broadcast %253 : vector<1x256xf32> to vector<8x256xf32>
    %255 = arith.addf %251, %254 : vector<8x256xf32>
    %cst_159 = arith.constant 5.000000e-01 : f32
    %256 = vector.broadcast %cst_159 : f32 to vector<8x256xf32>
    %257 = arith.mulf %256, %255 : vector<8x256xf32>
    %cst_160 = arith.constant 0.707106769 : f32
    %258 = vector.broadcast %cst_160 : f32 to vector<8x256xf32>
    %259 = arith.mulf %255, %258 : vector<8x256xf32>
    %260 = math.erf %259 : vector<8x256xf32>
    %cst_161 = arith.constant 1.000000e+00 : f32
    %261 = vector.broadcast %cst_161 : f32 to vector<8x256xf32>
    %262 = arith.addf %261, %260 : vector<8x256xf32>
    %263 = arith.mulf %257, %262 : vector<8x256xf32>
    %c0_162 = arith.constant 0 : index
    %c0_163 = arith.constant 0 : index
    %c0_164 = arith.constant 0 : index
    %264 = vector.load %arg22[%c0_162, %c0_163, %c0_164] : memref<2x256x64xbf16, #tpu.memory_space<vmem>>, vector<1x256x64xbf16>
    %265 = vector.shape_cast %264 : vector<1x256x64xbf16> to vector<256x64xbf16>
    %266 = arith.truncf %263 : vector<8x256xf32> to vector<8x256xbf16>
    %cst_165 = arith.constant dense<0.000000e+00> : vector<8x64xf32>
    %267 = tpu.matmul %266, %265, %cst_165 {dimension_numbers = #tpu.dot_dimension_numbers<[1], [0], [0], [1], [0, 0, 1, 1], [], []>} : vector<8x256xbf16>, vector<256x64xbf16>, vector<8x64xf32> -> vector<8x64xf32>
    %268 = arith.addf %221, %267 : vector<8x64xf32>
    %c0_166 = arith.constant 0 : index
    %c0_167 = arith.constant 0 : index
    %c0_168 = arith.constant 0 : index
    %269 = vector.load %arg23[%c0_166, %c0_167, %c0_168] : memref<2x1x64xf32, #tpu.memory_space<vmem>>, vector<1x1x64xf32>
    %270 = vector.shape_cast %269 : vector<1x1x64xf32> to vector<1x64xf32>
    %271 = vector.broadcast %270 : vector<1x64xf32> to vector<8x64xf32>
    %272 = arith.addf %268, %271 : vector<8x64xf32>
    %c1_169 = arith.constant 1 : index
    %c0_170 = arith.constant 0 : index
    %c0_171 = arith.constant 0 : index
    %273 = vector.load %arg8[%c1_169, %c0_170, %c0_171] : memref<2x1x64xf32, #tpu.memory_space<vmem>>, vector<1x1x64xf32>
    %274 = vector.shape_cast %273 : vector<1x1x64xf32> to vector<1x64xf32>
    %c1_172 = arith.constant 1 : index
    %c0_173 = arith.constant 0 : index
    %c0_174 = arith.constant 0 : index
    %275 = vector.load %arg9[%c1_172, %c0_173, %c0_174] : memref<2x1x64xf32, #tpu.memory_space<vmem>>, vector<1x1x64xf32>
    %276 = vector.shape_cast %275 : vector<1x1x64xf32> to vector<1x64xf32>
    %cst_175 = arith.constant dense<0.000000e+00> : vector<8xf32>
    %277 = vector.multi_reduction <add>, %272, %cst_175 [1] : vector<8x64xf32> to vector<8xf32>
    %278 = vector.shape_cast %277 : vector<8xf32> to vector<8x1xf32>
    %cst_176 = arith.constant 6.400000e+01 : f32
    %279 = vector.broadcast %cst_176 : f32 to vector<8x1xf32>
    %280 = arith.divf %278, %279 : vector<8x1xf32>
    %281 = vector.broadcast %280 : vector<8x1xf32> to vector<8x64xf32>
    %282 = arith.subf %272, %281 : vector<8x64xf32>
    %283 = arith.mulf %282, %282 : vector<8x64xf32>
    %cst_177 = arith.constant dense<0.000000e+00> : vector<8xf32>
    %284 = vector.multi_reduction <add>, %283, %cst_177 [1] : vector<8x64xf32> to vector<8xf32>
    %285 = vector.shape_cast %284 : vector<8xf32> to vector<8x1xf32>
    %cst_178 = arith.constant 6.400000e+01 : f32
    %286 = vector.broadcast %cst_178 : f32 to vector<8x1xf32>
    %287 = arith.divf %285, %286 : vector<8x1xf32>
    %288 = vector.broadcast %280 : vector<8x1xf32> to vector<8x64xf32>
    %289 = arith.subf %272, %288 : vector<8x64xf32>
    %cst_179 = arith.constant 9.99999997E-7 : f32
    %290 = vector.broadcast %cst_179 : f32 to vector<8x1xf32>
    %291 = arith.addf %287, %290 : vector<8x1xf32>
    %292 = math.rsqrt %291 : vector<8x1xf32>
    %293 = vector.broadcast %292 : vector<8x1xf32> to vector<8x64xf32>
    %294 = arith.mulf %289, %293 : vector<8x64xf32>
    %295 = vector.broadcast %274 : vector<1x64xf32> to vector<8x64xf32>
    %296 = arith.mulf %294, %295 : vector<8x64xf32>
    %297 = vector.broadcast %276 : vector<1x64xf32> to vector<8x64xf32>
    %298 = arith.addf %296, %297 : vector<8x64xf32>
    %299 = arith.truncf %298 : vector<8x64xf32> to vector<8x64xbf16>
    %cst_180 = arith.constant 0.000000e+00 : f32
    %300 = vector.broadcast %cst_180 : f32 to vector<8x64xf32>
    %c4 = arith.constant 4 : index
    %c0_181 = arith.constant 0 : index
    %c0_182 = arith.constant 0 : index
    %301 = vector.load %arg10[%c4, %c0_181, %c0_182] : memref<8x64x16xbf16, #tpu.memory_space<vmem>>, vector<1x64x16xbf16>
    %302 = vector.shape_cast %301 : vector<1x64x16xbf16> to vector<64x16xbf16>
    %cst_183 = arith.constant dense<0.000000e+00> : vector<8x16xf32>
    %303 = tpu.matmul %299, %302, %cst_183 {dimension_numbers = #tpu.dot_dimension_numbers<[1], [0], [0], [1], [0, 0, 1, 1], [], []>} : vector<8x64xbf16>, vector<64x16xbf16>, vector<8x16xf32> -> vector<8x16xf32>
    %c4_184 = arith.constant 4 : index
    %c0_185 = arith.constant 0 : index
    %c0_186 = arith.constant 0 : index
    %304 = vector.load %arg11[%c4_184, %c0_185, %c0_186] : memref<8x1x16xf32, #tpu.memory_space<vmem>>, vector<1x1x16xf32>
    %305 = vector.shape_cast %304 : vector<1x1x16xf32> to vector<1x16xf32>
    %306 = vector.broadcast %305 : vector<1x16xf32> to vector<8x16xf32>
    %307 = arith.addf %303, %306 : vector<8x16xf32>
    %c4_187 = arith.constant 4 : index
    %c0_188 = arith.constant 0 : index
    %c0_189 = arith.constant 0 : index
    %308 = vector.load %arg12[%c4_187, %c0_188, %c0_189] : memref<8x64x16xbf16, #tpu.memory_space<vmem>>, vector<1x64x16xbf16>
    %309 = vector.shape_cast %308 : vector<1x64x16xbf16> to vector<64x16xbf16>
    %cst_190 = arith.constant dense<0.000000e+00> : vector<8x16xf32>
    %310 = tpu.matmul %299, %309, %cst_190 {dimension_numbers = #tpu.dot_dimension_numbers<[1], [0], [0], [1], [0, 0, 1, 1], [], []>} : vector<8x64xbf16>, vector<64x16xbf16>, vector<8x16xf32> -> vector<8x16xf32>
    %c4_191 = arith.constant 4 : index
    %c0_192 = arith.constant 0 : index
    %c0_193 = arith.constant 0 : index
    %311 = vector.load %arg13[%c4_191, %c0_192, %c0_193] : memref<8x1x16xf32, #tpu.memory_space<vmem>>, vector<1x1x16xf32>
    %312 = vector.shape_cast %311 : vector<1x1x16xf32> to vector<1x16xf32>
    %313 = vector.broadcast %312 : vector<1x16xf32> to vector<8x16xf32>
    %314 = arith.addf %310, %313 : vector<8x16xf32>
    %c4_194 = arith.constant 4 : index
    %c0_195 = arith.constant 0 : index
    %c0_196 = arith.constant 0 : index
    %315 = vector.load %arg14[%c4_194, %c0_195, %c0_196] : memref<8x64x16xbf16, #tpu.memory_space<vmem>>, vector<1x64x16xbf16>
    %316 = vector.shape_cast %315 : vector<1x64x16xbf16> to vector<64x16xbf16>
    %cst_197 = arith.constant dense<0.000000e+00> : vector<8x16xf32>
    %317 = tpu.matmul %299, %316, %cst_197 {dimension_numbers = #tpu.dot_dimension_numbers<[1], [0], [0], [1], [0, 0, 1, 1], [], []>} : vector<8x64xbf16>, vector<64x16xbf16>, vector<8x16xf32> -> vector<8x16xf32>
    %c4_198 = arith.constant 4 : index
    %c0_199 = arith.constant 0 : index
    %c0_200 = arith.constant 0 : index
    %318 = vector.load %arg15[%c4_198, %c0_199, %c0_200] : memref<8x1x16xf32, #tpu.memory_space<vmem>>, vector<1x1x16xf32>
    %319 = vector.shape_cast %318 : vector<1x1x16xf32> to vector<1x16xf32>
    %320 = vector.broadcast %319 : vector<1x16xf32> to vector<8x16xf32>
    %321 = arith.addf %317, %320 : vector<8x16xf32>
    %322 = arith.truncf %307 : vector<8x16xf32> to vector<8x16xbf16>
    %323 = arith.truncf %314 : vector<8x16xf32> to vector<8x16xbf16>
    %cst_201 = arith.constant dense<0.000000e+00> : vector<8x8xf32>
    %324 = tpu.matmul %322, %323, %cst_201 {dimension_numbers = #tpu.dot_dimension_numbers<[1], [1], [0], [0], [0, 0, 1, 0], [], []>} : vector<8x16xbf16>, vector<8x16xbf16>, vector<8x8xf32> -> vector<8x8xf32>
    %cst_202 = arith.constant 2.500000e-01 : f32
    %325 = vector.broadcast %cst_202 : f32 to vector<8x8xf32>
    %326 = arith.mulf %324, %325 : vector<8x8xf32>
    %327 = arith.addf %326, %8 : vector<8x8xf32>
    %cst_203 = arith.constant dense<0xFF800000> : vector<8xf32>
    %328 = vector.multi_reduction <maximumf>, %327, %cst_203 [1] : vector<8x8xf32> to vector<8xf32>
    %329 = vector.shape_cast %328 : vector<8xf32> to vector<8x1xf32>
    %330 = vector.broadcast %329 : vector<8x1xf32> to vector<8x8xf32>
    %331 = arith.subf %327, %330 : vector<8x8xf32>
    %332 = math.exp %331 : vector<8x8xf32>
    %cst_204 = arith.constant dense<0.000000e+00> : vector<8xf32>
    %333 = vector.multi_reduction <add>, %332, %cst_204 [1] : vector<8x8xf32> to vector<8xf32>
    %334 = vector.shape_cast %333 : vector<8xf32> to vector<8x1xf32>
    %335 = tpu.reciprocal %334 {approx = true} : vector<8x1xf32> -> vector<8x1xf32>
    %336 = vector.broadcast %335 : vector<8x1xf32> to vector<8x8xf32>
    %337 = arith.mulf %332, %336 : vector<8x8xf32>
    %338 = arith.truncf %337 : vector<8x8xf32> to vector<8x8xbf16>
    %339 = arith.truncf %321 : vector<8x16xf32> to vector<8x16xbf16>
    %cst_205 = arith.constant dense<0.000000e+00> : vector<8x16xf32>
    %340 = tpu.matmul %338, %339, %cst_205 {dimension_numbers = #tpu.dot_dimension_numbers<[1], [0], [0], [1], [0, 0, 1, 1], [], []>} : vector<8x8xbf16>, vector<8x16xbf16>, vector<8x16xf32> -> vector<8x16xf32>
    %341 = arith.truncf %340 : vector<8x16xf32> to vector<8x16xbf16>
    %c4_206 = arith.constant 4 : index
    %c0_207 = arith.constant 0 : index
    %c0_208 = arith.constant 0 : index
    %342 = vector.load %arg16[%c4_206, %c0_207, %c0_208] : memref<8x16x64xbf16, #tpu.memory_space<vmem>>, vector<1x16x64xbf16>
    %343 = vector.shape_cast %342 : vector<1x16x64xbf16> to vector<16x64xbf16>
    %cst_209 = arith.constant dense<0.000000e+00> : vector<8x64xf32>
    %344 = tpu.matmul %341, %343, %cst_209 {dimension_numbers = #tpu.dot_dimension_numbers<[1], [0], [0], [1], [0, 0, 1, 1], [], []>} : vector<8x16xbf16>, vector<16x64xbf16>, vector<8x64xf32> -> vector<8x64xf32>
    %345 = arith.addf %300, %344 : vector<8x64xf32>
    %c5 = arith.constant 5 : index
    %c0_210 = arith.constant 0 : index
    %c0_211 = arith.constant 0 : index
    %346 = vector.load %arg10[%c5, %c0_210, %c0_211] : memref<8x64x16xbf16, #tpu.memory_space<vmem>>, vector<1x64x16xbf16>
    %347 = vector.shape_cast %346 : vector<1x64x16xbf16> to vector<64x16xbf16>
    %cst_212 = arith.constant dense<0.000000e+00> : vector<8x16xf32>
    %348 = tpu.matmul %299, %347, %cst_212 {dimension_numbers = #tpu.dot_dimension_numbers<[1], [0], [0], [1], [0, 0, 1, 1], [], []>} : vector<8x64xbf16>, vector<64x16xbf16>, vector<8x16xf32> -> vector<8x16xf32>
    %c5_213 = arith.constant 5 : index
    %c0_214 = arith.constant 0 : index
    %c0_215 = arith.constant 0 : index
    %349 = vector.load %arg11[%c5_213, %c0_214, %c0_215] : memref<8x1x16xf32, #tpu.memory_space<vmem>>, vector<1x1x16xf32>
    %350 = vector.shape_cast %349 : vector<1x1x16xf32> to vector<1x16xf32>
    %351 = vector.broadcast %350 : vector<1x16xf32> to vector<8x16xf32>
    %352 = arith.addf %348, %351 : vector<8x16xf32>
    %c5_216 = arith.constant 5 : index
    %c0_217 = arith.constant 0 : index
    %c0_218 = arith.constant 0 : index
    %353 = vector.load %arg12[%c5_216, %c0_217, %c0_218] : memref<8x64x16xbf16, #tpu.memory_space<vmem>>, vector<1x64x16xbf16>
    %354 = vector.shape_cast %353 : vector<1x64x16xbf16> to vector<64x16xbf16>
    %cst_219 = arith.constant dense<0.000000e+00> : vector<8x16xf32>
    %355 = tpu.matmul %299, %354, %cst_219 {dimension_numbers = #tpu.dot_dimension_numbers<[1], [0], [0], [1], [0, 0, 1, 1], [], []>} : vector<8x64xbf16>, vector<64x16xbf16>, vector<8x16xf32> -> vector<8x16xf32>
    %c5_220 = arith.constant 5 : index
    %c0_221 = arith.constant 0 : index
    %c0_222 = arith.constant 0 : index
    %356 = vector.load %arg13[%c5_220, %c0_221, %c0_222] : memref<8x1x16xf32, #tpu.memory_space<vmem>>, vector<1x1x16xf32>
    %357 = vector.shape_cast %356 : vector<1x1x16xf32> to vector<1x16xf32>
    %358 = vector.broadcast %357 : vector<1x16xf32> to vector<8x16xf32>
    %359 = arith.addf %355, %358 : vector<8x16xf32>
    %c5_223 = arith.constant 5 : index
    %c0_224 = arith.constant 0 : index
    %c0_225 = arith.constant 0 : index
    %360 = vector.load %arg14[%c5_223, %c0_224, %c0_225] : memref<8x64x16xbf16, #tpu.memory_space<vmem>>, vector<1x64x16xbf16>
    %361 = vector.shape_cast %360 : vector<1x64x16xbf16> to vector<64x16xbf16>
    %cst_226 = arith.constant dense<0.000000e+00> : vector<8x16xf32>
    %362 = tpu.matmul %299, %361, %cst_226 {dimension_numbers = #tpu.dot_dimension_numbers<[1], [0], [0], [1], [0, 0, 1, 1], [], []>} : vector<8x64xbf16>, vector<64x16xbf16>, vector<8x16xf32> -> vector<8x16xf32>
    %c5_227 = arith.constant 5 : index
    %c0_228 = arith.constant 0 : index
    %c0_229 = arith.constant 0 : index
    %363 = vector.load %arg15[%c5_227, %c0_228, %c0_229] : memref<8x1x16xf32, #tpu.memory_space<vmem>>, vector<1x1x16xf32>
    %364 = vector.shape_cast %363 : vector<1x1x16xf32> to vector<1x16xf32>
    %365 = vector.broadcast %364 : vector<1x16xf32> to vector<8x16xf32>
    %366 = arith.addf %362, %365 : vector<8x16xf32>
    %367 = arith.truncf %352 : vector<8x16xf32> to vector<8x16xbf16>
    %368 = arith.truncf %359 : vector<8x16xf32> to vector<8x16xbf16>
    %cst_230 = arith.constant dense<0.000000e+00> : vector<8x8xf32>
    %369 = tpu.matmul %367, %368, %cst_230 {dimension_numbers = #tpu.dot_dimension_numbers<[1], [1], [0], [0], [0, 0, 1, 0], [], []>} : vector<8x16xbf16>, vector<8x16xbf16>, vector<8x8xf32> -> vector<8x8xf32>
    %cst_231 = arith.constant 2.500000e-01 : f32
    %370 = vector.broadcast %cst_231 : f32 to vector<8x8xf32>
    %371 = arith.mulf %369, %370 : vector<8x8xf32>
    %372 = arith.addf %371, %8 : vector<8x8xf32>
    %cst_232 = arith.constant dense<0xFF800000> : vector<8xf32>
    %373 = vector.multi_reduction <maximumf>, %372, %cst_232 [1] : vector<8x8xf32> to vector<8xf32>
    %374 = vector.shape_cast %373 : vector<8xf32> to vector<8x1xf32>
    %375 = vector.broadcast %374 : vector<8x1xf32> to vector<8x8xf32>
    %376 = arith.subf %372, %375 : vector<8x8xf32>
    %377 = math.exp %376 : vector<8x8xf32>
    %cst_233 = arith.constant dense<0.000000e+00> : vector<8xf32>
    %378 = vector.multi_reduction <add>, %377, %cst_233 [1] : vector<8x8xf32> to vector<8xf32>
    %379 = vector.shape_cast %378 : vector<8xf32> to vector<8x1xf32>
    %380 = tpu.reciprocal %379 {approx = true} : vector<8x1xf32> -> vector<8x1xf32>
    %381 = vector.broadcast %380 : vector<8x1xf32> to vector<8x8xf32>
    %382 = arith.mulf %377, %381 : vector<8x8xf32>
    %383 = arith.truncf %382 : vector<8x8xf32> to vector<8x8xbf16>
    %384 = arith.truncf %366 : vector<8x16xf32> to vector<8x16xbf16>
    %cst_234 = arith.constant dense<0.000000e+00> : vector<8x16xf32>
    %385 = tpu.matmul %383, %384, %cst_234 {dimension_numbers = #tpu.dot_dimension_numbers<[1], [0], [0], [1], [0, 0, 1, 1], [], []>} : vector<8x8xbf16>, vector<8x16xbf16>, vector<8x16xf32> -> vector<8x16xf32>
    %386 = arith.truncf %385 : vector<8x16xf32> to vector<8x16xbf16>
    %c5_235 = arith.constant 5 : index
    %c0_236 = arith.constant 0 : index
    %c0_237 = arith.constant 0 : index
    %387 = vector.load %arg16[%c5_235, %c0_236, %c0_237] : memref<8x16x64xbf16, #tpu.memory_space<vmem>>, vector<1x16x64xbf16>
    %388 = vector.shape_cast %387 : vector<1x16x64xbf16> to vector<16x64xbf16>
    %cst_238 = arith.constant dense<0.000000e+00> : vector<8x64xf32>
    %389 = tpu.matmul %386, %388, %cst_238 {dimension_numbers = #tpu.dot_dimension_numbers<[1], [0], [0], [1], [0, 0, 1, 1], [], []>} : vector<8x16xbf16>, vector<16x64xbf16>, vector<8x64xf32> -> vector<8x64xf32>
    %390 = arith.addf %345, %389 : vector<8x64xf32>
    %c6 = arith.constant 6 : index
    %c0_239 = arith.constant 0 : index
    %c0_240 = arith.constant 0 : index
    %391 = vector.load %arg10[%c6, %c0_239, %c0_240] : memref<8x64x16xbf16, #tpu.memory_space<vmem>>, vector<1x64x16xbf16>
    %392 = vector.shape_cast %391 : vector<1x64x16xbf16> to vector<64x16xbf16>
    %cst_241 = arith.constant dense<0.000000e+00> : vector<8x16xf32>
    %393 = tpu.matmul %299, %392, %cst_241 {dimension_numbers = #tpu.dot_dimension_numbers<[1], [0], [0], [1], [0, 0, 1, 1], [], []>} : vector<8x64xbf16>, vector<64x16xbf16>, vector<8x16xf32> -> vector<8x16xf32>
    %c6_242 = arith.constant 6 : index
    %c0_243 = arith.constant 0 : index
    %c0_244 = arith.constant 0 : index
    %394 = vector.load %arg11[%c6_242, %c0_243, %c0_244] : memref<8x1x16xf32, #tpu.memory_space<vmem>>, vector<1x1x16xf32>
    %395 = vector.shape_cast %394 : vector<1x1x16xf32> to vector<1x16xf32>
    %396 = vector.broadcast %395 : vector<1x16xf32> to vector<8x16xf32>
    %397 = arith.addf %393, %396 : vector<8x16xf32>
    %c6_245 = arith.constant 6 : index
    %c0_246 = arith.constant 0 : index
    %c0_247 = arith.constant 0 : index
    %398 = vector.load %arg12[%c6_245, %c0_246, %c0_247] : memref<8x64x16xbf16, #tpu.memory_space<vmem>>, vector<1x64x16xbf16>
    %399 = vector.shape_cast %398 : vector<1x64x16xbf16> to vector<64x16xbf16>
    %cst_248 = arith.constant dense<0.000000e+00> : vector<8x16xf32>
    %400 = tpu.matmul %299, %399, %cst_248 {dimension_numbers = #tpu.dot_dimension_numbers<[1], [0], [0], [1], [0, 0, 1, 1], [], []>} : vector<8x64xbf16>, vector<64x16xbf16>, vector<8x16xf32> -> vector<8x16xf32>
    %c6_249 = arith.constant 6 : index
    %c0_250 = arith.constant 0 : index
    %c0_251 = arith.constant 0 : index
    %401 = vector.load %arg13[%c6_249, %c0_250, %c0_251] : memref<8x1x16xf32, #tpu.memory_space<vmem>>, vector<1x1x16xf32>
    %402 = vector.shape_cast %401 : vector<1x1x16xf32> to vector<1x16xf32>
    %403 = vector.broadcast %402 : vector<1x16xf32> to vector<8x16xf32>
    %404 = arith.addf %400, %403 : vector<8x16xf32>
    %c6_252 = arith.constant 6 : index
    %c0_253 = arith.constant 0 : index
    %c0_254 = arith.constant 0 : index
    %405 = vector.load %arg14[%c6_252, %c0_253, %c0_254] : memref<8x64x16xbf16, #tpu.memory_space<vmem>>, vector<1x64x16xbf16>
    %406 = vector.shape_cast %405 : vector<1x64x16xbf16> to vector<64x16xbf16>
    %cst_255 = arith.constant dense<0.000000e+00> : vector<8x16xf32>
    %407 = tpu.matmul %299, %406, %cst_255 {dimension_numbers = #tpu.dot_dimension_numbers<[1], [0], [0], [1], [0, 0, 1, 1], [], []>} : vector<8x64xbf16>, vector<64x16xbf16>, vector<8x16xf32> -> vector<8x16xf32>
    %c6_256 = arith.constant 6 : index
    %c0_257 = arith.constant 0 : index
    %c0_258 = arith.constant 0 : index
    %408 = vector.load %arg15[%c6_256, %c0_257, %c0_258] : memref<8x1x16xf32, #tpu.memory_space<vmem>>, vector<1x1x16xf32>
    %409 = vector.shape_cast %408 : vector<1x1x16xf32> to vector<1x16xf32>
    %410 = vector.broadcast %409 : vector<1x16xf32> to vector<8x16xf32>
    %411 = arith.addf %407, %410 : vector<8x16xf32>
    %412 = arith.truncf %397 : vector<8x16xf32> to vector<8x16xbf16>
    %413 = arith.truncf %404 : vector<8x16xf32> to vector<8x16xbf16>
    %cst_259 = arith.constant dense<0.000000e+00> : vector<8x8xf32>
    %414 = tpu.matmul %412, %413, %cst_259 {dimension_numbers = #tpu.dot_dimension_numbers<[1], [1], [0], [0], [0, 0, 1, 0], [], []>} : vector<8x16xbf16>, vector<8x16xbf16>, vector<8x8xf32> -> vector<8x8xf32>
    %cst_260 = arith.constant 2.500000e-01 : f32
    %415 = vector.broadcast %cst_260 : f32 to vector<8x8xf32>
    %416 = arith.mulf %414, %415 : vector<8x8xf32>
    %417 = arith.addf %416, %8 : vector<8x8xf32>
    %cst_261 = arith.constant dense<0xFF800000> : vector<8xf32>
    %418 = vector.multi_reduction <maximumf>, %417, %cst_261 [1] : vector<8x8xf32> to vector<8xf32>
    %419 = vector.shape_cast %418 : vector<8xf32> to vector<8x1xf32>
    %420 = vector.broadcast %419 : vector<8x1xf32> to vector<8x8xf32>
    %421 = arith.subf %417, %420 : vector<8x8xf32>
    %422 = math.exp %421 : vector<8x8xf32>
    %cst_262 = arith.constant dense<0.000000e+00> : vector<8xf32>
    %423 = vector.multi_reduction <add>, %422, %cst_262 [1] : vector<8x8xf32> to vector<8xf32>
    %424 = vector.shape_cast %423 : vector<8xf32> to vector<8x1xf32>
    %425 = tpu.reciprocal %424 {approx = true} : vector<8x1xf32> -> vector<8x1xf32>
    %426 = vector.broadcast %425 : vector<8x1xf32> to vector<8x8xf32>
    %427 = arith.mulf %422, %426 : vector<8x8xf32>
    %428 = arith.truncf %427 : vector<8x8xf32> to vector<8x8xbf16>
    %429 = arith.truncf %411 : vector<8x16xf32> to vector<8x16xbf16>
    %cst_263 = arith.constant dense<0.000000e+00> : vector<8x16xf32>
    %430 = tpu.matmul %428, %429, %cst_263 {dimension_numbers = #tpu.dot_dimension_numbers<[1], [0], [0], [1], [0, 0, 1, 1], [], []>} : vector<8x8xbf16>, vector<8x16xbf16>, vector<8x16xf32> -> vector<8x16xf32>
    %431 = arith.truncf %430 : vector<8x16xf32> to vector<8x16xbf16>
    %c6_264 = arith.constant 6 : index
    %c0_265 = arith.constant 0 : index
    %c0_266 = arith.constant 0 : index
    %432 = vector.load %arg16[%c6_264, %c0_265, %c0_266] : memref<8x16x64xbf16, #tpu.memory_space<vmem>>, vector<1x16x64xbf16>
    %433 = vector.shape_cast %432 : vector<1x16x64xbf16> to vector<16x64xbf16>
    %cst_267 = arith.constant dense<0.000000e+00> : vector<8x64xf32>
    %434 = tpu.matmul %431, %433, %cst_267 {dimension_numbers = #tpu.dot_dimension_numbers<[1], [0], [0], [1], [0, 0, 1, 1], [], []>} : vector<8x16xbf16>, vector<16x64xbf16>, vector<8x64xf32> -> vector<8x64xf32>
    %435 = arith.addf %390, %434 : vector<8x64xf32>
    %c7 = arith.constant 7 : index
    %c0_268 = arith.constant 0 : index
    %c0_269 = arith.constant 0 : index
    %436 = vector.load %arg10[%c7, %c0_268, %c0_269] : memref<8x64x16xbf16, #tpu.memory_space<vmem>>, vector<1x64x16xbf16>
    %437 = vector.shape_cast %436 : vector<1x64x16xbf16> to vector<64x16xbf16>
    %cst_270 = arith.constant dense<0.000000e+00> : vector<8x16xf32>
    %438 = tpu.matmul %299, %437, %cst_270 {dimension_numbers = #tpu.dot_dimension_numbers<[1], [0], [0], [1], [0, 0, 1, 1], [], []>} : vector<8x64xbf16>, vector<64x16xbf16>, vector<8x16xf32> -> vector<8x16xf32>
    %c7_271 = arith.constant 7 : index
    %c0_272 = arith.constant 0 : index
    %c0_273 = arith.constant 0 : index
    %439 = vector.load %arg11[%c7_271, %c0_272, %c0_273] : memref<8x1x16xf32, #tpu.memory_space<vmem>>, vector<1x1x16xf32>
    %440 = vector.shape_cast %439 : vector<1x1x16xf32> to vector<1x16xf32>
    %441 = vector.broadcast %440 : vector<1x16xf32> to vector<8x16xf32>
    %442 = arith.addf %438, %441 : vector<8x16xf32>
    %c7_274 = arith.constant 7 : index
    %c0_275 = arith.constant 0 : index
    %c0_276 = arith.constant 0 : index
    %443 = vector.load %arg12[%c7_274, %c0_275, %c0_276] : memref<8x64x16xbf16, #tpu.memory_space<vmem>>, vector<1x64x16xbf16>
    %444 = vector.shape_cast %443 : vector<1x64x16xbf16> to vector<64x16xbf16>
    %cst_277 = arith.constant dense<0.000000e+00> : vector<8x16xf32>
    %445 = tpu.matmul %299, %444, %cst_277 {dimension_numbers = #tpu.dot_dimension_numbers<[1], [0], [0], [1], [0, 0, 1, 1], [], []>} : vector<8x64xbf16>, vector<64x16xbf16>, vector<8x16xf32> -> vector<8x16xf32>
    %c7_278 = arith.constant 7 : index
    %c0_279 = arith.constant 0 : index
    %c0_280 = arith.constant 0 : index
    %446 = vector.load %arg13[%c7_278, %c0_279, %c0_280] : memref<8x1x16xf32, #tpu.memory_space<vmem>>, vector<1x1x16xf32>
    %447 = vector.shape_cast %446 : vector<1x1x16xf32> to vector<1x16xf32>
    %448 = vector.broadcast %447 : vector<1x16xf32> to vector<8x16xf32>
    %449 = arith.addf %445, %448 : vector<8x16xf32>
    %c7_281 = arith.constant 7 : index
    %c0_282 = arith.constant 0 : index
    %c0_283 = arith.constant 0 : index
    %450 = vector.load %arg14[%c7_281, %c0_282, %c0_283] : memref<8x64x16xbf16, #tpu.memory_space<vmem>>, vector<1x64x16xbf16>
    %451 = vector.shape_cast %450 : vector<1x64x16xbf16> to vector<64x16xbf16>
    %cst_284 = arith.constant dense<0.000000e+00> : vector<8x16xf32>
    %452 = tpu.matmul %299, %451, %cst_284 {dimension_numbers = #tpu.dot_dimension_numbers<[1], [0], [0], [1], [0, 0, 1, 1], [], []>} : vector<8x64xbf16>, vector<64x16xbf16>, vector<8x16xf32> -> vector<8x16xf32>
    %c7_285 = arith.constant 7 : index
    %c0_286 = arith.constant 0 : index
    %c0_287 = arith.constant 0 : index
    %453 = vector.load %arg15[%c7_285, %c0_286, %c0_287] : memref<8x1x16xf32, #tpu.memory_space<vmem>>, vector<1x1x16xf32>
    %454 = vector.shape_cast %453 : vector<1x1x16xf32> to vector<1x16xf32>
    %455 = vector.broadcast %454 : vector<1x16xf32> to vector<8x16xf32>
    %456 = arith.addf %452, %455 : vector<8x16xf32>
    %457 = arith.truncf %442 : vector<8x16xf32> to vector<8x16xbf16>
    %458 = arith.truncf %449 : vector<8x16xf32> to vector<8x16xbf16>
    %cst_288 = arith.constant dense<0.000000e+00> : vector<8x8xf32>
    %459 = tpu.matmul %457, %458, %cst_288 {dimension_numbers = #tpu.dot_dimension_numbers<[1], [1], [0], [0], [0, 0, 1, 0], [], []>} : vector<8x16xbf16>, vector<8x16xbf16>, vector<8x8xf32> -> vector<8x8xf32>
    %cst_289 = arith.constant 2.500000e-01 : f32
    %460 = vector.broadcast %cst_289 : f32 to vector<8x8xf32>
    %461 = arith.mulf %459, %460 : vector<8x8xf32>
    %462 = arith.addf %461, %8 : vector<8x8xf32>
    %cst_290 = arith.constant dense<0xFF800000> : vector<8xf32>
    %463 = vector.multi_reduction <maximumf>, %462, %cst_290 [1] : vector<8x8xf32> to vector<8xf32>
    %464 = vector.shape_cast %463 : vector<8xf32> to vector<8x1xf32>
    %465 = vector.broadcast %464 : vector<8x1xf32> to vector<8x8xf32>
    %466 = arith.subf %462, %465 : vector<8x8xf32>
    %467 = math.exp %466 : vector<8x8xf32>
    %cst_291 = arith.constant dense<0.000000e+00> : vector<8xf32>
    %468 = vector.multi_reduction <add>, %467, %cst_291 [1] : vector<8x8xf32> to vector<8xf32>
    %469 = vector.shape_cast %468 : vector<8xf32> to vector<8x1xf32>
    %470 = tpu.reciprocal %469 {approx = true} : vector<8x1xf32> -> vector<8x1xf32>
    %471 = vector.broadcast %470 : vector<8x1xf32> to vector<8x8xf32>
    %472 = arith.mulf %467, %471 : vector<8x8xf32>
    %473 = arith.truncf %472 : vector<8x8xf32> to vector<8x8xbf16>
    %474 = arith.truncf %456 : vector<8x16xf32> to vector<8x16xbf16>
    %cst_292 = arith.constant dense<0.000000e+00> : vector<8x16xf32>
    %475 = tpu.matmul %473, %474, %cst_292 {dimension_numbers = #tpu.dot_dimension_numbers<[1], [0], [0], [1], [0, 0, 1, 1], [], []>} : vector<8x8xbf16>, vector<8x16xbf16>, vector<8x16xf32> -> vector<8x16xf32>
    %476 = arith.truncf %475 : vector<8x16xf32> to vector<8x16xbf16>
    %c7_293 = arith.constant 7 : index
    %c0_294 = arith.constant 0 : index
    %c0_295 = arith.constant 0 : index
    %477 = vector.load %arg16[%c7_293, %c0_294, %c0_295] : memref<8x16x64xbf16, #tpu.memory_space<vmem>>, vector<1x16x64xbf16>
    %478 = vector.shape_cast %477 : vector<1x16x64xbf16> to vector<16x64xbf16>
    %cst_296 = arith.constant dense<0.000000e+00> : vector<8x64xf32>
    %479 = tpu.matmul %476, %478, %cst_296 {dimension_numbers = #tpu.dot_dimension_numbers<[1], [0], [0], [1], [0, 0, 1, 1], [], []>} : vector<8x16xbf16>, vector<16x64xbf16>, vector<8x64xf32> -> vector<8x64xf32>
    %480 = arith.addf %435, %479 : vector<8x64xf32>
    %481 = arith.addf %272, %480 : vector<8x64xf32>
    %c1_297 = arith.constant 1 : index
    %c0_298 = arith.constant 0 : index
    %c0_299 = arith.constant 0 : index
    %482 = vector.load %arg17[%c1_297, %c0_298, %c0_299] : memref<2x1x64xf32, #tpu.memory_space<vmem>>, vector<1x1x64xf32>
    %483 = vector.shape_cast %482 : vector<1x1x64xf32> to vector<1x64xf32>
    %484 = vector.broadcast %483 : vector<1x64xf32> to vector<8x64xf32>
    %485 = arith.addf %481, %484 : vector<8x64xf32>
    %c1_300 = arith.constant 1 : index
    %c0_301 = arith.constant 0 : index
    %c0_302 = arith.constant 0 : index
    %486 = vector.load %arg18[%c1_300, %c0_301, %c0_302] : memref<2x1x64xf32, #tpu.memory_space<vmem>>, vector<1x1x64xf32>
    %487 = vector.shape_cast %486 : vector<1x1x64xf32> to vector<1x64xf32>
    %c1_303 = arith.constant 1 : index
    %c0_304 = arith.constant 0 : index
    %c0_305 = arith.constant 0 : index
    %488 = vector.load %arg19[%c1_303, %c0_304, %c0_305] : memref<2x1x64xf32, #tpu.memory_space<vmem>>, vector<1x1x64xf32>
    %489 = vector.shape_cast %488 : vector<1x1x64xf32> to vector<1x64xf32>
    %cst_306 = arith.constant dense<0.000000e+00> : vector<8xf32>
    %490 = vector.multi_reduction <add>, %485, %cst_306 [1] : vector<8x64xf32> to vector<8xf32>
    %491 = vector.shape_cast %490 : vector<8xf32> to vector<8x1xf32>
    %cst_307 = arith.constant 6.400000e+01 : f32
    %492 = vector.broadcast %cst_307 : f32 to vector<8x1xf32>
    %493 = arith.divf %491, %492 : vector<8x1xf32>
    %494 = vector.broadcast %493 : vector<8x1xf32> to vector<8x64xf32>
    %495 = arith.subf %485, %494 : vector<8x64xf32>
    %496 = arith.mulf %495, %495 : vector<8x64xf32>
    %cst_308 = arith.constant dense<0.000000e+00> : vector<8xf32>
    %497 = vector.multi_reduction <add>, %496, %cst_308 [1] : vector<8x64xf32> to vector<8xf32>
    %498 = vector.shape_cast %497 : vector<8xf32> to vector<8x1xf32>
    %cst_309 = arith.constant 6.400000e+01 : f32
    %499 = vector.broadcast %cst_309 : f32 to vector<8x1xf32>
    %500 = arith.divf %498, %499 : vector<8x1xf32>
    %501 = vector.broadcast %493 : vector<8x1xf32> to vector<8x64xf32>
    %502 = arith.subf %485, %501 : vector<8x64xf32>
    %cst_310 = arith.constant 9.99999997E-7 : f32
    %503 = vector.broadcast %cst_310 : f32 to vector<8x1xf32>
    %504 = arith.addf %500, %503 : vector<8x1xf32>
    %505 = math.rsqrt %504 : vector<8x1xf32>
    %506 = vector.broadcast %505 : vector<8x1xf32> to vector<8x64xf32>
    %507 = arith.mulf %502, %506 : vector<8x64xf32>
    %508 = vector.broadcast %487 : vector<1x64xf32> to vector<8x64xf32>
    %509 = arith.mulf %507, %508 : vector<8x64xf32>
    %510 = vector.broadcast %489 : vector<1x64xf32> to vector<8x64xf32>
    %511 = arith.addf %509, %510 : vector<8x64xf32>
    %c1_311 = arith.constant 1 : index
    %c0_312 = arith.constant 0 : index
    %c0_313 = arith.constant 0 : index
    %512 = vector.load %arg20[%c1_311, %c0_312, %c0_313] : memref<2x64x256xbf16, #tpu.memory_space<vmem>>, vector<1x64x256xbf16>
    %513 = vector.shape_cast %512 : vector<1x64x256xbf16> to vector<64x256xbf16>
    %514 = arith.truncf %511 : vector<8x64xf32> to vector<8x64xbf16>
    %cst_314 = arith.constant dense<0.000000e+00> : vector<8x256xf32>
    %515 = tpu.matmul %514, %513, %cst_314 {dimension_numbers = #tpu.dot_dimension_numbers<[1], [0], [0], [1], [0, 0, 1, 1], [], []>} : vector<8x64xbf16>, vector<64x256xbf16>, vector<8x256xf32> -> vector<8x256xf32>
    %c1_315 = arith.constant 1 : index
    %c0_316 = arith.constant 0 : index
    %c0_317 = arith.constant 0 : index
    %516 = vector.load %arg21[%c1_315, %c0_316, %c0_317] : memref<2x1x256xf32, #tpu.memory_space<vmem>>, vector<1x1x256xf32>
    %517 = vector.shape_cast %516 : vector<1x1x256xf32> to vector<1x256xf32>
    %518 = vector.broadcast %517 : vector<1x256xf32> to vector<8x256xf32>
    %519 = arith.addf %515, %518 : vector<8x256xf32>
    %cst_318 = arith.constant 5.000000e-01 : f32
    %520 = vector.broadcast %cst_318 : f32 to vector<8x256xf32>
    %521 = arith.mulf %520, %519 : vector<8x256xf32>
    %cst_319 = arith.constant 0.707106769 : f32
    %522 = vector.broadcast %cst_319 : f32 to vector<8x256xf32>
    %523 = arith.mulf %519, %522 : vector<8x256xf32>
    %524 = math.erf %523 : vector<8x256xf32>
    %cst_320 = arith.constant 1.000000e+00 : f32
    %525 = vector.broadcast %cst_320 : f32 to vector<8x256xf32>
    %526 = arith.addf %525, %524 : vector<8x256xf32>
    %527 = arith.mulf %521, %526 : vector<8x256xf32>
    %c1_321 = arith.constant 1 : index
    %c0_322 = arith.constant 0 : index
    %c0_323 = arith.constant 0 : index
    %528 = vector.load %arg22[%c1_321, %c0_322, %c0_323] : memref<2x256x64xbf16, #tpu.memory_space<vmem>>, vector<1x256x64xbf16>
    %529 = vector.shape_cast %528 : vector<1x256x64xbf16> to vector<256x64xbf16>
    %530 = arith.truncf %527 : vector<8x256xf32> to vector<8x256xbf16>
    %cst_324 = arith.constant dense<0.000000e+00> : vector<8x64xf32>
    %531 = tpu.matmul %530, %529, %cst_324 {dimension_numbers = #tpu.dot_dimension_numbers<[1], [0], [0], [1], [0, 0, 1, 1], [], []>} : vector<8x256xbf16>, vector<256x64xbf16>, vector<8x64xf32> -> vector<8x64xf32>
    %532 = arith.addf %485, %531 : vector<8x64xf32>
    %c1_325 = arith.constant 1 : index
    %c0_326 = arith.constant 0 : index
    %c0_327 = arith.constant 0 : index
    %533 = vector.load %arg23[%c1_325, %c0_326, %c0_327] : memref<2x1x64xf32, #tpu.memory_space<vmem>>, vector<1x1x64xf32>
    %534 = vector.shape_cast %533 : vector<1x1x64xf32> to vector<1x64xf32>
    %535 = vector.broadcast %534 : vector<1x64xf32> to vector<8x64xf32>
    %536 = arith.addf %532, %535 : vector<8x64xf32>
    %c0_328 = arith.constant 0 : index
    %c0_329 = arith.constant 0 : index
    %537 = vector.load %arg2[%c0_328, %c0_329] : memref<16x6xbf16, #tpu.memory_space<vmem>>, vector<16x6xbf16>
    %c0_330 = arith.constant 0 : index
    %c0_331 = arith.constant 0 : index
    %538 = vector.load %arg24[%c0_330, %c0_331] : memref<6x64xbf16, #tpu.memory_space<vmem>>, vector<6x64xbf16>
    %cst_332 = arith.constant dense<0.000000e+00> : vector<16x64xf32>
    %539 = tpu.matmul %537, %538, %cst_332 {dimension_numbers = #tpu.dot_dimension_numbers<[1], [0], [0], [1], [0, 0, 1, 1], [], []>} : vector<16x6xbf16>, vector<6x64xbf16>, vector<16x64xf32> -> vector<16x64xf32>
    %c0_333 = arith.constant 0 : index
    %c0_334 = arith.constant 0 : index
    %540 = vector.load %arg25[%c0_333, %c0_334] : memref<1x64xf32, #tpu.memory_space<vmem>>, vector<1x64xf32>
    %541 = vector.broadcast %540 : vector<1x64xf32> to vector<16x64xf32>
    %542 = arith.addf %539, %541 : vector<16x64xf32>
    %cst_335 = arith.constant 0.000000e+00 : f32
    %543 = vector.broadcast %cst_335 : f32 to vector<16x64xf32>
    %544 = arith.maximumf %542, %543 : vector<16x64xf32>
    %c0_336 = arith.constant 0 : index
    %c0_337 = arith.constant 0 : index
    %545 = vector.load %arg26[%c0_336, %c0_337] : memref<64x64xbf16, #tpu.memory_space<vmem>>, vector<64x64xbf16>
    %546 = arith.truncf %544 : vector<16x64xf32> to vector<16x64xbf16>
    %cst_338 = arith.constant dense<0.000000e+00> : vector<16x64xf32>
    %547 = tpu.matmul %546, %545, %cst_338 {dimension_numbers = #tpu.dot_dimension_numbers<[1], [0], [0], [1], [0, 0, 1, 1], [], []>} : vector<16x64xbf16>, vector<64x64xbf16>, vector<16x64xf32> -> vector<16x64xf32>
    %c0_339 = arith.constant 0 : index
    %c0_340 = arith.constant 0 : index
    %548 = vector.load %arg27[%c0_339, %c0_340] : memref<1x64xf32, #tpu.memory_space<vmem>>, vector<1x64xf32>
    %549 = vector.broadcast %548 : vector<1x64xf32> to vector<16x64xf32>
    %550 = arith.addf %547, %549 : vector<16x64xf32>
    %cst_341 = arith.constant 0.000000e+00 : f32
    %551 = vector.broadcast %cst_341 : f32 to vector<16x64xf32>
    %552 = arith.maximumf %550, %551 : vector<16x64xf32>
    %c0_342 = arith.constant 0 : index
    %c0_343 = arith.constant 0 : index
    %553 = vector.load %arg28[%c0_342, %c0_343] : memref<64x64xbf16, #tpu.memory_space<vmem>>, vector<64x64xbf16>
    %554 = arith.truncf %536 : vector<8x64xf32> to vector<8x64xbf16>
    %cst_344 = arith.constant dense<0.000000e+00> : vector<8x64xf32>
    %555 = tpu.matmul %554, %553, %cst_344 {dimension_numbers = #tpu.dot_dimension_numbers<[1], [0], [0], [1], [0, 0, 1, 1], [], []>} : vector<8x64xbf16>, vector<64x64xbf16>, vector<8x64xf32> -> vector<8x64xf32>
    %c0_345 = arith.constant 0 : index
    %c0_346 = arith.constant 0 : index
    %556 = vector.load %arg29[%c0_345, %c0_346] : memref<1x64xf32, #tpu.memory_space<vmem>>, vector<1x64xf32>
    %557 = vector.broadcast %556 : vector<1x64xf32> to vector<8x64xf32>
    %558 = arith.addf %555, %557 : vector<8x64xf32>
    %c0_347 = arith.constant 0 : index
    %c0_348 = arith.constant 0 : index
    %559 = vector.load %arg30[%c0_347, %c0_348] : memref<64x64xbf16, #tpu.memory_space<vmem>>, vector<64x64xbf16>
    %560 = arith.truncf %552 : vector<16x64xf32> to vector<16x64xbf16>
    %cst_349 = arith.constant dense<0.000000e+00> : vector<16x64xf32>
    %561 = tpu.matmul %560, %559, %cst_349 {dimension_numbers = #tpu.dot_dimension_numbers<[1], [0], [0], [1], [0, 0, 1, 1], [], []>} : vector<16x64xbf16>, vector<64x64xbf16>, vector<16x64xf32> -> vector<16x64xf32>
    %c0_350 = arith.constant 0 : index
    %c0_351 = arith.constant 0 : index
    %562 = vector.load %arg31[%c0_350, %c0_351] : memref<1x64xf32, #tpu.memory_space<vmem>>, vector<1x64xf32>
    %563 = vector.broadcast %562 : vector<1x64xf32> to vector<16x64xf32>
    %564 = arith.addf %561, %563 : vector<16x64xf32>
    %c0_352 = arith.constant 0 : index
    %c0_353 = arith.constant 0 : index
    %565 = vector.load %arg32[%c0_352, %c0_353] : memref<64x64xbf16, #tpu.memory_space<vmem>>, vector<64x64xbf16>
    %566 = arith.truncf %552 : vector<16x64xf32> to vector<16x64xbf16>
    %cst_354 = arith.constant dense<0.000000e+00> : vector<16x64xf32>
    %567 = tpu.matmul %566, %565, %cst_354 {dimension_numbers = #tpu.dot_dimension_numbers<[1], [0], [0], [1], [0, 0, 1, 1], [], []>} : vector<16x64xbf16>, vector<64x64xbf16>, vector<16x64xf32> -> vector<16x64xf32>
    %c0_355 = arith.constant 0 : index
    %c0_356 = arith.constant 0 : index
    %568 = vector.load %arg33[%c0_355, %c0_356] : memref<1x64xf32, #tpu.memory_space<vmem>>, vector<1x64xf32>
    %569 = vector.broadcast %568 : vector<1x64xf32> to vector<16x64xf32>
    %570 = arith.addf %567, %569 : vector<16x64xf32>
    %571 = arith.truncf %558 : vector<8x64xf32> to vector<8x64xbf16>
    %572 = arith.truncf %564 : vector<16x64xf32> to vector<16x64xbf16>
    %cst_357 = arith.constant dense<0.000000e+00> : vector<8x16xf32>
    %573 = tpu.matmul %571, %572, %cst_357 {dimension_numbers = #tpu.dot_dimension_numbers<[1], [1], [0], [0], [0, 0, 1, 0], [], []>} : vector<8x64xbf16>, vector<16x64xbf16>, vector<8x16xf32> -> vector<8x16xf32>
    %cst_358 = arith.constant 1.250000e-01 : f32
    %574 = vector.broadcast %cst_358 : f32 to vector<8x16xf32>
    %575 = arith.mulf %573, %574 : vector<8x16xf32>
    %c0_359 = arith.constant 0 : index
    %c0_360 = arith.constant 0 : index
    %576 = vector.load %arg5[%c0_359, %c0_360] : memref<8x16xf32, #tpu.memory_space<vmem>>, vector<8x16xf32>
    %577 = arith.addf %575, %576 : vector<8x16xf32>
    %cst_361 = arith.constant dense<0xFF800000> : vector<8xf32>
    %578 = vector.multi_reduction <maximumf>, %577, %cst_361 [1] : vector<8x16xf32> to vector<8xf32>
    %579 = vector.shape_cast %578 : vector<8xf32> to vector<8x1xf32>
    %580 = vector.broadcast %579 : vector<8x1xf32> to vector<8x16xf32>
    %581 = arith.subf %577, %580 : vector<8x16xf32>
    %582 = math.exp %581 : vector<8x16xf32>
    %cst_362 = arith.constant dense<0.000000e+00> : vector<8xf32>
    %583 = vector.multi_reduction <add>, %582, %cst_362 [1] : vector<8x16xf32> to vector<8xf32>
    %584 = vector.shape_cast %583 : vector<8xf32> to vector<8x1xf32>
    %585 = tpu.reciprocal %584 {approx = true} : vector<8x1xf32> -> vector<8x1xf32>
    %586 = vector.broadcast %585 : vector<8x1xf32> to vector<8x16xf32>
    %587 = arith.mulf %582, %586 : vector<8x16xf32>
    %588 = arith.truncf %587 : vector<8x16xf32> to vector<8x16xbf16>
    %589 = arith.truncf %570 : vector<16x64xf32> to vector<16x64xbf16>
    %cst_363 = arith.constant dense<0.000000e+00> : vector<8x64xf32>
    %590 = tpu.matmul %588, %589, %cst_363 {dimension_numbers = #tpu.dot_dimension_numbers<[1], [0], [0], [1], [0, 0, 1, 1], [], []>} : vector<8x16xbf16>, vector<16x64xbf16>, vector<8x64xf32> -> vector<8x64xf32>
    %591 = arith.addf %536, %590 : vector<8x64xf32>
    %c0_364 = arith.constant 0 : index
    %c0_365 = arith.constant 0 : index
    %592 = vector.load %arg3[%c0_364, %c0_365] : memref<2x8xbf16, #tpu.memory_space<vmem>>, vector<2x8xbf16>
    %593 = arith.truncf %591 : vector<8x64xf32> to vector<8x64xbf16>
    %cst_366 = arith.constant dense<0.000000e+00> : vector<2x64xf32>
    %594 = tpu.matmul %592, %593, %cst_366 {dimension_numbers = #tpu.dot_dimension_numbers<[1], [0], [0], [1], [0, 0, 1, 1], [], []>} : vector<2x8xbf16>, vector<8x64xbf16>, vector<2x64xf32> -> vector<2x64xf32>
    %c0_367 = arith.constant 0 : index
    %c0_368 = arith.constant 0 : index
    %595 = vector.load %arg34[%c0_367, %c0_368] : memref<64x64xbf16, #tpu.memory_space<vmem>>, vector<64x64xbf16>
    %596 = arith.truncf %594 : vector<2x64xf32> to vector<2x64xbf16>
    %cst_369 = arith.constant dense<0.000000e+00> : vector<2x64xf32>
    %597 = tpu.matmul %596, %595, %cst_369 {dimension_numbers = #tpu.dot_dimension_numbers<[1], [0], [0], [1], [0, 0, 1, 1], [], []>} : vector<2x64xbf16>, vector<64x64xbf16>, vector<2x64xf32> -> vector<2x64xf32>
    %c0_370 = arith.constant 0 : index
    %c0_371 = arith.constant 0 : index
    %598 = vector.load %arg35[%c0_370, %c0_371] : memref<1x64xf32, #tpu.memory_space<vmem>>, vector<1x64xf32>
    %599 = vector.broadcast %598 : vector<1x64xf32> to vector<2x64xf32>
    %600 = arith.addf %597, %599 : vector<2x64xf32>
    %cst_372 = arith.constant 0.000000e+00 : f32
    %601 = vector.broadcast %cst_372 : f32 to vector<2x64xf32>
    %602 = arith.maximumf %600, %601 : vector<2x64xf32>
    %c0_373 = arith.constant 0 : index
    %c0_374 = arith.constant 0 : index
    %603 = vector.load %arg36[%c0_373, %c0_374] : memref<64x128xbf16, #tpu.memory_space<vmem>>, vector<64x128xbf16>
    %604 = arith.truncf %602 : vector<2x64xf32> to vector<2x64xbf16>
    %cst_375 = arith.constant dense<0.000000e+00> : vector<2x128xf32>
    %605 = tpu.matmul %604, %603, %cst_375 {dimension_numbers = #tpu.dot_dimension_numbers<[1], [0], [0], [1], [0, 0, 1, 1], [], []>} : vector<2x64xbf16>, vector<64x128xbf16>, vector<2x128xf32> -> vector<2x128xf32>
    %c0_376 = arith.constant 0 : index
    %c0_377 = arith.constant 0 : index
    %606 = vector.load %arg37[%c0_376, %c0_377] : memref<1x128xf32, #tpu.memory_space<vmem>>, vector<1x128xf32>
    %607 = vector.broadcast %606 : vector<1x128xf32> to vector<2x128xf32>
    %608 = arith.addf %605, %607 : vector<2x128xf32>
    %c0_378 = arith.constant 0 : index
    %c0_379 = arith.constant 0 : index
    %609 = vector.load %arg38[%c0_378, %c0_379] : memref<2x128xf32, #tpu.memory_space<vmem>>, vector<2x128xf32>
    tpu.vector_store %arg38[%c0_378, %c0_379], %608 {strides = array<i32>} : memref<2x128xf32, #tpu.memory_space<vmem>>, vector<2x128xf32>,
    return
  }
}

</mosaic_0001>

<llo_original>
// kernel: eq.17
$region0: #{eq.17}
  %s0 = inlined_call_operand.vmem [shape: s32[2,4], index: 0, kind: input, shape index: {}]
  %s1 = inlined_call_operand.vmem [shape: s32[8], index: 1, kind: output, shape index: {}]
  $region1: #{eq.17} parent=0
    #allocation0 [shape = 'u8[4096]{0}', space=vmem, size = 0x1000, scoped, tag = 'scoped mem for output reshape']
    #allocation1 [shape = 'u8[4096]{0}', space=vmem, size = 0x1000, scoped, tag = 'scoped mem for input reshape']
    %s3 = sshllo.u32 0, 2
    %v4 = vld [vmem:[%s0] sm:%s3]
    %5 = vst [vmem:[#allocation1] sm:%s3] %v4
    %v6 = vld [vmem:[#allocation1] sm:$0x1]
    %vm7 = vcmask 31744
    %8 = vst.msk [vmem:[#allocation0] sm:$0x1] %vm7, %v6
    %s9 = scalar_lea.vmem [#allocation1], 1
    %v10 = vld [vmem:[%s9] sm:$0x1]
    %11 = vrot.lane.b32.xlu0 %v10, 4
    %v12 = vpop.permute.xlu0 %11
    %vm13 = vcmask 64544
    %14 = vst.msk [vmem:[#allocation0] sm:$0x1] %vm13, %v12
    %s16 = sshllo.u32 0, 1
    %v18 = vld [vmem:[#allocation0] sm:%s16]
    %s19 = sshllo.u32 0, 1
    %20 = vst [vmem:[%s1] sm:%s19] %v18

// kernel: eq.27
$region0: #{eq.27}
  %s0 = inlined_call_operand.vmem [shape: s32[2,8], index: 0, kind: input, shape index: {}]
  %s1 = inlined_call_operand.vmem [shape: s32[16], index: 1, kind: output, shape index: {}]
  $region1: #{eq.27} parent=0
    #allocation0 [shape = 'u8[4096]{0}', space=vmem, size = 0x1000, scoped, tag = 'scoped mem for output reshape']
    #allocation1 [shape = 'u8[4096]{0}', space=vmem, size = 0x1000, scoped, tag = 'scoped mem for input reshape']
    %s3 = sshllo.u32 0, 2
    %v4 = vld [vmem:[%s0] sm:%s3]
    %5 = vst [vmem:[#allocation1] sm:%s3] %v4
    %v6 = vld [vmem:[#allocation1] sm:$0x1]
    %vm7 = vcmask 64512
    %8 = vst.msk [vmem:[#allocation0] sm:$0x1] %vm7, %v6
    %s9 = scalar_lea.vmem [#allocation1], 1
    %v10 = vld [vmem:[%s9] sm:$0x1]
    %11 = vrot.lane.b32.xlu0 %v10, 8
    %v12 = vpop.permute.xlu0 %11
    %vm13 = vcmask 130112
    %14 = vst.msk [vmem:[#allocation0] sm:$0x1] %vm13, %v12
    %s16 = sshllo.u32 0, 1
    %v18 = vld [vmem:[#allocation0] sm:%s16]
    %s19 = sshllo.u32 0, 1
    %20 = vst [vmem:[%s1] sm:%s19] %v18

// kernel: rgvit_forward.1
$region0: #{rgvit_forward.1}
  #allocation0 [shape = 'u32[]', space=smem, size = 0x4, offset = 0x4, fixed_abs, tag = 'smem constant byte address 0x4 - core index']
  #allocation1 [shape = 'u32[144,128]{1,0:T(1,128)}', space=vmem, size = 0x12000, scoped, tag = 'internal scratch']
  %s0 = inlined_call_operand.smem [shape: u32[39], index: -1, kind: input, shape index: {}]
  %s1 = sld [smem:[%s0]]
  %s2 = scalar_lea.smem %s0, 1
  %s3 = sld [smem:[%s2]]
  %s4 = scalar_lea.smem %s0, 2
  %s5 = sld [smem:[%s4]]
  %s6 = scalar_lea.smem %s0, 3
  %s7 = sld [smem:[%s6]]
  %s8 = scalar_lea.smem %s0, 4
  %s9 = sld [smem:[%s8]]
  %s10 = scalar_lea.smem %s0, 5
  %s11 = sld [smem:[%s10]]
  %s12 = scalar_lea.smem %s0, 6
  %s13 = sld [smem:[%s12]]
  %s14 = scalar_lea.smem %s0, 7
  %s15 = sld [smem:[%s14]]
  %s16 = scalar_lea.smem %s0, 8
  %s17 = sld [smem:[%s16]]
  %s18 = scalar_lea.smem %s0, 9
  %s19 = sld [smem:[%s18]]
  %s20 = scalar_lea.smem %s0, 10
  %s21 = sld [smem:[%s20]]
  %s22 = scalar_lea.smem %s0, 11
  %s23 = sld [smem:[%s22]]
  %s24 = scalar_lea.smem %s0, 12
  %s25 = sld [smem:[%s24]]
  %s26 = scalar_lea.smem %s0, 13
  %s27 = sld [smem:[%s26]]
  %s28 = scalar_lea.smem %s0, 14
  %s29 = sld [smem:[%s28]]
  %s30 = scalar_lea.smem %s0, 15
  %s31 = sld [smem:[%s30]]
  %s32 = scalar_lea.smem %s0, 16
  %s33 = sld [smem:[%s32]]
  %s34 = scalar_lea.smem %s0, 17
  %s35 = sld [smem:[%s34]]
  %s36 = scalar_lea.smem %s0, 18
  %s37 = sld [smem:[%s36]]
  %s38 = scalar_lea.smem %s0, 19
  %s39 = sld [smem:[%s38]]
  %s40 = scalar_lea.smem %s0, 20
  %s41 = sld [smem:[%s40]]
  %s42 = scalar_lea.smem %s0, 21
  %s43 = sld [smem:[%s42]]
  %s44 = scalar_lea.smem %s0, 22
  %s45 = sld [smem:[%s44]]
  %s46 = scalar_lea.smem %s0, 23
  %s47 = sld [smem:[%s46]]
  %s48 = scalar_lea.smem %s0, 24
  %s49 = sld [smem:[%s48]]
  %s50 = scalar_lea.smem %s0, 25
  %s51 = sld [smem:[%s50]]
  %s52 = scalar_lea.smem %s0, 26
  %s53 = sld [smem:[%s52]]
  %s54 = scalar_lea.smem %s0, 27
  %s55 = sld [smem:[%s54]]
  %s56 = scalar_lea.smem %s0, 28
  %s57 = sld [smem:[%s56]]
  %s58 = scalar_lea.smem %s0, 29
  %s59 = sld [smem:[%s58]]
  %s60 = scalar_lea.smem %s0, 30
  %s61 = sld [smem:[%s60]]
  %s62 = scalar_lea.smem %s0, 31
  %s63 = sld [smem:[%s62]]
  %s64 = scalar_lea.smem %s0, 32
  %s65 = sld [smem:[%s64]]
  %s66 = scalar_lea.smem %s0, 33
  %s67 = sld [smem:[%s66]]
  %s68 = scalar_lea.smem %s0, 34
  %s69 = sld [smem:[%s68]]
  %s70 = scalar_lea.smem %s0, 35
  %s71 = sld [smem:[%s70]]
  %s72 = scalar_lea.smem %s0, 36
  %s73 = sld [smem:[%s72]]
  %s74 = scalar_lea.smem %s0, 37
  %s75 = sld [smem:[%s74]]
  %s76 = scalar_lea.smem %s0, 38
  %s77 = sld [smem:[%s76]]
  %s78 = sld [smem:[#allocation0]]
  $region162: #{rgvit_forward.1} parent=0
    _
  %s80 = ssub.s32 1, %s78
  %s81 = scalar_select 0, %s80, %s78
  // Predicated region
  $region2: #{rgvit_forward.1} parent=0 // pred_check
    _
  $region3: #{rgvit_forward.1} parent=0 // pred_check_branch
    %83 = sbr.rel (0) target = $region5
  $region4: #{rgvit_forward.1} parent=0 // pred_region
    _
  $region5: #{rgvit_forward.1} parent=0 // pred_fallthru
    _
  // Predicated region
  $region6: #{rgvit_forward.1} parent=0 // pred_check
    _
  $region7: #{rgvit_forward.1} parent=0 // pred_check_branch
    %85 = sbr.rel (0) target = $region9
  $region8: #{rgvit_forward.1} parent=0 // pred_region
    _
  $region9: #{rgvit_forward.1} parent=0 // pred_fallthru
    _
  // Predicated region
  $region10: #{rgvit_forward.1} parent=0 // pred_check
    _
  $region11: #{rgvit_forward.1} parent=0 // pred_check_branch
    %87 = sbr.rel (0) target = $region13
  $region12: #{rgvit_forward.1} parent=0 // pred_region
    _
  $region13: #{rgvit_forward.1} parent=0 // pred_fallthru
    _
  // Predicated region
  $region14: #{rgvit_forward.1} parent=0 // pred_check
    _
  $region15: #{rgvit_forward.1} parent=0 // pred_check_branch
    %89 = sbr.rel (0) target = $region17
  $region16: #{rgvit_forward.1} parent=0 // pred_region
    _
  $region17: #{rgvit_forward.1} parent=0 // pred_fallthru
    _
  // Predicated region
  $region18: #{rgvit_forward.1} parent=0 // pred_check
    _
  $region19: #{rgvit_forward.1} parent=0 // pred_check_branch
    %91 = sbr.rel (0) target = $region21
  $region20: #{rgvit_forward.1} parent=0 // pred_region
    _
  $region21: #{rgvit_forward.1} parent=0 // pred_fallthru
    _
  // Predicated region
  $region22: #{rgvit_forward.1} parent=0 // pred_check
    _
  $region23: #{rgvit_forward.1} parent=0 // pred_check_branch
    %93 = sbr.rel (0) target = $region25
  $region24: #{rgvit_forward.1} parent=0 // pred_region
    _
  $region25: #{rgvit_forward.1} parent=0 // pred_fallthru
    _
  // Predicated region
  $region26: #{rgvit_forward.1} parent=0 // pred_check
    _
  $region27: #{rgvit_forward.1} parent=0 // pred_check_branch
    %95 = sbr.rel (0) target = $region29
  $region28: #{rgvit_forward.1} parent=0 // pred_region
    _
  $region29: #{rgvit_forward.1} parent=0 // pred_fallthru
    _
  // Predicated region
  $region30: #{rgvit_forward.1} parent=0 // pred_check
    _
  $region31: #{rgvit_forward.1} parent=0 // pred_check_branch
    %97 = sbr.rel (0) target = $region33
  $region32: #{rgvit_forward.1} parent=0 // pred_region
    _
  $region33: #{rgvit_forward.1} parent=0 // pred_fallthru
    _
  // Predicated region
  $region34: #{rgvit_forward.1} parent=0 // pred_check
    _
  $region35: #{rgvit_forward.1} parent=0 // pred_check_branch
    %99 = sbr.rel (0) target = $region37
  $region36: #{rgvit_forward.1} parent=0 // pred_region
    _
  $region37: #{rgvit_forward.1} parent=0 // pred_fallthru
    _
  // Predicated region
  $region38: #{rgvit_forward.1} parent=0 // pred_check
    _
  $region39: #{rgvit_forward.1} parent=0 // pred_check_branch
    %101 = sbr.rel (0) target = $region41
  $region40: #{rgvit_forward.1} parent=0 // pred_region
    _
  $region41: #{rgvit_forward.1} parent=0 // pred_fallthru
    _
  // Predicated region
  $region42: #{rgvit_forward.1} parent=0 // pred_check
    _
  $region43: #{rgvit_forward.1} parent=0 // pred_check_branch
    %103 = sbr.rel (0) target = $region45
  $region44: #{rgvit_forward.1} parent=0 // pred_region
    _
  $region45: #{rgvit_forward.1} parent=0 // pred_fallthru
    _
  // Predicated region
  $region46: #{rgvit_forward.1} parent=0 // pred_check
    _
  $region47: #{rgvit_forward.1} parent=0 // pred_check_branch
    %105 = sbr.rel (0) target = $region49
  $region48: #{rgvit_forward.1} parent=0 // pred_region
    _
  $region49: #{rgvit_forward.1} parent=0 // pred_fallthru
    _
  // Predicated region
  $region50: #{rgvit_forward.1} parent=0 // pred_check
    _
  $region51: #{rgvit_forward.1} parent=0 // pred_check_branch
    %107 = sbr.rel (0) target = $region53
  $region52: #{rgvit_forward.1} parent=0 // pred_region
    _
  $region53: #{rgvit_forward.1} parent=0 // pred_fallthru
    _
  // Predicated region
  $region54: #{rgvit_forward.1} parent=0 // pred_check
    _
  $region55: #{rgvit_forward.1} parent=0 // pred_check_branch
    %109 = sbr.rel (0) target = $region57
  $region56: #{rgvit_forward.1} parent=0 // pred_region
    _
  $region57: #{rgvit_forward.1} parent=0 // pred_fallthru
    _
  // Predicated region
  $region58: #{rgvit_forward.1} parent=0 // pred_check
    _
  $region59: #{rgvit_forward.1} parent=0 // pred_check_branch
    %111 = sbr.rel (0) target = $region61
  $region60: #{rgvit_forward.1} parent=0 // pred_region
    _
  $region61: #{rgvit_forward.1} parent=0 // pred_fallthru
    _
  // Predicated region
  $region62: #{rgvit_forward.1} parent=0 // pred_check
    _
  $region63: #{rgvit_forward.1} parent=0 // pred_check_branch
    %113 = sbr.rel (0) target = $region65
  $region64: #{rgvit_forward.1} parent=0 // pred_region
    _
  $region65: #{rgvit_forward.1} parent=0 // pred_fallthru
    _
  // Predicated region
  $region66: #{rgvit_forward.1} parent=0 // pred_check
    _
  $region67: #{rgvit_forward.1} parent=0 // pred_check_branch
    %115 = sbr.rel (0) target = $region69
  $region68: #{rgvit_forward.1} parent=0 // pred_region
    _
  $region69: #{rgvit_forward.1} parent=0 // pred_fallthru
    _
  // Predicated region
  $region70: #{rgvit_forward.1} parent=0 // pred_check
    _
  $region71: #{rgvit_forward.1} parent=0 // pred_check_branch
    %117 = sbr.rel (0) target = $region73
  $region72: #{rgvit_forward.1} parent=0 // pred_region
    _
  $region73: #{rgvit_forward.1} parent=0 // pred_fallthru
    _
  // Predicated region
  $region74: #{rgvit_forward.1} parent=0 // pred_check
    _
  $region75: #{rgvit_forward.1} parent=0 // pred_check_branch
    %119 = sbr.rel (0) target = $region77
  $region76: #{rgvit_forward.1} parent=0 // pred_region
    _
  $region77: #{rgvit_forward.1} parent=0 // pred_fallthru
    _
  // Predicated region
  $region78: #{rgvit_forward.1} parent=0 // pred_check
    _
  $region79: #{rgvit_forward.1} parent=0 // pred_check_branch
    %121 = sbr.rel (0) target = $region81
  $region80: #{rgvit_forward.1} parent=0 // pred_region
    _
  $region81: #{rgvit_forward.1} parent=0 // pred_fallthru
    _
  // Predicated region
  $region82: #{rgvit_forward.1} parent=0 // pred_check
    _
  $region83: #{rgvit_forward.1} parent=0 // pred_check_branch
    %123 = sbr.rel (0) target = $region85
  $region84: #{rgvit_forward.1} parent=0 // pred_region
    _
  $region85: #{rgvit_forward.1} parent=0 // pred_fallthru
    _
  // Predicated region
  $region86: #{rgvit_forward.1} parent=0 // pred_check
    _
  $region87: #{rgvit_forward.1} parent=0 // pred_check_branch
    %125 = sbr.rel (0) target = $region89
  $region88: #{rgvit_forward.1} parent=0 // pred_region
    _
  $region89: #{rgvit_forward.1} parent=0 // pred_fallthru
    _
  // Predicated region
  $region90: #{rgvit_forward.1} parent=0 // pred_check
    _
  $region91: #{rgvit_forward.1} parent=0 // pred_check_branch
    %127 = sbr.rel (0) target = $region93
  $region92: #{rgvit_forward.1} parent=0 // pred_region
    _
  $region93: #{rgvit_forward.1} parent=0 // pred_fallthru
    _
  // Predicated region
  $region94: #{rgvit_forward.1} parent=0 // pred_check
    _
  $region95: #{rgvit_forward.1} parent=0 // pred_check_branch
    %129 = sbr.rel (0) target = $region97
  $region96: #{rgvit_forward.1} parent=0 // pred_region
    _
  $region97: #{rgvit_forward.1} parent=0 // pred_fallthru
    _
  // Predicated region
  $region98: #{rgvit_forward.1} parent=0 // pred_check
    _
  $region99: #{rgvit_forward.1} parent=0 // pred_check_branch
    %131 = sbr.rel (0) target = $region101
  $region100: #{rgvit_forward.1} parent=0 // pred_region
    _
  $region101: #{rgvit_forward.1} parent=0 // pred_fallthru
    _
  // Predicated region
  $region102: #{rgvit_forward.1} parent=0 // pred_check
    _
  $region103: #{rgvit_forward.1} parent=0 // pred_check_branch
    %133 = sbr.rel (0) target = $region105
  $region104: #{rgvit_forward.1} parent=0 // pred_region
    _
  $region105: #{rgvit_forward.1} parent=0 // pred_fallthru
    _
  // Predicated region
  $region106: #{rgvit_forward.1} parent=0 // pred_check
    _
  $region107: #{rgvit_forward.1} parent=0 // pred_check_branch
    %135 = sbr.rel (0) target = $region109
  $region108: #{rgvit_forward.1} parent=0 // pred_region
    _
  $region109: #{rgvit_forward.1} parent=0 // pred_fallthru
    _
  // Predicated region
  $region110: #{rgvit_forward.1} parent=0 // pred_check
    _
  $region111: #{rgvit_forward.1} parent=0 // pred_check_branch
    %137 = sbr.rel (0) target = $region113
  $region112: #{rgvit_forward.1} parent=0 // pred_region
    _
  $region113: #{rgvit_forward.1} parent=0 // pred_fallthru
    _
  // Predicated region
  $region114: #{rgvit_forward.1} parent=0 // pred_check
    _
  $region115: #{rgvit_forward.1} parent=0 // pred_check_branch
    %139 = sbr.rel (0) target = $region117
  $region116: #{rgvit_forward.1} parent=0 // pred_region
    _
  $region117: #{rgvit_forward.1} parent=0 // pred_fallthru
    _
  // Predicated region
  $region118: #{rgvit_forward.1} parent=0 // pred_check
    _
  $region119: #{rgvit_forward.1} parent=0 // pred_check_branch
    %141 = sbr.rel (0) target = $region121
  $region120: #{rgvit_forward.1} parent=0 // pred_region
    _
  $region121: #{rgvit_forward.1} parent=0 // pred_fallthru
    _
  // Predicated region
  $region122: #{rgvit_forward.1} parent=0 // pred_check
    _
  $region123: #{rgvit_forward.1} parent=0 // pred_check_branch
    %143 = sbr.rel (0) target = $region125
  $region124: #{rgvit_forward.1} parent=0 // pred_region
    _
  $region125: #{rgvit_forward.1} parent=0 // pred_fallthru
    _
  // Predicated region
  $region126: #{rgvit_forward.1} parent=0 // pred_check
    _
  $region127: #{rgvit_forward.1} parent=0 // pred_check_branch
    %145 = sbr.rel (0) target = $region129
  $region128: #{rgvit_forward.1} parent=0 // pred_region
    _
  $region129: #{rgvit_forward.1} parent=0 // pred_fallthru
    _
  // Predicated region
  $region130: #{rgvit_forward.1} parent=0 // pred_check
    _
  $region131: #{rgvit_forward.1} parent=0 // pred_check_branch
    %147 = sbr.rel (0) target = $region133
  $region132: #{rgvit_forward.1} parent=0 // pred_region
    _
  $region133: #{rgvit_forward.1} parent=0 // pred_fallthru
    _
  // Predicated region
  $region134: #{rgvit_forward.1} parent=0 // pred_check
    _
  $region135: #{rgvit_forward.1} parent=0 // pred_check_branch
    %149 = sbr.rel (0) target = $region137
  $region136: #{rgvit_forward.1} parent=0 // pred_region
    _
  $region137: #{rgvit_forward.1} parent=0 // pred_fallthru
    _
  // Predicated region
  $region138: #{rgvit_forward.1} parent=0 // pred_check
    _
  $region139: #{rgvit_forward.1} parent=0 // pred_check_branch
    %151 = sbr.rel (0) target = $region141
  $region140: #{rgvit_forward.1} parent=0 // pred_region
    _
  $region141: #{rgvit_forward.1} parent=0 // pred_fallthru
    _
  // Predicated region
  $region142: #{rgvit_forward.1} parent=0 // pred_check
    _
  $region143: #{rgvit_forward.1} parent=0 // pred_check_branch
    %153 = sbr.rel (0) target = $region145
  $region144: #{rgvit_forward.1} parent=0 // pred_region
    _
  $region145: #{rgvit_forward.1} parent=0 // pred_fallthru
    _
  // Predicated region
  $region146: #{rgvit_forward.1} parent=0 // pred_check
    _
  $region147: #{rgvit_forward.1} parent=0 // pred_check_branch
    %155 = sbr.rel (0) target = $region149
  $region148: #{rgvit_forward.1} parent=0 // pred_region
    _
  $region149: #{rgvit_forward.1} parent=0 // pred_fallthru
    _
  // Predicated region
  $region150: #{rgvit_forward.1} parent=0 // pred_check
    _
  $region151: #{rgvit_forward.1} parent=0 // pred_check_branch
    %157 = sbr.rel (0) target = $region153
  $region152: #{rgvit_forward.1} parent=0 // pred_region
    _
  $region153: #{rgvit_forward.1} parent=0 // pred_fallthru
    _
  %v159 = vld [vmem:[%s1] sm:$0xff]
  %v160 = vld [vmem:[%s1 + $0x8] sm:$0xff]
  %v161 = vld [vmem:[%s1 + $0x10] sm:$0xff]
  %v162 = vld [vmem:[%s13] sm:$0xf]
  %v163 = vld [vmem:[%s13 + $0x4] sm:$0xf]
  %v164 = vld [vmem:[%s13 + $0x8] sm:$0xf]
  %v165 = vld [vmem:[%s13 + $0xc] sm:$0xf]
  %v166 = vld [vmem:[%s13 + $0x10] sm:$0xf]
  %v167 = vld [vmem:[%s13 + $0x14] sm:$0xf]
  %v168 = vld [vmem:[%s13 + $0x18] sm:$0xf]
  %v169 = vld [vmem:[%s13 + $0x1c] sm:$0xf]
  %v170 = vld [vmem:[%s13 + $0x20] sm:$0xf]
  %v171 = vld [vmem:[%s13 + $0x24] sm:$0xf]
  %v172 = vld [vmem:[%s13 + $0x28] sm:$0xf]
  %v173 = vld [vmem:[%s13 + $0x2c] sm:$0xf]
  %v174 = vld [vmem:[%s13 + $0x30] sm:$0xf]
  %v175 = vld [vmem:[%s13 + $0x34] sm:$0xf]
  %v176 = vld [vmem:[%s13 + $0x38] sm:$0xf]
  %v177 = vld [vmem:[%s13 + $0x3c] sm:$0xf]
  %v178 = vld [vmem:[%s13 + $0x40] sm:$0xf]
  %v179 = vld [vmem:[%s13 + $0x44] sm:$0xf]
  %v180 = vld [vmem:[%s13 + $0x48] sm:$0xf]
  %v181 = vld [vmem:[%s13 + $0x4c] sm:$0xf]
  %v182 = vld [vmem:[%s13 + $0x50] sm:$0xf]
  %v183 = vld [vmem:[%s13 + $0x54] sm:$0xf]
  %v184 = vld [vmem:[%s13 + $0x58] sm:$0xf]
  %v185 = vld [vmem:[%s13 + $0x5c] sm:$0xf]
  %v186 = vld [vmem:[%s13 + $0x60] sm:$0xf]
  %v187 = vld [vmem:[%s13 + $0x64] sm:$0xf]
  %v188 = vld [vmem:[%s13 + $0x68] sm:$0xf]
  %v189 = vld [vmem:[%s13 + $0x6c] sm:$0xf]
  %v190 = vld [vmem:[%s13 + $0x70] sm:$0xf]
  %v191 = vld [vmem:[%s13 + $0x74] sm:$0xf]
  %v192 = vld [vmem:[%s13 + $0x78] sm:$0xf]
  %v193 = vld [vmem:[%s13 + $0x7c] sm:$0xf]
  %v194 = vld [vmem:[%s13 + $0x80] sm:$0xf]
  %v195 = vld [vmem:[%s13 + $0x84] sm:$0xf]
  %v196 = vld [vmem:[%s13 + $0x88] sm:$0xf]
  %v197 = vld [vmem:[%s13 + $0x8c] sm:$0xf]
  %v198 = vld [vmem:[%s13 + $0x90] sm:$0xf]
  %v199 = vld [vmem:[%s13 + $0x94] sm:$0xf]
  %v200 = vld [vmem:[%s13 + $0x98] sm:$0xf]
  %v201 = vld [vmem:[%s13 + $0x9c] sm:$0xf]
  %v202 = vld [vmem:[%s13 + $0xa0] sm:$0xf]
  %v203 = vld [vmem:[%s13 + $0xa4] sm:$0xf]
  %v204 = vld [vmem:[%s13 + $0xa8] sm:$0xf]
  %v205 = vld [vmem:[%s13 + $0xac] sm:$0xf]
  %v206 = vld [vmem:[%s13 + $0xb0] sm:$0xf]
  %v207 = vld [vmem:[%s13 + $0xb4] sm:$0xf]
  %v208 = vld [vmem:[%s13 + $0xb8] sm:$0xf]
  %v209 = vld [vmem:[%s13 + $0xbc] sm:$0xf]
  %v210 = vld [vmem:[%s13 + $0xc0] sm:$0xf]
  %v211 = vld [vmem:[%s13 + $0xc4] sm:$0xf]
  %v212 = vld [vmem:[%s13 + $0xc8] sm:$0xf]
  %v213 = vld [vmem:[%s13 + $0xcc] sm:$0xf]
  %v214 = vld [vmem:[%s13 + $0xd0] sm:$0xf]
  %v215 = vld [vmem:[%s13 + $0xd4] sm:$0xf]
  %v216 = vld [vmem:[%s13 + $0xd8] sm:$0xf]
  %v217 = vld [vmem:[%s13 + $0xdc] sm:$0xf]
  %v218 = vld [vmem:[%s13 + $0xe0] sm:$0xf]
  %v219 = vld [vmem:[%s13 + $0xe4] sm:$0xf]
  %v220 = vld [vmem:[%s13 + $0xe8] sm:$0xf]
  %v221 = vld [vmem:[%s13 + $0xec] sm:$0xf]
  %v222 = vld [vmem:[%s13 + $0xf0] sm:$0xf]
  %v223 = vld [vmem:[%s13 + $0xf4] sm:$0xf]
  %v224 = vld [vmem:[%s13 + $0xf8] sm:$0xf]
  %v225 = vld [vmem:[%s13 + $0xfc] sm:$0xf]
  %v226 = vld [vmem:[%s13 + $0x100] sm:$0xf]
  %v227 = vld [vmem:[%s13 + $0x104] sm:$0xf]
  %v228 = vld [vmem:[%s13 + $0x108] sm:$0xf]
  %v229 = vld [vmem:[%s13 + $0x10c] sm:$0xf]
  %v230 = vld [vmem:[%s13 + $0x110] sm:$0xf]
  %v231 = vld [vmem:[%s13 + $0x114] sm:$0xf]
  %v232 = vld [vmem:[%s13 + $0x118] sm:$0xf]
  %v233 = vld [vmem:[%s13 + $0x11c] sm:$0xf]
  %v234 = vld [vmem:[%s13 + $0x120] sm:$0xf]
  %v235 = vld [vmem:[%s13 + $0x124] sm:$0xf]
  %v236 = vld [vmem:[%s13 + $0x128] sm:$0xf]
  %v237 = vld [vmem:[%s13 + $0x12c] sm:$0xf]
  %v238 = vld [vmem:[%s13 + $0x130] sm:$0xf]
  %v239 = vld [vmem:[%s13 + $0x134] sm:$0xf]
  %v240 = vld [vmem:[%s13 + $0x138] sm:$0xf]
  %v241 = vld [vmem:[%s13 + $0x13c] sm:$0xf]
  %v242 = vld [vmem:[%s13 + $0x140] sm:$0xf]
  %v243 = vld [vmem:[%s13 + $0x144] sm:$0xf]
  %v244 = vld [vmem:[%s13 + $0x148] sm:$0xf]
  %v245 = vld [vmem:[%s13 + $0x14c] sm:$0xf]
  %v246 = vld [vmem:[%s13 + $0x150] sm:$0xf]
  %v247 = vld [vmem:[%s13 + $0x154] sm:$0xf]
  %v248 = vld [vmem:[%s13 + $0x158] sm:$0xf]
  %v249 = vld [vmem:[%s13 + $0x15c] sm:$0xf]
  %v250 = vld [vmem:[%s13 + $0x160] sm:$0xf]
  %v251 = vld [vmem:[%s13 + $0x164] sm:$0xf]
  %v252 = vld [vmem:[%s13 + $0x168] sm:$0xf]
  %v253 = vld [vmem:[%s13 + $0x16c] sm:$0xf]
  %v254 = vld [vmem:[%s13 + $0x170] sm:$0xf]
  %v255 = vld [vmem:[%s13 + $0x174] sm:$0xf]
  %v256 = vld [vmem:[%s13 + $0x178] sm:$0xf]
  %v257 = vld [vmem:[%s13 + $0x17c] sm:$0xf]
  %v258 = vld [vmem:[%s15] sm:$0x1]
  %v260 = vlaneseq
  %v261 = vshrl.u32 %v260, 7
  %v262 = vsub.s32 0, %v261
  %v263 = vrot.slane %v258, %v262
  %v268 = vunpack.c.l.b16 %v159
  %v269 = vunpack.c.h.b16 %v159
  %v270 = vunpack.c.l.b16 %v160
  %v271 = vunpack.c.h.b16 %v160
  %v272 = vunpack.c.l.b16 %v161
  %v273 = vunpack.c.h.b16 %v161
  %v274 = vpack.c.b16 %v268, %v268
  %v275 = vpack.c.b16 %v269, %v269
  %v276 = vpack.c.b16 %v270, %v270
  %v277 = vpack.c.b16 %v271, %v271
  %v278 = vpack.c.b16 %v272, %v272
  %v279 = vpack.c.b16 %v273, %v273
  %v382 = vunpack.c.l.b16 %v162
  %v383 = vunpack.c.l.b16 %v163
  %v384 = vunpack.c.l.b16 %v164
  %v385 = vunpack.c.l.b16 %v165
  %v386 = vunpack.c.l.b16 %v166
  %v387 = vunpack.c.l.b16 %v167
  %v388 = vunpack.c.l.b16 %v168
  %v389 = vunpack.c.l.b16 %v169
  %v390 = vunpack.c.l.b16 %v170
  %v391 = vunpack.c.l.b16 %v171
  %v392 = vunpack.c.l.b16 %v172
  %v393 = vunpack.c.l.b16 %v173
  %v394 = vunpack.c.l.b16 %v174
  %v395 = vunpack.c.l.b16 %v175
  %v396 = vunpack.c.l.b16 %v176
  %v397 = vunpack.c.l.b16 %v177
  %v398 = vunpack.c.l.b16 %v178
  %v399 = vunpack.c.l.b16 %v179
  %v400 = vunpack.c.l.b16 %v180
  %v401 = vunpack.c.l.b16 %v181
  %v402 = vunpack.c.l.b16 %v182
  %v403 = vunpack.c.l.b16 %v183
  %v404 = vunpack.c.l.b16 %v184
  %v405 = vunpack.c.l.b16 %v185
  %v406 = vunpack.c.l.b16 %v186
  %v407 = vunpack.c.l.b16 %v187
  %v408 = vunpack.c.l.b16 %v188
  %v409 = vunpack.c.l.b16 %v189
  %v410 = vunpack.c.l.b16 %v190
  %v411 = vunpack.c.l.b16 %v191
  %v412 = vunpack.c.l.b16 %v192
  %v413 = vunpack.c.l.b16 %v193
  %v414 = vunpack.c.l.b16 %v194
  %v415 = vunpack.c.l.b16 %v195
  %v416 = vunpack.c.l.b16 %v196
  %v417 = vunpack.c.l.b16 %v197
  %v418 = vunpack.c.l.b16 %v198
  %v419 = vunpack.c.l.b16 %v199
  %v420 = vunpack.c.l.b16 %v200
  %v421 = vunpack.c.l.b16 %v201
  %v422 = vunpack.c.l.b16 %v202
  %v423 = vunpack.c.l.b16 %v203
  %v424 = vunpack.c.l.b16 %v204
  %v425 = vunpack.c.l.b16 %v205
  %v426 = vunpack.c.l.b16 %v206
  %v427 = vunpack.c.l.b16 %v207
  %v428 = vunpack.c.l.b16 %v208
  %v429 = vunpack.c.l.b16 %v209
  %v430 = vunpack.c.l.b16 %v210
  %v431 = vunpack.c.l.b16 %v211
  %v432 = vunpack.c.l.b16 %v212
  %v433 = vunpack.c.l.b16 %v213
  %v434 = vunpack.c.l.b16 %v214
  %v435 = vunpack.c.l.b16 %v215
  %v436 = vunpack.c.l.b16 %v216
  %v437 = vunpack.c.l.b16 %v217
  %v438 = vunpack.c.l.b16 %v218
  %v439 = vunpack.c.l.b16 %v219
  %v440 = vunpack.c.l.b16 %v220
  %v441 = vunpack.c.l.b16 %v221
  %v442 = vunpack.c.l.b16 %v222
  %v443 = vunpack.c.l.b16 %v223
  %v444 = vunpack.c.l.b16 %v224
  %v445 = vunpack.c.l.b16 %v225
  %v446 = vunpack.c.l.b16 %v226
  %v447 = vunpack.c.l.b16 %v227
  %v448 = vunpack.c.l.b16 %v228
  %v449 = vunpack.c.l.b16 %v229
  %v450 = vunpack.c.l.b16 %v230
  %v451 = vunpack.c.l.b16 %v231
  %v452 = vunpack.c.l.b16 %v232
  %v453 = vunpack.c.l.b16 %v233
  %v454 = vunpack.c.l.b16 %v234
  %v455 = vunpack.c.l.b16 %v235
  %v456 = vunpack.c.l.b16 %v236
  %v457 = vunpack.c.l.b16 %v237
  %v458 = vunpack.c.l.b16 %v238
  %v459 = vunpack.c.l.b16 %v239
  %v460 = vunpack.c.l.b16 %v240
  %v461 = vunpack.c.l.b16 %v241
  %v462 = vunpack.c.l.b16 %v242
  %v463 = vunpack.c.l.b16 %v243
  %v464 = vunpack.c.l.b16 %v244
  %v465 = vunpack.c.l.b16 %v245
  %v466 = vunpack.c.l.b16 %v246
  %v467 = vunpack.c.l.b16 %v247
  %v468 = vunpack.c.l.b16 %v248
  %v469 = vunpack.c.l.b16 %v249
  %v470 = vunpack.c.l.b16 %v250
  %v471 = vunpack.c.l.b16 %v251
  %v472 = vunpack.c.l.b16 %v252
  %v473 = vunpack.c.l.b16 %v253
  %v474 = vunpack.c.l.b16 %v254
  %v475 = vunpack.c.l.b16 %v255
  %v476 = vunpack.c.l.b16 %v256
  %v477 = vunpack.c.l.b16 %v257
  %v478 = vpack.c.b16 %v383, %v382
  %v479 = vpack.c.b16 %v385, %v384
  %v480 = vpack.c.b16 %v387, %v386
  %v481 = vpack.c.b16 %v389, %v388
  %v482 = vpack.c.b16 %v391, %v390
  %v483 = vpack.c.b16 %v393, %v392
  %v484 = vpack.c.b16 %v395, %v394
  %v485 = vpack.c.b16 %v397, %v396
  %v486 = vpack.c.b16 %v399, %v398
  %v487 = vpack.c.b16 %v401, %v400
  %v488 = vpack.c.b16 %v403, %v402
  %v489 = vpack.c.b16 %v405, %v404
  %v490 = vpack.c.b16 %v407, %v406
  %v491 = vpack.c.b16 %v409, %v408
  %v492 = vpack.c.b16 %v411, %v410
  %v493 = vpack.c.b16 %v413, %v412
  %v494 = vpack.c.b16 %v415, %v414
  %v495 = vpack.c.b16 %v417, %v416
  %v496 = vpack.c.b16 %v419, %v418
  %v497 = vpack.c.b16 %v421, %v420
  %v498 = vpack.c.b16 %v423, %v422
  %v499 = vpack.c.b16 %v425, %v424
  %v500 = vpack.c.b16 %v427, %v426
  %v501 = vpack.c.b16 %v429, %v428
  %v502 = vpack.c.b16 %v431, %v430
  %v503 = vpack.c.b16 %v433, %v432
  %v504 = vpack.c.b16 %v435, %v434
  %v505 = vpack.c.b16 %v437, %v436
  %v506 = vpack.c.b16 %v439, %v438
  %v507 = vpack.c.b16 %v441, %v440
  %v508 = vpack.c.b16 %v443, %v442
  %v509 = vpack.c.b16 %v445, %v444
  %v510 = vpack.c.b16 %v447, %v446
  %v511 = vpack.c.b16 %v449, %v448
  %v512 = vpack.c.b16 %v451, %v450
  %v513 = vpack.c.b16 %v453, %v452
  %v514 = vpack.c.b16 %v455, %v454
  %v515 = vpack.c.b16 %v457, %v456
  %v516 = vpack.c.b16 %v459, %v458
  %v517 = vpack.c.b16 %v461, %v460
  %v518 = vpack.c.b16 %v463, %v462
  %v519 = vpack.c.b16 %v465, %v464
  %v520 = vpack.c.b16 %v467, %v466
  %v521 = vpack.c.b16 %v469, %v468
  %v522 = vpack.c.b16 %v471, %v470
  %v523 = vpack.c.b16 %v473, %v472
  %v524 = vpack.c.b16 %v475, %v474
  %v525 = vpack.c.b16 %v477, %v476
  %574 = vmatprep.subr.bf16.mxu0 0
  %575 = vmatpush1.bf16.msra.mxu0 %v478
  %576 = vmatprep.subr.bf16.mxu0 0
  %577 = vmatpush1.bf16.msra.mxu0 %v479
  %578 = vmatprep.subr.bf16.mxu0 0
  %579 = vmatpush1.bf16.msra.mxu0 %v480
  %580 = vmatprep.subr.bf16.mxu0 0
  %581 = vmatpush1.bf16.msra.mxu0 %v481
  %582 = vmatprep.subr.bf16.mxu0 0
  %583 = vmatpush1.bf16.msra.mxu0 %v482
  %584 = vmatprep.subr.bf16.mxu0 0
  %585 = vmatpush1.bf16.msra.mxu0 %v483
  %586 = vmatprep.subr.bf16.mxu0 0
  %587 = vmatpush1.bf16.msra.mxu0 %v484
  %588 = vmatprep.subr.bf16.mxu0 0
  %589 = vmatpush1.bf16.msra.mxu0 %v485
  %590 = vmatprep.subr.bf16.mxu0 0
  %591 = vmatpush1.bf16.msra.mxu0 %v486
  %592 = vmatprep.subr.bf16.mxu0 0
  %593 = vmatpush1.bf16.msra.mxu0 %v487
  %594 = vmatprep.subr.bf16.mxu0 0
  %595 = vmatpush1.bf16.msra.mxu0 %v488
  %596 = vmatprep.subr.bf16.mxu0 0
  %597 = vmatpush1.bf16.msra.mxu0 %v489
  %598 = vmatprep.subr.bf16.mxu0 0
  %599 = vmatpush1.bf16.msra.mxu0 %v490
  %600 = vmatprep.subr.bf16.mxu0 0
  %601 = vmatpush1.bf16.msra.mxu0 %v491
  %602 = vmatprep.subr.bf16.mxu0 0
  %603 = vmatpush1.bf16.msra.mxu0 %v492
  %604 = vmatprep.subr.bf16.mxu0 0
  %605 = vmatpush1.bf16.msra.mxu0 %v493
  %606 = vmatprep.mubr.bf16.mxu0 %v275
  %607 = vmatmul.mubr.bf16.gmra.mrb[0].mxu0 %v274
  %v608 = vpop.f32.mrb[0].mxu0
  %v609 = vadd.f32 %v263, %v608
  %v610 = vpop.f32.mrb[0].mxu0
  %v611 = vpop.f32.mrb[0].mxu0
  %v612 = vpop.f32.mrb[0].mxu0
  %613 = vdwg.mxu0
  %614 = vmatprep.subr.bf16.mxu0 0
  %615 = vmatpush1.bf16.msra.mxu0 %v494
  %616 = vmatprep.subr.bf16.mxu0 0
  %617 = vmatpush1.bf16.msra.mxu0 %v495
  %618 = vmatprep.subr.bf16.mxu0 0
  %619 = vmatpush1.bf16.msra.mxu0 %v496
  %620 = vmatprep.subr.bf16.mxu0 0
  %621 = vmatpush1.bf16.msra.mxu0 %v497
  %622 = vmatprep.subr.bf16.mxu0 0
  %623 = vmatpush1.bf16.msra.mxu0 %v498
  %624 = vmatprep.subr.bf16.mxu0 0
  %625 = vmatpush1.bf16.msra.mxu0 %v499
  %626 = vmatprep.subr.bf16.mxu0 0
  %627 = vmatpush1.bf16.msra.mxu0 %v500
  %628 = vmatprep.subr.bf16.mxu0 0
  %629 = vmatpush1.bf16.msra.mxu0 %v501
  %630 = vmatprep.subr.bf16.mxu0 0
  %631 = vmatpush1.bf16.msra.mxu0 %v502
  %632 = vmatprep.subr.bf16.mxu0 0
  %633 = vmatpush1.bf16.msra.mxu0 %v503
  %634 = vmatprep.subr.bf16.mxu0 0
  %635 = vmatpush1.bf16.msra.mxu0 %v504
  %636 = vmatprep.subr.bf16.mxu0 0
  %637 = vmatpush1.bf16.msra.mxu0 %v505
  %638 = vmatprep.subr.bf16.mxu0 0
  %639 = vmatpush1.bf16.msra.mxu0 %v506
  %640 = vmatprep.subr.bf16.mxu0 0
  %641 = vmatpush1.bf16.msra.mxu0 %v507
  %642 = vmatprep.subr.bf16.mxu0 0
  %643 = vmatpush1.bf16.msra.mxu0 %v508
  %644 = vmatprep.subr.bf16.mxu0 0
  %645 = vmatpush1.bf16.msra.mxu0 %v509
  %646 = vmatprep.mubr.bf16.mxu0 %v277
  %647 = vmatmul.mubr.bf16.gmra.mrb[0].mxu0 %v276
  %v648 = vpop.f32.mrb[0].mxu0
  %v649 = vadd.f32 %v609, %v648
  %v650 = vpop.f32.mrb[0].mxu0
  %v651 = vpop.f32.mrb[0].mxu0
  %v652 = vpop.f32.mrb[0].mxu0
  %653 = vdwg.mxu0
  %654 = vmatprep.subr.bf16.mxu0 0
  %655 = vmatpush1.bf16.msra.mxu0 %v510
  %656 = vmatprep.subr.bf16.mxu0 0
  %657 = vmatpush1.bf16.msra.mxu0 %v511
  %658 = vmatprep.subr.bf16.mxu0 0
  %659 = vmatpush1.bf16.msra.mxu0 %v512
  %660 = vmatprep.subr.bf16.mxu0 0
  %661 = vmatpush1.bf16.msra.mxu0 %v513
  %662 = vmatprep.subr.bf16.mxu0 0
  %663 = vmatpush1.bf16.msra.mxu0 %v514
  %664 = vmatprep.subr.bf16.mxu0 0
  %665 = vmatpush1.bf16.msra.mxu0 %v515
  %666 = vmatprep.subr.bf16.mxu0 0
  %667 = vmatpush1.bf16.msra.mxu0 %v516
  %668 = vmatprep.subr.bf16.mxu0 0
  %669 = vmatpush1.bf16.msra.mxu0 %v517
  %670 = vmatprep.subr.bf16.mxu0 0
  %671 = vmatpush1.bf16.msra.mxu0 %v518
  %672 = vmatprep.subr.bf16.mxu0 0
  %673 = vmatpush1.bf16.msra.mxu0 %v519
  %674 = vmatprep.subr.bf16.mxu0 0
  %675 = vmatpush1.bf16.msra.mxu0 %v520
  %676 = vmatprep.subr.bf16.mxu0 0
  %677 = vmatpush1.bf16.msra.mxu0 %v521
  %678 = vmatprep.subr.bf16.mxu0 0
  %679 = vmatpush1.bf16.msra.mxu0 %v522
  %680 = vmatprep.subr.bf16.mxu0 0
  %681 = vmatpush1.bf16.msra.mxu0 %v523
  %682 = vmatprep.subr.bf16.mxu0 0
  %683 = vmatpush1.bf16.msra.mxu0 %v524
  %684 = vmatprep.subr.bf16.mxu0 0
  %685 = vmatpush1.bf16.msra.mxu0 %v525
  %686 = vmatprep.mubr.bf16.mxu0 %v279
  %687 = vmatmul.mubr.bf16.gmra.mrb[0].mxu0 %v278
  %v688 = vpop.f32.mrb[0].mxu0
  %v689 = vadd.f32 %v649, %v688
  %v690 = vpop.f32.mrb[0].mxu0
  %v691 = vpop.f32.mrb[0].mxu0
  %v692 = vpop.f32.mrb[0].mxu0
  %693 = vdwg.mxu0
  %v694 = vld [vmem:[%s3] sm:$0xff]
  %v695 = vadd.f32 %v689, %v694
  %v696 = vld [vmem:[%s9] sm:$0xff]
  %v697 = vld [vmem:[%s17] sm:$0x1]
  %v698 = vld [vmem:[%s19] sm:$0x1]
  %vm699 = vcmask 523264
  %v700 = vsel %vm699, %v695, 0.0
  %701 = vadd.xlane.f32.xlu0 %v700
  %v702 = vpop.xlane.xlu0 %701
  %v703 = vrcp.pop 64.0
  %v704 = vmul.f32 %v702, %v703
  %v705 = vsub.f32 %v695, %v704
  %v706 = vmul.f32 %v705, %v705
  %v707 = vsel %vm699, %v706, 0.0
  %708 = vadd.xlane.f32.xlu0 %v707
  %v709 = vpop.xlane.xlu0 %708
  %v710 = vmul.f32 %v709, %v703
  %v711 = vadd.f32 %v710, 1e-06
  %v712 = vrsqrt.pop %v711
  %v713 = vmul.f32 %v705, %v712
  %v715 = vlaneseq
  %v716 = vshrl.u32 %v715, 7
  %v717 = vsub.s32 0, %v716
  %v718 = vrot.slane %v697, %v717
  %v720 = vmul.f32 %v713, %v718
  %v722 = vlaneseq
  %v723 = vshrl.u32 %v722, 7
  %v724 = vsub.s32 0, %v723
  %v725 = vrot.slane %v698, %v724
  %v727 = vadd.f32 %v720, %v725
  %v728 = vpack.c.bf16 %v727, %v727
  %v729 = vld [vmem:[%s21] sm:$0xf]
  %v730 = vld [vmem:[%s21 + $0x4] sm:$0xf]
  %v731 = vld [vmem:[%s21 + $0x8] sm:$0xf]
  %v732 = vld [vmem:[%s21 + $0xc] sm:$0xf]
  %v733 = vld [vmem:[%s21 + $0x10] sm:$0xf]
  %v734 = vld [vmem:[%s21 + $0x14] sm:$0xf]
  %v735 = vld [vmem:[%s21 + $0x18] sm:$0xf]
  %v736 = vld [vmem:[%s21 + $0x1c] sm:$0xf]
  %v737 = vld [vmem:[%s23] sm:$0x1]
  %v739 = vlaneseq
  %v740 = vshrl.u32 %v739, 7
  %v741 = vsub.s32 0, %v740
  %v742 = vrot.slane %v737, %v741
  %v752 = vunpack.c.l.b16 %v729
  %v753 = vunpack.c.l.b16 %v730
  %v754 = vunpack.c.l.b16 %v731
  %v755 = vunpack.c.l.b16 %v732
  %v756 = vunpack.c.l.b16 %v733
  %v757 = vunpack.c.l.b16 %v734
  %v758 = vunpack.c.l.b16 %v735
  %v759 = vunpack.c.l.b16 %v736
  %v760 = vpack.c.b16 %v753, %v752
  %v761 = vpack.c.b16 %v755, %v754
  %v762 = vpack.c.b16 %v757, %v756
  %v763 = vpack.c.b16 %v759, %v758
  %v769 = vsel %vm699, %v728, 0
  %771 = vmatprep.subr.bf16.mxu0 0
  %772 = vmatpush1.bf16.msra.mxu0 %v760
  %773 = vmatprep.subr.bf16.mxu0 0
  %774 = vmatpush1.bf16.msra.mxu0 %v761
  %775 = vmatprep.subr.bf16.mxu0 0
  %776 = vmatpush1.bf16.msra.mxu0 %v762
  %777 = vmatprep.subr.bf16.mxu0 0
  %778 = vmatpush1.bf16.msra.mxu0 %v763
  %779 = vmatprep.subr.bf16.mxu0 0
  %780 = vmatpush1.bf16.msra.mxu0 0
  %781 = vmatprep.subr.bf16.mxu0 0
  %782 = vmatpush1.bf16.msra.mxu0 0
  %783 = vmatprep.subr.bf16.mxu0 0
  %784 = vmatpush1.bf16.msra.mxu0 0
  %785 = vmatprep.subr.bf16.mxu0 0
  %786 = vmatpush1.bf16.msra.mxu0 0
  %787 = vmatprep.subr.bf16.mxu0 0
  %788 = vmatpush1.bf16.msra.mxu0 0
  %789 = vmatprep.subr.bf16.mxu0 0
  %790 = vmatpush1.bf16.msra.mxu0 0
  %791 = vmatprep.subr.bf16.mxu0 0
  %792 = vmatpush1.bf16.msra.mxu0 0
  %793 = vmatprep.subr.bf16.mxu0 0
  %794 = vmatpush1.bf16.msra.mxu0 0
  %795 = vmatprep.subr.bf16.mxu0 0
  %796 = vmatpush1.bf16.msra.mxu0 0
  %797 = vmatprep.subr.bf16.mxu0 0
  %798 = vmatpush1.bf16.msra.mxu0 0
  %799 = vmatprep.subr.bf16.mxu0 0
  %800 = vmatpush1.bf16.msra.mxu0 0
  %801 = vmatprep.subr.bf16.mxu0 0
  %802 = vmatpush1.bf16.msra.mxu0 0
  %803 = vmatprep.mubr.bf16.mxu0 0
  %804 = vmatmul.mubr.bf16.gmra.mrb[0].mxu0 %v769
  %v805 = vpop.f32.mrb[0].mxu0
  %v806 = vadd.f32 %v742, %v805
  %v807 = vpop.f32.mrb[0].mxu0
  %v808 = vpop.f32.mrb[0].mxu0
  %v809 = vpop.f32.mrb[0].mxu0
  %810 = vdwg.mxu0
  %v811 = vld [vmem:[%s25] sm:$0xf]
  %v812 = vld [vmem:[%s25 + $0x4] sm:$0xf]
  %v813 = vld [vmem:[%s25 + $0x8] sm:$0xf]
  %v814 = vld [vmem:[%s25 + $0xc] sm:$0xf]
  %v815 = vld [vmem:[%s25 + $0x10] sm:$0xf]
  %v816 = vld [vmem:[%s25 + $0x14] sm:$0xf]
  %v817 = vld [vmem:[%s25 + $0x18] sm:$0xf]
  %v818 = vld [vmem:[%s25 + $0x1c] sm:$0xf]
  %v819 = vld [vmem:[%s27] sm:$0x1]
  %v821 = vlaneseq
  %v822 = vshrl.u32 %v821, 7
  %v823 = vsub.s32 0, %v822
  %v824 = vrot.slane %v819, %v823
  %v834 = vunpack.c.l.b16 %v811
  %v835 = vunpack.c.l.b16 %v812
  %v836 = vunpack.c.l.b16 %v813
  %v837 = vunpack.c.l.b16 %v814
  %v838 = vunpack.c.l.b16 %v815
  %v839 = vunpack.c.l.b16 %v816
  %v840 = vunpack.c.l.b16 %v817
  %v841 = vunpack.c.l.b16 %v818
  %v842 = vpack.c.b16 %v835, %v834
  %v843 = vpack.c.b16 %v837, %v836
  %v844 = vpack.c.b16 %v839, %v838
  %v845 = vpack.c.b16 %v841, %v840
  %850 = vmatprep.subr.bf16.mxu0 0
  %851 = vmatpush1.bf16.msra.mxu0 %v842
  %852 = vmatprep.subr.bf16.mxu0 0
  %853 = vmatpush1.bf16.msra.mxu0 %v843
  %854 = vmatprep.subr.bf16.mxu0 0
  %855 = vmatpush1.bf16.msra.mxu0 %v844
  %856 = vmatprep.subr.bf16.mxu0 0
  %857 = vmatpush1.bf16.msra.mxu0 %v845
  %858 = vmatprep.subr.bf16.mxu0 0
  %859 = vmatpush1.bf16.msra.mxu0 0
  %860 = vmatprep.subr.bf16.mxu0 0
  %861 = vmatpush1.bf16.msra.mxu0 0
  %862 = vmatprep.subr.bf16.mxu0 0
  %863 = vmatpush1.bf16.msra.mxu0 0
  %864 = vmatprep.subr.bf16.mxu0 0
  %865 = vmatpush1.bf16.msra.mxu0 0
  %866 = vmatprep.subr.bf16.mxu0 0
  %867 = vmatpush1.bf16.msra.mxu0 0
  %868 = vmatprep.subr.bf16.mxu0 0
  %869 = vmatpush1.bf16.msra.mxu0 0
  %870 = vmatprep.subr.bf16.mxu0 0
  %871 = vmatpush1.bf16.msra.mxu0 0
  %872 = vmatprep.subr.bf16.mxu0 0
  %873 = vmatpush1.bf16.msra.mxu0 0
  %874 = vmatprep.subr.bf16.mxu0 0
  %875 = vmatpush1.bf16.msra.mxu0 0
  %876 = vmatprep.subr.bf16.mxu0 0
  %877 = vmatpush1.bf16.msra.mxu0 0
  %878 = vmatprep.subr.bf16.mxu0 0
  %879 = vmatpush1.bf16.msra.mxu0 0
  %880 = vmatprep.subr.bf16.mxu0 0
  %881 = vmatpush1.bf16.msra.mxu0 0
  %882 = vmatprep.mubr.bf16.mxu0 0
  %883 = vmatmul.mubr.bf16.gmra.mrb[0].mxu0 %v769
  %v884 = vpop.f32.mrb[0].mxu0
  %v885 = vadd.f32 %v824, %v884
  %v886 = vpop.f32.mrb[0].mxu0
  %v887 = vpop.f32.mrb[0].mxu0
  %v888 = vpop.f32.mrb[0].mxu0
  %889 = vdwg.mxu0
  %v890 = vld [vmem:[%s29] sm:$0xf]
  %v891 = vld [vmem:[%s29 + $0x4] sm:$0xf]
  %v892 = vld [vmem:[%s29 + $0x8] sm:$0xf]
  %v893 = vld [vmem:[%s29 + $0xc] sm:$0xf]
  %v894 = vld [vmem:[%s29 + $0x10] sm:$0xf]
  %v895 = vld [vmem:[%s29 + $0x14] sm:$0xf]
  %v896 = vld [vmem:[%s29 + $0x18] sm:$0xf]
  %v897 = vld [vmem:[%s29 + $0x1c] sm:$0xf]
  %v898 = vld [vmem:[%s31] sm:$0x1]
  %v900 = vlaneseq
  %v901 = vshrl.u32 %v900, 7
  %v902 = vsub.s32 0, %v901
  %v903 = vrot.slane %v898, %v902
  %v913 = vunpack.c.l.b16 %v890
  %v914 = vunpack.c.l.b16 %v891
  %v915 = vunpack.c.l.b16 %v892
  %v916 = vunpack.c.l.b16 %v893
  %v917 = vunpack.c.l.b16 %v894
  %v918 = vunpack.c.l.b16 %v895
  %v919 = vunpack.c.l.b16 %v896
  %v920 = vunpack.c.l.b16 %v897
  %v921 = vpack.c.b16 %v914, %v913
  %v922 = vpack.c.b16 %v916, %v915
  %v923 = vpack.c.b16 %v918, %v917
  %v924 = vpack.c.b16 %v920, %v919
  %929 = vmatprep.subr.bf16.mxu0 0
  %930 = vmatpush1.bf16.msra.mxu0 %v921
  %931 = vmatprep.subr.bf16.mxu0 0
  %932 = vmatpush1.bf16.msra.mxu0 %v922
  %933 = vmatprep.subr.bf16.mxu0 0
  %934 = vmatpush1.bf16.msra.mxu0 %v923
  %935 = vmatprep.subr.bf16.mxu0 0
  %936 = vmatpush1.bf16.msra.mxu0 %v924
  %937 = vmatprep.subr.bf16.mxu0 0
  %938 = vmatpush1.bf16.msra.mxu0 0
  %939 = vmatprep.subr.bf16.mxu0 0
  %940 = vmatpush1.bf16.msra.mxu0 0
  %941 = vmatprep.subr.bf16.mxu0 0
  %942 = vmatpush1.bf16.msra.mxu0 0
  %943 = vmatprep.subr.bf16.mxu0 0
  %944 = vmatpush1.bf16.msra.mxu0 0
  %945 = vmatprep.subr.bf16.mxu0 0
  %946 = vmatpush1.bf16.msra.mxu0 0
  %947 = vmatprep.subr.bf16.mxu0 0
  %948 = vmatpush1.bf16.msra.mxu0 0
  %949 = vmatprep.subr.bf16.mxu0 0
  %950 = vmatpush1.bf16.msra.mxu0 0
  %951 = vmatprep.subr.bf16.mxu0 0
  %952 = vmatpush1.bf16.msra.mxu0 0
  %953 = vmatprep.subr.bf16.mxu0 0
  %954 = vmatpush1.bf16.msra.mxu0 0
  %955 = vmatprep.subr.bf16.mxu0 0
  %956 = vmatpush1.bf16.msra.mxu0 0
  %957 = vmatprep.subr.bf16.mxu0 0
  %958 = vmatpush1.bf16.msra.mxu0 0
  %959 = vmatprep.subr.bf16.mxu0 0
  %960 = vmatpush1.bf16.msra.mxu0 0
  %961 = vmatprep.mubr.bf16.mxu0 0
  %962 = vmatmul.mubr.bf16.gmra.mrb[0].mxu0 %v769
  %v963 = vpop.f32.mrb[0].mxu0
  %v964 = vadd.f32 %v903, %v963
  %v965 = vpop.f32.mrb[0].mxu0
  %v966 = vpop.f32.mrb[0].mxu0
  %v967 = vpop.f32.mrb[0].mxu0
  %968 = vdwg.mxu0
  %v969 = vpack.c.bf16 %v806, %v806
  %v970 = vpack.c.bf16 %v885, %v885
  %vm971 = vcmask 130048
  %v973 = vsel %vm971, %v969, 0
  %v976 = vsel %vm971, %v970, 0
  %978 = vmatprep.subr.bf16.mxu0 0
  %979 = vmatpush1.bf16.xpose.msra.mxu0 %v976
  %980 = vmatprep.subr.bf16.mxu0 0
  %981 = vmatpush1.bf16.xpose.msra.mxu0 0
  %982 = vmatprep.subr.bf16.mxu0 0
  %983 = vmatpush1.bf16.xpose.msra.mxu0 0
  %984 = vmatprep.subr.bf16.mxu0 0
  %985 = vmatpush1.bf16.xpose.msra.mxu0 0
  %986 = vmatprep.subr.bf16.mxu0 0
  %987 = vmatpush1.bf16.xpose.msra.mxu0 0
  %988 = vmatprep.subr.bf16.mxu0 0
  %989 = vmatpush1.bf16.xpose.msra.mxu0 0
  %990 = vmatprep.subr.bf16.mxu0 0
  %991 = vmatpush1.bf16.xpose.msra.mxu0 0
  %992 = vmatprep.subr.bf16.mxu0 0
  %993 = vmatpush1.bf16.xpose.msra.mxu0 0
  %994 = vmatprep.subr.bf16.mxu0 0
  %995 = vmatpush1.bf16.xpose.msra.mxu0 0
  %996 = vmatprep.subr.bf16.mxu0 0
  %997 = vmatpush1.bf16.xpose.msra.mxu0 0
  %998 = vmatprep.subr.bf16.mxu0 0
  %999 = vmatpush1.bf16.xpose.msra.mxu0 0
  %1000 = vmatprep.subr.bf16.mxu0 0
  %1001 = vmatpush1.bf16.xpose.msra.mxu0 0
  %1002 = vmatprep.subr.bf16.mxu0 0
  %1003 = vmatpush1.bf16.xpose.msra.mxu0 0
  %1004 = vmatprep.subr.bf16.mxu0 0
  %1005 = vmatpush1.bf16.xpose.msra.mxu0 0
  %1006 = vmatprep.subr.bf16.mxu0 0
  %1007 = vmatpush1.bf16.xpose.msra.mxu0 0
  %1008 = vmatprep.subr.bf16.mxu0 0
  %1009 = vmatpush1.bf16.xpose.msra.mxu0 0
  %1010 = vmatprep.mubr.bf16.mxu0 0
  %1011 = vmatmul.mubr.bf16.gmra.mrb[0].mxu0 %v973
  %v1012 = vpop.f32.mrb[0].mxu0
  %v1013 = vadd.f32 0.0, %v1012
  %v1014 = vpop.f32.mrb[0].mxu0
  %v1015 = vpop.f32.mrb[0].mxu0
  %v1016 = vpop.f32.mrb[0].mxu0
  %1017 = vdwg.mxu0
  %v1018 = vmul.f32 %v1013, 0.25
  %v1019 = vadd.f32 %v1018, %v696
  %vm1020 = vcmask 64512
  %v1021 = vsel %vm1020, %v1019, -inf
  %1022 = vmax.xlane.f32.xlu0 %v1021
  %v1023 = vpop.xlane.xlu0 %1022
  %v1024 = vsub.f32 %v1019, %v1023
  %v1025 = vmul.f32 %v1024, 1.442695
  %v1026 = vpow.pop %v1025
  %v1027 = vsel %vm1020, %v1026, 0.0
  %1028 = vadd.xlane.f32.xlu0 %v1027
  %v1029 = vpop.xlane.xlu0 %1028
  %v1030 = vrcp.pop %v1029
  %v1031 = vmul.f32 %v1026, %v1030
  %v1032 = vpack.c.bf16 %v1031, %v1031
  %v1033 = vpack.c.bf16 %v964, %v964
  %v1035 = vsel %vm1020, %v1032, 0
  %vm1037 = vcmask 1043456
  %v1039 = vsel %vm1037, %v1033, 0
  %1041 = vmatprep.subr.bf16.mxu0 0
  %1042 = vmatpush1.bf16.msra.mxu0 %v1039
  %1043 = vmatprep.subr.bf16.mxu0 0
  %1044 = vmatpush1.bf16.msra.mxu0 0
  %1045 = vmatprep.subr.bf16.mxu0 0
  %1046 = vmatpush1.bf16.msra.mxu0 0
  %1047 = vmatprep.subr.bf16.mxu0 0
  %1048 = vmatpush1.bf16.msra.mxu0 0
  %1049 = vmatprep.subr.bf16.mxu0 0
  %1050 = vmatpush1.bf16.msra.mxu0 0
  %1051 = vmatprep.subr.bf16.mxu0 0
  %1052 = vmatpush1.bf16.msra.mxu0 0
  %1053 = vmatprep.subr.bf16.mxu0 0
  %1054 = vmatpush1.bf16.msra.mxu0 0
  %1055 = vmatprep.subr.bf16.mxu0 0
  %1056 = vmatpush1.bf16.msra.mxu0 0
  %1057 = vmatprep.subr.bf16.mxu0 0
  %1058 = vmatpush1.bf16.msra.mxu0 0
  %1059 = vmatprep.subr.bf16.mxu0 0
  %1060 = vmatpush1.bf16.msra.mxu0 0
  %1061 = vmatprep.subr.bf16.mxu0 0
  %1062 = vmatpush1.bf16.msra.mxu0 0
  %1063 = vmatprep.subr.bf16.mxu0 0
  %1064 = vmatpush1.bf16.msra.mxu0 0
  %1065 = vmatprep.subr.bf16.mxu0 0
  %1066 = vmatpush1.bf16.msra.mxu0 0
  %1067 = vmatprep.subr.bf16.mxu0 0
  %1068 = vmatpush1.bf16.msra.mxu0 0
  %1069 = vmatprep.subr.bf16.mxu0 0
  %1070 = vmatpush1.bf16.msra.mxu0 0
  %1071 = vmatprep.subr.bf16.mxu0 0
  %1072 = vmatpush1.bf16.msra.mxu0 0
  %1073 = vmatprep.mubr.bf16.mxu0 0
  %1074 = vmatmul.mubr.bf16.gmra.mrb[0].mxu0 %v1035
  %v1075 = vpop.f32.mrb[0].mxu0
  %v1076 = vadd.f32 0.0, %v1075
  %v1077 = vpop.f32.mrb[0].mxu0
  %v1078 = vpop.f32.mrb[0].mxu0
  %v1079 = vpop.f32.mrb[0].mxu0
  %1080 = vdwg.mxu0
  %v1081 = vpack.c.bf16 %v1076, %v1076
  %v1082 = vld [vmem:[%s33] sm:$0xf]
  %v1083 = vld [vmem:[%s33 + $0x4] sm:$0xf]
  %s1084 = scalar_lea.vmem %s21, 32
  %v1085 = vld [vmem:[%s1084] sm:$0xf]
  %v1086 = vld [vmem:[%s1084 + $0x4] sm:$0xf]
  %v1087 = vld [vmem:[%s1084 + $0x8] sm:$0xf]
  %v1088 = vld [vmem:[%s1084 + $0xc] sm:$0xf]
  %v1089 = vld [vmem:[%s1084 + $0x10] sm:$0xf]
  %v1090 = vld [vmem:[%s1084 + $0x14] sm:$0xf]
  %v1091 = vld [vmem:[%s1084 + $0x18] sm:$0xf]
  %v1092 = vld [vmem:[%s1084 + $0x1c] sm:$0xf]
  %s1093 = scalar_lea.vmem %s23, 1
  %v1094 = vld [vmem:[%s1093] sm:$0x1]
  %v1096 = vlaneseq
  %v1097 = vshrl.u32 %v1096, 7
  %v1098 = vsub.s32 0, %v1097
  %v1099 = vrot.slane %v1094, %v1098
  %v1109 = vunpack.c.l.b16 %v1085
  %v1110 = vunpack.c.l.b16 %v1086
  %v1111 = vunpack.c.l.b16 %v1087
  %v1112 = vunpack.c.l.b16 %v1088
  %v1113 = vunpack.c.l.b16 %v1089
  %v1114 = vunpack.c.l.b16 %v1090
  %v1115 = vunpack.c.l.b16 %v1091
  %v1116 = vunpack.c.l.b16 %v1092
  %v1117 = vpack.c.b16 %v1110, %v1109
  %v1118 = vpack.c.b16 %v1112, %v1111
  %v1119 = vpack.c.b16 %v1114, %v1113
  %v1120 = vpack.c.b16 %v1116, %v1115
  %1125 = vmatprep.subr.bf16.mxu0 0
  %1126 = vmatpush1.bf16.msra.mxu0 %v1117
  %1127 = vmatprep.subr.bf16.mxu0 0
  %1128 = vmatpush1.bf16.msra.mxu0 %v1118
  %1129 = vmatprep.subr.bf16.mxu0 0
  %1130 = vmatpush1.bf16.msra.mxu0 %v1119
  %1131 = vmatprep.subr.bf16.mxu0 0
  %1132 = vmatpush1.bf16.msra.mxu0 %v1120
  %1133 = vmatprep.subr.bf16.mxu0 0
  %1134 = vmatpush1.bf16.msra.mxu0 0
  %1135 = vmatprep.subr.bf16.mxu0 0
  %1136 = vmatpush1.bf16.msra.mxu0 0
  %1137 = vmatprep.subr.bf16.mxu0 0
  %1138 = vmatpush1.bf16.msra.mxu0 0
  %1139 = vmatprep.subr.bf16.mxu0 0
  %1140 = vmatpush1.bf16.msra.mxu0 0
  %1141 = vmatprep.subr.bf16.mxu0 0
  %1142 = vmatpush1.bf16.msra.mxu0 0
  %1143 = vmatprep.subr.bf16.mxu0 0
  %1144 = vmatpush1.bf16.msra.mxu0 0
  %1145 = vmatprep.subr.bf16.mxu0 0
  %1146 = vmatpush1.bf16.msra.mxu0 0
  %1147 = vmatprep.subr.bf16.mxu0 0
  %1148 = vmatpush1.bf16.msra.mxu0 0
  %1149 = vmatprep.subr.bf16.mxu0 0
  %1150 = vmatpush1.bf16.msra.mxu0 0
  %1151 = vmatprep.subr.bf16.mxu0 0
  %1152 = vmatpush1.bf16.msra.mxu0 0
  %1153 = vmatprep.subr.bf16.mxu0 0
  %1154 = vmatpush1.bf16.msra.mxu0 0
  %1155 = vmatprep.subr.bf16.mxu0 0
  %1156 = vmatpush1.bf16.msra.mxu0 0
  %1157 = vmatprep.mubr.bf16.mxu0 0
  %1158 = vmatmul.mubr.bf16.gmra.mrb[0].mxu0 %v769
  %v1159 = vpop.f32.mrb[0].mxu0
  %v1160 = vadd.f32 %v1099, %v1159
  %v1161 = vpop.f32.mrb[0].mxu0
  %v1162 = vpop.f32.mrb[0].mxu0
  %v1163 = vpop.f32.mrb[0].mxu0
  %1164 = vdwg.mxu0
  %s1165 = scalar_lea.vmem %s25, 32
  %v1166 = vld [vmem:[%s1165] sm:$0xf]
  %v1167 = vld [vmem:[%s1165 + $0x4] sm:$0xf]
  %v1168 = vld [vmem:[%s1165 + $0x8] sm:$0xf]
  %v1169 = vld [vmem:[%s1165 + $0xc] sm:$0xf]
  %v1170 = vld [vmem:[%s1165 + $0x10] sm:$0xf]
  %v1171 = vld [vmem:[%s1165 + $0x14] sm:$0xf]
  %v1172 = vld [vmem:[%s1165 + $0x18] sm:$0xf]
  %v1173 = vld [vmem:[%s1165 + $0x1c] sm:$0xf]
  %s1174 = scalar_lea.vmem %s27, 1
  %v1175 = vld [vmem:[%s1174] sm:$0x1]
  %v1177 = vlaneseq
  %v1178 = vshrl.u32 %v1177, 7
  %v1179 = vsub.s32 0, %v1178
  %v1180 = vrot.slane %v1175, %v1179
  %v1190 = vunpack.c.l.b16 %v1166
  %v1191 = vunpack.c.l.b16 %v1167
  %v1192 = vunpack.c.l.b16 %v1168
  %v1193 = vunpack.c.l.b16 %v1169
  %v1194 = vunpack.c.l.b16 %v1170
  %v1195 = vunpack.c.l.b16 %v1171
  %v1196 = vunpack.c.l.b16 %v1172
  %v1197 = vunpack.c.l.b16 %v1173
  %v1198 = vpack.c.b16 %v1191, %v1190
  %v1199 = vpack.c.b16 %v1193, %v1192
  %v1200 = vpack.c.b16 %v1195, %v1194
  %v1201 = vpack.c.b16 %v1197, %v1196
  %1206 = vmatprep.subr.bf16.mxu0 0
  %1207 = vmatpush1.bf16.msra.mxu0 %v1198
  %1208 = vmatprep.subr.bf16.mxu0 0
  %1209 = vmatpush1.bf16.msra.mxu0 %v1199
  %1210 = vmatprep.subr.bf16.mxu0 0
  %1211 = vmatpush1.bf16.msra.mxu0 %v1200
  %1212 = vmatprep.subr.bf16.mxu0 0
  %1213 = vmatpush1.bf16.msra.mxu0 %v1201
  %1214 = vmatprep.subr.bf16.mxu0 0
  %1215 = vmatpush1.bf16.msra.mxu0 0
  %1216 = vmatprep.subr.bf16.mxu0 0
  %1217 = vmatpush1.bf16.msra.mxu0 0
  %1218 = vmatprep.subr.bf16.mxu0 0
  %1219 = vmatpush1.bf16.msra.mxu0 0
  %1220 = vmatprep.subr.bf16.mxu0 0
  %1221 = vmatpush1.bf16.msra.mxu0 0
  %1222 = vmatprep.subr.bf16.mxu0 0
  %1223 = vmatpush1.bf16.msra.mxu0 0
  %1224 = vmatprep.subr.bf16.mxu0 0
  %1225 = vmatpush1.bf16.msra.mxu0 0
  %1226 = vmatprep.subr.bf16.mxu0 0
  %1227 = vmatpush1.bf16.msra.mxu0 0
  %1228 = vmatprep.subr.bf16.mxu0 0
  %1229 = vmatpush1.bf16.msra.mxu0 0
  %1230 = vmatprep.subr.bf16.mxu0 0
  %1231 = vmatpush1.bf16.msra.mxu0 0
  %1232 = vmatprep.subr.bf16.mxu0 0
  %1233 = vmatpush1.bf16.msra.mxu0 0
  %1234 = vmatprep.subr.bf16.mxu0 0
  %1235 = vmatpush1.bf16.msra.mxu0 0
  %1236 = vmatprep.subr.bf16.mxu0 0
  %1237 = vmatpush1.bf16.msra.mxu0 0
  %1238 = vmatprep.mubr.bf16.mxu0 0
  %1239 = vmatmul.mubr.bf16.gmra.mrb[0].mxu0 %v769
  %v1240 = vpop.f32.mrb[0].mxu0
  %v1241 = vadd.f32 %v1180, %v1240
  %v1242 = vpop.f32.mrb[0].mxu0
  %v1243 = vpop.f32.mrb[0].mxu0
  %v1244 = vpop.f32.mrb[0].mxu0
  %1245 = vdwg.mxu0
  %s1246 = scalar_lea.vmem %s29, 32
  %v1247 = vld [vmem:[%s1246] sm:$0xf]
  %v1248 = vld [vmem:[%s1246 + $0x4] sm:$0xf]
  %v1249 = vld [vmem:[%s1246 + $0x8] sm:$0xf]
  %v1250 = vld [vmem:[%s1246 + $0xc] sm:$0xf]
  %v1251 = vld [vmem:[%s1246 + $0x10] sm:$0xf]
  %v1252 = vld [vmem:[%s1246 + $0x14] sm:$0xf]
  %v1253 = vld [vmem:[%s1246 + $0x18] sm:$0xf]
  %v1254 = vld [vmem:[%s1246 + $0x1c] sm:$0xf]
  %s1255 = scalar_lea.vmem %s31, 1
  %v1256 = vld [vmem:[%s1255] sm:$0x1]
  %v1258 = vlaneseq
  %v1259 = vshrl.u32 %v1258, 7
  %v1260 = vsub.s32 0, %v1259
  %v1261 = vrot.slane %v1256, %v1260
  %v1271 = vunpack.c.l.b16 %v1247
  %v1272 = vunpack.c.l.b16 %v1248
  %v1273 = vunpack.c.l.b16 %v1249
  %v1274 = vunpack.c.l.b16 %v1250
  %v1275 = vunpack.c.l.b16 %v1251
  %v1276 = vunpack.c.l.b16 %v1252
  %v1277 = vunpack.c.l.b16 %v1253
  %v1278 = vunpack.c.l.b16 %v1254
  %v1279 = vpack.c.b16 %v1272, %v1271
  %v1280 = vpack.c.b16 %v1274, %v1273
  %v1281 = vpack.c.b16 %v1276, %v1275
  %v1282 = vpack.c.b16 %v1278, %v1277
  %1287 = vmatprep.subr.bf16.mxu0 0
  %1288 = vmatpush1.bf16.msra.mxu0 %v1279
  %1289 = vmatprep.subr.bf16.mxu0 0
  %1290 = vmatpush1.bf16.msra.mxu0 %v1280
  %1291 = vmatprep.subr.bf16.mxu0 0
  %1292 = vmatpush1.bf16.msra.mxu0 %v1281
  %1293 = vmatprep.subr.bf16.mxu0 0
  %1294 = vmatpush1.bf16.msra.mxu0 %v1282
  %1295 = vmatprep.subr.bf16.mxu0 0
  %1296 = vmatpush1.bf16.msra.mxu0 0
  %1297 = vmatprep.subr.bf16.mxu0 0
  %1298 = vmatpush1.bf16.msra.mxu0 0
  %1299 = vmatprep.subr.bf16.mxu0 0
  %1300 = vmatpush1.bf16.msra.mxu0 0
  %1301 = vmatprep.subr.bf16.mxu0 0
  %1302 = vmatpush1.bf16.msra.mxu0 0
  %1303 = vmatprep.subr.bf16.mxu0 0
  %1304 = vmatpush1.bf16.msra.mxu0 0
  %1305 = vmatprep.subr.bf16.mxu0 0
  %1306 = vmatpush1.bf16.msra.mxu0 0
  %1307 = vmatprep.subr.bf16.mxu0 0
  %1308 = vmatpush1.bf16.msra.mxu0 0
  %1309 = vmatprep.subr.bf16.mxu0 0
  %1310 = vmatpush1.bf16.msra.mxu0 0
  %1311 = vmatprep.subr.bf16.mxu0 0
  %1312 = vmatpush1.bf16.msra.mxu0 0
  %1313 = vmatprep.subr.bf16.mxu0 0
  %1314 = vmatpush1.bf16.msra.mxu0 0
  %1315 = vmatprep.subr.bf16.mxu0 0
  %1316 = vmatpush1.bf16.msra.mxu0 0
  %1317 = vmatprep.subr.bf16.mxu0 0
  %1318 = vmatpush1.bf16.msra.mxu0 0
  %1319 = vmatprep.mubr.bf16.mxu0 0
  %1320 = vmatmul.mubr.bf16.gmra.mrb[0].mxu0 %v769
  %v1321 = vpop.f32.mrb[0].mxu0
  %v1322 = vadd.f32 %v1261, %v1321
  %v1323 = vpop.f32.mrb[0].mxu0
  %v1324 = vpop.f32.mrb[0].mxu0
  %v1325 = vpop.f32.mrb[0].mxu0
  %1326 = vdwg.mxu0
  %v1327 = vpack.c.bf16 %v1160, %v1160
  %v1328 = vpack.c.bf16 %v1241, %v1241
  %v1330 = vsel %vm971, %v1327, 0
  %v1333 = vsel %vm971, %v1328, 0
  %1335 = vmatprep.subr.bf16.mxu0 0
  %1336 = vmatpush1.bf16.xpose.msra.mxu0 %v1333
  %1337 = vmatprep.subr.bf16.mxu0 0
  %1338 = vmatpush1.bf16.xpose.msra.mxu0 0
  %1339 = vmatprep.subr.bf16.mxu0 0
  %1340 = vmatpush1.bf16.xpose.msra.mxu0 0
  %1341 = vmatprep.subr.bf16.mxu0 0
  %1342 = vmatpush1.bf16.xpose.msra.mxu0 0
  %1343 = vmatprep.subr.bf16.mxu0 0
  %1344 = vmatpush1.bf16.xpose.msra.mxu0 0
  %1345 = vmatprep.subr.bf16.mxu0 0
  %1346 = vmatpush1.bf16.xpose.msra.mxu0 0
  %1347 = vmatprep.subr.bf16.mxu0 0
  %1348 = vmatpush1.bf16.xpose.msra.mxu0 0
  %1349 = vmatprep.subr.bf16.mxu0 0
  %1350 = vmatpush1.bf16.xpose.msra.mxu0 0
  %1351 = vmatprep.subr.bf16.mxu0 0
  %1352 = vmatpush1.bf16.xpose.msra.mxu0 0
  %1353 = vmatprep.subr.bf16.mxu0 0
  %1354 = vmatpush1.bf16.xpose.msra.mxu0 0
  %1355 = vmatprep.subr.bf16.mxu0 0
  %1356 = vmatpush1.bf16.xpose.msra.mxu0 0
  %1357 = vmatprep.subr.bf16.mxu0 0
  %1358 = vmatpush1.bf16.xpose.msra.mxu0 0
  %1359 = vmatprep.subr.bf16.mxu0 0
  %1360 = vmatpush1.bf16.xpose.msra.mxu0 0
  %1361 = vmatprep.subr.bf16.mxu0 0
  %1362 = vmatpush1.bf16.xpose.msra.mxu0 0
  %1363 = vmatprep.subr.bf16.mxu0 0
  %1364 = vmatpush1.bf16.xpose.msra.mxu0 0
  %1365 = vmatprep.subr.bf16.mxu0 0
  %1366 = vmatpush1.bf16.xpose.msra.mxu0 0
  %1367 = vmatprep.mubr.bf16.mxu0 0
  %1368 = vmatmul.mubr.bf16.gmra.mrb[0].mxu0 %v1330
  %v1369 = vpop.f32.mrb[0].mxu0
  %v1370 = vadd.f32 0.0, %v1369
  %v1371 = vpop.f32.mrb[0].mxu0
  %v1372 = vpop.f32.mrb[0].mxu0
  %v1373 = vpop.f32.mrb[0].mxu0
  %1374 = vdwg.mxu0
  %v1375 = vmul.f32 %v1370, 0.25
  %v1376 = vadd.f32 %v1375, %v696
  %v1377 = vsel %vm1020, %v1376, -inf
  %1378 = vmax.xlane.f32.xlu0 %v1377
  %v1379 = vpop.xlane.xlu0 %1378
  %v1380 = vsub.f32 %v1376, %v1379
  %v1381 = vmul.f32 %v1380, 1.442695
  %v1382 = vpow.pop %v1381
  %v1383 = vsel %vm1020, %v1382, 0.0
  %1384 = vadd.xlane.f32.xlu0 %v1383
  %v1385 = vpop.xlane.xlu0 %1384
  %v1386 = vrcp.pop %v1385
  %v1387 = vmul.f32 %v1382, %v1386
  %v1388 = vpack.c.bf16 %v1387, %v1387
  %v1389 = vpack.c.bf16 %v1322, %v1322
  %v1391 = vsel %vm1020, %v1388, 0
  %v1394 = vsel %vm1037, %v1389, 0
  %1396 = vmatprep.subr.bf16.mxu0 0
  %1397 = vmatpush1.bf16.msra.mxu0 %v1394
  %1398 = vmatprep.subr.bf16.mxu0 0
  %1399 = vmatpush1.bf16.msra.mxu0 0
  %1400 = vmatprep.subr.bf16.mxu0 0
  %1401 = vmatpush1.bf16.msra.mxu0 0
  %1402 = vmatprep.subr.bf16.mxu0 0
  %1403 = vmatpush1.bf16.msra.mxu0 0
  %1404 = vmatprep.subr.bf16.mxu0 0
  %1405 = vmatpush1.bf16.msra.mxu0 0
  %1406 = vmatprep.subr.bf16.mxu0 0
  %1407 = vmatpush1.bf16.msra.mxu0 0
  %1408 = vmatprep.subr.bf16.mxu0 0
  %1409 = vmatpush1.bf16.msra.mxu0 0
  %1410 = vmatprep.subr.bf16.mxu0 0
  %1411 = vmatpush1.bf16.msra.mxu0 0
  %1412 = vmatprep.subr.bf16.mxu0 0
  %1413 = vmatpush1.bf16.msra.mxu0 0
  %1414 = vmatprep.subr.bf16.mxu0 0
  %1415 = vmatpush1.bf16.msra.mxu0 0
  %1416 = vmatprep.subr.bf16.mxu0 0
  %1417 = vmatpush1.bf16.msra.mxu0 0
  %1418 = vmatprep.subr.bf16.mxu0 0
  %1419 = vmatpush1.bf16.msra.mxu0 0
  %1420 = vmatprep.subr.bf16.mxu0 0
  %1421 = vmatpush1.bf16.msra.mxu0 0
  %1422 = vmatprep.subr.bf16.mxu0 0
  %1423 = vmatpush1.bf16.msra.mxu0 0
  %1424 = vmatprep.subr.bf16.mxu0 0
  %1425 = vmatpush1.bf16.msra.mxu0 0
  %1426 = vmatprep.subr.bf16.mxu0 0
  %1427 = vmatpush1.bf16.msra.mxu0 0
  %1428 = vmatprep.mubr.bf16.mxu0 0
  %1429 = vmatmul.mubr.bf16.gmra.mrb[0].mxu0 %v1391
  %v1430 = vpop.f32.mrb[0].mxu0
  %v1431 = vadd.f32 0.0, %v1430
  %v1432 = vpop.f32.mrb[0].mxu0
  %v1433 = vpop.f32.mrb[0].mxu0
  %v1434 = vpop.f32.mrb[0].mxu0
  %1435 = vdwg.mxu0
  %v1436 = vpack.c.bf16 %v1431, %v1431
  %s1437 = scalar_lea.vmem %s33, 8
  %v1438 = vld [vmem:[%s1437] sm:$0xf]
  %v1439 = vld [vmem:[%s1437 + $0x4] sm:$0xf]
  %v1442 = vunpack.c.l.b16 %v1438
  %v1443 = vunpack.c.l.b16 %v1439
  %v1444 = vpack.c.b16 %v1443, %v1442
  %v1447 = vsel %vm971, %v1436, 0
  %1449 = vmatprep.subr.bf16.mxu0 0
  %1450 = vmatpush1.bf16.msra.mxu0 %v1444
  %1451 = vmatprep.subr.bf16.mxu0 0
  %1452 = vmatpush1.bf16.msra.mxu0 0
  %1453 = vmatprep.subr.bf16.mxu0 0
  %1454 = vmatpush1.bf16.msra.mxu0 0
  %1455 = vmatprep.subr.bf16.mxu0 0
  %1456 = vmatpush1.bf16.msra.mxu0 0
  %1457 = vmatprep.subr.bf16.mxu0 0
  %1458 = vmatpush1.bf16.msra.mxu0 0
  %1459 = vmatprep.subr.bf16.mxu0 0
  %1460 = vmatpush1.bf16.msra.mxu0 0
  %1461 = vmatprep.subr.bf16.mxu0 0
  %1462 = vmatpush1.bf16.msra.mxu0 0
  %1463 = vmatprep.subr.bf16.mxu0 0
  %1464 = vmatpush1.bf16.msra.mxu0 0
  %1465 = vmatprep.subr.bf16.mxu0 0
  %1466 = vmatpush1.bf16.msra.mxu0 0
  %1467 = vmatprep.subr.bf16.mxu0 0
  %1468 = vmatpush1.bf16.msra.mxu0 0
  %1469 = vmatprep.subr.bf16.mxu0 0
  %1470 = vmatpush1.bf16.msra.mxu0 0
  %1471 = vmatprep.subr.bf16.mxu0 0
  %1472 = vmatpush1.bf16.msra.mxu0 0
  %1473 = vmatprep.subr.bf16.mxu0 0
  %1474 = vmatpush1.bf16.msra.mxu0 0
  %1475 = vmatprep.subr.bf16.mxu0 0
  %1476 = vmatpush1.bf16.msra.mxu0 0
  %1477 = vmatprep.subr.bf16.mxu0 0
  %1478 = vmatpush1.bf16.msra.mxu0 0
  %1479 = vmatprep.subr.bf16.mxu0 0
  %1480 = vmatpush1.bf16.msra.mxu0 0
  %1481 = vmatprep.mubr.bf16.mxu0 0
  %1482 = vmatmul.mubr.bf16.gmra.mrb[0].mxu0 %v1447
  %v1483 = vpop.f32.mrb[0].mxu0
  %v1484 = vadd.f32 0.0, %v1483
  %v1485 = vpop.f32.mrb[0].mxu0
  %v1486 = vpop.f32.mrb[0].mxu0
  %v1487 = vpop.f32.mrb[0].mxu0
  %1488 = vdwg.mxu0
  %v1491 = vunpack.c.l.b16 %v1082
  %v1492 = vunpack.c.l.b16 %v1083
  %v1493 = vpack.c.b16 %v1492, %v1491
  %v1496 = vsel %vm971, %v1081, 0
  %1498 = vmatprep.subr.bf16.mxu0 0
  %1499 = vmatpush1.bf16.msra.mxu0 %v1493
  %1500 = vmatprep.subr.bf16.mxu0 0
  %1501 = vmatpush1.bf16.msra.mxu0 0
  %1502 = vmatprep.subr.bf16.mxu0 0
  %1503 = vmatpush1.bf16.msra.mxu0 0
  %1504 = vmatprep.subr.bf16.mxu0 0
  %1505 = vmatpush1.bf16.msra.mxu0 0
  %1506 = vmatprep.subr.bf16.mxu0 0
  %1507 = vmatpush1.bf16.msra.mxu0 0
  %1508 = vmatprep.subr.bf16.mxu0 0
  %1509 = vmatpush1.bf16.msra.mxu0 0
  %1510 = vmatprep.subr.bf16.mxu0 0
  %1511 = vmatpush1.bf16.msra.mxu0 0
  %1512 = vmatprep.subr.bf16.mxu0 0
  %1513 = vmatpush1.bf16.msra.mxu0 0
  %1514 = vmatprep.subr.bf16.mxu0 0
  %1515 = vmatpush1.bf16.msra.mxu0 0
  %1516 = vmatprep.subr.bf16.mxu0 0
  %1517 = vmatpush1.bf16.msra.mxu0 0
  %1518 = vmatprep.subr.bf16.mxu0 0
  %1519 = vmatpush1.bf16.msra.mxu0 0
  %1520 = vmatprep.subr.bf16.mxu0 0
  %1521 = vmatpush1.bf16.msra.mxu0 0
  %1522 = vmatprep.subr.bf16.mxu0 0
  %1523 = vmatpush1.bf16.msra.mxu0 0
  %1524 = vmatprep.subr.bf16.mxu0 0
  %1525 = vmatpush1.bf16.msra.mxu0 0
  %1526 = vmatprep.subr.bf16.mxu0 0
  %1527 = vmatpush1.bf16.msra.mxu0 0
  %1528 = vmatprep.subr.bf16.mxu0 0
  %1529 = vmatpush1.bf16.msra.mxu0 0
  %1530 = vmatprep.mubr.bf16.mxu0 0
  %1531 = vmatmul.mubr.bf16.gmra.mrb[0].mxu0 %v1496
  %v1532 = vpop.f32.mrb[0].mxu0
  %v1533 = vadd.f32 %v1484, %v1532
  %v1534 = vpop.f32.mrb[0].mxu0
  %v1535 = vpop.f32.mrb[0].mxu0
  %v1536 = vpop.f32.mrb[0].mxu0
  %1537 = vdwg.mxu0
  %s1538 = scalar_lea.vmem %s21, 64
  %v1539 = vld [vmem:[%s1538] sm:$0xf]
  %v1540 = vld [vmem:[%s1538 + $0x4] sm:$0xf]
  %v1541 = vld [vmem:[%s1538 + $0x8] sm:$0xf]
  %v1542 = vld [vmem:[%s1538 + $0xc] sm:$0xf]
  %v1543 = vld [vmem:[%s1538 + $0x10] sm:$0xf]
  %v1544 = vld [vmem:[%s1538 + $0x14] sm:$0xf]
  %v1545 = vld [vmem:[%s1538 + $0x18] sm:$0xf]
  %v1546 = vld [vmem:[%s1538 + $0x1c] sm:$0xf]
  %s1547 = scalar_lea.vmem %s23, 2
  %v1548 = vld [vmem:[%s1547] sm:$0x1]
  %v1550 = vlaneseq
  %v1551 = vshrl.u32 %v1550, 7
  %v1552 = vsub.s32 0, %v1551
  %v1553 = vrot.slane %v1548, %v1552
  %v1563 = vunpack.c.l.b16 %v1539
  %v1564 = vunpack.c.l.b16 %v1540
  %v1565 = vunpack.c.l.b16 %v1541
  %v1566 = vunpack.c.l.b16 %v1542
  %v1567 = vunpack.c.l.b16 %v1543
  %v1568 = vunpack.c.l.b16 %v1544
  %v1569 = vunpack.c.l.b16 %v1545
  %v1570 = vunpack.c.l.b16 %v1546
  %v1571 = vpack.c.b16 %v1564, %v1563
  %v1572 = vpack.c.b16 %v1566, %v1565
  %v1573 = vpack.c.b16 %v1568, %v1567
  %v1574 = vpack.c.b16 %v1570, %v1569
  %1579 = vmatprep.subr.bf16.mxu0 0
  %1580 = vmatpush1.bf16.msra.mxu0 %v1571
  %1581 = vmatprep.subr.bf16.mxu0 0
  %1582 = vmatpush1.bf16.msra.mxu0 %v1572
  %1583 = vmatprep.subr.bf16.mxu0 0
  %1584 = vmatpush1.bf16.msra.mxu0 %v1573
  %1585 = vmatprep.subr.bf16.mxu0 0
  %1586 = vmatpush1.bf16.msra.mxu0 %v1574
  %1587 = vmatprep.subr.bf16.mxu0 0
  %1588 = vmatpush1.bf16.msra.mxu0 0
  %1589 = vmatprep.subr.bf16.mxu0 0
  %1590 = vmatpush1.bf16.msra.mxu0 0
  %1591 = vmatprep.subr.bf16.mxu0 0
  %1592 = vmatpush1.bf16.msra.mxu0 0
  %1593 = vmatprep.subr.bf16.mxu0 0
  %1594 = vmatpush1.bf16.msra.mxu0 0
  %1595 = vmatprep.subr.bf16.mxu0 0
  %1596 = vmatpush1.bf16.msra.mxu0 0
  %1597 = vmatprep.subr.bf16.mxu0 0
  %1598 = vmatpush1.bf16.msra.mxu0 0
  %1599 = vmatprep.subr.bf16.mxu0 0
  %1600 = vmatpush1.bf16.msra.mxu0 0
  %1601 = vmatprep.subr.bf16.mxu0 0
  %1602 = vmatpush1.bf16.msra.mxu0 0
  %1603 = vmatprep.subr.bf16.mxu0 0
  %1604 = vmatpush1.bf16.msra.mxu0 0
  %1605 = vmatprep.subr.bf16.mxu0 0
  %1606 = vmatpush1.bf16.msra.mxu0 0
  %1607 = vmatprep.subr.bf16.mxu0 0
  %1608 = vmatpush1.bf16.msra.mxu0 0
  %1609 = vmatprep.subr.bf16.mxu0 0
  %1610 = vmatpush1.bf16.msra.mxu0 0
  %1611 = vmatprep.mubr.bf16.mxu0 0
  %1612 = vmatmul.mubr.bf16.gmra.mrb[0].mxu0 %v769
  %v1613 = vpop.f32.mrb[0].mxu0
  %v1614 = vadd.f32 %v1553, %v1613
  %v1615 = vpop.f32.mrb[0].mxu0
  %v1616 = vpop.f32.mrb[0].mxu0
  %v1617 = vpop.f32.mrb[0].mxu0
  %1618 = vdwg.mxu0
  %s1619 = scalar_lea.vmem %s25, 64
  %v1620 = vld [vmem:[%s1619] sm:$0xf]
  %v1621 = vld [vmem:[%s1619 + $0x4] sm:$0xf]
  %v1622 = vld [vmem:[%s1619 + $0x8] sm:$0xf]
  %v1623 = vld [vmem:[%s1619 + $0xc] sm:$0xf]
  %v1624 = vld [vmem:[%s1619 + $0x10] sm:$0xf]
  %v1625 = vld [vmem:[%s1619 + $0x14] sm:$0xf]
  %v1626 = vld [vmem:[%s1619 + $0x18] sm:$0xf]
  %v1627 = vld [vmem:[%s1619 + $0x1c] sm:$0xf]
  %s1628 = scalar_lea.vmem %s27, 2
  %v1629 = vld [vmem:[%s1628] sm:$0x1]
  %v1631 = vlaneseq
  %v1632 = vshrl.u32 %v1631, 7
  %v1633 = vsub.s32 0, %v1632
  %v1634 = vrot.slane %v1629, %v1633
  %v1644 = vunpack.c.l.b16 %v1620
  %v1645 = vunpack.c.l.b16 %v1621
  %v1646 = vunpack.c.l.b16 %v1622
  %v1647 = vunpack.c.l.b16 %v1623
  %v1648 = vunpack.c.l.b16 %v1624
  %v1649 = vunpack.c.l.b16 %v1625
  %v1650 = vunpack.c.l.b16 %v1626
  %v1651 = vunpack.c.l.b16 %v1627
  %v1652 = vpack.c.b16 %v1645, %v1644
  %v1653 = vpack.c.b16 %v1647, %v1646
  %v1654 = vpack.c.b16 %v1649, %v1648
  %v1655 = vpack.c.b16 %v1651, %v1650
  %1660 = vmatprep.subr.bf16.mxu0 0
  %1661 = vmatpush1.bf16.msra.mxu0 %v1652
  %1662 = vmatprep.subr.bf16.mxu0 0
  %1663 = vmatpush1.bf16.msra.mxu0 %v1653
  %1664 = vmatprep.subr.bf16.mxu0 0
  %1665 = vmatpush1.bf16.msra.mxu0 %v1654
  %1666 = vmatprep.subr.bf16.mxu0 0
  %1667 = vmatpush1.bf16.msra.mxu0 %v1655
  %1668 = vmatprep.subr.bf16.mxu0 0
  %1669 = vmatpush1.bf16.msra.mxu0 0
  %1670 = vmatprep.subr.bf16.mxu0 0
  %1671 = vmatpush1.bf16.msra.mxu0 0
  %1672 = vmatprep.subr.bf16.mxu0 0
  %1673 = vmatpush1.bf16.msra.mxu0 0
  %1674 = vmatprep.subr.bf16.mxu0 0
  %1675 = vmatpush1.bf16.msra.mxu0 0
  %1676 = vmatprep.subr.bf16.mxu0 0
  %1677 = vmatpush1.bf16.msra.mxu0 0
  %1678 = vmatprep.subr.bf16.mxu0 0
  %1679 = vmatpush1.bf16.msra.mxu0 0
  %1680 = vmatprep.subr.bf16.mxu0 0
  %1681 = vmatpush1.bf16.msra.mxu0 0
  %1682 = vmatprep.subr.bf16.mxu0 0
  %1683 = vmatpush1.bf16.msra.mxu0 0
  %1684 = vmatprep.subr.bf16.mxu0 0
  %1685 = vmatpush1.bf16.msra.mxu0 0
  %1686 = vmatprep.subr.bf16.mxu0 0
  %1687 = vmatpush1.bf16.msra.mxu0 0
  %1688 = vmatprep.subr.bf16.mxu0 0
  %1689 = vmatpush1.bf16.msra.mxu0 0
  %1690 = vmatprep.subr.bf16.mxu0 0
  %1691 = vmatpush1.bf16.msra.mxu0 0
  %1692 = vmatprep.mubr.bf16.mxu0 0
  %1693 = vmatmul.mubr.bf16.gmra.mrb[0].mxu0 %v769
  %v1694 = vpop.f32.mrb[0].mxu0
  %v1695 = vadd.f32 %v1634, %v1694
  %v1696 = vpop.f32.mrb[0].mxu0
  %v1697 = vpop.f32.mrb[0].mxu0
  %v1698 = vpop.f32.mrb[0].mxu0
  %1699 = vdwg.mxu0
  %s1700 = scalar_lea.vmem %s29, 64
  %v1701 = vld [vmem:[%s1700] sm:$0xf]
  %v1702 = vld [vmem:[%s1700 + $0x4] sm:$0xf]
  %v1703 = vld [vmem:[%s1700 + $0x8] sm:$0xf]
  %v1704 = vld [vmem:[%s1700 + $0xc] sm:$0xf]
  %v1705 = vld [vmem:[%s1700 + $0x10] sm:$0xf]
  %v1706 = vld [vmem:[%s1700 + $0x14] sm:$0xf]
  %v1707 = vld [vmem:[%s1700 + $0x18] sm:$0xf]
  %v1708 = vld [vmem:[%s1700 + $0x1c] sm:$0xf]
  %s1709 = scalar_lea.vmem %s31, 2
  %v1710 = vld [vmem:[%s1709] sm:$0x1]
  %v1712 = vlaneseq
  %v1713 = vshrl.u32 %v1712, 7
  %v1714 = vsub.s32 0, %v1713
  %v1715 = vrot.slane %v1710, %v1714
  %v1725 = vunpack.c.l.b16 %v1701
  %v1726 = vunpack.c.l.b16 %v1702
  %v1727 = vunpack.c.l.b16 %v1703
  %v1728 = vunpack.c.l.b16 %v1704
  %v1729 = vunpack.c.l.b16 %v1705
  %v1730 = vunpack.c.l.b16 %v1706
  %v1731 = vunpack.c.l.b16 %v1707
  %v1732 = vunpack.c.l.b16 %v1708
  %v1733 = vpack.c.b16 %v1726, %v1725
  %v1734 = vpack.c.b16 %v1728, %v1727
  %v1735 = vpack.c.b16 %v1730, %v1729
  %v1736 = vpack.c.b16 %v1732, %v1731
  %1741 = vmatprep.subr.bf16.mxu0 0
  %1742 = vmatpush1.bf16.msra.mxu0 %v1733
  %1743 = vmatprep.subr.bf16.mxu0 0
  %1744 = vmatpush1.bf16.msra.mxu0 %v1734
  %1745 = vmatprep.subr.bf16.mxu0 0
  %1746 = vmatpush1.bf16.msra.mxu0 %v1735
  %1747 = vmatprep.subr.bf16.mxu0 0
  %1748 = vmatpush1.bf16.msra.mxu0 %v1736
  %1749 = vmatprep.subr.bf16.mxu0 0
  %1750 = vmatpush1.bf16.msra.mxu0 0
  %1751 = vmatprep.subr.bf16.mxu0 0
  %1752 = vmatpush1.bf16.msra.mxu0 0
  %1753 = vmatprep.subr.bf16.mxu0 0
  %1754 = vmatpush1.bf16.msra.mxu0 0
  %1755 = vmatprep.subr.bf16.mxu0 0
  %1756 = vmatpush1.bf16.msra.mxu0 0
  %1757 = vmatprep.subr.bf16.mxu0 0
  %1758 = vmatpush1.bf16.msra.mxu0 0
  %1759 = vmatprep.subr.bf16.mxu0 0
  %1760 = vmatpush1.bf16.msra.mxu0 0
  %1761 = vmatprep.subr.bf16.mxu0 0
  %1762 = vmatpush1.bf16.msra.mxu0 0
  %1763 = vmatprep.subr.bf16.mxu0 0
  %1764 = vmatpush1.bf16.msra.mxu0 0
  %1765 = vmatprep.subr.bf16.mxu0 0
  %1766 = vmatpush1.bf16.msra.mxu0 0
  %1767 = vmatprep.subr.bf16.mxu0 0
  %1768 = vmatpush1.bf16.msra.mxu0 0
  %1769 = vmatprep.subr.bf16.mxu0 0
  %1770 = vmatpush1.bf16.msra.mxu0 0
  %1771 = vmatprep.subr.bf16.mxu0 0
  %1772 = vmatpush1.bf16.msra.mxu0 0
  %1773 = vmatprep.mubr.bf16.mxu0 0
  %1774 = vmatmul.mubr.bf16.gmra.mrb[0].mxu0 %v769
  %v1775 = vpop.f32.mrb[0].mxu0
  %v1776 = vadd.f32 %v1715, %v1775
  %v1777 = vpop.f32.mrb[0].mxu0
  %v1778 = vpop.f32.mrb[0].mxu0
  %v1779 = vpop.f32.mrb[0].mxu0
  %1780 = vdwg.mxu0
  %v1781 = vpack.c.bf16 %v1614, %v1614
  %v1782 = vpack.c.bf16 %v1695, %v1695
  %v1784 = vsel %vm971, %v1781, 0
  %v1787 = vsel %vm971, %v1782, 0
  %1789 = vmatprep.subr.bf16.mxu0 0
  %1790 = vmatpush1.bf16.xpose.msra.mxu0 %v1787
  %1791 = vmatprep.subr.bf16.mxu0 0
  %1792 = vmatpush1.bf16.xpose.msra.mxu0 0
  %1793 = vmatprep.subr.bf16.mxu0 0
  %1794 = vmatpush1.bf16.xpose.msra.mxu0 0
  %1795 = vmatprep.subr.bf16.mxu0 0
  %1796 = vmatpush1.bf16.xpose.msra.mxu0 0
  %1797 = vmatprep.subr.bf16.mxu0 0
  %1798 = vmatpush1.bf16.xpose.msra.mxu0 0
  %1799 = vmatprep.subr.bf16.mxu0 0
  %1800 = vmatpush1.bf16.xpose.msra.mxu0 0
  %1801 = vmatprep.subr.bf16.mxu0 0
  %1802 = vmatpush1.bf16.xpose.msra.mxu0 0
  %1803 = vmatprep.subr.bf16.mxu0 0
  %1804 = vmatpush1.bf16.xpose.msra.mxu0 0
  %1805 = vmatprep.subr.bf16.mxu0 0
  %1806 = vmatpush1.bf16.xpose.msra.mxu0 0
  %1807 = vmatprep.subr.bf16.mxu0 0
  %1808 = vmatpush1.bf16.xpose.msra.mxu0 0
  %1809 = vmatprep.subr.bf16.mxu0 0
  %1810 = vmatpush1.bf16.xpose.msra.mxu0 0
  %1811 = vmatprep.subr.bf16.mxu0 0
  %1812 = vmatpush1.bf16.xpose.msra.mxu0 0
  %1813 = vmatprep.subr.bf16.mxu0 0
  %1814 = vmatpush1.bf16.xpose.msra.mxu0 0
  %1815 = vmatprep.subr.bf16.mxu0 0
  %1816 = vmatpush1.bf16.xpose.msra.mxu0 0
  %1817 = vmatprep.subr.bf16.mxu0 0
  %1818 = vmatpush1.bf16.xpose.msra.mxu0 0
  %1819 = vmatprep.subr.bf16.mxu0 0
  %1820 = vmatpush1.bf16.xpose.msra.mxu0 0
  %1821 = vmatprep.mubr.bf16.mxu0 0
  %1822 = vmatmul.mubr.bf16.gmra.mrb[0].mxu0 %v1784
  %v1823 = vpop.f32.mrb[0].mxu0
  %v1824 = vadd.f32 0.0, %v1823
  %v1825 = vpop.f32.mrb[0].mxu0
  %v1826 = vpop.f32.mrb[0].mxu0
  %v1827 = vpop.f32.mrb[0].mxu0
  %1828 = vdwg.mxu0
  %v1829 = vmul.f32 %v1824, 0.25
  %v1830 = vadd.f32 %v1829, %v696
  %v1831 = vsel %vm1020, %v1830, -inf
  %1832 = vmax.xlane.f32.xlu0 %v1831
  %v1833 = vpop.xlane.xlu0 %1832
  %v1834 = vsub.f32 %v1830, %v1833
  %v1835 = vmul.f32 %v1834, 1.442695
  %v1836 = vpow.pop %v1835
  %v1837 = vsel %vm1020, %v1836, 0.0
  %1838 = vadd.xlane.f32.xlu0 %v1837
  %v1839 = vpop.xlane.xlu0 %1838
  %v1840 = vrcp.pop %v1839
  %v1841 = vmul.f32 %v1836, %v1840
  %v1842 = vpack.c.bf16 %v1841, %v1841
  %v1843 = vpack.c.bf16 %v1776, %v1776
  %v1845 = vsel %vm1020, %v1842, 0
  %v1848 = vsel %vm1037, %v1843, 0
  %1850 = vmatprep.subr.bf16.mxu0 0
  %1851 = vmatpush1.bf16.msra.mxu0 %v1848
  %1852 = vmatprep.subr.bf16.mxu0 0
  %1853 = vmatpush1.bf16.msra.mxu0 0
  %1854 = vmatprep.subr.bf16.mxu0 0
  %1855 = vmatpush1.bf16.msra.mxu0 0
  %1856 = vmatprep.subr.bf16.mxu0 0
  %1857 = vmatpush1.bf16.msra.mxu0 0
  %1858 = vmatprep.subr.bf16.mxu0 0
  %1859 = vmatpush1.bf16.msra.mxu0 0
  %1860 = vmatprep.subr.bf16.mxu0 0
  %1861 = vmatpush1.bf16.msra.mxu0 0
  %1862 = vmatprep.subr.bf16.mxu0 0
  %1863 = vmatpush1.bf16.msra.mxu0 0
  %1864 = vmatprep.subr.bf16.mxu0 0
  %1865 = vmatpush1.bf16.msra.mxu0 0
  %1866 = vmatprep.subr.bf16.mxu0 0
  %1867 = vmatpush1.bf16.msra.mxu0 0
  %1868 = vmatprep.subr.bf16.mxu0 0
  %1869 = vmatpush1.bf16.msra.mxu0 0
  %1870 = vmatprep.subr.bf16.mxu0 0
  %1871 = vmatpush1.bf16.msra.mxu0 0
  %1872 = vmatprep.subr.bf16.mxu0 0
  %1873 = vmatpush1.bf16.msra.mxu0 0
  %1874 = vmatprep.subr.bf16.mxu0 0
  %1875 = vmatpush1.bf16.msra.mxu0 0
  %1876 = vmatprep.subr.bf16.mxu0 0
  %1877 = vmatpush1.bf16.msra.mxu0 0
  %1878 = vmatprep.subr.bf16.mxu0 0
  %1879 = vmatpush1.bf16.msra.mxu0 0
  %1880 = vmatprep.subr.bf16.mxu0 0
  %1881 = vmatpush1.bf16.msra.mxu0 0
  %1882 = vmatprep.mubr.bf16.mxu0 0
  %1883 = vmatmul.mubr.bf16.gmra.mrb[0].mxu0 %v1845
  %v1884 = vpop.f32.mrb[0].mxu0
  %v1885 = vadd.f32 0.0, %v1884
  %v1886 = vpop.f32.mrb[0].mxu0
  %v1887 = vpop.f32.mrb[0].mxu0
  %v1888 = vpop.f32.mrb[0].mxu0
  %1889 = vdwg.mxu0
  %v1890 = vpack.c.bf16 %v1885, %v1885
  %s1891 = scalar_lea.vmem %s33, 16
  %v1892 = vld [vmem:[%s1891] sm:$0xf]
  %v1893 = vld [vmem:[%s1891 + $0x4] sm:$0xf]
  %v1896 = vunpack.c.l.b16 %v1892
  %v1897 = vunpack.c.l.b16 %v1893
  %v1898 = vpack.c.b16 %v1897, %v1896
  %v1901 = vsel %vm971, %v1890, 0
  %1903 = vmatprep.subr.bf16.mxu0 0
  %1904 = vmatpush1.bf16.msra.mxu0 %v1898
  %1905 = vmatprep.subr.bf16.mxu0 0
  %1906 = vmatpush1.bf16.msra.mxu0 0
  %1907 = vmatprep.subr.bf16.mxu0 0
  %1908 = vmatpush1.bf16.msra.mxu0 0
  %1909 = vmatprep.subr.bf16.mxu0 0
  %1910 = vmatpush1.bf16.msra.mxu0 0
  %1911 = vmatprep.subr.bf16.mxu0 0
  %1912 = vmatpush1.bf16.msra.mxu0 0
  %1913 = vmatprep.subr.bf16.mxu0 0
  %1914 = vmatpush1.bf16.msra.mxu0 0
  %1915 = vmatprep.subr.bf16.mxu0 0
  %1916 = vmatpush1.bf16.msra.mxu0 0
  %1917 = vmatprep.subr.bf16.mxu0 0
  %1918 = vmatpush1.bf16.msra.mxu0 0
  %1919 = vmatprep.subr.bf16.mxu0 0
  %1920 = vmatpush1.bf16.msra.mxu0 0
  %1921 = vmatprep.subr.bf16.mxu0 0
  %1922 = vmatpush1.bf16.msra.mxu0 0
  %1923 = vmatprep.subr.bf16.mxu0 0
  %1924 = vmatpush1.bf16.msra.mxu0 0
  %1925 = vmatprep.subr.bf16.mxu0 0
  %1926 = vmatpush1.bf16.msra.mxu0 0
  %1927 = vmatprep.subr.bf16.mxu0 0
  %1928 = vmatpush1.bf16.msra.mxu0 0
  %1929 = vmatprep.subr.bf16.mxu0 0
  %1930 = vmatpush1.bf16.msra.mxu0 0
  %1931 = vmatprep.subr.bf16.mxu0 0
  %1932 = vmatpush1.bf16.msra.mxu0 0
  %1933 = vmatprep.subr.bf16.mxu0 0
  %1934 = vmatpush1.bf16.msra.mxu0 0
  %1935 = vmatprep.mubr.bf16.mxu0 0
  %1936 = vmatmul.mubr.bf16.gmra.mrb[0].mxu0 %v1901
  %v1937 = vpop.f32.mrb[0].mxu0
  %v1938 = vadd.f32 0.0, %v1937
  %v1939 = vpop.f32.mrb[0].mxu0
  %v1940 = vpop.f32.mrb[0].mxu0
  %v1941 = vpop.f32.mrb[0].mxu0
  %1942 = vdwg.mxu0
  %v1943 = vadd.f32 %v1533, %v1938
  %s1944 = scalar_lea.vmem %s21, 96
  %v1945 = vld [vmem:[%s1944] sm:$0xf]
  %v1946 = vld [vmem:[%s1944 + $0x4] sm:$0xf]
  %v1947 = vld [vmem:[%s1944 + $0x8] sm:$0xf]
  %v1948 = vld [vmem:[%s1944 + $0xc] sm:$0xf]
  %v1949 = vld [vmem:[%s1944 + $0x10] sm:$0xf]
  %v1950 = vld [vmem:[%s1944 + $0x14] sm:$0xf]
  %v1951 = vld [vmem:[%s1944 + $0x18] sm:$0xf]
  %v1952 = vld [vmem:[%s1944 + $0x1c] sm:$0xf]
  %s1953 = scalar_lea.vmem %s23, 3
  %v1954 = vld [vmem:[%s1953] sm:$0x1]
  %v1956 = vlaneseq
  %v1957 = vshrl.u32 %v1956, 7
  %v1958 = vsub.s32 0, %v1957
  %v1959 = vrot.slane %v1954, %v1958
  %v1969 = vunpack.c.l.b16 %v1945
  %v1970 = vunpack.c.l.b16 %v1946
  %v1971 = vunpack.c.l.b16 %v1947
  %v1972 = vunpack.c.l.b16 %v1948
  %v1973 = vunpack.c.l.b16 %v1949
  %v1974 = vunpack.c.l.b16 %v1950
  %v1975 = vunpack.c.l.b16 %v1951
  %v1976 = vunpack.c.l.b16 %v1952
  %v1977 = vpack.c.b16 %v1970, %v1969
  %v1978 = vpack.c.b16 %v1972, %v1971
  %v1979 = vpack.c.b16 %v1974, %v1973
  %v1980 = vpack.c.b16 %v1976, %v1975
  %1985 = vmatprep.subr.bf16.mxu0 0
  %1986 = vmatpush1.bf16.msra.mxu0 %v1977
  %1987 = vmatprep.subr.bf16.mxu0 0
  %1988 = vmatpush1.bf16.msra.mxu0 %v1978
  %1989 = vmatprep.subr.bf16.mxu0 0
  %1990 = vmatpush1.bf16.msra.mxu0 %v1979
  %1991 = vmatprep.subr.bf16.mxu0 0
  %1992 = vmatpush1.bf16.msra.mxu0 %v1980
  %1993 = vmatprep.subr.bf16.mxu0 0
  %1994 = vmatpush1.bf16.msra.mxu0 0
  %1995 = vmatprep.subr.bf16.mxu0 0
  %1996 = vmatpush1.bf16.msra.mxu0 0
  %1997 = vmatprep.subr.bf16.mxu0 0
  %1998 = vmatpush1.bf16.msra.mxu0 0
  %1999 = vmatprep.subr.bf16.mxu0 0
  %2000 = vmatpush1.bf16.msra.mxu0 0
  %2001 = vmatprep.subr.bf16.mxu0 0
  %2002 = vmatpush1.bf16.msra.mxu0 0
  %2003 = vmatprep.subr.bf16.mxu0 0
  %2004 = vmatpush1.bf16.msra.mxu0 0
  %2005 = vmatprep.subr.bf16.mxu0 0
  %2006 = vmatpush1.bf16.msra.mxu0 0
  %2007 = vmatprep.subr.bf16.mxu0 0
  %2008 = vmatpush1.bf16.msra.mxu0 0
  %2009 = vmatprep.subr.bf16.mxu0 0
  %2010 = vmatpush1.bf16.msra.mxu0 0
  %2011 = vmatprep.subr.bf16.mxu0 0
  %2012 = vmatpush1.bf16.msra.mxu0 0
  %2013 = vmatprep.subr.bf16.mxu0 0
  %2014 = vmatpush1.bf16.msra.mxu0 0
  %2015 = vmatprep.subr.bf16.mxu0 0
  %2016 = vmatpush1.bf16.msra.mxu0 0
  %2017 = vmatprep.mubr.bf16.mxu0 0
  %2018 = vmatmul.mubr.bf16.gmra.mrb[0].mxu0 %v769
  %v2019 = vpop.f32.mrb[0].mxu0
  %v2020 = vadd.f32 %v1959, %v2019
  %v2021 = vpop.f32.mrb[0].mxu0
  %v2022 = vpop.f32.mrb[0].mxu0
  %v2023 = vpop.f32.mrb[0].mxu0
  %2024 = vdwg.mxu0
  %s2025 = scalar_lea.vmem %s25, 96
  %v2026 = vld [vmem:[%s2025] sm:$0xf]
  %v2027 = vld [vmem:[%s2025 + $0x4] sm:$0xf]
  %v2028 = vld [vmem:[%s2025 + $0x8] sm:$0xf]
  %v2029 = vld [vmem:[%s2025 + $0xc] sm:$0xf]
  %v2030 = vld [vmem:[%s2025 + $0x10] sm:$0xf]
  %v2031 = vld [vmem:[%s2025 + $0x14] sm:$0xf]
  %v2032 = vld [vmem:[%s2025 + $0x18] sm:$0xf]
  %v2033 = vld [vmem:[%s2025 + $0x1c] sm:$0xf]
  %s2034 = scalar_lea.vmem %s27, 3
  %v2035 = vld [vmem:[%s2034] sm:$0x1]
  %v2037 = vlaneseq
  %v2038 = vshrl.u32 %v2037, 7
  %v2039 = vsub.s32 0, %v2038
  %v2040 = vrot.slane %v2035, %v2039
  %v2050 = vunpack.c.l.b16 %v2026
  %v2051 = vunpack.c.l.b16 %v2027
  %v2052 = vunpack.c.l.b16 %v2028
  %v2053 = vunpack.c.l.b16 %v2029
  %v2054 = vunpack.c.l.b16 %v2030
  %v2055 = vunpack.c.l.b16 %v2031
  %v2056 = vunpack.c.l.b16 %v2032
  %v2057 = vunpack.c.l.b16 %v2033
  %v2058 = vpack.c.b16 %v2051, %v2050
  %v2059 = vpack.c.b16 %v2053, %v2052
  %v2060 = vpack.c.b16 %v2055, %v2054
  %v2061 = vpack.c.b16 %v2057, %v2056
  %2066 = vmatprep.subr.bf16.mxu0 0
  %2067 = vmatpush1.bf16.msra.mxu0 %v2058
  %2068 = vmatprep.subr.bf16.mxu0 0
  %2069 = vmatpush1.bf16.msra.mxu0 %v2059
  %2070 = vmatprep.subr.bf16.mxu0 0
  %2071 = vmatpush1.bf16.msra.mxu0 %v2060
  %2072 = vmatprep.subr.bf16.mxu0 0
  %2073 = vmatpush1.bf16.msra.mxu0 %v2061
  %2074 = vmatprep.subr.bf16.mxu0 0
  %2075 = vmatpush1.bf16.msra.mxu0 0
  %2076 = vmatprep.subr.bf16.mxu0 0
  %2077 = vmatpush1.bf16.msra.mxu0 0
  %2078 = vmatprep.subr.bf16.mxu0 0
  %2079 = vmatpush1.bf16.msra.mxu0 0
  %2080 = vmatprep.subr.bf16.mxu0 0
  %2081 = vmatpush1.bf16.msra.mxu0 0
  %2082 = vmatprep.subr.bf16.mxu0 0
  %2083 = vmatpush1.bf16.msra.mxu0 0
  %2084 = vmatprep.subr.bf16.mxu0 0
  %2085 = vmatpush1.bf16.msra.mxu0 0
  %2086 = vmatprep.subr.bf16.mxu0 0
  %2087 = vmatpush1.bf16.msra.mxu0 0
  %2088 = vmatprep.subr.bf16.mxu0 0
  %2089 = vmatpush1.bf16.msra.mxu0 0
  %2090 = vmatprep.subr.bf16.mxu0 0
  %2091 = vmatpush1.bf16.msra.mxu0 0
  %2092 = vmatprep.subr.bf16.mxu0 0
  %2093 = vmatpush1.bf16.msra.mxu0 0
  %2094 = vmatprep.subr.bf16.mxu0 0
  %2095 = vmatpush1.bf16.msra.mxu0 0
  %2096 = vmatprep.subr.bf16.mxu0 0
  %2097 = vmatpush1.bf16.msra.mxu0 0
  %2098 = vmatprep.mubr.bf16.mxu0 0
  %2099 = vmatmul.mubr.bf16.gmra.mrb[0].mxu0 %v769
  %v2100 = vpop.f32.mrb[0].mxu0
  %v2101 = vadd.f32 %v2040, %v2100
  %v2102 = vpop.f32.mrb[0].mxu0
  %v2103 = vpop.f32.mrb[0].mxu0
  %v2104 = vpop.f32.mrb[0].mxu0
  %2105 = vdwg.mxu0
  %s2106 = scalar_lea.vmem %s29, 96
  %v2107 = vld [vmem:[%s2106] sm:$0xf]
  %v2108 = vld [vmem:[%s2106 + $0x4] sm:$0xf]
  %v2109 = vld [vmem:[%s2106 + $0x8] sm:$0xf]
  %v2110 = vld [vmem:[%s2106 + $0xc] sm:$0xf]
  %v2111 = vld [vmem:[%s2106 + $0x10] sm:$0xf]
  %v2112 = vld [vmem:[%s2106 + $0x14] sm:$0xf]
  %v2113 = vld [vmem:[%s2106 + $0x18] sm:$0xf]
  %v2114 = vld [vmem:[%s2106 + $0x1c] sm:$0xf]
  %s2115 = scalar_lea.vmem %s31, 3
  %v2116 = vld [vmem:[%s2115] sm:$0x1]
  %v2118 = vlaneseq
  %v2119 = vshrl.u32 %v2118, 7
  %v2120 = vsub.s32 0, %v2119
  %v2121 = vrot.slane %v2116, %v2120
  %v2131 = vunpack.c.l.b16 %v2107
  %v2132 = vunpack.c.l.b16 %v2108
  %v2133 = vunpack.c.l.b16 %v2109
  %v2134 = vunpack.c.l.b16 %v2110
  %v2135 = vunpack.c.l.b16 %v2111
  %v2136 = vunpack.c.l.b16 %v2112
  %v2137 = vunpack.c.l.b16 %v2113
  %v2138 = vunpack.c.l.b16 %v2114
  %v2139 = vpack.c.b16 %v2132, %v2131
  %v2140 = vpack.c.b16 %v2134, %v2133
  %v2141 = vpack.c.b16 %v2136, %v2135
  %v2142 = vpack.c.b16 %v2138, %v2137
  %2147 = vmatprep.subr.bf16.mxu0 0
  %2148 = vmatpush1.bf16.msra.mxu0 %v2139
  %2149 = vmatprep.subr.bf16.mxu0 0
  %2150 = vmatpush1.bf16.msra.mxu0 %v2140
  %2151 = vmatprep.subr.bf16.mxu0 0
  %2152 = vmatpush1.bf16.msra.mxu0 %v2141
  %2153 = vmatprep.subr.bf16.mxu0 0
  %2154 = vmatpush1.bf16.msra.mxu0 %v2142
  %2155 = vmatprep.subr.bf16.mxu0 0
  %2156 = vmatpush1.bf16.msra.mxu0 0
  %2157 = vmatprep.subr.bf16.mxu0 0
  %2158 = vmatpush1.bf16.msra.mxu0 0
  %2159 = vmatprep.subr.bf16.mxu0 0
  %2160 = vmatpush1.bf16.msra.mxu0 0
  %2161 = vmatprep.subr.bf16.mxu0 0
  %2162 = vmatpush1.bf16.msra.mxu0 0
  %2163 = vmatprep.subr.bf16.mxu0 0
  %2164 = vmatpush1.bf16.msra.mxu0 0
  %2165 = vmatprep.subr.bf16.mxu0 0
  %2166 = vmatpush1.bf16.msra.mxu0 0
  %2167 = vmatprep.subr.bf16.mxu0 0
  %2168 = vmatpush1.bf16.msra.mxu0 0
  %2169 = vmatprep.subr.bf16.mxu0 0
  %2170 = vmatpush1.bf16.msra.mxu0 0
  %2171 = vmatprep.subr.bf16.mxu0 0
  %2172 = vmatpush1.bf16.msra.mxu0 0
  %2173 = vmatprep.subr.bf16.mxu0 0
  %2174 = vmatpush1.bf16.msra.mxu0 0
  %2175 = vmatprep.subr.bf16.mxu0 0
  %2176 = vmatpush1.bf16.msra.mxu0 0
  %2177 = vmatprep.subr.bf16.mxu0 0
  %2178 = vmatpush1.bf16.msra.mxu0 0
  %2179 = vmatprep.mubr.bf16.mxu0 0
  %2180 = vmatmul.mubr.bf16.gmra.mrb[0].mxu0 %v769
  %v2181 = vpop.f32.mrb[0].mxu0
  %v2182 = vadd.f32 %v2121, %v2181
  %v2183 = vpop.f32.mrb[0].mxu0
  %v2184 = vpop.f32.mrb[0].mxu0
  %v2185 = vpop.f32.mrb[0].mxu0
  %2186 = vdwg.mxu0
  %v2187 = vpack.c.bf16 %v2020, %v2020
  %v2188 = vpack.c.bf16 %v2101, %v2101
  %v2190 = vsel %vm971, %v2187, 0
  %v2193 = vsel %vm971, %v2188, 0
  %2195 = vmatprep.subr.bf16.mxu0 0
  %2196 = vmatpush1.bf16.xpose.msra.mxu0 %v2193
  %2197 = vmatprep.subr.bf16.mxu0 0
  %2198 = vmatpush1.bf16.xpose.msra.mxu0 0
  %2199 = vmatprep.subr.bf16.mxu0 0
  %2200 = vmatpush1.bf16.xpose.msra.mxu0 0
  %2201 = vmatprep.subr.bf16.mxu0 0
  %2202 = vmatpush1.bf16.xpose.msra.mxu0 0
  %2203 = vmatprep.subr.bf16.mxu0 0
  %2204 = vmatpush1.bf16.xpose.msra.mxu0 0
  %2205 = vmatprep.subr.bf16.mxu0 0
  %2206 = vmatpush1.bf16.xpose.msra.mxu0 0
  %2207 = vmatprep.subr.bf16.mxu0 0
  %2208 = vmatpush1.bf16.xpose.msra.mxu0 0
  %2209 = vmatprep.subr.bf16.mxu0 0
  %2210 = vmatpush1.bf16.xpose.msra.mxu0 0
  %2211 = vmatprep.subr.bf16.mxu0 0
  %2212 = vmatpush1.bf16.xpose.msra.mxu0 0
  %2213 = vmatprep.subr.bf16.mxu0 0
  %2214 = vmatpush1.bf16.xpose.msra.mxu0 0
  %2215 = vmatprep.subr.bf16.mxu0 0
  %2216 = vmatpush1.bf16.xpose.msra.mxu0 0
  %2217 = vmatprep.subr.bf16.mxu0 0
  %2218 = vmatpush1.bf16.xpose.msra.mxu0 0
  %2219 = vmatprep.subr.bf16.mxu0 0
  %2220 = vmatpush1.bf16.xpose.msra.mxu0 0
  %2221 = vmatprep.subr.bf16.mxu0 0
  %2222 = vmatpush1.bf16.xpose.msra.mxu0 0
  %2223 = vmatprep.subr.bf16.mxu0 0
  %2224 = vmatpush1.bf16.xpose.msra.mxu0 0
  %2225 = vmatprep.subr.bf16.mxu0 0
  %2226 = vmatpush1.bf16.xpose.msra.mxu0 0
  %2227 = vmatprep.mubr.bf16.mxu0 0
  %2228 = vmatmul.mubr.bf16.gmra.mrb[0].mxu0 %v2190
  %v2229 = vpop.f32.mrb[0].mxu0
  %v2230 = vadd.f32 0.0, %v2229
  %v2231 = vpop.f32.mrb[0].mxu0
  %v2232 = vpop.f32.mrb[0].mxu0
  %v2233 = vpop.f32.mrb[0].mxu0
  %2234 = vdwg.mxu0
  %v2235 = vmul.f32 %v2230, 0.25
  %v2236 = vadd.f32 %v2235, %v696
  %v2237 = vsel %vm1020, %v2236, -inf
  %2238 = vmax.xlane.f32.xlu0 %v2237
  %v2239 = vpop.xlane.xlu0 %2238
  %v2240 = vsub.f32 %v2236, %v2239
  %v2241 = vmul.f32 %v2240, 1.442695
  %v2242 = vpow.pop %v2241
  %v2243 = vsel %vm1020, %v2242, 0.0
  %2244 = vadd.xlane.f32.xlu0 %v2243
  %v2245 = vpop.xlane.xlu0 %2244
  %v2246 = vrcp.pop %v2245
  %v2247 = vmul.f32 %v2242, %v2246
  %v2248 = vpack.c.bf16 %v2247, %v2247
  %v2249 = vpack.c.bf16 %v2182, %v2182
  %v2251 = vsel %vm1020, %v2248, 0
  %v2254 = vsel %vm1037, %v2249, 0
  %2256 = vmatprep.subr.bf16.mxu0 0
  %2257 = vmatpush1.bf16.msra.mxu0 %v2254
  %2258 = vmatprep.subr.bf16.mxu0 0
  %2259 = vmatpush1.bf16.msra.mxu0 0
  %2260 = vmatprep.subr.bf16.mxu0 0
  %2261 = vmatpush1.bf16.msra.mxu0 0
  %2262 = vmatprep.subr.bf16.mxu0 0
  %2263 = vmatpush1.bf16.msra.mxu0 0
  %2264 = vmatprep.subr.bf16.mxu0 0
  %2265 = vmatpush1.bf16.msra.mxu0 0
  %2266 = vmatprep.subr.bf16.mxu0 0
  %2267 = vmatpush1.bf16.msra.mxu0 0
  %2268 = vmatprep.subr.bf16.mxu0 0
  %2269 = vmatpush1.bf16.msra.mxu0 0
  %2270 = vmatprep.subr.bf16.mxu0 0
  %2271 = vmatpush1.bf16.msra.mxu0 0
  %2272 = vmatprep.subr.bf16.mxu0 0
  %2273 = vmatpush1.bf16.msra.mxu0 0
  %2274 = vmatprep.subr.bf16.mxu0 0
  %2275 = vmatpush1.bf16.msra.mxu0 0
  %2276 = vmatprep.subr.bf16.mxu0 0
  %2277 = vmatpush1.bf16.msra.mxu0 0
  %2278 = vmatprep.subr.bf16.mxu0 0
  %2279 = vmatpush1.bf16.msra.mxu0 0
  %2280 = vmatprep.subr.bf16.mxu0 0
  %2281 = vmatpush1.bf16.msra.mxu0 0
  %2282 = vmatprep.subr.bf16.mxu0 0
  %2283 = vmatpush1.bf16.msra.mxu0 0
  %2284 = vmatprep.subr.bf16.mxu0 0
  %2285 = vmatpush1.bf16.msra.mxu0 0
  %2286 = vmatprep.subr.bf16.mxu0 0
  %2287 = vmatpush1.bf16.msra.mxu0 0
  %2288 = vmatprep.mubr.bf16.mxu0 0
  %2289 = vmatmul.mubr.bf16.gmra.mrb[0].mxu0 %v2251
  %v2290 = vpop.f32.mrb[0].mxu0
  %v2291 = vadd.f32 0.0, %v2290
  %v2292 = vpop.f32.mrb[0].mxu0
  %v2293 = vpop.f32.mrb[0].mxu0
  %v2294 = vpop.f32.mrb[0].mxu0
  %2295 = vdwg.mxu0
  %v2296 = vpack.c.bf16 %v2291, %v2291
  %s2297 = scalar_lea.vmem %s33, 24
  %v2298 = vld [vmem:[%s2297] sm:$0xf]
  %v2299 = vld [vmem:[%s2297 + $0x4] sm:$0xf]
  %v2302 = vunpack.c.l.b16 %v2298
  %v2303 = vunpack.c.l.b16 %v2299
  %v2304 = vpack.c.b16 %v2303, %v2302
  %v2307 = vsel %vm971, %v2296, 0
  %2309 = vmatprep.subr.bf16.mxu0 0
  %2310 = vmatpush1.bf16.msra.mxu0 %v2304
  %2311 = vmatprep.subr.bf16.mxu0 0
  %2312 = vmatpush1.bf16.msra.mxu0 0
  %2313 = vmatprep.subr.bf16.mxu0 0
  %2314 = vmatpush1.bf16.msra.mxu0 0
  %2315 = vmatprep.subr.bf16.mxu0 0
  %2316 = vmatpush1.bf16.msra.mxu0 0
  %2317 = vmatprep.subr.bf16.mxu0 0
  %2318 = vmatpush1.bf16.msra.mxu0 0
  %2319 = vmatprep.subr.bf16.mxu0 0
  %2320 = vmatpush1.bf16.msra.mxu0 0
  %2321 = vmatprep.subr.bf16.mxu0 0
  %2322 = vmatpush1.bf16.msra.mxu0 0
  %2323 = vmatprep.subr.bf16.mxu0 0
  %2324 = vmatpush1.bf16.msra.mxu0 0
  %2325 = vmatprep.subr.bf16.mxu0 0
  %2326 = vmatpush1.bf16.msra.mxu0 0
  %2327 = vmatprep.subr.bf16.mxu0 0
  %2328 = vmatpush1.bf16.msra.mxu0 0
  %2329 = vmatprep.subr.bf16.mxu0 0
  %2330 = vmatpush1.bf16.msra.mxu0 0
  %2331 = vmatprep.subr.bf16.mxu0 0
  %2332 = vmatpush1.bf16.msra.mxu0 0
  %2333 = vmatprep.subr.bf16.mxu0 0
  %2334 = vmatpush1.bf16.msra.mxu0 0
  %2335 = vmatprep.subr.bf16.mxu0 0
  %2336 = vmatpush1.bf16.msra.mxu0 0
  %2337 = vmatprep.subr.bf16.mxu0 0
  %2338 = vmatpush1.bf16.msra.mxu0 0
  %2339 = vmatprep.subr.bf16.mxu0 0
  %2340 = vmatpush1.bf16.msra.mxu0 0
  %2341 = vmatprep.mubr.bf16.mxu0 0
  %2342 = vmatmul.mubr.bf16.gmra.mrb[0].mxu0 %v2307
  %v2343 = vpop.f32.mrb[0].mxu0
  %v2344 = vadd.f32 0.0, %v2343
  %v2345 = vpop.f32.mrb[0].mxu0
  %v2346 = vpop.f32.mrb[0].mxu0
  %v2347 = vpop.f32.mrb[0].mxu0
  %2348 = vdwg.mxu0
  %v2349 = vadd.f32 %v1943, %v2344
  %v2350 = vadd.f32 %v695, %v2349
  %v2351 = vld [vmem:[%s35] sm:$0x1]
  %v2353 = vlaneseq
  %v2354 = vshrl.u32 %v2353, 7
  %v2355 = vsub.s32 0, %v2354
  %v2356 = vrot.slane %v2351, %v2355
  %v2358 = vadd.f32 %v2350, %v2356
  %v2359 = vld [vmem:[%s37] sm:$0x1]
  %v2360 = vld [vmem:[%s39] sm:$0x1]
  %v2361 = vsel %vm699, %v2358, 0.0
  %2362 = vadd.xlane.f32.xlu0 %v2361
  %v2363 = vpop.xlane.xlu0 %2362
  %v2364 = vmul.f32 %v2363, %v703
  %v2365 = vsub.f32 %v2358, %v2364
  %v2366 = vmul.f32 %v2365, %v2365
  %v2367 = vsel %vm699, %v2366, 0.0
  %2368 = vadd.xlane.f32.xlu0 %v2367
  %v2369 = vpop.xlane.xlu0 %2368
  %v2370 = vmul.f32 %v2369, %v703
  %v2371 = vadd.f32 %v2370, 1e-06
  %v2372 = vrsqrt.pop %v2371
  %v2373 = vmul.f32 %v2365, %v2372
  %v2375 = vlaneseq
  %v2376 = vshrl.u32 %v2375, 7
  %v2377 = vsub.s32 0, %v2376
  %v2378 = vrot.slane %v2359, %v2377
  %v2380 = vmul.f32 %v2373, %v2378
  %v2382 = vlaneseq
  %v2383 = vshrl.u32 %v2382, 7
  %v2384 = vsub.s32 0, %v2383
  %v2385 = vrot.slane %v2360, %v2384
  %v2387 = vadd.f32 %v2380, %v2385
  %v2388 = vld [vmem:[%s41] sm:$0xff]
  %v2389 = vld [vmem:[%s41 + $0x8] sm:$0xff]
  %v2390 = vld [vmem:[%s41 + $0x10] sm:$0xff]
  %v2391 = vld [vmem:[%s41 + $0x18] sm:$0xff]
  %v2392 = vld [vmem:[%s41 + $0x20] sm:$0xff]
  %v2393 = vld [vmem:[%s41 + $0x28] sm:$0xff]
  %v2394 = vld [vmem:[%s41 + $0x30] sm:$0xff]
  %v2395 = vld [vmem:[%s41 + $0x38] sm:$0xff]
  %v2396 = vpack.c.bf16 %v2387, %v2387
  %v2397 = vld [vmem:[%s43] sm:$0x3]
  %v2399 = vlaneseq
  %v2400 = vshrl.u32 %v2399, 7
  %v2401 = vsub.s32 0, %v2400
  %v2402 = vrot.slane %v2397, %v2401
  %v2403 = vlaneseq
  %v2404 = vshrl.u32 %v2403, 7
  %v2405 = vsub.s32 1, %v2404
  %v2406 = vrot.slane %v2397, %v2405
  %v2417 = vunpack.c.l.b16 %v2388
  %v2418 = vunpack.c.h.b16 %v2388
  %v2419 = vunpack.c.l.b16 %v2389
  %v2420 = vunpack.c.h.b16 %v2389
  %v2421 = vunpack.c.l.b16 %v2390
  %v2422 = vunpack.c.h.b16 %v2390
  %v2423 = vunpack.c.l.b16 %v2391
  %v2424 = vunpack.c.h.b16 %v2391
  %v2425 = vunpack.c.l.b16 %v2392
  %v2426 = vunpack.c.h.b16 %v2392
  %v2427 = vunpack.c.l.b16 %v2393
  %v2428 = vunpack.c.h.b16 %v2393
  %v2429 = vunpack.c.l.b16 %v2394
  %v2430 = vunpack.c.h.b16 %v2394
  %v2431 = vunpack.c.l.b16 %v2395
  %v2432 = vunpack.c.h.b16 %v2395
  %v2433 = vpack.c.b16 %v2419, %v2417
  %v2434 = vpack.c.b16 %v2420, %v2418
  %v2435 = vpack.c.b16 %v2423, %v2421
  %v2436 = vpack.c.b16 %v2424, %v2422
  %v2437 = vpack.c.b16 %v2427, %v2425
  %v2438 = vpack.c.b16 %v2428, %v2426
  %v2439 = vpack.c.b16 %v2431, %v2429
  %v2440 = vpack.c.b16 %v2432, %v2430
  %v2450 = vsel %vm699, %v2396, 0
  %2452 = vmatprep.subr.bf16.mxu0 %v2434
  %2453 = vmatpush1.bf16.msra.mxu0 %v2433
  %2454 = vmatprep.subr.bf16.mxu0 %v2436
  %2455 = vmatpush1.bf16.msra.mxu0 %v2435
  %2456 = vmatprep.subr.bf16.mxu0 %v2438
  %2457 = vmatpush1.bf16.msra.mxu0 %v2437
  %2458 = vmatprep.subr.bf16.mxu0 %v2440
  %2459 = vmatpush1.bf16.msra.mxu0 %v2439
  %2460 = vmatprep.subr.bf16.mxu0 0
  %2461 = vmatpush1.bf16.msra.mxu0 0
  %2462 = vmatprep.subr.bf16.mxu0 0
  %2463 = vmatpush1.bf16.msra.mxu0 0
  %2464 = vmatprep.subr.bf16.mxu0 0
  %2465 = vmatpush1.bf16.msra.mxu0 0
  %2466 = vmatprep.subr.bf16.mxu0 0
  %2467 = vmatpush1.bf16.msra.mxu0 0
  %2468 = vmatprep.subr.bf16.mxu0 0
  %2469 = vmatpush1.bf16.msra.mxu0 0
  %2470 = vmatprep.subr.bf16.mxu0 0
  %2471 = vmatpush1.bf16.msra.mxu0 0
  %2472 = vmatprep.subr.bf16.mxu0 0
  %2473 = vmatpush1.bf16.msra.mxu0 0
  %2474 = vmatprep.subr.bf16.mxu0 0
  %2475 = vmatpush1.bf16.msra.mxu0 0
  %2476 = vmatprep.subr.bf16.mxu0 0
  %2477 = vmatpush1.bf16.msra.mxu0 0
  %2478 = vmatprep.subr.bf16.mxu0 0
  %2479 = vmatpush1.bf16.msra.mxu0 0
  %2480 = vmatprep.subr.bf16.mxu0 0
  %2481 = vmatpush1.bf16.msra.mxu0 0
  %2482 = vmatprep.subr.bf16.mxu0 0
  %2483 = vmatpush1.bf16.msra.mxu0 0
  %2484 = vmatprep.mubr.bf16.mxu0 0
  %2485 = vmatmul.mubr.bf16.gmra.mrb[0].mxu0 %v2450
  %v2486 = vpop.f32.mrb[0].mxu0
  %v2487 = vadd.f32 %v2402, %v2486
  %v2488 = vpop.f32.mrb[0].mxu0
  %v2489 = vadd.f32 %v2406, %v2488
  %v2490 = vpop.f32.mrb[0].mxu0
  %v2491 = vpop.f32.mrb[0].mxu0
  %2492 = vdwg.mxu0
  %v2493 = vmul.f32 %v2487, 0.5
  %v2494 = vmul.f32 %v2489, 0.5
  %v2495 = vmul.f32 %v2487, 0.70710677
  %v2496 = vmul.f32 %v2489, 0.70710677
  %v2497 = verf.f32.pop %v2495
  %v2498 = verf.f32.pop %v2496
  %v2499 = vadd.f32 %v2497, 1.0
  %v2500 = vadd.f32 %v2498, 1.0
  %v2501 = vmul.f32 %v2493, %v2499
  %v2502 = vmul.f32 %v2494, %v2500
  %v2503 = vld [vmem:[%s45] sm:$0xf]
  %v2504 = vld [vmem:[%s45 + $0x4] sm:$0xf]
  %v2505 = vld [vmem:[%s45 + $0x8] sm:$0xf]
  %v2506 = vld [vmem:[%s45 + $0xc] sm:$0xf]
  %v2507 = vld [vmem:[%s45 + $0x10] sm:$0xf]
  %v2508 = vld [vmem:[%s45 + $0x14] sm:$0xf]
  %v2509 = vld [vmem:[%s45 + $0x18] sm:$0xf]
  %v2510 = vld [vmem:[%s45 + $0x1c] sm:$0xf]
  %v2511 = vld [vmem:[%s45 + $0x20] sm:$0xf]
  %v2512 = vld [vmem:[%s45 + $0x24] sm:$0xf]
  %v2513 = vld [vmem:[%s45 + $0x28] sm:$0xf]
  %v2514 = vld [vmem:[%s45 + $0x2c] sm:$0xf]
  %v2515 = vld [vmem:[%s45 + $0x30] sm:$0xf]
  %v2516 = vld [vmem:[%s45 + $0x34] sm:$0xf]
  %v2517 = vld [vmem:[%s45 + $0x38] sm:$0xf]
  %v2518 = vld [vmem:[%s45 + $0x3c] sm:$0xf]
  %v2519 = vld [vmem:[%s45 + $0x40] sm:$0xf]
  %v2520 = vld [vmem:[%s45 + $0x44] sm:$0xf]
  %v2521 = vld [vmem:[%s45 + $0x48] sm:$0xf]
  %v2522 = vld [vmem:[%s45 + $0x4c] sm:$0xf]
  %v2523 = vld [vmem:[%s45 + $0x50] sm:$0xf]
  %v2524 = vld [vmem:[%s45 + $0x54] sm:$0xf]
  %v2525 = vld [vmem:[%s45 + $0x58] sm:$0xf]
  %v2526 = vld [vmem:[%s45 + $0x5c] sm:$0xf]
  %v2527 = vld [vmem:[%s45 + $0x60] sm:$0xf]
  %v2528 = vld [vmem:[%s45 + $0x64] sm:$0xf]
  %v2529 = vld [vmem:[%s45 + $0x68] sm:$0xf]
  %v2530 = vld [vmem:[%s45 + $0x6c] sm:$0xf]
  %v2531 = vld [vmem:[%s45 + $0x70] sm:$0xf]
  %v2532 = vld [vmem:[%s45 + $0x74] sm:$0xf]
  %v2533 = vld [vmem:[%s45 + $0x78] sm:$0xf]
  %v2534 = vld [vmem:[%s45 + $0x7c] sm:$0xf]
  %v2535 = vpack.c.bf16 %v2501, %v2501
  %v2536 = vpack.c.bf16 %v2502, %v2502
  %v2569 = vunpack.c.l.b16 %v2503
  %v2570 = vunpack.c.l.b16 %v2504
  %v2571 = vunpack.c.l.b16 %v2505
  %v2572 = vunpack.c.l.b16 %v2506
  %v2573 = vunpack.c.l.b16 %v2507
  %v2574 = vunpack.c.l.b16 %v2508
  %v2575 = vunpack.c.l.b16 %v2509
  %v2576 = vunpack.c.l.b16 %v2510
  %v2577 = vunpack.c.l.b16 %v2511
  %v2578 = vunpack.c.l.b16 %v2512
  %v2579 = vunpack.c.l.b16 %v2513
  %v2580 = vunpack.c.l.b16 %v2514
  %v2581 = vunpack.c.l.b16 %v2515
  %v2582 = vunpack.c.l.b16 %v2516
  %v2583 = vunpack.c.l.b16 %v2517
  %v2584 = vunpack.c.l.b16 %v2518
  %v2585 = vunpack.c.l.b16 %v2519
  %v2586 = vunpack.c.l.b16 %v2520
  %v2587 = vunpack.c.l.b16 %v2521
  %v2588 = vunpack.c.l.b16 %v2522
  %v2589 = vunpack.c.l.b16 %v2523
  %v2590 = vunpack.c.l.b16 %v2524
  %v2591 = vunpack.c.l.b16 %v2525
  %v2592 = vunpack.c.l.b16 %v2526
  %v2593 = vunpack.c.l.b16 %v2527
  %v2594 = vunpack.c.l.b16 %v2528
  %v2595 = vunpack.c.l.b16 %v2529
  %v2596 = vunpack.c.l.b16 %v2530
  %v2597 = vunpack.c.l.b16 %v2531
  %v2598 = vunpack.c.l.b16 %v2532
  %v2599 = vunpack.c.l.b16 %v2533
  %v2600 = vunpack.c.l.b16 %v2534
  %v2601 = vpack.c.b16 %v2570, %v2569
  %v2602 = vpack.c.b16 %v2572, %v2571
  %v2603 = vpack.c.b16 %v2574, %v2573
  %v2604 = vpack.c.b16 %v2576, %v2575
  %v2605 = vpack.c.b16 %v2578, %v2577
  %v2606 = vpack.c.b16 %v2580, %v2579
  %v2607 = vpack.c.b16 %v2582, %v2581
  %v2608 = vpack.c.b16 %v2584, %v2583
  %v2609 = vpack.c.b16 %v2586, %v2585
  %v2610 = vpack.c.b16 %v2588, %v2587
  %v2611 = vpack.c.b16 %v2590, %v2589
  %v2612 = vpack.c.b16 %v2592, %v2591
  %v2613 = vpack.c.b16 %v2594, %v2593
  %v2614 = vpack.c.b16 %v2596, %v2595
  %v2615 = vpack.c.b16 %v2598, %v2597
  %v2616 = vpack.c.b16 %v2600, %v2599
  %2633 = vmatprep.subr.bf16.mxu0 0
  %2634 = vmatpush1.bf16.msra.mxu0 %v2601
  %2635 = vmatprep.subr.bf16.mxu0 0
  %2636 = vmatpush1.bf16.msra.mxu0 %v2602
  %2637 = vmatprep.subr.bf16.mxu0 0
  %2638 = vmatpush1.bf16.msra.mxu0 %v2603
  %2639 = vmatprep.subr.bf16.mxu0 0
  %2640 = vmatpush1.bf16.msra.mxu0 %v2604
  %2641 = vmatprep.subr.bf16.mxu0 0
  %2642 = vmatpush1.bf16.msra.mxu0 %v2605
  %2643 = vmatprep.subr.bf16.mxu0 0
  %2644 = vmatpush1.bf16.msra.mxu0 %v2606
  %2645 = vmatprep.subr.bf16.mxu0 0
  %2646 = vmatpush1.bf16.msra.mxu0 %v2607
  %2647 = vmatprep.subr.bf16.mxu0 0
  %2648 = vmatpush1.bf16.msra.mxu0 %v2608
  %2649 = vmatprep.subr.bf16.mxu0 0
  %2650 = vmatpush1.bf16.msra.mxu0 %v2609
  %2651 = vmatprep.subr.bf16.mxu0 0
  %2652 = vmatpush1.bf16.msra.mxu0 %v2610
  %2653 = vmatprep.subr.bf16.mxu0 0
  %2654 = vmatpush1.bf16.msra.mxu0 %v2611
  %2655 = vmatprep.subr.bf16.mxu0 0
  %2656 = vmatpush1.bf16.msra.mxu0 %v2612
  %2657 = vmatprep.subr.bf16.mxu0 0
  %2658 = vmatpush1.bf16.msra.mxu0 %v2613
  %2659 = vmatprep.subr.bf16.mxu0 0
  %2660 = vmatpush1.bf16.msra.mxu0 %v2614
  %2661 = vmatprep.subr.bf16.mxu0 0
  %2662 = vmatpush1.bf16.msra.mxu0 %v2615
  %2663 = vmatprep.subr.bf16.mxu0 0
  %2664 = vmatpush1.bf16.msra.mxu0 %v2616
  %2665 = vmatprep.mubr.bf16.mxu0 %v2536
  %2666 = vmatmul.mubr.bf16.gmra.mrb[0].mxu0 %v2535
  %v2667 = vpop.f32.mrb[0].mxu0
  %v2668 = vadd.f32 0.0, %v2667
  %v2669 = vpop.f32.mrb[0].mxu0
  %v2670 = vpop.f32.mrb[0].mxu0
  %v2671 = vpop.f32.mrb[0].mxu0
  %2672 = vdwg.mxu0
  %v2673 = vadd.f32 %v2358, %v2668
  %v2674 = vld [vmem:[%s47] sm:$0x1]
  %v2676 = vlaneseq
  %v2677 = vshrl.u32 %v2676, 7
  %v2678 = vsub.s32 0, %v2677
  %v2679 = vrot.slane %v2674, %v2678
  %v2681 = vadd.f32 %v2673, %v2679
  %s2682 = scalar_lea.vmem %s17, 1
  %v2683 = vld [vmem:[%s2682] sm:$0x1]
  %s2684 = scalar_lea.vmem %s19, 1
  %v2685 = vld [vmem:[%s2684] sm:$0x1]
  %v2686 = vsel %vm699, %v2681, 0.0
  %2687 = vadd.xlane.f32.xlu0 %v2686
  %v2688 = vpop.xlane.xlu0 %2687
  %v2689 = vmul.f32 %v2688, %v703
  %v2690 = vsub.f32 %v2681, %v2689
  %v2691 = vmul.f32 %v2690, %v2690
  %v2692 = vsel %vm699, %v2691, 0.0
  %2693 = vadd.xlane.f32.xlu0 %v2692
  %v2694 = vpop.xlane.xlu0 %2693
  %v2695 = vmul.f32 %v2694, %v703
  %v2696 = vadd.f32 %v2695, 1e-06
  %v2697 = vrsqrt.pop %v2696
  %v2698 = vmul.f32 %v2690, %v2697
  %v2700 = vlaneseq
  %v2701 = vshrl.u32 %v2700, 7
  %v2702 = vsub.s32 0, %v2701
  %v2703 = vrot.slane %v2683, %v2702
  %v2705 = vmul.f32 %v2698, %v2703
  %v2707 = vlaneseq
  %v2708 = vshrl.u32 %v2707, 7
  %v2709 = vsub.s32 0, %v2708
  %v2710 = vrot.slane %v2685, %v2709
  %v2712 = vadd.f32 %v2705, %v2710
  %v2713 = vpack.c.bf16 %v2712, %v2712
  %s2714 = scalar_lea.vmem %s21, 128
  %v2715 = vld [vmem:[%s2714] sm:$0xf]
  %v2716 = vld [vmem:[%s2714 + $0x4] sm:$0xf]
  %v2717 = vld [vmem:[%s2714 + $0x8] sm:$0xf]
  %v2718 = vld [vmem:[%s2714 + $0xc] sm:$0xf]
  %v2719 = vld [vmem:[%s2714 + $0x10] sm:$0xf]
  %v2720 = vld [vmem:[%s2714 + $0x14] sm:$0xf]
  %v2721 = vld [vmem:[%s2714 + $0x18] sm:$0xf]
  %v2722 = vld [vmem:[%s2714 + $0x1c] sm:$0xf]
  %s2723 = scalar_lea.vmem %s23, 4
  %v2724 = vld [vmem:[%s2723] sm:$0x1]
  %v2726 = vlaneseq
  %v2727 = vshrl.u32 %v2726, 7
  %v2728 = vsub.s32 0, %v2727
  %v2729 = vrot.slane %v2724, %v2728
  %v2739 = vunpack.c.l.b16 %v2715
  %v2740 = vunpack.c.l.b16 %v2716
  %v2741 = vunpack.c.l.b16 %v2717
  %v2742 = vunpack.c.l.b16 %v2718
  %v2743 = vunpack.c.l.b16 %v2719
  %v2744 = vunpack.c.l.b16 %v2720
  %v2745 = vunpack.c.l.b16 %v2721
  %v2746 = vunpack.c.l.b16 %v2722
  %v2747 = vpack.c.b16 %v2740, %v2739
  %v2748 = vpack.c.b16 %v2742, %v2741
  %v2749 = vpack.c.b16 %v2744, %v2743
  %v2750 = vpack.c.b16 %v2746, %v2745
  %v2756 = vsel %vm699, %v2713, 0
  %2758 = vmatprep.subr.bf16.mxu0 0
  %2759 = vmatpush1.bf16.msra.mxu0 %v2747
  %2760 = vmatprep.subr.bf16.mxu0 0
  %2761 = vmatpush1.bf16.msra.mxu0 %v2748
  %2762 = vmatprep.subr.bf16.mxu0 0
  %2763 = vmatpush1.bf16.msra.mxu0 %v2749
  %2764 = vmatprep.subr.bf16.mxu0 0
  %2765 = vmatpush1.bf16.msra.mxu0 %v2750
  %2766 = vmatprep.subr.bf16.mxu0 0
  %2767 = vmatpush1.bf16.msra.mxu0 0
  %2768 = vmatprep.subr.bf16.mxu0 0
  %2769 = vmatpush1.bf16.msra.mxu0 0
  %2770 = vmatprep.subr.bf16.mxu0 0
  %2771 = vmatpush1.bf16.msra.mxu0 0
  %2772 = vmatprep.subr.bf16.mxu0 0
  %2773 = vmatpush1.bf16.msra.mxu0 0
  %2774 = vmatprep.subr.bf16.mxu0 0
  %2775 = vmatpush1.bf16.msra.mxu0 0
  %2776 = vmatprep.subr.bf16.mxu0 0
  %2777 = vmatpush1.bf16.msra.mxu0 0
  %2778 = vmatprep.subr.bf16.mxu0 0
  %2779 = vmatpush1.bf16.msra.mxu0 0
  %2780 = vmatprep.subr.bf16.mxu0 0
  %2781 = vmatpush1.bf16.msra.mxu0 0
  %2782 = vmatprep.subr.bf16.mxu0 0
  %2783 = vmatpush1.bf16.msra.mxu0 0
  %2784 = vmatprep.subr.bf16.mxu0 0
  %2785 = vmatpush1.bf16.msra.mxu0 0
  %2786 = vmatprep.subr.bf16.mxu0 0
  %2787 = vmatpush1.bf16.msra.mxu0 0
  %2788 = vmatprep.subr.bf16.mxu0 0
  %2789 = vmatpush1.bf16.msra.mxu0 0
  %2790 = vmatprep.mubr.bf16.mxu0 0
  %2791 = vmatmul.mubr.bf16.gmra.mrb[0].mxu0 %v2756
  %v2792 = vpop.f32.mrb[0].mxu0
  %v2793 = vadd.f32 %v2729, %v2792
  %v2794 = vpop.f32.mrb[0].mxu0
  %v2795 = vpop.f32.mrb[0].mxu0
  %v2796 = vpop.f32.mrb[0].mxu0
  %2797 = vdwg.mxu0
  %s2798 = scalar_lea.vmem %s25, 128
  %v2799 = vld [vmem:[%s2798] sm:$0xf]
  %v2800 = vld [vmem:[%s2798 + $0x4] sm:$0xf]
  %v2801 = vld [vmem:[%s2798 + $0x8] sm:$0xf]
  %v2802 = vld [vmem:[%s2798 + $0xc] sm:$0xf]
  %v2803 = vld [vmem:[%s2798 + $0x10] sm:$0xf]
  %v2804 = vld [vmem:[%s2798 + $0x14] sm:$0xf]
  %v2805 = vld [vmem:[%s2798 + $0x18] sm:$0xf]
  %v2806 = vld [vmem:[%s2798 + $0x1c] sm:$0xf]
  %s2807 = scalar_lea.vmem %s27, 4
  %v2808 = vld [vmem:[%s2807] sm:$0x1]
  %v2810 = vlaneseq
  %v2811 = vshrl.u32 %v2810, 7
  %v2812 = vsub.s32 0, %v2811
  %v2813 = vrot.slane %v2808, %v2812
  %v2823 = vunpack.c.l.b16 %v2799
  %v2824 = vunpack.c.l.b16 %v2800
  %v2825 = vunpack.c.l.b16 %v2801
  %v2826 = vunpack.c.l.b16 %v2802
  %v2827 = vunpack.c.l.b16 %v2803
  %v2828 = vunpack.c.l.b16 %v2804
  %v2829 = vunpack.c.l.b16 %v2805
  %v2830 = vunpack.c.l.b16 %v2806
  %v2831 = vpack.c.b16 %v2824, %v2823
  %v2832 = vpack.c.b16 %v2826, %v2825
  %v2833 = vpack.c.b16 %v2828, %v2827
  %v2834 = vpack.c.b16 %v2830, %v2829
  %2839 = vmatprep.subr.bf16.mxu0 0
  %2840 = vmatpush1.bf16.msra.mxu0 %v2831
  %2841 = vmatprep.subr.bf16.mxu0 0
  %2842 = vmatpush1.bf16.msra.mxu0 %v2832
  %2843 = vmatprep.subr.bf16.mxu0 0
  %2844 = vmatpush1.bf16.msra.mxu0 %v2833
  %2845 = vmatprep.subr.bf16.mxu0 0
  %2846 = vmatpush1.bf16.msra.mxu0 %v2834
  %2847 = vmatprep.subr.bf16.mxu0 0
  %2848 = vmatpush1.bf16.msra.mxu0 0
  %2849 = vmatprep.subr.bf16.mxu0 0
  %2850 = vmatpush1.bf16.msra.mxu0 0
  %2851 = vmatprep.subr.bf16.mxu0 0
  %2852 = vmatpush1.bf16.msra.mxu0 0
  %2853 = vmatprep.subr.bf16.mxu0 0
  %2854 = vmatpush1.bf16.msra.mxu0 0
  %2855 = vmatprep.subr.bf16.mxu0 0
  %2856 = vmatpush1.bf16.msra.mxu0 0
  %2857 = vmatprep.subr.bf16.mxu0 0
  %2858 = vmatpush1.bf16.msra.mxu0 0
  %2859 = vmatprep.subr.bf16.mxu0 0
  %2860 = vmatpush1.bf16.msra.mxu0 0
  %2861 = vmatprep.subr.bf16.mxu0 0
  %2862 = vmatpush1.bf16.msra.mxu0 0
  %2863 = vmatprep.subr.bf16.mxu0 0
  %2864 = vmatpush1.bf16.msra.mxu0 0
  %2865 = vmatprep.subr.bf16.mxu0 0
  %2866 = vmatpush1.bf16.msra.mxu0 0
  %2867 = vmatprep.subr.bf16.mxu0 0
  %2868 = vmatpush1.bf16.msra.mxu0 0
  %2869 = vmatprep.subr.bf16.mxu0 0
  %2870 = vmatpush1.bf16.msra.mxu0 0
  %2871 = vmatprep.mubr.bf16.mxu0 0
  %2872 = vmatmul.mubr.bf16.gmra.mrb[0].mxu0 %v2756
  %v2873 = vpop.f32.mrb[0].mxu0
  %v2874 = vadd.f32 %v2813, %v2873
  %v2875 = vpop.f32.mrb[0].mxu0
  %v2876 = vpop.f32.mrb[0].mxu0
  %v2877 = vpop.f32.mrb[0].mxu0
  %2878 = vdwg.mxu0
  %s2879 = scalar_lea.vmem %s29, 128
  %v2880 = vld [vmem:[%s2879] sm:$0xf]
  %v2881 = vld [vmem:[%s2879 + $0x4] sm:$0xf]
  %v2882 = vld [vmem:[%s2879 + $0x8] sm:$0xf]
  %v2883 = vld [vmem:[%s2879 + $0xc] sm:$0xf]
  %v2884 = vld [vmem:[%s2879 + $0x10] sm:$0xf]
  %v2885 = vld [vmem:[%s2879 + $0x14] sm:$0xf]
  %v2886 = vld [vmem:[%s2879 + $0x18] sm:$0xf]
  %v2887 = vld [vmem:[%s2879 + $0x1c] sm:$0xf]
  %s2888 = scalar_lea.vmem %s31, 4
  %v2889 = vld [vmem:[%s2888] sm:$0x1]
  %v2891 = vlaneseq
  %v2892 = vshrl.u32 %v2891, 7
  %v2893 = vsub.s32 0, %v2892
  %v2894 = vrot.slane %v2889, %v2893
  %v2904 = vunpack.c.l.b16 %v2880
  %v2905 = vunpack.c.l.b16 %v2881
  %v2906 = vunpack.c.l.b16 %v2882
  %v2907 = vunpack.c.l.b16 %v2883
  %v2908 = vunpack.c.l.b16 %v2884
  %v2909 = vunpack.c.l.b16 %v2885
  %v2910 = vunpack.c.l.b16 %v2886
  %v2911 = vunpack.c.l.b16 %v2887
  %v2912 = vpack.c.b16 %v2905, %v2904
  %v2913 = vpack.c.b16 %v2907, %v2906
  %v2914 = vpack.c.b16 %v2909, %v2908
  %v2915 = vpack.c.b16 %v2911, %v2910
  %2920 = vmatprep.subr.bf16.mxu0 0
  %2921 = vmatpush1.bf16.msra.mxu0 %v2912
  %2922 = vmatprep.subr.bf16.mxu0 0
  %2923 = vmatpush1.bf16.msra.mxu0 %v2913
  %2924 = vmatprep.subr.bf16.mxu0 0
  %2925 = vmatpush1.bf16.msra.mxu0 %v2914
  %2926 = vmatprep.subr.bf16.mxu0 0
  %2927 = vmatpush1.bf16.msra.mxu0 %v2915
  %2928 = vmatprep.subr.bf16.mxu0 0
  %2929 = vmatpush1.bf16.msra.mxu0 0
  %2930 = vmatprep.subr.bf16.mxu0 0
  %2931 = vmatpush1.bf16.msra.mxu0 0
  %2932 = vmatprep.subr.bf16.mxu0 0
  %2933 = vmatpush1.bf16.msra.mxu0 0
  %2934 = vmatprep.subr.bf16.mxu0 0
  %2935 = vmatpush1.bf16.msra.mxu0 0
  %2936 = vmatprep.subr.bf16.mxu0 0
  %2937 = vmatpush1.bf16.msra.mxu0 0
  %2938 = vmatprep.subr.bf16.mxu0 0
  %2939 = vmatpush1.bf16.msra.mxu0 0
  %2940 = vmatprep.subr.bf16.mxu0 0
  %2941 = vmatpush1.bf16.msra.mxu0 0
  %2942 = vmatprep.subr.bf16.mxu0 0
  %2943 = vmatpush1.bf16.msra.mxu0 0
  %2944 = vmatprep.subr.bf16.mxu0 0
  %2945 = vmatpush1.bf16.msra.mxu0 0
  %2946 = vmatprep.subr.bf16.mxu0 0
  %2947 = vmatpush1.bf16.msra.mxu0 0
  %2948 = vmatprep.subr.bf16.mxu0 0
  %2949 = vmatpush1.bf16.msra.mxu0 0
  %2950 = vmatprep.subr.bf16.mxu0 0
  %2951 = vmatpush1.bf16.msra.mxu0 0
  %2952 = vmatprep.mubr.bf16.mxu0 0
  %2953 = vmatmul.mubr.bf16.gmra.mrb[0].mxu0 %v2756
  %v2954 = vpop.f32.mrb[0].mxu0
  %v2955 = vadd.f32 %v2894, %v2954
  %v2956 = vpop.f32.mrb[0].mxu0
  %v2957 = vpop.f32.mrb[0].mxu0
  %v2958 = vpop.f32.mrb[0].mxu0
  %2959 = vdwg.mxu0
  %v2960 = vpack.c.bf16 %v2793, %v2793
  %v2961 = vpack.c.bf16 %v2874, %v2874
  %v2963 = vsel %vm971, %v2960, 0
  %v2966 = vsel %vm971, %v2961, 0
  %2968 = vmatprep.subr.bf16.mxu0 0
  %2969 = vmatpush1.bf16.xpose.msra.mxu0 %v2966
  %2970 = vmatprep.subr.bf16.mxu0 0
  %2971 = vmatpush1.bf16.xpose.msra.mxu0 0
  %2972 = vmatprep.subr.bf16.mxu0 0
  %2973 = vmatpush1.bf16.xpose.msra.mxu0 0
  %2974 = vmatprep.subr.bf16.mxu0 0
  %2975 = vmatpush1.bf16.xpose.msra.mxu0 0
  %2976 = vmatprep.subr.bf16.mxu0 0
  %2977 = vmatpush1.bf16.xpose.msra.mxu0 0
  %2978 = vmatprep.subr.bf16.mxu0 0
  %2979 = vmatpush1.bf16.xpose.msra.mxu0 0
  %2980 = vmatprep.subr.bf16.mxu0 0
  %2981 = vmatpush1.bf16.xpose.msra.mxu0 0
  %2982 = vmatprep.subr.bf16.mxu0 0
  %2983 = vmatpush1.bf16.xpose.msra.mxu0 0
  %2984 = vmatprep.subr.bf16.mxu0 0
  %2985 = vmatpush1.bf16.xpose.msra.mxu0 0
  %2986 = vmatprep.subr.bf16.mxu0 0
  %2987 = vmatpush1.bf16.xpose.msra.mxu0 0
  %2988 = vmatprep.subr.bf16.mxu0 0
  %2989 = vmatpush1.bf16.xpose.msra.mxu0 0
  %2990 = vmatprep.subr.bf16.mxu0 0
  %2991 = vmatpush1.bf16.xpose.msra.mxu0 0
  %2992 = vmatprep.subr.bf16.mxu0 0
  %2993 = vmatpush1.bf16.xpose.msra.mxu0 0
  %2994 = vmatprep.subr.bf16.mxu0 0
  %2995 = vmatpush1.bf16.xpose.msra.mxu0 0
  %2996 = vmatprep.subr.bf16.mxu0 0
  %2997 = vmatpush1.bf16.xpose.msra.mxu0 0
  %2998 = vmatprep.subr.bf16.mxu0 0
  %2999 = vmatpush1.bf16.xpose.msra.mxu0 0
  %3000 = vmatprep.mubr.bf16.mxu0 0
  %3001 = vmatmul.mubr.bf16.gmra.mrb[0].mxu0 %v2963
  %v3002 = vpop.f32.mrb[0].mxu0
  %v3003 = vadd.f32 0.0, %v3002
  %v3004 = vpop.f32.mrb[0].mxu0
  %v3005 = vpop.f32.mrb[0].mxu0
  %v3006 = vpop.f32.mrb[0].mxu0
  %3007 = vdwg.mxu0
  %v3008 = vmul.f32 %v3003, 0.25
  %v3009 = vadd.f32 %v3008, %v696
  %v3010 = vsel %vm1020, %v3009, -inf
  %3011 = vmax.xlane.f32.xlu0 %v3010
  %v3012 = vpop.xlane.xlu0 %3011
  %v3013 = vsub.f32 %v3009, %v3012
  %v3014 = vmul.f32 %v3013, 1.442695
  %v3015 = vpow.pop %v3014
  %v3016 = vsel %vm1020, %v3015, 0.0
  %3017 = vadd.xlane.f32.xlu0 %v3016
  %v3018 = vpop.xlane.xlu0 %3017
  %v3019 = vrcp.pop %v3018
  %v3020 = vmul.f32 %v3015, %v3019
  %v3021 = vpack.c.bf16 %v3020, %v3020
  %v3022 = vpack.c.bf16 %v2955, %v2955
  %v3024 = vsel %vm1020, %v3021, 0
  %v3027 = vsel %vm1037, %v3022, 0
  %3029 = vmatprep.subr.bf16.mxu0 0
  %3030 = vmatpush1.bf16.msra.mxu0 %v3027
  %3031 = vmatprep.subr.bf16.mxu0 0
  %3032 = vmatpush1.bf16.msra.mxu0 0
  %3033 = vmatprep.subr.bf16.mxu0 0
  %3034 = vmatpush1.bf16.msra.mxu0 0
  %3035 = vmatprep.subr.bf16.mxu0 0
  %3036 = vmatpush1.bf16.msra.mxu0 0
  %3037 = vmatprep.subr.bf16.mxu0 0
  %3038 = vmatpush1.bf16.msra.mxu0 0
  %3039 = vmatprep.subr.bf16.mxu0 0
  %3040 = vmatpush1.bf16.msra.mxu0 0
  %3041 = vmatprep.subr.bf16.mxu0 0
  %3042 = vmatpush1.bf16.msra.mxu0 0
  %3043 = vmatprep.subr.bf16.mxu0 0
  %3044 = vmatpush1.bf16.msra.mxu0 0
  %3045 = vmatprep.subr.bf16.mxu0 0
  %3046 = vmatpush1.bf16.msra.mxu0 0
  %3047 = vmatprep.subr.bf16.mxu0 0
  %3048 = vmatpush1.bf16.msra.mxu0 0
  %3049 = vmatprep.subr.bf16.mxu0 0
  %3050 = vmatpush1.bf16.msra.mxu0 0
  %3051 = vmatprep.subr.bf16.mxu0 0
  %3052 = vmatpush1.bf16.msra.mxu0 0
  %3053 = vmatprep.subr.bf16.mxu0 0
  %3054 = vmatpush1.bf16.msra.mxu0 0
  %3055 = vmatprep.subr.bf16.mxu0 0
  %3056 = vmatpush1.bf16.msra.mxu0 0
  %3057 = vmatprep.subr.bf16.mxu0 0
  %3058 = vmatpush1.bf16.msra.mxu0 0
  %3059 = vmatprep.subr.bf16.mxu0 0
  %3060 = vmatpush1.bf16.msra.mxu0 0
  %3061 = vmatprep.mubr.bf16.mxu0 0
  %3062 = vmatmul.mubr.bf16.gmra.mrb[0].mxu0 %v3024
  %v3063 = vpop.f32.mrb[0].mxu0
  %v3064 = vadd.f32 0.0, %v3063
  %v3065 = vpop.f32.mrb[0].mxu0
  %v3066 = vpop.f32.mrb[0].mxu0
  %v3067 = vpop.f32.mrb[0].mxu0
  %3068 = vdwg.mxu0
  %v3069 = vpack.c.bf16 %v3064, %v3064
  %s3070 = scalar_lea.vmem %s33, 32
  %v3071 = vld [vmem:[%s3070] sm:$0xf]
  %v3072 = vld [vmem:[%s3070 + $0x4] sm:$0xf]
  %s3073 = scalar_lea.vmem %s21, 160
  %v3074 = vld [vmem:[%s3073] sm:$0xf]
  %v3075 = vld [vmem:[%s3073 + $0x4] sm:$0xf]
  %v3076 = vld [vmem:[%s3073 + $0x8] sm:$0xf]
  %v3077 = vld [vmem:[%s3073 + $0xc] sm:$0xf]
  %v3078 = vld [vmem:[%s3073 + $0x10] sm:$0xf]
  %v3079 = vld [vmem:[%s3073 + $0x14] sm:$0xf]
  %v3080 = vld [vmem:[%s3073 + $0x18] sm:$0xf]
  %v3081 = vld [vmem:[%s3073 + $0x1c] sm:$0xf]
  %s3082 = scalar_lea.vmem %s23, 5
  %v3083 = vld [vmem:[%s3082] sm:$0x1]
  %v3085 = vlaneseq
  %v3086 = vshrl.u32 %v3085, 7
  %v3087 = vsub.s32 0, %v3086
  %v3088 = vrot.slane %v3083, %v3087
  %v3098 = vunpack.c.l.b16 %v3074
  %v3099 = vunpack.c.l.b16 %v3075
  %v3100 = vunpack.c.l.b16 %v3076
  %v3101 = vunpack.c.l.b16 %v3077
  %v3102 = vunpack.c.l.b16 %v3078
  %v3103 = vunpack.c.l.b16 %v3079
  %v3104 = vunpack.c.l.b16 %v3080
  %v3105 = vunpack.c.l.b16 %v3081
  %v3106 = vpack.c.b16 %v3099, %v3098
  %v3107 = vpack.c.b16 %v3101, %v3100
  %v3108 = vpack.c.b16 %v3103, %v3102
  %v3109 = vpack.c.b16 %v3105, %v3104
  %3114 = vmatprep.subr.bf16.mxu0 0
  %3115 = vmatpush1.bf16.msra.mxu0 %v3106
  %3116 = vmatprep.subr.bf16.mxu0 0
  %3117 = vmatpush1.bf16.msra.mxu0 %v3107
  %3118 = vmatprep.subr.bf16.mxu0 0
  %3119 = vmatpush1.bf16.msra.mxu0 %v3108
  %3120 = vmatprep.subr.bf16.mxu0 0
  %3121 = vmatpush1.bf16.msra.mxu0 %v3109
  %3122 = vmatprep.subr.bf16.mxu0 0
  %3123 = vmatpush1.bf16.msra.mxu0 0
  %3124 = vmatprep.subr.bf16.mxu0 0
  %3125 = vmatpush1.bf16.msra.mxu0 0
  %3126 = vmatprep.subr.bf16.mxu0 0
  %3127 = vmatpush1.bf16.msra.mxu0 0
  %3128 = vmatprep.subr.bf16.mxu0 0
  %3129 = vmatpush1.bf16.msra.mxu0 0
  %3130 = vmatprep.subr.bf16.mxu0 0
  %3131 = vmatpush1.bf16.msra.mxu0 0
  %3132 = vmatprep.subr.bf16.mxu0 0
  %3133 = vmatpush1.bf16.msra.mxu0 0
  %3134 = vmatprep.subr.bf16.mxu0 0
  %3135 = vmatpush1.bf16.msra.mxu0 0
  %3136 = vmatprep.subr.bf16.mxu0 0
  %3137 = vmatpush1.bf16.msra.mxu0 0
  %3138 = vmatprep.subr.bf16.mxu0 0
  %3139 = vmatpush1.bf16.msra.mxu0 0
  %3140 = vmatprep.subr.bf16.mxu0 0
  %3141 = vmatpush1.bf16.msra.mxu0 0
  %3142 = vmatprep.subr.bf16.mxu0 0
  %3143 = vmatpush1.bf16.msra.mxu0 0
  %3144 = vmatprep.subr.bf16.mxu0 0
  %3145 = vmatpush1.bf16.msra.mxu0 0
  %3146 = vmatprep.mubr.bf16.mxu0 0
  %3147 = vmatmul.mubr.bf16.gmra.mrb[0].mxu0 %v2756
  %v3148 = vpop.f32.mrb[0].mxu0
  %v3149 = vadd.f32 %v3088, %v3148
  %v3150 = vpop.f32.mrb[0].mxu0
  %v3151 = vpop.f32.mrb[0].mxu0
  %v3152 = vpop.f32.mrb[0].mxu0
  %3153 = vdwg.mxu0
  %s3154 = scalar_lea.vmem %s25, 160
  %v3155 = vld [vmem:[%s3154] sm:$0xf]
  %v3156 = vld [vmem:[%s3154 + $0x4] sm:$0xf]
  %v3157 = vld [vmem:[%s3154 + $0x8] sm:$0xf]
  %v3158 = vld [vmem:[%s3154 + $0xc] sm:$0xf]
  %v3159 = vld [vmem:[%s3154 + $0x10] sm:$0xf]
  %v3160 = vld [vmem:[%s3154 + $0x14] sm:$0xf]
  %v3161 = vld [vmem:[%s3154 + $0x18] sm:$0xf]
  %v3162 = vld [vmem:[%s3154 + $0x1c] sm:$0xf]
  %s3163 = scalar_lea.vmem %s27, 5
  %v3164 = vld [vmem:[%s3163] sm:$0x1]
  %v3166 = vlaneseq
  %v3167 = vshrl.u32 %v3166, 7
  %v3168 = vsub.s32 0, %v3167
  %v3169 = vrot.slane %v3164, %v3168
  %v3179 = vunpack.c.l.b16 %v3155
  %v3180 = vunpack.c.l.b16 %v3156
  %v3181 = vunpack.c.l.b16 %v3157
  %v3182 = vunpack.c.l.b16 %v3158
  %v3183 = vunpack.c.l.b16 %v3159
  %v3184 = vunpack.c.l.b16 %v3160
  %v3185 = vunpack.c.l.b16 %v3161
  %v3186 = vunpack.c.l.b16 %v3162
  %v3187 = vpack.c.b16 %v3180, %v3179
  %v3188 = vpack.c.b16 %v3182, %v3181
  %v3189 = vpack.c.b16 %v3184, %v3183
  %v3190 = vpack.c.b16 %v3186, %v3185
  %3195 = vmatprep.subr.bf16.mxu0 0
  %3196 = vmatpush1.bf16.msra.mxu0 %v3187
  %3197 = vmatprep.subr.bf16.mxu0 0
  %3198 = vmatpush1.bf16.msra.mxu0 %v3188
  %3199 = vmatprep.subr.bf16.mxu0 0
  %3200 = vmatpush1.bf16.msra.mxu0 %v3189
  %3201 = vmatprep.subr.bf16.mxu0 0
  %3202 = vmatpush1.bf16.msra.mxu0 %v3190
  %3203 = vmatprep.subr.bf16.mxu0 0
  %3204 = vmatpush1.bf16.msra.mxu0 0
  %3205 = vmatprep.subr.bf16.mxu0 0
  %3206 = vmatpush1.bf16.msra.mxu0 0
  %3207 = vmatprep.subr.bf16.mxu0 0
  %3208 = vmatpush1.bf16.msra.mxu0 0
  %3209 = vmatprep.subr.bf16.mxu0 0
  %3210 = vmatpush1.bf16.msra.mxu0 0
  %3211 = vmatprep.subr.bf16.mxu0 0
  %3212 = vmatpush1.bf16.msra.mxu0 0
  %3213 = vmatprep.subr.bf16.mxu0 0
  %3214 = vmatpush1.bf16.msra.mxu0 0
  %3215 = vmatprep.subr.bf16.mxu0 0
  %3216 = vmatpush1.bf16.msra.mxu0 0
  %3217 = vmatprep.subr.bf16.mxu0 0
  %3218 = vmatpush1.bf16.msra.mxu0 0
  %3219 = vmatprep.subr.bf16.mxu0 0
  %3220 = vmatpush1.bf16.msra.mxu0 0
  %3221 = vmatprep.subr.bf16.mxu0 0
  %3222 = vmatpush1.bf16.msra.mxu0 0
  %3223 = vmatprep.subr.bf16.mxu0 0
  %3224 = vmatpush1.bf16.msra.mxu0 0
  %3225 = vmatprep.subr.bf16.mxu0 0
  %3226 = vmatpush1.bf16.msra.mxu0 0
  %3227 = vmatprep.mubr.bf16.mxu0 0
  %3228 = vmatmul.mubr.bf16.gmra.mrb[0].mxu0 %v2756
  %v3229 = vpop.f32.mrb[0].mxu0
  %v3230 = vadd.f32 %v3169, %v3229
  %v3231 = vpop.f32.mrb[0].mxu0
  %v3232 = vpop.f32.mrb[0].mxu0
  %v3233 = vpop.f32.mrb[0].mxu0
  %3234 = vdwg.mxu0
  %s3235 = scalar_lea.vmem %s29, 160
  %v3236 = vld [vmem:[%s3235] sm:$0xf]
  %v3237 = vld [vmem:[%s3235 + $0x4] sm:$0xf]
  %v3238 = vld [vmem:[%s3235 + $0x8] sm:$0xf]
  %v3239 = vld [vmem:[%s3235 + $0xc] sm:$0xf]
  %v3240 = vld [vmem:[%s3235 + $0x10] sm:$0xf]
  %v3241 = vld [vmem:[%s3235 + $0x14] sm:$0xf]
  %v3242 = vld [vmem:[%s3235 + $0x18] sm:$0xf]
  %v3243 = vld [vmem:[%s3235 + $0x1c] sm:$0xf]
  %s3244 = scalar_lea.vmem %s31, 5
  %v3245 = vld [vmem:[%s3244] sm:$0x1]
  %v3247 = vlaneseq
  %v3248 = vshrl.u32 %v3247, 7
  %v3249 = vsub.s32 0, %v3248
  %v3250 = vrot.slane %v3245, %v3249
  %v3260 = vunpack.c.l.b16 %v3236
  %v3261 = vunpack.c.l.b16 %v3237
  %v3262 = vunpack.c.l.b16 %v3238
  %v3263 = vunpack.c.l.b16 %v3239
  %v3264 = vunpack.c.l.b16 %v3240
  %v3265 = vunpack.c.l.b16 %v3241
  %v3266 = vunpack.c.l.b16 %v3242
  %v3267 = vunpack.c.l.b16 %v3243
  %v3268 = vpack.c.b16 %v3261, %v3260
  %v3269 = vpack.c.b16 %v3263, %v3262
  %v3270 = vpack.c.b16 %v3265, %v3264
  %v3271 = vpack.c.b16 %v3267, %v3266
  %3276 = vmatprep.subr.bf16.mxu0 0
  %3277 = vmatpush1.bf16.msra.mxu0 %v3268
  %3278 = vmatprep.subr.bf16.mxu0 0
  %3279 = vmatpush1.bf16.msra.mxu0 %v3269
  %3280 = vmatprep.subr.bf16.mxu0 0
  %3281 = vmatpush1.bf16.msra.mxu0 %v3270
  %3282 = vmatprep.subr.bf16.mxu0 0
  %3283 = vmatpush1.bf16.msra.mxu0 %v3271
  %3284 = vmatprep.subr.bf16.mxu0 0
  %3285 = vmatpush1.bf16.msra.mxu0 0
  %3286 = vmatprep.subr.bf16.mxu0 0
  %3287 = vmatpush1.bf16.msra.mxu0 0
  %3288 = vmatprep.subr.bf16.mxu0 0
  %3289 = vmatpush1.bf16.msra.mxu0 0
  %3290 = vmatprep.subr.bf16.mxu0 0
  %3291 = vmatpush1.bf16.msra.mxu0 0
  %3292 = vmatprep.subr.bf16.mxu0 0
  %3293 = vmatpush1.bf16.msra.mxu0 0
  %3294 = vmatprep.subr.bf16.mxu0 0
  %3295 = vmatpush1.bf16.msra.mxu0 0
  %3296 = vmatprep.subr.bf16.mxu0 0
  %3297 = vmatpush1.bf16.msra.mxu0 0
  %3298 = vmatprep.subr.bf16.mxu0 0
  %3299 = vmatpush1.bf16.msra.mxu0 0
  %3300 = vmatprep.subr.bf16.mxu0 0
  %3301 = vmatpush1.bf16.msra.mxu0 0
  %3302 = vmatprep.subr.bf16.mxu0 0
  %3303 = vmatpush1.bf16.msra.mxu0 0
  %3304 = vmatprep.subr.bf16.mxu0 0
  %3305 = vmatpush1.bf16.msra.mxu0 0
  %3306 = vmatprep.subr.bf16.mxu0 0
  %3307 = vmatpush1.bf16.msra.mxu0 0
  %3308 = vmatprep.mubr.bf16.mxu0 0
  %3309 = vmatmul.mubr.bf16.gmra.mrb[0].mxu0 %v2756
  %v3310 = vpop.f32.mrb[0].mxu0
  %v3311 = vadd.f32 %v3250, %v3310
  %v3312 = vpop.f32.mrb[0].mxu0
  %v3313 = vpop.f32.mrb[0].mxu0
  %v3314 = vpop.f32.mrb[0].mxu0
  %3315 = vdwg.mxu0
  %v3316 = vpack.c.bf16 %v3149, %v3149
  %v3317 = vpack.c.bf16 %v3230, %v3230
  %v3319 = vsel %vm971, %v3316, 0
  %v3322 = vsel %vm971, %v3317, 0
  %3324 = vmatprep.subr.bf16.mxu0 0
  %3325 = vmatpush1.bf16.xpose.msra.mxu0 %v3322
  %3326 = vmatprep.subr.bf16.mxu0 0
  %3327 = vmatpush1.bf16.xpose.msra.mxu0 0
  %3328 = vmatprep.subr.bf16.mxu0 0
  %3329 = vmatpush1.bf16.xpose.msra.mxu0 0
  %3330 = vmatprep.subr.bf16.mxu0 0
  %3331 = vmatpush1.bf16.xpose.msra.mxu0 0
  %3332 = vmatprep.subr.bf16.mxu0 0
  %3333 = vmatpush1.bf16.xpose.msra.mxu0 0
  %3334 = vmatprep.subr.bf16.mxu0 0
  %3335 = vmatpush1.bf16.xpose.msra.mxu0 0
  %3336 = vmatprep.subr.bf16.mxu0 0
  %3337 = vmatpush1.bf16.xpose.msra.mxu0 0
  %3338 = vmatprep.subr.bf16.mxu0 0
  %3339 = vmatpush1.bf16.xpose.msra.mxu0 0
  %3340 = vmatprep.subr.bf16.mxu0 0
  %3341 = vmatpush1.bf16.xpose.msra.mxu0 0
  %3342 = vmatprep.subr.bf16.mxu0 0
  %3343 = vmatpush1.bf16.xpose.msra.mxu0 0
  %3344 = vmatprep.subr.bf16.mxu0 0
  %3345 = vmatpush1.bf16.xpose.msra.mxu0 0
  %3346 = vmatprep.subr.bf16.mxu0 0
  %3347 = vmatpush1.bf16.xpose.msra.mxu0 0
  %3348 = vmatprep.subr.bf16.mxu0 0
  %3349 = vmatpush1.bf16.xpose.msra.mxu0 0
  %3350 = vmatprep.subr.bf16.mxu0 0
  %3351 = vmatpush1.bf16.xpose.msra.mxu0 0
  %3352 = vmatprep.subr.bf16.mxu0 0
  %3353 = vmatpush1.bf16.xpose.msra.mxu0 0
  %3354 = vmatprep.subr.bf16.mxu0 0
  %3355 = vmatpush1.bf16.xpose.msra.mxu0 0
  %3356 = vmatprep.mubr.bf16.mxu0 0
  %3357 = vmatmul.mubr.bf16.gmra.mrb[0].mxu0 %v3319
  %v3358 = vpop.f32.mrb[0].mxu0
  %v3359 = vadd.f32 0.0, %v3358
  %v3360 = vpop.f32.mrb[0].mxu0
  %v3361 = vpop.f32.mrb[0].mxu0
  %v3362 = vpop.f32.mrb[0].mxu0
  %3363 = vdwg.mxu0
  %v3364 = vmul.f32 %v3359, 0.25
  %v3365 = vadd.f32 %v3364, %v696
  %v3366 = vsel %vm1020, %v3365, -inf
  %3367 = vmax.xlane.f32.xlu0 %v3366
  %v3368 = vpop.xlane.xlu0 %3367
  %v3369 = vsub.f32 %v3365, %v3368
  %v3370 = vmul.f32 %v3369, 1.442695
  %v3371 = vpow.pop %v3370
  %v3372 = vsel %vm1020, %v3371, 0.0
  %3373 = vadd.xlane.f32.xlu0 %v3372
  %v3374 = vpop.xlane.xlu0 %3373
  %v3375 = vrcp.pop %v3374
  %v3376 = vmul.f32 %v3371, %v3375
  %v3377 = vpack.c.bf16 %v3376, %v3376
  %v3378 = vpack.c.bf16 %v3311, %v3311
  %v3380 = vsel %vm1020, %v3377, 0
  %v3383 = vsel %vm1037, %v3378, 0
  %3385 = vmatprep.subr.bf16.mxu0 0
  %3386 = vmatpush1.bf16.msra.mxu0 %v3383
  %3387 = vmatprep.subr.bf16.mxu0 0
  %3388 = vmatpush1.bf16.msra.mxu0 0
  %3389 = vmatprep.subr.bf16.mxu0 0
  %3390 = vmatpush1.bf16.msra.mxu0 0
  %3391 = vmatprep.subr.bf16.mxu0 0
  %3392 = vmatpush1.bf16.msra.mxu0 0
  %3393 = vmatprep.subr.bf16.mxu0 0
  %3394 = vmatpush1.bf16.msra.mxu0 0
  %3395 = vmatprep.subr.bf16.mxu0 0
  %3396 = vmatpush1.bf16.msra.mxu0 0
  %3397 = vmatprep.subr.bf16.mxu0 0
  %3398 = vmatpush1.bf16.msra.mxu0 0
  %3399 = vmatprep.subr.bf16.mxu0 0
  %3400 = vmatpush1.bf16.msra.mxu0 0
  %3401 = vmatprep.subr.bf16.mxu0 0
  %3402 = vmatpush1.bf16.msra.mxu0 0
  %3403 = vmatprep.subr.bf16.mxu0 0
  %3404 = vmatpush1.bf16.msra.mxu0 0
  %3405 = vmatprep.subr.bf16.mxu0 0
  %3406 = vmatpush1.bf16.msra.mxu0 0
  %3407 = vmatprep.subr.bf16.mxu0 0
  %3408 = vmatpush1.bf16.msra.mxu0 0
  %3409 = vmatprep.subr.bf16.mxu0 0
  %3410 = vmatpush1.bf16.msra.mxu0 0
  %3411 = vmatprep.subr.bf16.mxu0 0
  %3412 = vmatpush1.bf16.msra.mxu0 0
  %3413 = vmatprep.subr.bf16.mxu0 0
  %3414 = vmatpush1.bf16.msra.mxu0 0
  %3415 = vmatprep.subr.bf16.mxu0 0
  %3416 = vmatpush1.bf16.msra.mxu0 0
  %3417 = vmatprep.mubr.bf16.mxu0 0
  %3418 = vmatmul.mubr.bf16.gmra.mrb[0].mxu0 %v3380
  %v3419 = vpop.f32.mrb[0].mxu0
  %v3420 = vadd.f32 0.0, %v3419
  %v3421 = vpop.f32.mrb[0].mxu0
  %v3422 = vpop.f32.mrb[0].mxu0
  %v3423 = vpop.f32.mrb[0].mxu0
  %3424 = vdwg.mxu0
  %v3425 = vpack.c.bf16 %v3420, %v3420
  %s3426 = scalar_lea.vmem %s33, 40
  %v3427 = vld [vmem:[%s3426] sm:$0xf]
  %v3428 = vld [vmem:[%s3426 + $0x4] sm:$0xf]
  %v3431 = vunpack.c.l.b16 %v3427
  %v3432 = vunpack.c.l.b16 %v3428
  %v3433 = vpack.c.b16 %v3432, %v3431
  %v3436 = vsel %vm971, %v3425, 0
  %3438 = vmatprep.subr.bf16.mxu0 0
  %3439 = vmatpush1.bf16.msra.mxu0 %v3433
  %3440 = vmatprep.subr.bf16.mxu0 0
  %3441 = vmatpush1.bf16.msra.mxu0 0
  %3442 = vmatprep.subr.bf16.mxu0 0
  %3443 = vmatpush1.bf16.msra.mxu0 0
  %3444 = vmatprep.subr.bf16.mxu0 0
  %3445 = vmatpush1.bf16.msra.mxu0 0
  %3446 = vmatprep.subr.bf16.mxu0 0
  %3447 = vmatpush1.bf16.msra.mxu0 0
  %3448 = vmatprep.subr.bf16.mxu0 0
  %3449 = vmatpush1.bf16.msra.mxu0 0
  %3450 = vmatprep.subr.bf16.mxu0 0
  %3451 = vmatpush1.bf16.msra.mxu0 0
  %3452 = vmatprep.subr.bf16.mxu0 0
  %3453 = vmatpush1.bf16.msra.mxu0 0
  %3454 = vmatprep.subr.bf16.mxu0 0
  %3455 = vmatpush1.bf16.msra.mxu0 0
  %3456 = vmatprep.subr.bf16.mxu0 0
  %3457 = vmatpush1.bf16.msra.mxu0 0
  %3458 = vmatprep.subr.bf16.mxu0 0
  %3459 = vmatpush1.bf16.msra.mxu0 0
  %3460 = vmatprep.subr.bf16.mxu0 0
  %3461 = vmatpush1.bf16.msra.mxu0 0
  %3462 = vmatprep.subr.bf16.mxu0 0
  %3463 = vmatpush1.bf16.msra.mxu0 0
  %3464 = vmatprep.subr.bf16.mxu0 0
  %3465 = vmatpush1.bf16.msra.mxu0 0
  %3466 = vmatprep.subr.bf16.mxu0 0
  %3467 = vmatpush1.bf16.msra.mxu0 0
  %3468 = vmatprep.subr.bf16.mxu0 0
  %3469 = vmatpush1.bf16.msra.mxu0 0
  %3470 = vmatprep.mubr.bf16.mxu0 0
  %3471 = vmatmul.mubr.bf16.gmra.mrb[0].mxu0 %v3436
  %v3472 = vpop.f32.mrb[0].mxu0
  %v3473 = vadd.f32 0.0, %v3472
  %v3474 = vpop.f32.mrb[0].mxu0
  %v3475 = vpop.f32.mrb[0].mxu0
  %v3476 = vpop.f32.mrb[0].mxu0
  %3477 = vdwg.mxu0
  %v3480 = vunpack.c.l.b16 %v3071
  %v3481 = vunpack.c.l.b16 %v3072
  %v3482 = vpack.c.b16 %v3481, %v3480
  %v3485 = vsel %vm971, %v3069, 0
  %3487 = vmatprep.subr.bf16.mxu0 0
  %3488 = vmatpush1.bf16.msra.mxu0 %v3482
  %3489 = vmatprep.subr.bf16.mxu0 0
  %3490 = vmatpush1.bf16.msra.mxu0 0
  %3491 = vmatprep.subr.bf16.mxu0 0
  %3492 = vmatpush1.bf16.msra.mxu0 0
  %3493 = vmatprep.subr.bf16.mxu0 0
  %3494 = vmatpush1.bf16.msra.mxu0 0
  %3495 = vmatprep.subr.bf16.mxu0 0
  %3496 = vmatpush1.bf16.msra.mxu0 0
  %3497 = vmatprep.subr.bf16.mxu0 0
  %3498 = vmatpush1.bf16.msra.mxu0 0
  %3499 = vmatprep.subr.bf16.mxu0 0
  %3500 = vmatpush1.bf16.msra.mxu0 0
  %3501 = vmatprep.subr.bf16.mxu0 0
  %3502 = vmatpush1.bf16.msra.mxu0 0
  %3503 = vmatprep.subr.bf16.mxu0 0
  %3504 = vmatpush1.bf16.msra.mxu0 0
  %3505 = vmatprep.subr.bf16.mxu0 0
  %3506 = vmatpush1.bf16.msra.mxu0 0
  %3507 = vmatprep.subr.bf16.mxu0 0
  %3508 = vmatpush1.bf16.msra.mxu0 0
  %3509 = vmatprep.subr.bf16.mxu0 0
  %3510 = vmatpush1.bf16.msra.mxu0 0
  %3511 = vmatprep.subr.bf16.mxu0 0
  %3512 = vmatpush1.bf16.msra.mxu0 0
  %3513 = vmatprep.subr.bf16.mxu0 0
  %3514 = vmatpush1.bf16.msra.mxu0 0
  %3515 = vmatprep.subr.bf16.mxu0 0
  %3516 = vmatpush1.bf16.msra.mxu0 0
  %3517 = vmatprep.subr.bf16.mxu0 0
  %3518 = vmatpush1.bf16.msra.mxu0 0
  %3519 = vmatprep.mubr.bf16.mxu0 0
  %3520 = vmatmul.mubr.bf16.gmra.mrb[0].mxu0 %v3485
  %v3521 = vpop.f32.mrb[0].mxu0
  %v3522 = vadd.f32 %v3473, %v3521
  %v3523 = vpop.f32.mrb[0].mxu0
  %v3524 = vpop.f32.mrb[0].mxu0
  %v3525 = vpop.f32.mrb[0].mxu0
  %3526 = vdwg.mxu0
  %s3527 = scalar_lea.vmem %s21, 192
  %v3528 = vld [vmem:[%s3527] sm:$0xf]
  %v3529 = vld [vmem:[%s3527 + $0x4] sm:$0xf]
  %v3530 = vld [vmem:[%s3527 + $0x8] sm:$0xf]
  %v3531 = vld [vmem:[%s3527 + $0xc] sm:$0xf]
  %v3532 = vld [vmem:[%s3527 + $0x10] sm:$0xf]
  %v3533 = vld [vmem:[%s3527 + $0x14] sm:$0xf]
  %v3534 = vld [vmem:[%s3527 + $0x18] sm:$0xf]
  %v3535 = vld [vmem:[%s3527 + $0x1c] sm:$0xf]
  %s3536 = scalar_lea.vmem %s23, 6
  %v3537 = vld [vmem:[%s3536] sm:$0x1]
  %v3539 = vlaneseq
  %v3540 = vshrl.u32 %v3539, 7
  %v3541 = vsub.s32 0, %v3540
  %v3542 = vrot.slane %v3537, %v3541
  %v3552 = vunpack.c.l.b16 %v3528
  %v3553 = vunpack.c.l.b16 %v3529
  %v3554 = vunpack.c.l.b16 %v3530
  %v3555 = vunpack.c.l.b16 %v3531
  %v3556 = vunpack.c.l.b16 %v3532
  %v3557 = vunpack.c.l.b16 %v3533
  %v3558 = vunpack.c.l.b16 %v3534
  %v3559 = vunpack.c.l.b16 %v3535
  %v3560 = vpack.c.b16 %v3553, %v3552
  %v3561 = vpack.c.b16 %v3555, %v3554
  %v3562 = vpack.c.b16 %v3557, %v3556
  %v3563 = vpack.c.b16 %v3559, %v3558
  %3568 = vmatprep.subr.bf16.mxu0 0
  %3569 = vmatpush1.bf16.msra.mxu0 %v3560
  %3570 = vmatprep.subr.bf16.mxu0 0
  %3571 = vmatpush1.bf16.msra.mxu0 %v3561
  %3572 = vmatprep.subr.bf16.mxu0 0
  %3573 = vmatpush1.bf16.msra.mxu0 %v3562
  %3574 = vmatprep.subr.bf16.mxu0 0
  %3575 = vmatpush1.bf16.msra.mxu0 %v3563
  %3576 = vmatprep.subr.bf16.mxu0 0
  %3577 = vmatpush1.bf16.msra.mxu0 0
  %3578 = vmatprep.subr.bf16.mxu0 0
  %3579 = vmatpush1.bf16.msra.mxu0 0
  %3580 = vmatprep.subr.bf16.mxu0 0
  %3581 = vmatpush1.bf16.msra.mxu0 0
  %3582 = vmatprep.subr.bf16.mxu0 0
  %3583 = vmatpush1.bf16.msra.mxu0 0
  %3584 = vmatprep.subr.bf16.mxu0 0
  %3585 = vmatpush1.bf16.msra.mxu0 0
  %3586 = vmatprep.subr.bf16.mxu0 0
  %3587 = vmatpush1.bf16.msra.mxu0 0
  %3588 = vmatprep.subr.bf16.mxu0 0
  %3589 = vmatpush1.bf16.msra.mxu0 0
  %3590 = vmatprep.subr.bf16.mxu0 0
  %3591 = vmatpush1.bf16.msra.mxu0 0
  %3592 = vmatprep.subr.bf16.mxu0 0
  %3593 = vmatpush1.bf16.msra.mxu0 0
  %3594 = vmatprep.subr.bf16.mxu0 0
  %3595 = vmatpush1.bf16.msra.mxu0 0
  %3596 = vmatprep.subr.bf16.mxu0 0
  %3597 = vmatpush1.bf16.msra.mxu0 0
  %3598 = vmatprep.subr.bf16.mxu0 0
  %3599 = vmatpush1.bf16.msra.mxu0 0
  %3600 = vmatprep.mubr.bf16.mxu0 0
  %3601 = vmatmul.mubr.bf16.gmra.mrb[0].mxu0 %v2756
  %v3602 = vpop.f32.mrb[0].mxu0
  %v3603 = vadd.f32 %v3542, %v3602
  %v3604 = vpop.f32.mrb[0].mxu0
  %v3605 = vpop.f32.mrb[0].mxu0
  %v3606 = vpop.f32.mrb[0].mxu0
  %3607 = vdwg.mxu0
  %s3608 = scalar_lea.vmem %s25, 192
  %v3609 = vld [vmem:[%s3608] sm:$0xf]
  %v3610 = vld [vmem:[%s3608 + $0x4] sm:$0xf]
  %v3611 = vld [vmem:[%s3608 + $0x8] sm:$0xf]
  %v3612 = vld [vmem:[%s3608 + $0xc] sm:$0xf]
  %v3613 = vld [vmem:[%s3608 + $0x10] sm:$0xf]
  %v3614 = vld [vmem:[%s3608 + $0x14] sm:$0xf]
  %v3615 = vld [vmem:[%s3608 + $0x18] sm:$0xf]
  %v3616 = vld [vmem:[%s3608 + $0x1c] sm:$0xf]
  %s3617 = scalar_lea.vmem %s27, 6
  %v3618 = vld [vmem:[%s3617] sm:$0x1]
  %v3620 = vlaneseq
  %v3621 = vshrl.u32 %v3620, 7
  %v3622 = vsub.s32 0, %v3621
  %v3623 = vrot.slane %v3618, %v3622
  %v3633 = vunpack.c.l.b16 %v3609
  %v3634 = vunpack.c.l.b16 %v3610
  %v3635 = vunpack.c.l.b16 %v3611
  %v3636 = vunpack.c.l.b16 %v3612
  %v3637 = vunpack.c.l.b16 %v3613
  %v3638 = vunpack.c.l.b16 %v3614
  %v3639 = vunpack.c.l.b16 %v3615
  %v3640 = vunpack.c.l.b16 %v3616
  %v3641 = vpack.c.b16 %v3634, %v3633
  %v3642 = vpack.c.b16 %v3636, %v3635
  %v3643 = vpack.c.b16 %v3638, %v3637
  %v3644 = vpack.c.b16 %v3640, %v3639
  %3649 = vmatprep.subr.bf16.mxu0 0
  %3650 = vmatpush1.bf16.msra.mxu0 %v3641
  %3651 = vmatprep.subr.bf16.mxu0 0
  %3652 = vmatpush1.bf16.msra.mxu0 %v3642
  %3653 = vmatprep.subr.bf16.mxu0 0
  %3654 = vmatpush1.bf16.msra.mxu0 %v3643
  %3655 = vmatprep.subr.bf16.mxu0 0
  %3656 = vmatpush1.bf16.msra.mxu0 %v3644
  %3657 = vmatprep.subr.bf16.mxu0 0
  %3658 = vmatpush1.bf16.msra.mxu0 0
  %3659 = vmatprep.subr.bf16.mxu0 0
  %3660 = vmatpush1.bf16.msra.mxu0 0
  %3661 = vmatprep.subr.bf16.mxu0 0
  %3662 = vmatpush1.bf16.msra.mxu0 0
  %3663 = vmatprep.subr.bf16.mxu0 0
  %3664 = vmatpush1.bf16.msra.mxu0 0
  %3665 = vmatprep.subr.bf16.mxu0 0
  %3666 = vmatpush1.bf16.msra.mxu0 0
  %3667 = vmatprep.subr.bf16.mxu0 0
  %3668 = vmatpush1.bf16.msra.mxu0 0
  %3669 = vmatprep.subr.bf16.mxu0 0
  %3670 = vmatpush1.bf16.msra.mxu0 0
  %3671 = vmatprep.subr.bf16.mxu0 0
  %3672 = vmatpush1.bf16.msra.mxu0 0
  %3673 = vmatprep.subr.bf16.mxu0 0
  %3674 = vmatpush1.bf16.msra.mxu0 0
  %3675 = vmatprep.subr.bf16.mxu0 0
  %3676 = vmatpush1.bf16.msra.mxu0 0
  %3677 = vmatprep.subr.bf16.mxu0 0
  %3678 = vmatpush1.bf16.msra.mxu0 0
  %3679 = vmatprep.subr.bf16.mxu0 0
  %3680 = vmatpush1.bf16.msra.mxu0 0
  %3681 = vmatprep.mubr.bf16.mxu0 0
  %3682 = vmatmul.mubr.bf16.gmra.mrb[0].mxu0 %v2756
  %v3683 = vpop.f32.mrb[0].mxu0
  %v3684 = vadd.f32 %v3623, %v3683
  %v3685 = vpop.f32.mrb[0].mxu0
  %v3686 = vpop.f32.mrb[0].mxu0
  %v3687 = vpop.f32.mrb[0].mxu0
  %3688 = vdwg.mxu0
  %s3689 = scalar_lea.vmem %s29, 192
  %v3690 = vld [vmem:[%s3689] sm:$0xf]
  %v3691 = vld [vmem:[%s3689 + $0x4] sm:$0xf]
  %v3692 = vld [vmem:[%s3689 + $0x8] sm:$0xf]
  %v3693 = vld [vmem:[%s3689 + $0xc] sm:$0xf]
  %v3694 = vld [vmem:[%s3689 + $0x10] sm:$0xf]
  %v3695 = vld [vmem:[%s3689 + $0x14] sm:$0xf]
  %v3696 = vld [vmem:[%s3689 + $0x18] sm:$0xf]
  %v3697 = vld [vmem:[%s3689 + $0x1c] sm:$0xf]
  %s3698 = scalar_lea.vmem %s31, 6
  %v3699 = vld [vmem:[%s3698] sm:$0x1]
  %v3701 = vlaneseq
  %v3702 = vshrl.u32 %v3701, 7
  %v3703 = vsub.s32 0, %v3702
  %v3704 = vrot.slane %v3699, %v3703
  %v3714 = vunpack.c.l.b16 %v3690
  %v3715 = vunpack.c.l.b16 %v3691
  %v3716 = vunpack.c.l.b16 %v3692
  %v3717 = vunpack.c.l.b16 %v3693
  %v3718 = vunpack.c.l.b16 %v3694
  %v3719 = vunpack.c.l.b16 %v3695
  %v3720 = vunpack.c.l.b16 %v3696
  %v3721 = vunpack.c.l.b16 %v3697
  %v3722 = vpack.c.b16 %v3715, %v3714
  %v3723 = vpack.c.b16 %v3717, %v3716
  %v3724 = vpack.c.b16 %v3719, %v3718
  %v3725 = vpack.c.b16 %v3721, %v3720
  %3730 = vmatprep.subr.bf16.mxu0 0
  %3731 = vmatpush1.bf16.msra.mxu0 %v3722
  %3732 = vmatprep.subr.bf16.mxu0 0
  %3733 = vmatpush1.bf16.msra.mxu0 %v3723
  %3734 = vmatprep.subr.bf16.mxu0 0
  %3735 = vmatpush1.bf16.msra.mxu0 %v3724
  %3736 = vmatprep.subr.bf16.mxu0 0
  %3737 = vmatpush1.bf16.msra.mxu0 %v3725
  %3738 = vmatprep.subr.bf16.mxu0 0
  %3739 = vmatpush1.bf16.msra.mxu0 0
  %3740 = vmatprep.subr.bf16.mxu0 0
  %3741 = vmatpush1.bf16.msra.mxu0 0
  %3742 = vmatprep.subr.bf16.mxu0 0
  %3743 = vmatpush1.bf16.msra.mxu0 0
  %3744 = vmatprep.subr.bf16.mxu0 0
  %3745 = vmatpush1.bf16.msra.mxu0 0
  %3746 = vmatprep.subr.bf16.mxu0 0
  %3747 = vmatpush1.bf16.msra.mxu0 0
  %3748 = vmatprep.subr.bf16.mxu0 0
  %3749 = vmatpush1.bf16.msra.mxu0 0
  %3750 = vmatprep.subr.bf16.mxu0 0
  %3751 = vmatpush1.bf16.msra.mxu0 0
  %3752 = vmatprep.subr.bf16.mxu0 0
  %3753 = vmatpush1.bf16.msra.mxu0 0
  %3754 = vmatprep.subr.bf16.mxu0 0
  %3755 = vmatpush1.bf16.msra.mxu0 0
  %3756 = vmatprep.subr.bf16.mxu0 0
  %3757 = vmatpush1.bf16.msra.mxu0 0
  %3758 = vmatprep.subr.bf16.mxu0 0
  %3759 = vmatpush1.bf16.msra.mxu0 0
  %3760 = vmatprep.subr.bf16.mxu0 0
  %3761 = vmatpush1.bf16.msra.mxu0 0
  %3762 = vmatprep.mubr.bf16.mxu0 0
  %3763 = vmatmul.mubr.bf16.gmra.mrb[0].mxu0 %v2756
  %v3764 = vpop.f32.mrb[0].mxu0
  %v3765 = vadd.f32 %v3704, %v3764
  %v3766 = vpop.f32.mrb[0].mxu0
  %v3767 = vpop.f32.mrb[0].mxu0
  %v3768 = vpop.f32.mrb[0].mxu0
  %3769 = vdwg.mxu0
  %v3770 = vpack.c.bf16 %v3603, %v3603
  %v3771 = vpack.c.bf16 %v3684, %v3684
  %v3773 = vsel %vm971, %v3770, 0
  %v3776 = vsel %vm971, %v3771, 0
  %3778 = vmatprep.subr.bf16.mxu0 0
  %3779 = vmatpush1.bf16.xpose.msra.mxu0 %v3776
  %3780 = vmatprep.subr.bf16.mxu0 0
  %3781 = vmatpush1.bf16.xpose.msra.mxu0 0
  %3782 = vmatprep.subr.bf16.mxu0 0
  %3783 = vmatpush1.bf16.xpose.msra.mxu0 0
  %3784 = vmatprep.subr.bf16.mxu0 0
  %3785 = vmatpush1.bf16.xpose.msra.mxu0 0
  %3786 = vmatprep.subr.bf16.mxu0 0
  %3787 = vmatpush1.bf16.xpose.msra.mxu0 0
  %3788 = vmatprep.subr.bf16.mxu0 0
  %3789 = vmatpush1.bf16.xpose.msra.mxu0 0
  %3790 = vmatprep.subr.bf16.mxu0 0
  %3791 = vmatpush1.bf16.xpose.msra.mxu0 0
  %3792 = vmatprep.subr.bf16.mxu0 0
  %3793 = vmatpush1.bf16.xpose.msra.mxu0 0
  %3794 = vmatprep.subr.bf16.mxu0 0
  %3795 = vmatpush1.bf16.xpose.msra.mxu0 0
  %3796 = vmatprep.subr.bf16.mxu0 0
  %3797 = vmatpush1.bf16.xpose.msra.mxu0 0
  %3798 = vmatprep.subr.bf16.mxu0 0
  %3799 = vmatpush1.bf16.xpose.msra.mxu0 0
  %3800 = vmatprep.subr.bf16.mxu0 0
  %3801 = vmatpush1.bf16.xpose.msra.mxu0 0
  %3802 = vmatprep.subr.bf16.mxu0 0
  %3803 = vmatpush1.bf16.xpose.msra.mxu0 0
  %3804 = vmatprep.subr.bf16.mxu0 0
  %3805 = vmatpush1.bf16.xpose.msra.mxu0 0
  %3806 = vmatprep.subr.bf16.mxu0 0
  %3807 = vmatpush1.bf16.xpose.msra.mxu0 0
  %3808 = vmatprep.subr.bf16.mxu0 0
  %3809 = vmatpush1.bf16.xpose.msra.mxu0 0
  %3810 = vmatprep.mubr.bf16.mxu0 0
  %3811 = vmatmul.mubr.bf16.gmra.mrb[0].mxu0 %v3773
  %v3812 = vpop.f32.mrb[0].mxu0
  %v3813 = vadd.f32 0.0, %v3812
  %v3814 = vpop.f32.mrb[0].mxu0
  %v3815 = vpop.f32.mrb[0].mxu0
  %v3816 = vpop.f32.mrb[0].mxu0
  %3817 = vdwg.mxu0
  %v3818 = vmul.f32 %v3813, 0.25
  %v3819 = vadd.f32 %v3818, %v696
  %v3820 = vsel %vm1020, %v3819, -inf
  %3821 = vmax.xlane.f32.xlu0 %v3820
  %v3822 = vpop.xlane.xlu0 %3821
  %v3823 = vsub.f32 %v3819, %v3822
  %v3824 = vmul.f32 %v3823, 1.442695
  %v3825 = vpow.pop %v3824
  %v3826 = vsel %vm1020, %v3825, 0.0
  %3827 = vadd.xlane.f32.xlu0 %v3826
  %v3828 = vpop.xlane.xlu0 %3827
  %v3829 = vrcp.pop %v3828
  %v3830 = vmul.f32 %v3825, %v3829
  %v3831 = vpack.c.bf16 %v3830, %v3830
  %v3832 = vpack.c.bf16 %v3765, %v3765
  %v3834 = vsel %vm1020, %v3831, 0
  %v3837 = vsel %vm1037, %v3832, 0
  %3839 = vmatprep.subr.bf16.mxu0 0
  %3840 = vmatpush1.bf16.msra.mxu0 %v3837
  %3841 = vmatprep.subr.bf16.mxu0 0
  %3842 = vmatpush1.bf16.msra.mxu0 0
  %3843 = vmatprep.subr.bf16.mxu0 0
  %3844 = vmatpush1.bf16.msra.mxu0 0
  %3845 = vmatprep.subr.bf16.mxu0 0
  %3846 = vmatpush1.bf16.msra.mxu0 0
  %3847 = vmatprep.subr.bf16.mxu0 0
  %3848 = vmatpush1.bf16.msra.mxu0 0
  %3849 = vmatprep.subr.bf16.mxu0 0
  %3850 = vmatpush1.bf16.msra.mxu0 0
  %3851 = vmatprep.subr.bf16.mxu0 0
  %3852 = vmatpush1.bf16.msra.mxu0 0
  %3853 = vmatprep.subr.bf16.mxu0 0
  %3854 = vmatpush1.bf16.msra.mxu0 0
  %3855 = vmatprep.subr.bf16.mxu0 0
  %3856 = vmatpush1.bf16.msra.mxu0 0
  %3857 = vmatprep.subr.bf16.mxu0 0
  %3858 = vmatpush1.bf16.msra.mxu0 0
  %3859 = vmatprep.subr.bf16.mxu0 0
  %3860 = vmatpush1.bf16.msra.mxu0 0
  %3861 = vmatprep.subr.bf16.mxu0 0
  %3862 = vmatpush1.bf16.msra.mxu0 0
  %3863 = vmatprep.subr.bf16.mxu0 0
  %3864 = vmatpush1.bf16.msra.mxu0 0
  %3865 = vmatprep.subr.bf16.mxu0 0
  %3866 = vmatpush1.bf16.msra.mxu0 0
  %3867 = vmatprep.subr.bf16.mxu0 0
  %3868 = vmatpush1.bf16.msra.mxu0 0
  %3869 = vmatprep.subr.bf16.mxu0 0
  %3870 = vmatpush1.bf16.msra.mxu0 0
  %3871 = vmatprep.mubr.bf16.mxu0 0
  %3872 = vmatmul.mubr.bf16.gmra.mrb[0].mxu0 %v3834
  %v3873 = vpop.f32.mrb[0].mxu0
  %v3874 = vadd.f32 0.0, %v3873
  %v3875 = vpop.f32.mrb[0].mxu0
  %v3876 = vpop.f32.mrb[0].mxu0
  %v3877 = vpop.f32.mrb[0].mxu0
  %3878 = vdwg.mxu0
  %v3879 = vpack.c.bf16 %v3874, %v3874
  %s3880 = scalar_lea.vmem %s33, 48
  %v3881 = vld [vmem:[%s3880] sm:$0xf]
  %v3882 = vld [vmem:[%s3880 + $0x4] sm:$0xf]
  %v3885 = vunpack.c.l.b16 %v3881
  %v3886 = vunpack.c.l.b16 %v3882
  %v3887 = vpack.c.b16 %v3886, %v3885
  %v3890 = vsel %vm971, %v3879, 0
  %3892 = vmatprep.subr.bf16.mxu0 0
  %3893 = vmatpush1.bf16.msra.mxu0 %v3887
  %3894 = vmatprep.subr.bf16.mxu0 0
  %3895 = vmatpush1.bf16.msra.mxu0 0
  %3896 = vmatprep.subr.bf16.mxu0 0
  %3897 = vmatpush1.bf16.msra.mxu0 0
  %3898 = vmatprep.subr.bf16.mxu0 0
  %3899 = vmatpush1.bf16.msra.mxu0 0
  %3900 = vmatprep.subr.bf16.mxu0 0
  %3901 = vmatpush1.bf16.msra.mxu0 0
  %3902 = vmatprep.subr.bf16.mxu0 0
  %3903 = vmatpush1.bf16.msra.mxu0 0
  %3904 = vmatprep.subr.bf16.mxu0 0
  %3905 = vmatpush1.bf16.msra.mxu0 0
  %3906 = vmatprep.subr.bf16.mxu0 0
  %3907 = vmatpush1.bf16.msra.mxu0 0
  %3908 = vmatprep.subr.bf16.mxu0 0
  %3909 = vmatpush1.bf16.msra.mxu0 0
  %3910 = vmatprep.subr.bf16.mxu0 0
  %3911 = vmatpush1.bf16.msra.mxu0 0
  %3912 = vmatprep.subr.bf16.mxu0 0
  %3913 = vmatpush1.bf16.msra.mxu0 0
  %3914 = vmatprep.subr.bf16.mxu0 0
  %3915 = vmatpush1.bf16.msra.mxu0 0
  %3916 = vmatprep.subr.bf16.mxu0 0
  %3917 = vmatpush1.bf16.msra.mxu0 0
  %3918 = vmatprep.subr.bf16.mxu0 0
  %3919 = vmatpush1.bf16.msra.mxu0 0
  %3920 = vmatprep.subr.bf16.mxu0 0
  %3921 = vmatpush1.bf16.msra.mxu0 0
  %3922 = vmatprep.subr.bf16.mxu0 0
  %3923 = vmatpush1.bf16.msra.mxu0 0
  %3924 = vmatprep.mubr.bf16.mxu0 0
  %3925 = vmatmul.mubr.bf16.gmra.mrb[0].mxu0 %v3890
  %v3926 = vpop.f32.mrb[0].mxu0
  %v3927 = vadd.f32 0.0, %v3926
  %v3928 = vpop.f32.mrb[0].mxu0
  %v3929 = vpop.f32.mrb[0].mxu0
  %v3930 = vpop.f32.mrb[0].mxu0
  %3931 = vdwg.mxu0
  %v3932 = vadd.f32 %v3522, %v3927
  %s3933 = scalar_lea.vmem %s21, 224
  %v3934 = vld [vmem:[%s3933] sm:$0xf]
  %v3935 = vld [vmem:[%s3933 + $0x4] sm:$0xf]
  %v3936 = vld [vmem:[%s3933 + $0x8] sm:$0xf]
  %v3937 = vld [vmem:[%s3933 + $0xc] sm:$0xf]
  %v3938 = vld [vmem:[%s3933 + $0x10] sm:$0xf]
  %v3939 = vld [vmem:[%s3933 + $0x14] sm:$0xf]
  %v3940 = vld [vmem:[%s3933 + $0x18] sm:$0xf]
  %v3941 = vld [vmem:[%s3933 + $0x1c] sm:$0xf]
  %s3942 = scalar_lea.vmem %s23, 7
  %v3943 = vld [vmem:[%s3942] sm:$0x1]
  %v3945 = vlaneseq
  %v3946 = vshrl.u32 %v3945, 7
  %v3947 = vsub.s32 0, %v3946
  %v3948 = vrot.slane %v3943, %v3947
  %v3958 = vunpack.c.l.b16 %v3934
  %v3959 = vunpack.c.l.b16 %v3935
  %v3960 = vunpack.c.l.b16 %v3936
  %v3961 = vunpack.c.l.b16 %v3937
  %v3962 = vunpack.c.l.b16 %v3938
  %v3963 = vunpack.c.l.b16 %v3939
  %v3964 = vunpack.c.l.b16 %v3940
  %v3965 = vunpack.c.l.b16 %v3941
  %v3966 = vpack.c.b16 %v3959, %v3958
  %v3967 = vpack.c.b16 %v3961, %v3960
  %v3968 = vpack.c.b16 %v3963, %v3962
  %v3969 = vpack.c.b16 %v3965, %v3964
  %3974 = vmatprep.subr.bf16.mxu0 0
  %3975 = vmatpush1.bf16.msra.mxu0 %v3966
  %3976 = vmatprep.subr.bf16.mxu0 0
  %3977 = vmatpush1.bf16.msra.mxu0 %v3967
  %3978 = vmatprep.subr.bf16.mxu0 0
  %3979 = vmatpush1.bf16.msra.mxu0 %v3968
  %3980 = vmatprep.subr.bf16.mxu0 0
  %3981 = vmatpush1.bf16.msra.mxu0 %v3969
  %3982 = vmatprep.subr.bf16.mxu0 0
  %3983 = vmatpush1.bf16.msra.mxu0 0
  %3984 = vmatprep.subr.bf16.mxu0 0
  %3985 = vmatpush1.bf16.msra.mxu0 0
  %3986 = vmatprep.subr.bf16.mxu0 0
  %3987 = vmatpush1.bf16.msra.mxu0 0
  %3988 = vmatprep.subr.bf16.mxu0 0
  %3989 = vmatpush1.bf16.msra.mxu0 0
  %3990 = vmatprep.subr.bf16.mxu0 0
  %3991 = vmatpush1.bf16.msra.mxu0 0
  %3992 = vmatprep.subr.bf16.mxu0 0
  %3993 = vmatpush1.bf16.msra.mxu0 0
  %3994 = vmatprep.subr.bf16.mxu0 0
  %3995 = vmatpush1.bf16.msra.mxu0 0
  %3996 = vmatprep.subr.bf16.mxu0 0
  %3997 = vmatpush1.bf16.msra.mxu0 0
  %3998 = vmatprep.subr.bf16.mxu0 0
  %3999 = vmatpush1.bf16.msra.mxu0 0
  %4000 = vmatprep.subr.bf16.mxu0 0
  %4001 = vmatpush1.bf16.msra.mxu0 0
  %4002 = vmatprep.subr.bf16.mxu0 0
  %4003 = vmatpush1.bf16.msra.mxu0 0
  %4004 = vmatprep.subr.bf16.mxu0 0
  %4005 = vmatpush1.bf16.msra.mxu0 0
  %4006 = vmatprep.mubr.bf16.mxu0 0
  %4007 = vmatmul.mubr.bf16.gmra.mrb[0].mxu0 %v2756
  %v4008 = vpop.f32.mrb[0].mxu0
  %v4009 = vadd.f32 %v3948, %v4008
  %v4010 = vpop.f32.mrb[0].mxu0
  %v4011 = vpop.f32.mrb[0].mxu0
  %v4012 = vpop.f32.mrb[0].mxu0
  %4013 = vdwg.mxu0
  %s4014 = scalar_lea.vmem %s25, 224
  %v4015 = vld [vmem:[%s4014] sm:$0xf]
  %v4016 = vld [vmem:[%s4014 + $0x4] sm:$0xf]
  %v4017 = vld [vmem:[%s4014 + $0x8] sm:$0xf]
  %v4018 = vld [vmem:[%s4014 + $0xc] sm:$0xf]
  %v4019 = vld [vmem:[%s4014 + $0x10] sm:$0xf]
  %v4020 = vld [vmem:[%s4014 + $0x14] sm:$0xf]
  %v4021 = vld [vmem:[%s4014 + $0x18] sm:$0xf]
  %v4022 = vld [vmem:[%s4014 + $0x1c] sm:$0xf]
  %s4023 = scalar_lea.vmem %s27, 7
  %v4024 = vld [vmem:[%s4023] sm:$0x1]
  %v4026 = vlaneseq
  %v4027 = vshrl.u32 %v4026, 7
  %v4028 = vsub.s32 0, %v4027
  %v4029 = vrot.slane %v4024, %v4028
  %v4039 = vunpack.c.l.b16 %v4015
  %v4040 = vunpack.c.l.b16 %v4016
  %v4041 = vunpack.c.l.b16 %v4017
  %v4042 = vunpack.c.l.b16 %v4018
  %v4043 = vunpack.c.l.b16 %v4019
  %v4044 = vunpack.c.l.b16 %v4020
  %v4045 = vunpack.c.l.b16 %v4021
  %v4046 = vunpack.c.l.b16 %v4022
  %v4047 = vpack.c.b16 %v4040, %v4039
  %v4048 = vpack.c.b16 %v4042, %v4041
  %v4049 = vpack.c.b16 %v4044, %v4043
  %v4050 = vpack.c.b16 %v4046, %v4045
  %4055 = vmatprep.subr.bf16.mxu0 0
  %4056 = vmatpush1.bf16.msra.mxu0 %v4047
  %4057 = vmatprep.subr.bf16.mxu0 0
  %4058 = vmatpush1.bf16.msra.mxu0 %v4048
  %4059 = vmatprep.subr.bf16.mxu0 0
  %4060 = vmatpush1.bf16.msra.mxu0 %v4049
  %4061 = vmatprep.subr.bf16.mxu0 0
  %4062 = vmatpush1.bf16.msra.mxu0 %v4050
  %4063 = vmatprep.subr.bf16.mxu0 0
  %4064 = vmatpush1.bf16.msra.mxu0 0
  %4065 = vmatprep.subr.bf16.mxu0 0
  %4066 = vmatpush1.bf16.msra.mxu0 0
  %4067 = vmatprep.subr.bf16.mxu0 0
  %4068 = vmatpush1.bf16.msra.mxu0 0
  %4069 = vmatprep.subr.bf16.mxu0 0
  %4070 = vmatpush1.bf16.msra.mxu0 0
  %4071 = vmatprep.subr.bf16.mxu0 0
  %4072 = vmatpush1.bf16.msra.mxu0 0
  %4073 = vmatprep.subr.bf16.mxu0 0
  %4074 = vmatpush1.bf16.msra.mxu0 0
  %4075 = vmatprep.subr.bf16.mxu0 0
  %4076 = vmatpush1.bf16.msra.mxu0 0
  %4077 = vmatprep.subr.bf16.mxu0 0
  %4078 = vmatpush1.bf16.msra.mxu0 0
  %4079 = vmatprep.subr.bf16.mxu0 0
  %4080 = vmatpush1.bf16.msra.mxu0 0
  %4081 = vmatprep.subr.bf16.mxu0 0
  %4082 = vmatpush1.bf16.msra.mxu0 0
  %4083 = vmatprep.subr.bf16.mxu0 0
  %4084 = vmatpush1.bf16.msra.mxu0 0
  %4085 = vmatprep.subr.bf16.mxu0 0
  %4086 = vmatpush1.bf16.msra.mxu0 0
  %4087 = vmatprep.mubr.bf16.mxu0 0
  %4088 = vmatmul.mubr.bf16.gmra.mrb[0].mxu0 %v2756
  %v4089 = vpop.f32.mrb[0].mxu0
  %v4090 = vadd.f32 %v4029, %v4089
  %v4091 = vpop.f32.mrb[0].mxu0
  %v4092 = vpop.f32.mrb[0].mxu0
  %v4093 = vpop.f32.mrb[0].mxu0
  %4094 = vdwg.mxu0
  %s4095 = scalar_lea.vmem %s29, 224
  %v4096 = vld [vmem:[%s4095] sm:$0xf]
  %v4097 = vld [vmem:[%s4095 + $0x4] sm:$0xf]
  %v4098 = vld [vmem:[%s4095 + $0x8] sm:$0xf]
  %v4099 = vld [vmem:[%s4095 + $0xc] sm:$0xf]
  %v4100 = vld [vmem:[%s4095 + $0x10] sm:$0xf]
  %v4101 = vld [vmem:[%s4095 + $0x14] sm:$0xf]
  %v4102 = vld [vmem:[%s4095 + $0x18] sm:$0xf]
  %v4103 = vld [vmem:[%s4095 + $0x1c] sm:$0xf]
  %s4104 = scalar_lea.vmem %s31, 7
  %v4105 = vld [vmem:[%s4104] sm:$0x1]
  %v4107 = vlaneseq
  %v4108 = vshrl.u32 %v4107, 7
  %v4109 = vsub.s32 0, %v4108
  %v4110 = vrot.slane %v4105, %v4109
  %v4120 = vunpack.c.l.b16 %v4096
  %v4121 = vunpack.c.l.b16 %v4097
  %v4122 = vunpack.c.l.b16 %v4098
  %v4123 = vunpack.c.l.b16 %v4099
  %v4124 = vunpack.c.l.b16 %v4100
  %v4125 = vunpack.c.l.b16 %v4101
  %v4126 = vunpack.c.l.b16 %v4102
  %v4127 = vunpack.c.l.b16 %v4103
  %v4128 = vpack.c.b16 %v4121, %v4120
  %v4129 = vpack.c.b16 %v4123, %v4122
  %v4130 = vpack.c.b16 %v4125, %v4124
  %v4131 = vpack.c.b16 %v4127, %v4126
  %4136 = vmatprep.subr.bf16.mxu0 0
  %4137 = vmatpush1.bf16.msra.mxu0 %v4128
  %4138 = vmatprep.subr.bf16.mxu0 0
  %4139 = vmatpush1.bf16.msra.mxu0 %v4129
  %4140 = vmatprep.subr.bf16.mxu0 0
  %4141 = vmatpush1.bf16.msra.mxu0 %v4130
  %4142 = vmatprep.subr.bf16.mxu0 0
  %4143 = vmatpush1.bf16.msra.mxu0 %v4131
  %4144 = vmatprep.subr.bf16.mxu0 0
  %4145 = vmatpush1.bf16.msra.mxu0 0
  %4146 = vmatprep.subr.bf16.mxu0 0
  %4147 = vmatpush1.bf16.msra.mxu0 0
  %4148 = vmatprep.subr.bf16.mxu0 0
  %4149 = vmatpush1.bf16.msra.mxu0 0
  %4150 = vmatprep.subr.bf16.mxu0 0
  %4151 = vmatpush1.bf16.msra.mxu0 0
  %4152 = vmatprep.subr.bf16.mxu0 0
  %4153 = vmatpush1.bf16.msra.mxu0 0
  %4154 = vmatprep.subr.bf16.mxu0 0
  %4155 = vmatpush1.bf16.msra.mxu0 0
  %4156 = vmatprep.subr.bf16.mxu0 0
  %4157 = vmatpush1.bf16.msra.mxu0 0
  %4158 = vmatprep.subr.bf16.mxu0 0
  %4159 = vmatpush1.bf16.msra.mxu0 0
  %4160 = vmatprep.subr.bf16.mxu0 0
  %4161 = vmatpush1.bf16.msra.mxu0 0
  %4162 = vmatprep.subr.bf16.mxu0 0
  %4163 = vmatpush1.bf16.msra.mxu0 0
  %4164 = vmatprep.subr.bf16.mxu0 0
  %4165 = vmatpush1.bf16.msra.mxu0 0
  %4166 = vmatprep.subr.bf16.mxu0 0
  %4167 = vmatpush1.bf16.msra.mxu0 0
  %4168 = vmatprep.mubr.bf16.mxu0 0
  %4169 = vmatmul.mubr.bf16.gmra.mrb[0].mxu0 %v2756
  %v4170 = vpop.f32.mrb[0].mxu0
  %v4171 = vadd.f32 %v4110, %v4170
  %v4172 = vpop.f32.mrb[0].mxu0
  %v4173 = vpop.f32.mrb[0].mxu0
  %v4174 = vpop.f32.mrb[0].mxu0
  %4175 = vdwg.mxu0
  %v4176 = vpack.c.bf16 %v4009, %v4009
  %v4177 = vpack.c.bf16 %v4090, %v4090
  %v4179 = vsel %vm971, %v4176, 0
  %v4182 = vsel %vm971, %v4177, 0
  %4184 = vmatprep.subr.bf16.mxu0 0
  %4185 = vmatpush1.bf16.xpose.msra.mxu0 %v4182
  %4186 = vmatprep.subr.bf16.mxu0 0
  %4187 = vmatpush1.bf16.xpose.msra.mxu0 0
  %4188 = vmatprep.subr.bf16.mxu0 0
  %4189 = vmatpush1.bf16.xpose.msra.mxu0 0
  %4190 = vmatprep.subr.bf16.mxu0 0
  %4191 = vmatpush1.bf16.xpose.msra.mxu0 0
  %4192 = vmatprep.subr.bf16.mxu0 0
  %4193 = vmatpush1.bf16.xpose.msra.mxu0 0
  %4194 = vmatprep.subr.bf16.mxu0 0
  %4195 = vmatpush1.bf16.xpose.msra.mxu0 0
  %4196 = vmatprep.subr.bf16.mxu0 0
  %4197 = vmatpush1.bf16.xpose.msra.mxu0 0
  %4198 = vmatprep.subr.bf16.mxu0 0
  %4199 = vmatpush1.bf16.xpose.msra.mxu0 0
  %4200 = vmatprep.subr.bf16.mxu0 0
  %4201 = vmatpush1.bf16.xpose.msra.mxu0 0
  %4202 = vmatprep.subr.bf16.mxu0 0
  %4203 = vmatpush1.bf16.xpose.msra.mxu0 0
  %4204 = vmatprep.subr.bf16.mxu0 0
  %4205 = vmatpush1.bf16.xpose.msra.mxu0 0
  %4206 = vmatprep.subr.bf16.mxu0 0
  %4207 = vmatpush1.bf16.xpose.msra.mxu0 0
  %4208 = vmatprep.subr.bf16.mxu0 0
  %4209 = vmatpush1.bf16.xpose.msra.mxu0 0
  %4210 = vmatprep.subr.bf16.mxu0 0
  %4211 = vmatpush1.bf16.xpose.msra.mxu0 0
  %4212 = vmatprep.subr.bf16.mxu0 0
  %4213 = vmatpush1.bf16.xpose.msra.mxu0 0
  %4214 = vmatprep.subr.bf16.mxu0 0
  %4215 = vmatpush1.bf16.xpose.msra.mxu0 0
  %4216 = vmatprep.mubr.bf16.mxu0 0
  %4217 = vmatmul.mubr.bf16.gmra.mrb[0].mxu0 %v4179
  %v4218 = vpop.f32.mrb[0].mxu0
  %v4219 = vadd.f32 0.0, %v4218
  %v4220 = vpop.f32.mrb[0].mxu0
  %v4221 = vpop.f32.mrb[0].mxu0
  %v4222 = vpop.f32.mrb[0].mxu0
  %4223 = vdwg.mxu0
  %v4224 = vmul.f32 %v4219, 0.25
  %v4225 = vadd.f32 %v4224, %v696
  %v4226 = vsel %vm1020, %v4225, -inf
  %4227 = vmax.xlane.f32.xlu0 %v4226
  %v4228 = vpop.xlane.xlu0 %4227
  %v4229 = vsub.f32 %v4225, %v4228
  %v4230 = vmul.f32 %v4229, 1.442695
  %v4231 = vpow.pop %v4230
  %v4232 = vsel %vm1020, %v4231, 0.0
  %4233 = vadd.xlane.f32.xlu0 %v4232
  %v4234 = vpop.xlane.xlu0 %4233
  %v4235 = vrcp.pop %v4234
  %v4236 = vmul.f32 %v4231, %v4235
  %v4237 = vpack.c.bf16 %v4236, %v4236
  %v4238 = vpack.c.bf16 %v4171, %v4171
  %v4240 = vsel %vm1020, %v4237, 0
  %v4243 = vsel %vm1037, %v4238, 0
  %4245 = vmatprep.subr.bf16.mxu0 0
  %4246 = vmatpush1.bf16.msra.mxu0 %v4243
  %4247 = vmatprep.subr.bf16.mxu0 0
  %4248 = vmatpush1.bf16.msra.mxu0 0
  %4249 = vmatprep.subr.bf16.mxu0 0
  %4250 = vmatpush1.bf16.msra.mxu0 0
  %4251 = vmatprep.subr.bf16.mxu0 0
  %4252 = vmatpush1.bf16.msra.mxu0 0
  %4253 = vmatprep.subr.bf16.mxu0 0
  %4254 = vmatpush1.bf16.msra.mxu0 0
  %4255 = vmatprep.subr.bf16.mxu0 0
  %4256 = vmatpush1.bf16.msra.mxu0 0
  %4257 = vmatprep.subr.bf16.mxu0 0
  %4258 = vmatpush1.bf16.msra.mxu0 0
  %4259 = vmatprep.subr.bf16.mxu0 0
  %4260 = vmatpush1.bf16.msra.mxu0 0
  %4261 = vmatprep.subr.bf16.mxu0 0
  %4262 = vmatpush1.bf16.msra.mxu0 0
  %4263 = vmatprep.subr.bf16.mxu0 0
  %4264 = vmatpush1.bf16.msra.mxu0 0
  %4265 = vmatprep.subr.bf16.mxu0 0
  %4266 = vmatpush1.bf16.msra.mxu0 0
  %4267 = vmatprep.subr.bf16.mxu0 0
  %4268 = vmatpush1.bf16.msra.mxu0 0
  %4269 = vmatprep.subr.bf16.mxu0 0
  %4270 = vmatpush1.bf16.msra.mxu0 0
  %4271 = vmatprep.subr.bf16.mxu0 0
  %4272 = vmatpush1.bf16.msra.mxu0 0
  %4273 = vmatprep.subr.bf16.mxu0 0
  %4274 = vmatpush1.bf16.msra.mxu0 0
  %4275 = vmatprep.subr.bf16.mxu0 0
  %4276 = vmatpush1.bf16.msra.mxu0 0
  %4277 = vmatprep.mubr.bf16.mxu0 0
  %4278 = vmatmul.mubr.bf16.gmra.mrb[0].mxu0 %v4240
  %v4279 = vpop.f32.mrb[0].mxu0
  %v4280 = vadd.f32 0.0, %v4279
  %v4281 = vpop.f32.mrb[0].mxu0
  %v4282 = vpop.f32.mrb[0].mxu0
  %v4283 = vpop.f32.mrb[0].mxu0
  %4284 = vdwg.mxu0
  %v4285 = vpack.c.bf16 %v4280, %v4280
  %s4286 = scalar_lea.vmem %s33, 56
  %v4287 = vld [vmem:[%s4286] sm:$0xf]
  %v4288 = vld [vmem:[%s4286 + $0x4] sm:$0xf]
  %v4291 = vunpack.c.l.b16 %v4287
  %v4292 = vunpack.c.l.b16 %v4288
  %v4293 = vpack.c.b16 %v4292, %v4291
  %v4296 = vsel %vm971, %v4285, 0
  %4298 = vmatprep.subr.bf16.mxu0 0
  %4299 = vmatpush1.bf16.msra.mxu0 %v4293
  %4300 = vmatprep.subr.bf16.mxu0 0
  %4301 = vmatpush1.bf16.msra.mxu0 0
  %4302 = vmatprep.subr.bf16.mxu0 0
  %4303 = vmatpush1.bf16.msra.mxu0 0
  %4304 = vmatprep.subr.bf16.mxu0 0
  %4305 = vmatpush1.bf16.msra.mxu0 0
  %4306 = vmatprep.subr.bf16.mxu0 0
  %4307 = vmatpush1.bf16.msra.mxu0 0
  %4308 = vmatprep.subr.bf16.mxu0 0
  %4309 = vmatpush1.bf16.msra.mxu0 0
  %4310 = vmatprep.subr.bf16.mxu0 0
  %4311 = vmatpush1.bf16.msra.mxu0 0
  %4312 = vmatprep.subr.bf16.mxu0 0
  %4313 = vmatpush1.bf16.msra.mxu0 0
  %4314 = vmatprep.subr.bf16.mxu0 0
  %4315 = vmatpush1.bf16.msra.mxu0 0
  %4316 = vmatprep.subr.bf16.mxu0 0
  %4317 = vmatpush1.bf16.msra.mxu0 0
  %4318 = vmatprep.subr.bf16.mxu0 0
  %4319 = vmatpush1.bf16.msra.mxu0 0
  %4320 = vmatprep.subr.bf16.mxu0 0
  %4321 = vmatpush1.bf16.msra.mxu0 0
  %4322 = vmatprep.subr.bf16.mxu0 0
  %4323 = vmatpush1.bf16.msra.mxu0 0
  %4324 = vmatprep.subr.bf16.mxu0 0
  %4325 = vmatpush1.bf16.msra.mxu0 0
  %4326 = vmatprep.subr.bf16.mxu0 0
  %4327 = vmatpush1.bf16.msra.mxu0 0
  %4328 = vmatprep.subr.bf16.mxu0 0
  %4329 = vmatpush1.bf16.msra.mxu0 0
  %4330 = vmatprep.mubr.bf16.mxu0 0
  %4331 = vmatmul.mubr.bf16.gmra.mrb[0].mxu0 %v4296
  %v4332 = vpop.f32.mrb[0].mxu0
  %v4333 = vadd.f32 0.0, %v4332
  %v4334 = vpop.f32.mrb[0].mxu0
  %v4335 = vpop.f32.mrb[0].mxu0
  %v4336 = vpop.f32.mrb[0].mxu0
  %4337 = vdwg.mxu0
  %v4338 = vadd.f32 %v3932, %v4333
  %v4339 = vadd.f32 %v2681, %v4338
  %s4340 = scalar_lea.vmem %s35, 1
  %v4341 = vld [vmem:[%s4340] sm:$0x1]
  %v4343 = vlaneseq
  %v4344 = vshrl.u32 %v4343, 7
  %v4345 = vsub.s32 0, %v4344
  %v4346 = vrot.slane %v4341, %v4345
  %v4348 = vadd.f32 %v4339, %v4346
  %s4349 = scalar_lea.vmem %s37, 1
  %v4350 = vld [vmem:[%s4349] sm:$0x1]
  %s4351 = scalar_lea.vmem %s39, 1
  %v4352 = vld [vmem:[%s4351] sm:$0x1]
  %v4353 = vsel %vm699, %v4348, 0.0
  %4354 = vadd.xlane.f32.xlu0 %v4353
  %v4355 = vpop.xlane.xlu0 %4354
  %v4356 = vmul.f32 %v4355, %v703
  %v4357 = vsub.f32 %v4348, %v4356
  %v4358 = vmul.f32 %v4357, %v4357
  %v4359 = vsel %vm699, %v4358, 0.0
  %4360 = vadd.xlane.f32.xlu0 %v4359
  %v4361 = vpop.xlane.xlu0 %4360
  %v4362 = vmul.f32 %v4361, %v703
  %v4363 = vadd.f32 %v4362, 1e-06
  %v4364 = vrsqrt.pop %v4363
  %v4365 = vmul.f32 %v4357, %v4364
  %v4367 = vlaneseq
  %v4368 = vshrl.u32 %v4367, 7
  %v4369 = vsub.s32 0, %v4368
  %v4370 = vrot.slane %v4350, %v4369
  %v4372 = vmul.f32 %v4365, %v4370
  %v4374 = vlaneseq
  %v4375 = vshrl.u32 %v4374, 7
  %v4376 = vsub.s32 0, %v4375
  %v4377 = vrot.slane %v4352, %v4376
  %v4379 = vadd.f32 %v4372, %v4377
  %s4380 = scalar_lea.vmem %s41, 64
  %v4381 = vld [vmem:[%s4380] sm:$0xff]
  %v4382 = vld [vmem:[%s4380 + $0x8] sm:$0xff]
  %v4383 = vld [vmem:[%s4380 + $0x10] sm:$0xff]
  %v4384 = vld [vmem:[%s4380 + $0x18] sm:$0xff]
  %v4385 = vld [vmem:[%s4380 + $0x20] sm:$0xff]
  %v4386 = vld [vmem:[%s4380 + $0x28] sm:$0xff]
  %v4387 = vld [vmem:[%s4380 + $0x30] sm:$0xff]
  %v4388 = vld [vmem:[%s4380 + $0x38] sm:$0xff]
  %v4389 = vpack.c.bf16 %v4379, %v4379
  %s4390 = scalar_lea.vmem %s43, 2
  %v4391 = vld [vmem:[%s4390] sm:$0x3]
  %v4393 = vlaneseq
  %v4394 = vshrl.u32 %v4393, 7
  %v4395 = vsub.s32 0, %v4394
  %v4396 = vrot.slane %v4391, %v4395
  %v4397 = vlaneseq
  %v4398 = vshrl.u32 %v4397, 7
  %v4399 = vsub.s32 1, %v4398
  %v4400 = vrot.slane %v4391, %v4399
  %v4411 = vunpack.c.l.b16 %v4381
  %v4412 = vunpack.c.h.b16 %v4381
  %v4413 = vunpack.c.l.b16 %v4382
  %v4414 = vunpack.c.h.b16 %v4382
  %v4415 = vunpack.c.l.b16 %v4383
  %v4416 = vunpack.c.h.b16 %v4383
  %v4417 = vunpack.c.l.b16 %v4384
  %v4418 = vunpack.c.h.b16 %v4384
  %v4419 = vunpack.c.l.b16 %v4385
  %v4420 = vunpack.c.h.b16 %v4385
  %v4421 = vunpack.c.l.b16 %v4386
  %v4422 = vunpack.c.h.b16 %v4386
  %v4423 = vunpack.c.l.b16 %v4387
  %v4424 = vunpack.c.h.b16 %v4387
  %v4425 = vunpack.c.l.b16 %v4388
  %v4426 = vunpack.c.h.b16 %v4388
  %v4427 = vpack.c.b16 %v4413, %v4411
  %v4428 = vpack.c.b16 %v4414, %v4412
  %v4429 = vpack.c.b16 %v4417, %v4415
  %v4430 = vpack.c.b16 %v4418, %v4416
  %v4431 = vpack.c.b16 %v4421, %v4419
  %v4432 = vpack.c.b16 %v4422, %v4420
  %v4433 = vpack.c.b16 %v4425, %v4423
  %v4434 = vpack.c.b16 %v4426, %v4424
  %v4444 = vsel %vm699, %v4389, 0
  %4446 = vmatprep.subr.bf16.mxu0 %v4428
  %4447 = vmatpush1.bf16.msra.mxu0 %v4427
  %4448 = vmatprep.subr.bf16.mxu0 %v4430
  %4449 = vmatpush1.bf16.msra.mxu0 %v4429
  %4450 = vmatprep.subr.bf16.mxu0 %v4432
  %4451 = vmatpush1.bf16.msra.mxu0 %v4431
  %4452 = vmatprep.subr.bf16.mxu0 %v4434
  %4453 = vmatpush1.bf16.msra.mxu0 %v4433
  %4454 = vmatprep.subr.bf16.mxu0 0
  %4455 = vmatpush1.bf16.msra.mxu0 0
  %4456 = vmatprep.subr.bf16.mxu0 0
  %4457 = vmatpush1.bf16.msra.mxu0 0
  %4458 = vmatprep.subr.bf16.mxu0 0
  %4459 = vmatpush1.bf16.msra.mxu0 0
  %4460 = vmatprep.subr.bf16.mxu0 0
  %4461 = vmatpush1.bf16.msra.mxu0 0
  %4462 = vmatprep.subr.bf16.mxu0 0
  %4463 = vmatpush1.bf16.msra.mxu0 0
  %4464 = vmatprep.subr.bf16.mxu0 0
  %4465 = vmatpush1.bf16.msra.mxu0 0
  %4466 = vmatprep.subr.bf16.mxu0 0
  %4467 = vmatpush1.bf16.msra.mxu0 0
  %4468 = vmatprep.subr.bf16.mxu0 0
  %4469 = vmatpush1.bf16.msra.mxu0 0
  %4470 = vmatprep.subr.bf16.mxu0 0
  %4471 = vmatpush1.bf16.msra.mxu0 0
  %4472 = vmatprep.subr.bf16.mxu0 0
  %4473 = vmatpush1.bf16.msra.mxu0 0
  %4474 = vmatprep.subr.bf16.mxu0 0
  %4475 = vmatpush1.bf16.msra.mxu0 0
  %4476 = vmatprep.subr.bf16.mxu0 0
  %4477 = vmatpush1.bf16.msra.mxu0 0
  %4478 = vmatprep.mubr.bf16.mxu0 0
  %4479 = vmatmul.mubr.bf16.gmra.mrb[0].mxu0 %v4444
  %v4480 = vpop.f32.mrb[0].mxu0
  %v4481 = vadd.f32 %v4396, %v4480
  %v4482 = vpop.f32.mrb[0].mxu0
  %v4483 = vadd.f32 %v4400, %v4482
  %v4484 = vpop.f32.mrb[0].mxu0
  %v4485 = vpop.f32.mrb[0].mxu0
  %4486 = vdwg.mxu0
  %v4487 = vmul.f32 %v4481, 0.5
  %v4488 = vmul.f32 %v4483, 0.5
  %v4489 = vmul.f32 %v4481, 0.70710677
  %v4490 = vmul.f32 %v4483, 0.70710677
  %v4491 = verf.f32.pop %v4489
  %v4492 = verf.f32.pop %v4490
  %v4493 = vadd.f32 %v4491, 1.0
  %v4494 = vadd.f32 %v4492, 1.0
  %v4495 = vmul.f32 %v4487, %v4493
  %v4496 = vmul.f32 %v4488, %v4494
  %s4497 = scalar_lea.vmem %s45, 128
  %v4498 = vld [vmem:[%s4497] sm:$0xf]
  %v4499 = vld [vmem:[%s4497 + $0x4] sm:$0xf]
  %v4500 = vld [vmem:[%s4497 + $0x8] sm:$0xf]
  %v4501 = vld [vmem:[%s4497 + $0xc] sm:$0xf]
  %v4502 = vld [vmem:[%s4497 + $0x10] sm:$0xf]
  %v4503 = vld [vmem:[%s4497 + $0x14] sm:$0xf]
  %v4504 = vld [vmem:[%s4497 + $0x18] sm:$0xf]
  %v4505 = vld [vmem:[%s4497 + $0x1c] sm:$0xf]
  %v4506 = vld [vmem:[%s4497 + $0x20] sm:$0xf]
  %v4507 = vld [vmem:[%s4497 + $0x24] sm:$0xf]
  %v4508 = vld [vmem:[%s4497 + $0x28] sm:$0xf]
  %v4509 = vld [vmem:[%s4497 + $0x2c] sm:$0xf]
  %v4510 = vld [vmem:[%s4497 + $0x30] sm:$0xf]
  %v4511 = vld [vmem:[%s4497 + $0x34] sm:$0xf]
  %v4512 = vld [vmem:[%s4497 + $0x38] sm:$0xf]
  %v4513 = vld [vmem:[%s4497 + $0x3c] sm:$0xf]
  %v4514 = vld [vmem:[%s4497 + $0x40] sm:$0xf]
  %v4515 = vld [vmem:[%s4497 + $0x44] sm:$0xf]
  %v4516 = vld [vmem:[%s4497 + $0x48] sm:$0xf]
  %v4517 = vld [vmem:[%s4497 + $0x4c] sm:$0xf]
  %v4518 = vld [vmem:[%s4497 + $0x50] sm:$0xf]
  %v4519 = vld [vmem:[%s4497 + $0x54] sm:$0xf]
  %v4520 = vld [vmem:[%s4497 + $0x58] sm:$0xf]
  %v4521 = vld [vmem:[%s4497 + $0x5c] sm:$0xf]
  %v4522 = vld [vmem:[%s4497 + $0x60] sm:$0xf]
  %v4523 = vld [vmem:[%s4497 + $0x64] sm:$0xf]
  %v4524 = vld [vmem:[%s4497 + $0x68] sm:$0xf]
  %v4525 = vld [vmem:[%s4497 + $0x6c] sm:$0xf]
  %v4526 = vld [vmem:[%s4497 + $0x70] sm:$0xf]
  %v4527 = vld [vmem:[%s4497 + $0x74] sm:$0xf]
  %v4528 = vld [vmem:[%s4497 + $0x78] sm:$0xf]
  %v4529 = vld [vmem:[%s4497 + $0x7c] sm:$0xf]
  %v4530 = vpack.c.bf16 %v4495, %v4495
  %v4531 = vpack.c.bf16 %v4496, %v4496
  %v4564 = vunpack.c.l.b16 %v4498
  %v4565 = vunpack.c.l.b16 %v4499
  %v4566 = vunpack.c.l.b16 %v4500
  %v4567 = vunpack.c.l.b16 %v4501
  %v4568 = vunpack.c.l.b16 %v4502
  %v4569 = vunpack.c.l.b16 %v4503
  %v4570 = vunpack.c.l.b16 %v4504
  %v4571 = vunpack.c.l.b16 %v4505
  %v4572 = vunpack.c.l.b16 %v4506
  %v4573 = vunpack.c.l.b16 %v4507
  %v4574 = vunpack.c.l.b16 %v4508
  %v4575 = vunpack.c.l.b16 %v4509
  %v4576 = vunpack.c.l.b16 %v4510
  %v4577 = vunpack.c.l.b16 %v4511
  %v4578 = vunpack.c.l.b16 %v4512
  %v4579 = vunpack.c.l.b16 %v4513
  %v4580 = vunpack.c.l.b16 %v4514
  %v4581 = vunpack.c.l.b16 %v4515
  %v4582 = vunpack.c.l.b16 %v4516
  %v4583 = vunpack.c.l.b16 %v4517
  %v4584 = vunpack.c.l.b16 %v4518
  %v4585 = vunpack.c.l.b16 %v4519
  %v4586 = vunpack.c.l.b16 %v4520
  %v4587 = vunpack.c.l.b16 %v4521
  %v4588 = vunpack.c.l.b16 %v4522
  %v4589 = vunpack.c.l.b16 %v4523
  %v4590 = vunpack.c.l.b16 %v4524
  %v4591 = vunpack.c.l.b16 %v4525
  %v4592 = vunpack.c.l.b16 %v4526
  %v4593 = vunpack.c.l.b16 %v4527
  %v4594 = vunpack.c.l.b16 %v4528
  %v4595 = vunpack.c.l.b16 %v4529
  %v4596 = vpack.c.b16 %v4565, %v4564
  %v4597 = vpack.c.b16 %v4567, %v4566
  %v4598 = vpack.c.b16 %v4569, %v4568
  %v4599 = vpack.c.b16 %v4571, %v4570
  %v4600 = vpack.c.b16 %v4573, %v4572
  %v4601 = vpack.c.b16 %v4575, %v4574
  %v4602 = vpack.c.b16 %v4577, %v4576
  %v4603 = vpack.c.b16 %v4579, %v4578
  %v4604 = vpack.c.b16 %v4581, %v4580
  %v4605 = vpack.c.b16 %v4583, %v4582
  %v4606 = vpack.c.b16 %v4585, %v4584
  %v4607 = vpack.c.b16 %v4587, %v4586
  %v4608 = vpack.c.b16 %v4589, %v4588
  %v4609 = vpack.c.b16 %v4591, %v4590
  %v4610 = vpack.c.b16 %v4593, %v4592
  %v4611 = vpack.c.b16 %v4595, %v4594
  %4628 = vmatprep.subr.bf16.mxu0 0
  %4629 = vmatpush1.bf16.msra.mxu0 %v4596
  %4630 = vmatprep.subr.bf16.mxu0 0
  %4631 = vmatpush1.bf16.msra.mxu0 %v4597
  %4632 = vmatprep.subr.bf16.mxu0 0
  %4633 = vmatpush1.bf16.msra.mxu0 %v4598
  %4634 = vmatprep.subr.bf16.mxu0 0
  %4635 = vmatpush1.bf16.msra.mxu0 %v4599
  %4636 = vmatprep.subr.bf16.mxu0 0
  %4637 = vmatpush1.bf16.msra.mxu0 %v4600
  %4638 = vmatprep.subr.bf16.mxu0 0
  %4639 = vmatpush1.bf16.msra.mxu0 %v4601
  %4640 = vmatprep.subr.bf16.mxu0 0
  %4641 = vmatpush1.bf16.msra.mxu0 %v4602
  %4642 = vmatprep.subr.bf16.mxu0 0
  %4643 = vmatpush1.bf16.msra.mxu0 %v4603
  %4644 = vmatprep.subr.bf16.mxu0 0
  %4645 = vmatpush1.bf16.msra.mxu0 %v4604
  %4646 = vmatprep.subr.bf16.mxu0 0
  %4647 = vmatpush1.bf16.msra.mxu0 %v4605
  %4648 = vmatprep.subr.bf16.mxu0 0
  %4649 = vmatpush1.bf16.msra.mxu0 %v4606
  %4650 = vmatprep.subr.bf16.mxu0 0
  %4651 = vmatpush1.bf16.msra.mxu0 %v4607
  %4652 = vmatprep.subr.bf16.mxu0 0
  %4653 = vmatpush1.bf16.msra.mxu0 %v4608
  %4654 = vmatprep.subr.bf16.mxu0 0
  %4655 = vmatpush1.bf16.msra.mxu0 %v4609
  %4656 = vmatprep.subr.bf16.mxu0 0
  %4657 = vmatpush1.bf16.msra.mxu0 %v4610
  %4658 = vmatprep.subr.bf16.mxu0 0
  %4659 = vmatpush1.bf16.msra.mxu0 %v4611
  %4660 = vmatprep.mubr.bf16.mxu0 %v4531
  %4661 = vmatmul.mubr.bf16.gmra.mrb[0].mxu0 %v4530
  %v4662 = vpop.f32.mrb[0].mxu0
  %v4663 = vadd.f32 0.0, %v4662
  %v4664 = vpop.f32.mrb[0].mxu0
  %v4665 = vpop.f32.mrb[0].mxu0
  %v4666 = vpop.f32.mrb[0].mxu0
  %4667 = vdwg.mxu0
  %v4668 = vadd.f32 %v4348, %v4663
  %s4669 = scalar_lea.vmem %s47, 1
  %v4670 = vld [vmem:[%s4669] sm:$0x1]
  %v4672 = vlaneseq
  %v4673 = vshrl.u32 %v4672, 7
  %v4674 = vsub.s32 0, %v4673
  %v4675 = vrot.slane %v4670, %v4674
  %v4677 = vadd.f32 %v4668, %v4675
  %v4678 = vld [vmem:[%s5] sm:$0xf]
  %v4679 = vld [vmem:[%s5 + $0x4] sm:$0xf]
  %v4680 = vld [vmem:[%s49] sm:$0x7]
  %v4681 = vld [vmem:[%s51] sm:$0x1]
  %v4683 = vlaneseq
  %v4684 = vshrl.u32 %v4683, 7
  %v4685 = vsub.s32 0, %v4684
  %v4686 = vrot.slane %v4681, %v4685
  %v4690 = vunpack.c.l.b16 %v4678
  %v4691 = vunpack.c.l.b16 %v4679
  %v4692 = vpack.c.b16 %v4691, %v4690
  %vm4693 = vcmask 48128
  %v4695 = vsel %vm4693, %v4692, 0
  %vm4697 = vcmask 1042432
  %v4699 = vsel %vm4697, %v4680, 0
  %4701 = vmatprep.subr.bf16.mxu0 0
  %4702 = vmatpush1.bf16.msra.mxu0 %v4699
  %4703 = vmatprep.subr.bf16.mxu0 0
  %4704 = vmatpush1.bf16.msra.mxu0 0
  %4705 = vmatprep.subr.bf16.mxu0 0
  %4706 = vmatpush1.bf16.msra.mxu0 0
  %4707 = vmatprep.subr.bf16.mxu0 0
  %4708 = vmatpush1.bf16.msra.mxu0 0
  %4709 = vmatprep.subr.bf16.mxu0 0
  %4710 = vmatpush1.bf16.msra.mxu0 0
  %4711 = vmatprep.subr.bf16.mxu0 0
  %4712 = vmatpush1.bf16.msra.mxu0 0
  %4713 = vmatprep.subr.bf16.mxu0 0
  %4714 = vmatpush1.bf16.msra.mxu0 0
  %4715 = vmatprep.subr.bf16.mxu0 0
  %4716 = vmatpush1.bf16.msra.mxu0 0
  %4717 = vmatprep.subr.bf16.mxu0 0
  %4718 = vmatpush1.bf16.msra.mxu0 0
  %4719 = vmatprep.subr.bf16.mxu0 0
  %4720 = vmatpush1.bf16.msra.mxu0 0
  %4721 = vmatprep.subr.bf16.mxu0 0
  %4722 = vmatpush1.bf16.msra.mxu0 0
  %4723 = vmatprep.subr.bf16.mxu0 0
  %4724 = vmatpush1.bf16.msra.mxu0 0
  %4725 = vmatprep.subr.bf16.mxu0 0
  %4726 = vmatpush1.bf16.msra.mxu0 0
  %4727 = vmatprep.subr.bf16.mxu0 0
  %4728 = vmatpush1.bf16.msra.mxu0 0
  %4729 = vmatprep.subr.bf16.mxu0 0
  %4730 = vmatpush1.bf16.msra.mxu0 0
  %4731 = vmatprep.subr.bf16.mxu0 0
  %4732 = vmatpush1.bf16.msra.mxu0 0
  %4733 = vmatprep.mubr.bf16.mxu0 0
  %4734 = vmatmul.mubr.bf16.gmra.mrb[0].mxu0 %v4695
  %v4735 = vpop.f32.mrb[0].mxu0
  %v4736 = vadd.f32 %v4686, %v4735
  %v4737 = vpop.f32.mrb[0].mxu0
  %v4738 = vpop.f32.mrb[0].mxu0
  %v4739 = vadd.f32 %v4686, %v4738
  %v4740 = vpop.f32.mrb[0].mxu0
  %4741 = vdwg.mxu0
  %v4742 = vmax.f32 %v4736, 0.0
  %v4743 = vmax.f32 %v4739, 0.0
  %v4744 = vld [vmem:[%s53] sm:$0xf]
  %v4745 = vld [vmem:[%s53 + $0x4] sm:$0xf]
  %v4746 = vld [vmem:[%s53 + $0x8] sm:$0xf]
  %v4747 = vld [vmem:[%s53 + $0xc] sm:$0xf]
  %v4748 = vld [vmem:[%s53 + $0x10] sm:$0xf]
  %v4749 = vld [vmem:[%s53 + $0x14] sm:$0xf]
  %v4750 = vld [vmem:[%s53 + $0x18] sm:$0xf]
  %v4751 = vld [vmem:[%s53 + $0x1c] sm:$0xf]
  %v4752 = vpack.c.bf16 %v4743, %v4742
  %v4753 = vld [vmem:[%s55] sm:$0x1]
  %v4755 = vlaneseq
  %v4756 = vshrl.u32 %v4755, 7
  %v4757 = vsub.s32 0, %v4756
  %v4758 = vrot.slane %v4753, %v4757
  %v4768 = vunpack.c.l.b16 %v4744
  %v4769 = vunpack.c.l.b16 %v4745
  %v4770 = vunpack.c.l.b16 %v4746
  %v4771 = vunpack.c.l.b16 %v4747
  %v4772 = vunpack.c.l.b16 %v4748
  %v4773 = vunpack.c.l.b16 %v4749
  %v4774 = vunpack.c.l.b16 %v4750
  %v4775 = vunpack.c.l.b16 %v4751
  %v4776 = vpack.c.b16 %v4769, %v4768
  %v4777 = vpack.c.b16 %v4771, %v4770
  %v4778 = vpack.c.b16 %v4773, %v4772
  %v4779 = vpack.c.b16 %v4775, %v4774
  %v4785 = vsel %vm699, %v4752, 0
  %4787 = vmatprep.subr.bf16.mxu0 0
  %4788 = vmatpush1.bf16.msra.mxu0 %v4776
  %4789 = vmatprep.subr.bf16.mxu0 0
  %4790 = vmatpush1.bf16.msra.mxu0 %v4777
  %4791 = vmatprep.subr.bf16.mxu0 0
  %4792 = vmatpush1.bf16.msra.mxu0 %v4778
  %4793 = vmatprep.subr.bf16.mxu0 0
  %4794 = vmatpush1.bf16.msra.mxu0 %v4779
  %4795 = vmatprep.subr.bf16.mxu0 0
  %4796 = vmatpush1.bf16.msra.mxu0 0
  %4797 = vmatprep.subr.bf16.mxu0 0
  %4798 = vmatpush1.bf16.msra.mxu0 0
  %4799 = vmatprep.subr.bf16.mxu0 0
  %4800 = vmatpush1.bf16.msra.mxu0 0
  %4801 = vmatprep.subr.bf16.mxu0 0
  %4802 = vmatpush1.bf16.msra.mxu0 0
  %4803 = vmatprep.subr.bf16.mxu0 0
  %4804 = vmatpush1.bf16.msra.mxu0 0
  %4805 = vmatprep.subr.bf16.mxu0 0
  %4806 = vmatpush1.bf16.msra.mxu0 0
  %4807 = vmatprep.subr.bf16.mxu0 0
  %4808 = vmatpush1.bf16.msra.mxu0 0
  %4809 = vmatprep.subr.bf16.mxu0 0
  %4810 = vmatpush1.bf16.msra.mxu0 0
  %4811 = vmatprep.subr.bf16.mxu0 0
  %4812 = vmatpush1.bf16.msra.mxu0 0
  %4813 = vmatprep.subr.bf16.mxu0 0
  %4814 = vmatpush1.bf16.msra.mxu0 0
  %4815 = vmatprep.subr.bf16.mxu0 0
  %4816 = vmatpush1.bf16.msra.mxu0 0
  %4817 = vmatprep.subr.bf16.mxu0 0
  %4818 = vmatpush1.bf16.msra.mxu0 0
  %4819 = vmatprep.mubr.bf16.mxu0 0
  %4820 = vmatmul.mubr.bf16.gmra.mrb[0].mxu0 %v4785
  %v4821 = vpop.f32.mrb[0].mxu0
  %v4822 = vadd.f32 %v4758, %v4821
  %v4823 = vpop.f32.mrb[0].mxu0
  %v4824 = vpop.f32.mrb[0].mxu0
  %v4825 = vadd.f32 %v4758, %v4824
  %v4826 = vpop.f32.mrb[0].mxu0
  %4827 = vdwg.mxu0
  %v4828 = vmax.f32 %v4822, 0.0
  %v4829 = vmax.f32 %v4825, 0.0
  %v4830 = vld [vmem:[%s57] sm:$0xf]
  %v4831 = vld [vmem:[%s57 + $0x4] sm:$0xf]
  %v4832 = vld [vmem:[%s57 + $0x8] sm:$0xf]
  %v4833 = vld [vmem:[%s57 + $0xc] sm:$0xf]
  %v4834 = vld [vmem:[%s57 + $0x10] sm:$0xf]
  %v4835 = vld [vmem:[%s57 + $0x14] sm:$0xf]
  %v4836 = vld [vmem:[%s57 + $0x18] sm:$0xf]
  %v4837 = vld [vmem:[%s57 + $0x1c] sm:$0xf]
  %v4838 = vpack.c.bf16 %v4677, %v4677
  %v4839 = vld [vmem:[%s59] sm:$0x1]
  %v4841 = vlaneseq
  %v4842 = vshrl.u32 %v4841, 7
  %v4843 = vsub.s32 0, %v4842
  %v4844 = vrot.slane %v4839, %v4843
  %v4854 = vunpack.c.l.b16 %v4830
  %v4855 = vunpack.c.l.b16 %v4831
  %v4856 = vunpack.c.l.b16 %v4832
  %v4857 = vunpack.c.l.b16 %v4833
  %v4858 = vunpack.c.l.b16 %v4834
  %v4859 = vunpack.c.l.b16 %v4835
  %v4860 = vunpack.c.l.b16 %v4836
  %v4861 = vunpack.c.l.b16 %v4837
  %v4862 = vpack.c.b16 %v4855, %v4854
  %v4863 = vpack.c.b16 %v4857, %v4856
  %v4864 = vpack.c.b16 %v4859, %v4858
  %v4865 = vpack.c.b16 %v4861, %v4860
  %v4871 = vsel %vm699, %v4838, 0
  %4873 = vmatprep.subr.bf16.mxu0 0
  %4874 = vmatpush1.bf16.msra.mxu0 %v4862
  %4875 = vmatprep.subr.bf16.mxu0 0
  %4876 = vmatpush1.bf16.msra.mxu0 %v4863
  %4877 = vmatprep.subr.bf16.mxu0 0
  %4878 = vmatpush1.bf16.msra.mxu0 %v4864
  %4879 = vmatprep.subr.bf16.mxu0 0
  %4880 = vmatpush1.bf16.msra.mxu0 %v4865
  %4881 = vmatprep.subr.bf16.mxu0 0
  %4882 = vmatpush1.bf16.msra.mxu0 0
  %4883 = vmatprep.subr.bf16.mxu0 0
  %4884 = vmatpush1.bf16.msra.mxu0 0
  %4885 = vmatprep.subr.bf16.mxu0 0
  %4886 = vmatpush1.bf16.msra.mxu0 0
  %4887 = vmatprep.subr.bf16.mxu0 0
  %4888 = vmatpush1.bf16.msra.mxu0 0
  %4889 = vmatprep.subr.bf16.mxu0 0
  %4890 = vmatpush1.bf16.msra.mxu0 0
  %4891 = vmatprep.subr.bf16.mxu0 0
  %4892 = vmatpush1.bf16.msra.mxu0 0
  %4893 = vmatprep.subr.bf16.mxu0 0
  %4894 = vmatpush1.bf16.msra.mxu0 0
  %4895 = vmatprep.subr.bf16.mxu0 0
  %4896 = vmatpush1.bf16.msra.mxu0 0
  %4897 = vmatprep.subr.bf16.mxu0 0
  %4898 = vmatpush1.bf16.msra.mxu0 0
  %4899 = vmatprep.subr.bf16.mxu0 0
  %4900 = vmatpush1.bf16.msra.mxu0 0
  %4901 = vmatprep.subr.bf16.mxu0 0
  %4902 = vmatpush1.bf16.msra.mxu0 0
  %4903 = vmatprep.subr.bf16.mxu0 0
  %4904 = vmatpush1.bf16.msra.mxu0 0
  %4905 = vmatprep.mubr.bf16.mxu0 0
  %4906 = vmatmul.mubr.bf16.gmra.mrb[0].mxu0 %v4871
  %v4907 = vpop.f32.mrb[0].mxu0
  %v4908 = vadd.f32 %v4844, %v4907
  %v4909 = vpop.f32.mrb[0].mxu0
  %v4910 = vpop.f32.mrb[0].mxu0
  %v4911 = vpop.f32.mrb[0].mxu0
  %4912 = vdwg.mxu0
  %v4913 = vld [vmem:[%s61] sm:$0xf]
  %v4914 = vld [vmem:[%s61 + $0x4] sm:$0xf]
  %v4915 = vld [vmem:[%s61 + $0x8] sm:$0xf]
  %v4916 = vld [vmem:[%s61 + $0xc] sm:$0xf]
  %v4917 = vld [vmem:[%s61 + $0x10] sm:$0xf]
  %v4918 = vld [vmem:[%s61 + $0x14] sm:$0xf]
  %v4919 = vld [vmem:[%s61 + $0x18] sm:$0xf]
  %v4920 = vld [vmem:[%s61 + $0x1c] sm:$0xf]
  %v4921 = vpack.c.bf16 %v4829, %v4828
  %v4922 = vld [vmem:[%s63] sm:$0x1]
  %v4924 = vlaneseq
  %v4925 = vshrl.u32 %v4924, 7
  %v4926 = vsub.s32 0, %v4925
  %v4927 = vrot.slane %v4922, %v4926
  %v4937 = vunpack.c.l.b16 %v4913
  %v4938 = vunpack.c.l.b16 %v4914
  %v4939 = vunpack.c.l.b16 %v4915
  %v4940 = vunpack.c.l.b16 %v4916
  %v4941 = vunpack.c.l.b16 %v4917
  %v4942 = vunpack.c.l.b16 %v4918
  %v4943 = vunpack.c.l.b16 %v4919
  %v4944 = vunpack.c.l.b16 %v4920
  %v4945 = vpack.c.b16 %v4938, %v4937
  %v4946 = vpack.c.b16 %v4940, %v4939
  %v4947 = vpack.c.b16 %v4942, %v4941
  %v4948 = vpack.c.b16 %v4944, %v4943
  %v4954 = vsel %vm699, %v4921, 0
  %4956 = vmatprep.subr.bf16.mxu0 0
  %4957 = vmatpush1.bf16.msra.mxu0 %v4945
  %4958 = vmatprep.subr.bf16.mxu0 0
  %4959 = vmatpush1.bf16.msra.mxu0 %v4946
  %4960 = vmatprep.subr.bf16.mxu0 0
  %4961 = vmatpush1.bf16.msra.mxu0 %v4947
  %4962 = vmatprep.subr.bf16.mxu0 0
  %4963 = vmatpush1.bf16.msra.mxu0 %v4948
  %4964 = vmatprep.subr.bf16.mxu0 0
  %4965 = vmatpush1.bf16.msra.mxu0 0
  %4966 = vmatprep.subr.bf16.mxu0 0
  %4967 = vmatpush1.bf16.msra.mxu0 0
  %4968 = vmatprep.subr.bf16.mxu0 0
  %4969 = vmatpush1.bf16.msra.mxu0 0
  %4970 = vmatprep.subr.bf16.mxu0 0
  %4971 = vmatpush1.bf16.msra.mxu0 0
  %4972 = vmatprep.subr.bf16.mxu0 0
  %4973 = vmatpush1.bf16.msra.mxu0 0
  %4974 = vmatprep.subr.bf16.mxu0 0
  %4975 = vmatpush1.bf16.msra.mxu0 0
  %4976 = vmatprep.subr.bf16.mxu0 0
  %4977 = vmatpush1.bf16.msra.mxu0 0
  %4978 = vmatprep.subr.bf16.mxu0 0
  %4979 = vmatpush1.bf16.msra.mxu0 0
  %4980 = vmatprep.subr.bf16.mxu0 0
  %4981 = vmatpush1.bf16.msra.mxu0 0
  %4982 = vmatprep.subr.bf16.mxu0 0
  %4983 = vmatpush1.bf16.msra.mxu0 0
  %4984 = vmatprep.subr.bf16.mxu0 0
  %4985 = vmatpush1.bf16.msra.mxu0 0
  %4986 = vmatprep.subr.bf16.mxu0 0
  %4987 = vmatpush1.bf16.msra.mxu0 0
  %4988 = vmatprep.mubr.bf16.mxu0 0
  %4989 = vmatmul.mubr.bf16.gmra.mrb[0].mxu0 %v4954
  %v4990 = vpop.f32.mrb[0].mxu0
  %v4991 = vadd.f32 %v4927, %v4990
  %v4992 = vpop.f32.mrb[0].mxu0
  %v4993 = vpop.f32.mrb[0].mxu0
  %v4994 = vadd.f32 %v4927, %v4993
  %v4995 = vpop.f32.mrb[0].mxu0
  %4996 = vdwg.mxu0
  %v4997 = vld [vmem:[%s65] sm:$0xf]
  %v4998 = vld [vmem:[%s65 + $0x4] sm:$0xf]
  %v4999 = vld [vmem:[%s65 + $0x8] sm:$0xf]
  %v5000 = vld [vmem:[%s65 + $0xc] sm:$0xf]
  %v5001 = vld [vmem:[%s65 + $0x10] sm:$0xf]
  %v5002 = vld [vmem:[%s65 + $0x14] sm:$0xf]
  %v5003 = vld [vmem:[%s65 + $0x18] sm:$0xf]
  %v5004 = vld [vmem:[%s65 + $0x1c] sm:$0xf]
  %v5005 = vld [vmem:[%s67] sm:$0x1]
  %v5007 = vlaneseq
  %v5008 = vshrl.u32 %v5007, 7
  %v5009 = vsub.s32 0, %v5008
  %v5010 = vrot.slane %v5005, %v5009
  %v5020 = vunpack.c.l.b16 %v4997
  %v5021 = vunpack.c.l.b16 %v4998
  %v5022 = vunpack.c.l.b16 %v4999
  %v5023 = vunpack.c.l.b16 %v5000
  %v5024 = vunpack.c.l.b16 %v5001
  %v5025 = vunpack.c.l.b16 %v5002
  %v5026 = vunpack.c.l.b16 %v5003
  %v5027 = vunpack.c.l.b16 %v5004
  %v5028 = vpack.c.b16 %v5021, %v5020
  %v5029 = vpack.c.b16 %v5023, %v5022
  %v5030 = vpack.c.b16 %v5025, %v5024
  %v5031 = vpack.c.b16 %v5027, %v5026
  %5036 = vmatprep.subr.bf16.mxu0 0
  %5037 = vmatpush1.bf16.msra.mxu0 %v5028
  %5038 = vmatprep.subr.bf16.mxu0 0
  %5039 = vmatpush1.bf16.msra.mxu0 %v5029
  %5040 = vmatprep.subr.bf16.mxu0 0
  %5041 = vmatpush1.bf16.msra.mxu0 %v5030
  %5042 = vmatprep.subr.bf16.mxu0 0
  %5043 = vmatpush1.bf16.msra.mxu0 %v5031
  %5044 = vmatprep.subr.bf16.mxu0 0
  %5045 = vmatpush1.bf16.msra.mxu0 0
  %5046 = vmatprep.subr.bf16.mxu0 0
  %5047 = vmatpush1.bf16.msra.mxu0 0
  %5048 = vmatprep.subr.bf16.mxu0 0
  %5049 = vmatpush1.bf16.msra.mxu0 0
  %5050 = vmatprep.subr.bf16.mxu0 0
  %5051 = vmatpush1.bf16.msra.mxu0 0
  %5052 = vmatprep.subr.bf16.mxu0 0
  %5053 = vmatpush1.bf16.msra.mxu0 0
  %5054 = vmatprep.subr.bf16.mxu0 0
  %5055 = vmatpush1.bf16.msra.mxu0 0
  %5056 = vmatprep.subr.bf16.mxu0 0
  %5057 = vmatpush1.bf16.msra.mxu0 0
  %5058 = vmatprep.subr.bf16.mxu0 0
  %5059 = vmatpush1.bf16.msra.mxu0 0
  %5060 = vmatprep.subr.bf16.mxu0 0
  %5061 = vmatpush1.bf16.msra.mxu0 0
  %5062 = vmatprep.subr.bf16.mxu0 0
  %5063 = vmatpush1.bf16.msra.mxu0 0
  %5064 = vmatprep.subr.bf16.mxu0 0
  %5065 = vmatpush1.bf16.msra.mxu0 0
  %5066 = vmatprep.subr.bf16.mxu0 0
  %5067 = vmatpush1.bf16.msra.mxu0 0
  %5068 = vmatprep.mubr.bf16.mxu0 0
  %5069 = vmatmul.mubr.bf16.gmra.mrb[0].mxu0 %v4954
  %v5070 = vpop.f32.mrb[0].mxu0
  %v5071 = vadd.f32 %v5010, %v5070
  %v5072 = vpop.f32.mrb[0].mxu0
  %v5073 = vpop.f32.mrb[0].mxu0
  %v5074 = vadd.f32 %v5010, %v5073
  %v5075 = vpop.f32.mrb[0].mxu0
  %5076 = vdwg.mxu0
  %v5077 = vpack.c.bf16 %v4908, %v4908
  %v5078 = vpack.c.bf16 %v4994, %v4991
  %v5080 = vsel %vm699, %v5077, 0
  %v5083 = vsel %vm699, %v5078, 0
  %5085 = vmatprep.subr.bf16.mxu0 0
  %5086 = vmatpush1.bf16.xpose.msra.mxu0 %v5083
  %5087 = vmatprep.subr.bf16.mxu0 0
  %5088 = vmatpush1.bf16.xpose.msra.mxu0 0
  %5089 = vmatprep.subr.bf16.mxu0 0
  %5090 = vmatpush1.bf16.xpose.msra.mxu0 0
  %5091 = vmatprep.subr.bf16.mxu0 0
  %5092 = vmatpush1.bf16.xpose.msra.mxu0 0
  %5093 = vmatprep.subr.bf16.mxu0 0
  %5094 = vmatpush1.bf16.xpose.msra.mxu0 0
  %5095 = vmatprep.subr.bf16.mxu0 0
  %5096 = vmatpush1.bf16.xpose.msra.mxu0 0
  %5097 = vmatprep.subr.bf16.mxu0 0
  %5098 = vmatpush1.bf16.xpose.msra.mxu0 0
  %5099 = vmatprep.subr.bf16.mxu0 0
  %5100 = vmatpush1.bf16.xpose.msra.mxu0 0
  %5101 = vmatprep.subr.bf16.mxu0 0
  %5102 = vmatpush1.bf16.xpose.msra.mxu0 0
  %5103 = vmatprep.subr.bf16.mxu0 0
  %5104 = vmatpush1.bf16.xpose.msra.mxu0 0
  %5105 = vmatprep.subr.bf16.mxu0 0
  %5106 = vmatpush1.bf16.xpose.msra.mxu0 0
  %5107 = vmatprep.subr.bf16.mxu0 0
  %5108 = vmatpush1.bf16.xpose.msra.mxu0 0
  %5109 = vmatprep.subr.bf16.mxu0 0
  %5110 = vmatpush1.bf16.xpose.msra.mxu0 0
  %5111 = vmatprep.subr.bf16.mxu0 0
  %5112 = vmatpush1.bf16.xpose.msra.mxu0 0
  %5113 = vmatprep.subr.bf16.mxu0 0
  %5114 = vmatpush1.bf16.xpose.msra.mxu0 0
  %5115 = vmatprep.subr.bf16.mxu0 0
  %5116 = vmatpush1.bf16.xpose.msra.mxu0 0
  %5117 = vmatprep.mubr.bf16.mxu0 0
  %5118 = vmatmul.mubr.bf16.gmra.mrb[0].mxu0 %v5080
  %v5119 = vpop.f32.mrb[0].mxu0
  %v5120 = vadd.f32 0.0, %v5119
  %v5121 = vpop.f32.mrb[0].mxu0
  %v5122 = vpop.f32.mrb[0].mxu0
  %v5123 = vpop.f32.mrb[0].mxu0
  %5124 = vdwg.mxu0
  %v5125 = vmul.f32 %v5120, 0.125
  %v5126 = vld [vmem:[%s11] sm:$0xff]
  %v5127 = vadd.f32 %v5125, %v5126
  %v5128 = vsel %vm971, %v5127, -inf
  %5129 = vmax.xlane.f32.xlu0 %v5128
  %v5130 = vpop.xlane.xlu0 %5129
  %v5131 = vsub.f32 %v5127, %v5130
  %v5132 = vmul.f32 %v5131, 1.442695
  %v5133 = vpow.pop %v5132
  %v5134 = vsel %vm971, %v5133, 0.0
  %5135 = vadd.xlane.f32.xlu0 %v5134
  %v5136 = vpop.xlane.xlu0 %5135
  %v5137 = vrcp.pop %v5136
  %v5138 = vmul.f32 %v5133, %v5137
  %v5139 = vpack.c.bf16 %v5138, %v5138
  %v5140 = vpack.c.bf16 %v5074, %v5071
  %v5142 = vsel %vm971, %v5139, 0
  %5144 = vmatprep.subr.bf16.mxu0 0
  %5145 = vmatpush1.bf16.msra.mxu0 %v5140
  %5146 = vmatprep.subr.bf16.mxu0 0
  %5147 = vmatpush1.bf16.msra.mxu0 0
  %5148 = vmatprep.subr.bf16.mxu0 0
  %5149 = vmatpush1.bf16.msra.mxu0 0
  %5150 = vmatprep.subr.bf16.mxu0 0
  %5151 = vmatpush1.bf16.msra.mxu0 0
  %5152 = vmatprep.subr.bf16.mxu0 0
  %5153 = vmatpush1.bf16.msra.mxu0 0
  %5154 = vmatprep.subr.bf16.mxu0 0
  %5155 = vmatpush1.bf16.msra.mxu0 0
  %5156 = vmatprep.subr.bf16.mxu0 0
  %5157 = vmatpush1.bf16.msra.mxu0 0
  %5158 = vmatprep.subr.bf16.mxu0 0
  %5159 = vmatpush1.bf16.msra.mxu0 0
  %5160 = vmatprep.subr.bf16.mxu0 0
  %5161 = vmatpush1.bf16.msra.mxu0 0
  %5162 = vmatprep.subr.bf16.mxu0 0
  %5163 = vmatpush1.bf16.msra.mxu0 0
  %5164 = vmatprep.subr.bf16.mxu0 0
  %5165 = vmatpush1.bf16.msra.mxu0 0
  %5166 = vmatprep.subr.bf16.mxu0 0
  %5167 = vmatpush1.bf16.msra.mxu0 0
  %5168 = vmatprep.subr.bf16.mxu0 0
  %5169 = vmatpush1.bf16.msra.mxu0 0
  %5170 = vmatprep.subr.bf16.mxu0 0
  %5171 = vmatpush1.bf16.msra.mxu0 0
  %5172 = vmatprep.subr.bf16.mxu0 0
  %5173 = vmatpush1.bf16.msra.mxu0 0
  %5174 = vmatprep.subr.bf16.mxu0 0
  %5175 = vmatpush1.bf16.msra.mxu0 0
  %5176 = vmatprep.mubr.bf16.mxu0 0
  %5177 = vmatmul.mubr.bf16.gmra.mrb[0].mxu0 %v5142
  %v5178 = vpop.f32.mrb[0].mxu0
  %v5179 = vadd.f32 0.0, %v5178
  %v5180 = vpop.f32.mrb[0].mxu0
  %v5181 = vpop.f32.mrb[0].mxu0
  %v5182 = vpop.f32.mrb[0].mxu0
  %5183 = vdwg.mxu0
  %v5184 = vadd.f32 %v4677, %v5179
  %v5185 = vld [vmem:[%s7] sm:$0x1]
  %v5186 = vpack.c.bf16 %v5184, %v5184
  %v5188 = vsel %vm1020, %v5185, 0
  %v5191 = vsel %vm1037, %v5186, 0
  %5193 = vmatprep.subr.bf16.mxu0 0
  %5194 = vmatpush1.bf16.msra.mxu0 %v5191
  %5195 = vmatprep.subr.bf16.mxu0 0
  %5196 = vmatpush1.bf16.msra.mxu0 0
  %5197 = vmatprep.subr.bf16.mxu0 0
  %5198 = vmatpush1.bf16.msra.mxu0 0
  %5199 = vmatprep.subr.bf16.mxu0 0
  %5200 = vmatpush1.bf16.msra.mxu0 0
  %5201 = vmatprep.subr.bf16.mxu0 0
  %5202 = vmatpush1.bf16.msra.mxu0 0
  %5203 = vmatprep.subr.bf16.mxu0 0
  %5204 = vmatpush1.bf16.msra.mxu0 0
  %5205 = vmatprep.subr.bf16.mxu0 0
  %5206 = vmatpush1.bf16.msra.mxu0 0
  %5207 = vmatprep.subr.bf16.mxu0 0
  %5208 = vmatpush1.bf16.msra.mxu0 0
  %5209 = vmatprep.subr.bf16.mxu0 0
  %5210 = vmatpush1.bf16.msra.mxu0 0
  %5211 = vmatprep.subr.bf16.mxu0 0
  %5212 = vmatpush1.bf16.msra.mxu0 0
  %5213 = vmatprep.subr.bf16.mxu0 0
  %5214 = vmatpush1.bf16.msra.mxu0 0
  %5215 = vmatprep.subr.bf16.mxu0 0
  %5216 = vmatpush1.bf16.msra.mxu0 0
  %5217 = vmatprep.subr.bf16.mxu0 0
  %5218 = vmatpush1.bf16.msra.mxu0 0
  %5219 = vmatprep.subr.bf16.mxu0 0
  %5220 = vmatpush1.bf16.msra.mxu0 0
  %5221 = vmatprep.subr.bf16.mxu0 0
  %5222 = vmatpush1.bf16.msra.mxu0 0
  %5223 = vmatprep.subr.bf16.mxu0 0
  %5224 = vmatpush1.bf16.msra.mxu0 0
  %5225 = vmatprep.mubr.bf16.mxu0 0
  %5226 = vmatmul.mubr.bf16.gmra.mrb[0].mxu0 %v5188
  %v5227 = vpop.f32.mrb[0].mxu0
  %v5228 = vadd.f32 0.0, %v5227
  %v5229 = vpop.f32.mrb[0].mxu0
  %v5230 = vpop.f32.mrb[0].mxu0
  %v5231 = vpop.f32.mrb[0].mxu0
  %5232 = vdwg.mxu0
  %v5233 = vld [vmem:[%s69] sm:$0xf]
  %v5234 = vld [vmem:[%s69 + $0x4] sm:$0xf]
  %v5235 = vld [vmem:[%s69 + $0x8] sm:$0xf]
  %v5236 = vld [vmem:[%s69 + $0xc] sm:$0xf]
  %v5237 = vld [vmem:[%s69 + $0x10] sm:$0xf]
  %v5238 = vld [vmem:[%s69 + $0x14] sm:$0xf]
  %v5239 = vld [vmem:[%s69 + $0x18] sm:$0xf]
  %v5240 = vld [vmem:[%s69 + $0x1c] sm:$0xf]
  %v5241 = vpack.c.bf16 %v5228, %v5228
  %v5242 = vld [vmem:[%s71] sm:$0x1]
  %v5244 = vlaneseq
  %v5245 = vshrl.u32 %v5244, 7
  %v5246 = vsub.s32 0, %v5245
  %v5247 = vrot.slane %v5242, %v5246
  %v5257 = vunpack.c.l.b16 %v5233
  %v5258 = vunpack.c.l.b16 %v5234
  %v5259 = vunpack.c.l.b16 %v5235
  %v5260 = vunpack.c.l.b16 %v5236
  %v5261 = vunpack.c.l.b16 %v5237
  %v5262 = vunpack.c.l.b16 %v5238
  %v5263 = vunpack.c.l.b16 %v5239
  %v5264 = vunpack.c.l.b16 %v5240
  %v5265 = vpack.c.b16 %v5258, %v5257
  %v5266 = vpack.c.b16 %v5260, %v5259
  %v5267 = vpack.c.b16 %v5262, %v5261
  %v5268 = vpack.c.b16 %v5264, %v5263
  %v5274 = vsel %vm699, %v5241, 0
  %5276 = vmatprep.subr.bf16.mxu0 0
  %5277 = vmatpush1.bf16.msra.mxu0 %v5265
  %5278 = vmatprep.subr.bf16.mxu0 0
  %5279 = vmatpush1.bf16.msra.mxu0 %v5266
  %5280 = vmatprep.subr.bf16.mxu0 0
  %5281 = vmatpush1.bf16.msra.mxu0 %v5267
  %5282 = vmatprep.subr.bf16.mxu0 0
  %5283 = vmatpush1.bf16.msra.mxu0 %v5268
  %5284 = vmatprep.subr.bf16.mxu0 0
  %5285 = vmatpush1.bf16.msra.mxu0 0
  %5286 = vmatprep.subr.bf16.mxu0 0
  %5287 = vmatpush1.bf16.msra.mxu0 0
  %5288 = vmatprep.subr.bf16.mxu0 0
  %5289 = vmatpush1.bf16.msra.mxu0 0
  %5290 = vmatprep.subr.bf16.mxu0 0
  %5291 = vmatpush1.bf16.msra.mxu0 0
  %5292 = vmatprep.subr.bf16.mxu0 0
  %5293 = vmatpush1.bf16.msra.mxu0 0
  %5294 = vmatprep.subr.bf16.mxu0 0
  %5295 = vmatpush1.bf16.msra.mxu0 0
  %5296 = vmatprep.subr.bf16.mxu0 0
  %5297 = vmatpush1.bf16.msra.mxu0 0
  %5298 = vmatprep.subr.bf16.mxu0 0
  %5299 = vmatpush1.bf16.msra.mxu0 0
  %5300 = vmatprep.subr.bf16.mxu0 0
  %5301 = vmatpush1.bf16.msra.mxu0 0
  %5302 = vmatprep.subr.bf16.mxu0 0
  %5303 = vmatpush1.bf16.msra.mxu0 0
  %5304 = vmatprep.subr.bf16.mxu0 0
  %5305 = vmatpush1.bf16.msra.mxu0 0
  %5306 = vmatprep.subr.bf16.mxu0 0
  %5307 = vmatpush1.bf16.msra.mxu0 0
  %5308 = vmatprep.mubr.bf16.mxu0 0
  %5309 = vmatmul.mubr.bf16.gmra.mrb[0].mxu0 %v5274
  %v5310 = vpop.f32.mrb[0].mxu0
  %v5311 = vadd.f32 %v5247, %v5310
  %v5312 = vpop.f32.mrb[0].mxu0
  %v5313 = vpop.f32.mrb[0].mxu0
  %v5314 = vpop.f32.mrb[0].mxu0
  %5315 = vdwg.mxu0
  %v5316 = vmax.f32 %v5311, 0.0
  %v5317 = vld [vmem:[%s73] sm:$0xf]
  %v5318 = vld [vmem:[%s73 + $0x4] sm:$0xf]
  %v5319 = vld [vmem:[%s73 + $0x8] sm:$0xf]
  %v5320 = vld [vmem:[%s73 + $0xc] sm:$0xf]
  %v5321 = vld [vmem:[%s73 + $0x10] sm:$0xf]
  %v5322 = vld [vmem:[%s73 + $0x14] sm:$0xf]
  %v5323 = vld [vmem:[%s73 + $0x18] sm:$0xf]
  %v5324 = vld [vmem:[%s73 + $0x1c] sm:$0xf]
  %v5325 = vpack.c.bf16 %v5316, %v5316
  %v5326 = vld [vmem:[%s75] sm:$0x1]
  %v5328 = vlaneseq
  %v5329 = vshrl.u32 %v5328, 7
  %v5330 = vsub.s32 0, %v5329
  %v5331 = vrot.slane %v5326, %v5330
  %v5341 = vunpack.c.l.b16 %v5317
  %v5342 = vunpack.c.l.b16 %v5318
  %v5343 = vunpack.c.l.b16 %v5319
  %v5344 = vunpack.c.l.b16 %v5320
  %v5345 = vunpack.c.l.b16 %v5321
  %v5346 = vunpack.c.l.b16 %v5322
  %v5347 = vunpack.c.l.b16 %v5323
  %v5348 = vunpack.c.l.b16 %v5324
  %v5349 = vpack.c.b16 %v5342, %v5341
  %v5350 = vpack.c.b16 %v5344, %v5343
  %v5351 = vpack.c.b16 %v5346, %v5345
  %v5352 = vpack.c.b16 %v5348, %v5347
  %v5358 = vsel %vm699, %v5325, 0
  %5360 = vmatprep.subr.bf16.mxu0 0
  %5361 = vmatpush1.bf16.msra.mxu0 %v5349
  %5362 = vmatprep.subr.bf16.mxu0 0
  %5363 = vmatpush1.bf16.msra.mxu0 %v5350
  %5364 = vmatprep.subr.bf16.mxu0 0
  %5365 = vmatpush1.bf16.msra.mxu0 %v5351
  %5366 = vmatprep.subr.bf16.mxu0 0
  %5367 = vmatpush1.bf16.msra.mxu0 %v5352
  %5368 = vmatprep.subr.bf16.mxu0 0
  %5369 = vmatpush1.bf16.msra.mxu0 0
  %5370 = vmatprep.subr.bf16.mxu0 0
  %5371 = vmatpush1.bf16.msra.mxu0 0
  %5372 = vmatprep.subr.bf16.mxu0 0
  %5373 = vmatpush1.bf16.msra.mxu0 0
  %5374 = vmatprep.subr.bf16.mxu0 0
  %5375 = vmatpush1.bf16.msra.mxu0 0
  %5376 = vmatprep.subr.bf16.mxu0 0
  %5377 = vmatpush1.bf16.msra.mxu0 0
  %5378 = vmatprep.subr.bf16.mxu0 0
  %5379 = vmatpush1.bf16.msra.mxu0 0
  %5380 = vmatprep.subr.bf16.mxu0 0
  %5381 = vmatpush1.bf16.msra.mxu0 0
  %5382 = vmatprep.subr.bf16.mxu0 0
  %5383 = vmatpush1.bf16.msra.mxu0 0
  %5384 = vmatprep.subr.bf16.mxu0 0
  %5385 = vmatpush1.bf16.msra.mxu0 0
  %5386 = vmatprep.subr.bf16.mxu0 0
  %5387 = vmatpush1.bf16.msra.mxu0 0
  %5388 = vmatprep.subr.bf16.mxu0 0
  %5389 = vmatpush1.bf16.msra.mxu0 0
  %5390 = vmatprep.subr.bf16.mxu0 0
  %5391 = vmatpush1.bf16.msra.mxu0 0
  %5392 = vmatprep.mubr.bf16.mxu0 0
  %5393 = vmatmul.mubr.bf16.gmra.mrb[0].mxu0 %v5358
  %v5394 = vpop.f32.mrb[0].mxu0
  %v5395 = vadd.f32 %v5331, %v5394
  %v5396 = vpop.f32.mrb[0].mxu0
  %v5397 = vpop.f32.mrb[0].mxu0
  %v5398 = vpop.f32.mrb[0].mxu0
  %5399 = vdwg.mxu0
  %5400 = vst [vmem:[%s77] sm:$0x3] %v5395
  // Predicated region
  $region154: #{rgvit_forward.1} parent=0 // pred_check
    _
  $region155: #{rgvit_forward.1} parent=0 // pred_check_branch
    %5402 = sbr.rel (0) target = $region157
  $region156: #{rgvit_forward.1} parent=0 // pred_region
    _
  $region157: #{rgvit_forward.1} parent=0 // pred_fallthru
    _
  // Predicated region
  $region158: #{rgvit_forward.1} parent=0 // pred_check
    _
  $region159: #{rgvit_forward.1} parent=0 // pred_check_branch
    %5404 = sbr.rel (0) target = $region161
  $region160: #{rgvit_forward.1} parent=0 // pred_region
    _
  $region161: #{rgvit_forward.1} parent=0 // pred_fallthru
    _

</llo_original>
